<compile_context>
chip_gen: v7x
topology: tpu7x:2x2x1
jax: 0.10.0
libtpu: 0.0.40
codegen_flags: <defaults>
</compile_context>

<pallas_src>
import functools

import jax
import jax.numpy as jnp
from jax.experimental import pallas as pl
from jax.experimental.pallas import tpu as pltpu

F32 = jnp.float32
EPS = 1e-5


def _vmem_specs(n):
    return [pl.BlockSpec(memory_space=pltpu.MemorySpace.VMEM)] * n


def _round128(n):
    return ((n + 127) // 128) * 128


# --------------------------- Pallas kernels ---------------------------------

def _packed_embed_kernel(x_ref, w_ref, b_ref, g_ref, beta_ref, *o_refs, widths, seg, eps):
    """Block-diagonal linear + per-segment LayerNorm + relu; one output ref per segment."""
    y = jnp.dot(x_ref[...], w_ref[...], preferred_element_type=jnp.float32) + b_ref[...]
    for i, (o_ref, wd) in enumerate(zip(o_refs, widths)):
        lo = seg * i
        ys = y[:, lo:lo + wd]
        gs = g_ref[:, lo:lo + wd]
        bs = beta_ref[:, lo:lo + wd]
        mu = jnp.mean(ys, axis=-1, keepdims=True)
        var = jnp.mean((ys - mu) ** 2, axis=-1, keepdims=True)
        o_ref[...] = jnp.maximum((ys - mu) * jax.lax.rsqrt(var + eps) * gs + bs, 0.0)


def packed_embed(x, w, b, g, beta, widths, seg):
    n = x.shape[0]
    kern = functools.partial(_packed_embed_kernel, widths=tuple(widths), seg=seg, eps=EPS)
    return pl.pallas_call(
        kern,
        out_shape=tuple(jax.ShapeDtypeStruct((n, wd), F32) for wd in widths),
        in_specs=_vmem_specs(5),
        out_specs=tuple(pl.BlockSpec(memory_space=pltpu.MemorySpace.VMEM) for _ in widths),
    )(x, w, b, g, beta)


def _lin_ln_relu_kernel(x_ref, w_ref, b_ref, g_ref, beta_ref, o_ref, *, eps):
    y = jnp.dot(x_ref[...], w_ref[...], preferred_element_type=jnp.float32) + b_ref[...]
    mu = jnp.mean(y, axis=-1, keepdims=True)
    var = jnp.mean((y - mu) ** 2, axis=-1, keepdims=True)
    o_ref[...] = jnp.maximum((y - mu) * jax.lax.rsqrt(var + eps) * g_ref[...] + beta_ref[...], 0.0)


def linear_ln_relu(x2, w, b, g, beta):
    n, dout = x2.shape[0], w.shape[1]
    return pl.pallas_call(
        functools.partial(_lin_ln_relu_kernel, eps=EPS),
        out_shape=jax.ShapeDtypeStruct((n, dout), F32),
        in_specs=_vmem_specs(5),
        out_specs=pl.BlockSpec(memory_space=pltpu.MemorySpace.VMEM),
    )(x2, w, b.reshape(1, -1), g.reshape(1, -1), beta.reshape(1, -1))


def _lin_kernel(x_ref, w_ref, b_ref, o_ref):
    o_ref[...] = jnp.dot(x_ref[...], w_ref[...], preferred_element_type=jnp.float32) + b_ref[...]


def linear_bias(x2, w, b):
    n, dout = x2.shape[0], w.shape[1]
    return pl.pallas_call(
        _lin_kernel,
        out_shape=jax.ShapeDtypeStruct((n, dout), F32),
        in_specs=_vmem_specs(3),
        out_specs=pl.BlockSpec(memory_space=pltpu.MemorySpace.VMEM),
    )(x2, w, b.reshape(1, -1))


def _cat_gates_kernel(x_ref, wc_ref, bc_ref, g_ref, beta_ref, wih_ref, bl_ref, o_ref, *, eps):
    """gates_x = relu(LN(x @ W_cat + b_cat)) @ W_ih + (b_ih + b_hh); LSTM input proj hoisted."""
    y = jnp.dot(x_ref[...], wc_ref[...], preferred_element_type=jnp.float32) + bc_ref[...]
    mu = jnp.mean(y, axis=-1, keepdims=True)
    var = jnp.mean((y - mu) ** 2, axis=-1, keepdims=True)
    y = jnp.maximum((y - mu) * jax.lax.rsqrt(var + eps) * g_ref[...] + beta_ref[...], 0.0)
    o_ref[...] = jnp.dot(y, wih_ref[...], preferred_element_type=jnp.float32) + bl_ref[...]


def cat_gates(x2, wcat, bcat, g, beta, wih, b_lstm):
    n, gates = x2.shape[0], wih.shape[1]
    return pl.pallas_call(
        functools.partial(_cat_gates_kernel, eps=EPS),
        out_shape=jax.ShapeDtypeStruct((n, gates), F32),
        in_specs=_vmem_specs(7),
        out_specs=pl.BlockSpec(memory_space=pltpu.MemorySpace.VMEM),
    )(x2, wcat, bcat.reshape(1, -1), g.reshape(1, -1), beta.reshape(1, -1),
      wih, b_lstm.reshape(1, -1))


def _lstm_kernel(gx_ref, h0_ref, c0_ref, whh_ref, out_ref, hT_ref, cT_ref, *, hidden):
    """Single-program whole-sequence LSTM; only h @ W_hh per step (x @ W_ih precomputed)."""
    h = h0_ref[...]
    c = c0_ref[...]
    whh = whh_ref[...]
    for t in range(gx_ref.shape[0]):            # static horizon, fully unrolled
        gates = gx_ref[t] + jnp.dot(h, whh, preferred_element_type=jnp.float32)
        i = jax.nn.sigmoid(gates[:, 0 * hidden:1 * hidden])
        f = jax.nn.sigmoid(gates[:, 1 * hidden:2 * hidden])
        g = jnp.tanh(gates[:, 2 * hidden:3 * hidden])
        o = jax.nn.sigmoid(gates[:, 3 * hidden:4 * hidden])
        c = f * c + i * g
        h = o * jnp.tanh(c)
        out_ref[t] = h
    hT_ref[...] = h
    cT_ref[...] = c


def lstm_fused(gates_x, h0, c0, whh):
    H, B, G = gates_x.shape
    D = G // 4
    return pl.pallas_call(
        functools.partial(_lstm_kernel, hidden=D),
        out_shape=(jax.ShapeDtypeStruct((H, B, D), F32),
                   jax.ShapeDtypeStruct((B, D), F32),
                   jax.ShapeDtypeStruct((B, D), F32)),
        in_specs=_vmem_specs(4),
        out_specs=tuple(pl.BlockSpec(memory_space=pltpu.MemorySpace.VMEM) for _ in range(3)),
    )(gates_x, h0, c0, whh)


def _heads_kernel(x_ref, w1_ref, b1_ref, g1_ref, beta1_ref,
                  wa2_ref, ba2_ref, wm2_ref, bm2_ref, wv2_ref, avail_ref,
                  prob_ref, probm_ref, v_ref, *, seg, width, eps):
    """Fused pi_a / pi_m / v heads: packed first matmul, per-segment LN+relu, second
    matmuls, masked softmax(avail) for actions, softmax for moves, raw value."""
    y = jnp.dot(x_ref[...], w1_ref[...], preferred_element_type=jnp.float32) + b1_ref[...]
    hs = []
    for i in range(3):
        lo = seg * i
        ys = y[:, lo:lo + width]
        gs = g1_ref[:, lo:lo + width]
        bs = beta1_ref[:, lo:lo + width]
        mu = jnp.mean(ys, axis=-1, keepdims=True)
        var = jnp.mean((ys - mu) ** 2, axis=-1, keepdims=True)
        hs.append(jnp.maximum((ys - mu) * jax.lax.rsqrt(var + eps) * gs + bs, 0.0))
    a2 = jnp.dot(hs[0], wa2_ref[...], preferred_element_type=jnp.float32) + ba2_ref[...]
    m2 = jnp.dot(hs[1], wm2_ref[...], preferred_element_type=jnp.float32) + bm2_ref[...]
    v = jnp.dot(hs[2], wv2_ref[...], preferred_element_type=jnp.float32)

    logit = a2 + (avail_ref[...] - 1.0) * 1e7
    logit = logit - jnp.max(logit, axis=-1, keepdims=True)
    ea = jnp.exp(logit)
    prob_ref[...] = ea / jnp.sum(ea, axis=-1, keepdims=True)

    m2 = m2 - jnp.max(m2, axis=-1, keepdims=True)
    em = jnp.exp(m2)
    probm_ref[...] = em / jnp.sum(em, axis=-1, keepdims=True)

    v_ref[...] = v


def heads_fused(x2, w1, b1, g1, bt1, wa2, ba2, wm2, bm2, wv2, avail, seg, width):
    n = x2.shape[0]
    na, nm = wa2.shape[1], wm2.shape[1]
    kern = functools.partial(_heads_kernel, seg=seg, width=width, eps=EPS)
    return pl.pallas_call(
        kern,
        out_shape=(jax.ShapeDtypeStruct((n, na), F32),
                   jax.ShapeDtypeStruct((n, nm), F32),
                   jax.ShapeDtypeStruct((n, 1), F32)),
        in_specs=_vmem_specs(11),
        out_specs=tuple(pl.BlockSpec(memory_space=pltpu.MemorySpace.VMEM) for _ in range(3)),
    )(x2, w1, b1, g1, bt1, wa2, ba2.reshape(1, -1), wm2, bm2.reshape(1, -1), wv2, avail)


# ------------------------------ param packing (tiny JAX ops) ------------------

def _pack_blockdiag(fcs, lns):
    """Pack k small (din_i -> dout_i) Linear+LayerNorm layers into one block-diagonal
    weight with 128-aligned output segments."""
    dins = [fc['w'].shape[0] for fc in fcs]
    widths = [fc['w'].shape[1] for fc in fcs]
    seg = _round128(max(widths))
    k = len(fcs)
    W = jnp.zeros((sum(dins), seg * k), F32)
    b = jnp.zeros((1, seg * k), F32)
    g = jnp.ones((1, seg * k), F32)
    beta = jnp.zeros((1, seg * k), F32)
    r = 0
    for i, (fc, ln) in enumerate(zip(fcs, lns)):
        din, wd = dins[i], widths[i]
        lo = seg * i
        W = W.at[r:r + din, lo:lo + wd].set(fc['w'])
        b = b.at[:, lo:lo + wd].set(fc['b'][None, :])
        g = g.at[:, lo:lo + wd].set(ln['g'][None, :])
        beta = beta.at[:, lo:lo + wd].set(ln['b'][None, :])
        r += din
    return W, b, g, beta, widths, seg


def _pack_heads(p):
    fcs = [p['fc_pi_a1'], p['fc_pi_m1'], p['fc_v1']]
    lns = [p['ln_pi_a1'], p['ln_pi_m1'], p['ln_v1']]
    width = fcs[0]['w'].shape[1]
    seg = _round128(width)
    din = fcs[0]['w'].shape[0]
    w1 = jnp.zeros((din, seg * 3), F32)
    b1 = jnp.zeros((1, seg * 3), F32)
    g1 = jnp.ones((1, seg * 3), F32)
    bt1 = jnp.zeros((1, seg * 3), F32)
    for i, (fc, ln) in enumerate(zip(fcs, lns)):
        lo = seg * i
        w1 = w1.at[:, lo:lo + width].set(fc['w'])
        b1 = b1.at[:, lo:lo + width].set(fc['b'][None, :])
        g1 = g1.at[:, lo:lo + width].set(ln['g'][None, :])
        bt1 = bt1.at[:, lo:lo + width].set(ln['b'][None, :])
    return w1, b1, g1, bt1, seg, width


def _aug_ws(ws, as_lin):
    """Fold the query/key halves of the GAT score weight into the projection as 2 extra
    output columns:  [W | W@a_q | W@a_k],  bias [b | b@a_q | b@a_k];  score bias returned."""
    W, b = ws['w'], ws['b']
    a, ba = as_lin['w'], as_lin['b']
    d = W.shape[1]
    aq, ak = a[:d], a[d:]
    Waug = jnp.concatenate([W, W @ aq, W @ ak], axis=1)
    baug = jnp.concatenate([b, b @ aq, b @ ak])
    return Waug, baug, ba[0]


def _gumbel_hard(logits, key):
    # TODO(synk): torch RNG stream not reproducible; gumbel noise drawn via jax.random.
    # Forward value matches F.gumbel_softmax(hard=True); straight-through grad not implemented.
    g = jax.random.gumbel(key, logits.shape, dtype=logits.dtype)
    idx = jnp.argmax(logits + g, axis=-1)
    return jax.nn.one_hot(idx, logits.shape[-1], dtype=logits.dtype)


# ------------------------------ forward ---------------------------------------

def forward(params, state, key):
    p = params
    H, B = state['player_state'].shape[:2]
    n_left = state['left_team_state'].shape[2]
    n_right = state['right_team_state'].shape[2]
    HB = H * B
    D = p['fc_cat']['w'].shape[1]

    # ---- (1) five per-(H,B) vector embeddings in one block-diagonal kernel -----------
    vec_x = jnp.concatenate([
        state['match_situation'].reshape(HB, -1),
        state['player_situation'].reshape(HB, -1),
        state['ball_situation'].reshape(HB, -1),
        state['player_state'].reshape(HB, -1),
        state['ball_state'].reshape(HB, -1)], axis=-1).astype(F32)
    Wv, bv, gv, betav, widths, segv = _pack_blockdiag(
        [p['fc_match'], p['fc_psit'], p['fc_bsit'], p['fc_pstate'], p['fc_bstate']],
        [p['ln_match'], p['ln_psit'], p['ln_bsit'], p['ln_pstate'], p['ln_bstate']])
    match_sit, player_sit, ball_sit, player_emb, ball_emb = packed_embed(
        vec_x, Wv, bv, gv, betav, widths, segv)

    # ---- (2,3) team embeddings: one kernel per shared weight (team rows + closest row)
    left_rows = jnp.concatenate([
        state['left_team_state'].reshape(HB * n_left, -1),
        state['left_closest'].reshape(HB, -1)], axis=0).astype(F32)
    left_all = linear_ln_relu(left_rows, p['fc_left']['w'], p['fc_left']['b'],
                              p['ln_left']['g'], p['ln_left']['b'])
    left_emb = left_all[:HB * n_left].reshape(HB, n_left, -1)
    left_closest_emb = left_all[HB * n_left:]

    right_rows = jnp.concatenate([
        state['right_team_state'].reshape(HB * n_right, -1),
        state['right_closest'].reshape(HB, -1)], axis=0).astype(F32)
    right_all = linear_ln_relu(right_rows, p['fc_right']['w'], p['fc_right']['b'],
                               p['ln_right']['g'], p['ln_right']['b'])
    right_emb = right_all[:HB * n_right].reshape(HB, n_right, -1)
    right_closest_emb = right_all[HB * n_right:]

    # ---- defence attention (ball -> right team), decomposed GAT score ----------------
    dd = p['att1_def_ws']['w'].shape[1]
    Wd, bd, b_as_def = _aug_ws(p['att1_def_ws'], p['att1_def_as'])
    def_rows = jnp.concatenate([ball_emb, right_emb.reshape(HB * n_right, -1)], axis=0)
    def_proj = linear_bias(def_rows, Wd, bd)
    sq_ball = def_proj[:HB, dd:dd + 1]                              # (HB,1)
    def_right = def_proj[HB:].reshape(HB, n_right, dd + 2)
    right_ball_ws1 = def_right[..., :dd]
    sk_right_def = def_right[..., dd + 1]
    score_def = jax.nn.leaky_relu(sq_ball + sk_right_def + b_as_def)
    key, k1 = jax.random.split(key)
    ball_att1 = _gumbel_hard(score_def, k1)
    right_ball_atted = jnp.einsum('bn,bnd->bd', ball_att1, right_ball_ws1)      # (HB,48)

    # ---- attack attention 1: player & every left player vs right team ---------------
    d1 = p['att1_att_ws']['w'].shape[1]
    Wa1, ba1, b_as_a1 = _aug_ws(p['att1_att_ws'], p['att1_att_as'])
    a1_rows = jnp.concatenate([player_emb,
                               right_emb.reshape(HB * n_right, -1),
                               left_emb.reshape(HB * n_left, -1)], axis=0)
    a1_proj = linear_bias(a1_rows, Wa1, ba1)
    pr = a1_proj[:HB]
    player_ws1, sq_player = pr[:, :d1], pr[:, d1:d1 + 1]
    rr = a1_proj[HB:HB + HB * n_right].reshape(HB, n_right, d1 + 2)
    right_player_ws1, sk_right_a1 = rr[..., :d1], rr[..., d1 + 1]
    lr = a1_proj[HB + HB * n_right:].reshape(HB, n_left, d1 + 2)
    left_ws1, sq_left = lr[..., :d1], lr[..., d1]

    # player vs right team (softmax attention)
    score_p = jax.nn.leaky_relu(sq_player + sk_right_a1 + b_as_a1)
    att_p = jax.nn.softmax(score_p, axis=-1)
    right_att1_player = jax.nn.elu(jnp.einsum('bn,bnd->bd', att_p, right_player_ws1))
    player_right_embed = jnp.concatenate([player_ws1, right_att1_player], axis=-1)  # (HB,96)

    # each left player vs right team, preserving the original repeat_interleave pairing:
    # slot j of left-group l maps to right player (l*n_right + j) // n_left
    ridx = (jnp.arange(n_left)[:, None] * n_right + jnp.arange(n_right)[None, :]) // n_left
    sk_pair = sk_right_a1[:, ridx]                                  # (HB,n_left,n_right)
    ws_pair = right_player_ws1[:, ridx, :]                          # (HB,n_left,n_right,48)
    score_l = jax.nn.leaky_relu(sq_left[..., None] + sk_pair + b_as_a1)
    att_l = jax.nn.softmax(score_l, axis=-1)
    right_att1_left = jax.nn.elu(jnp.einsum('blj,bljd->bld', att_l, ws_pair))
    left_right_embed = jnp.concatenate([left_ws1, right_att1_left], axis=-1)    # (HB,10,96)

    # ---- attack attention 2: player vs left team (gumbel-hard) -----------------------
    d2 = p['att2_att_ws']['w'].shape[1]
    Wa2, ba2_, b_as_a2 = _aug_ws(p['att2_att_ws'], p['att2_att_as'])
    a2_rows = jnp.concatenate([player_right_embed,
                               left_right_embed.reshape(HB * n_left, -1)], axis=0)
    a2_proj = linear_bias(a2_rows, Wa2, ba2_)
    sq2 = a2_proj[:HB, d2:d2 + 1]
    l2 = a2_proj[HB:].reshape(HB, n_left, d2 + 2)
    left_ws2, sk2 = l2[..., :d2], l2[..., d2 + 1]
    score2 = jax.nn.leaky_relu(sq2 + sk2 + b_as_a2)
    key, k2 = jax.random.split(key)
    att2 = _gumbel_hard(score2, k2)
    left_player_atted = jnp.einsum('bn,bnd->bd', att2, left_ws2)    # (HB,96)

    # ---- trunk: fc_cat+LN+relu fused with the LSTM input projection ------------------
    cat = jnp.concatenate([match_sit, player_sit, ball_sit, left_closest_emb,
                           right_closest_emb, left_player_atted, right_ball_atted], axis=-1)
    b_lstm = p['lstm']['b_ih'] + p['lstm']['b_hh']
    gates_x = cat_gates(cat, p['fc_cat']['w'], p['fc_cat']['b'],
                        p['ln_cat']['g'], p['ln_cat']['b'],
                        p['lstm']['wih'], b_lstm).reshape(H, B, 4 * D)

    h0 = state['hidden'][0][0]
    c0 = state['hidden'][1][0]
    out, hT, cT = lstm_fused(gates_x, h0, c0, p['lstm']['whh'])

    # ---- fused heads: pi_a / pi_m / v + (masked) softmax in one kernel ---------------
    w1, b1, g1, bt1, segh, widthh = _pack_heads(p)
    prob, prob_m, v = heads_fused(out.reshape(HB, D), w1, b1, g1, bt1,
                                  p['fc_pi_a2']['w'], p['fc_pi_a2']['b'],
                                  p['fc_pi_m2']['w'], p['fc_pi_m2']['b'],
                                  p['fc_v2']['w'],
                                  state['avail'].reshape(HB, -1).astype(F32),
                                  segh, widthh)

    return (prob.reshape(H, B, -1), prob_m.reshape(H, B, -1), v.reshape(H, B, 1),
            (hT[None], cT[None]))


# ------------------------------ params ---------------------------------------

def init_params(key, fd, lstm_size):
    keys = iter(jax.random.split(key, 64))

    def lin(din, dout, bias=True):
        k1, k2 = next(keys), next(keys)
        bound = 1.0 / (din ** 0.5)
        w = jax.random.uniform(k1, (din, dout), F32, -bound, bound)
        b = jax.random.uniform(k2, (dout,), F32, -bound, bound) if bias else None
        return {'w': w, 'b': b}

    def ln(d):
        return {'g': jnp.ones((d,), F32), 'b': jnp.zeros((d,), F32)}

    D = lstm_size
    bnd = 1.0 / (D ** 0.5)
    return {
        'fc_match': lin(fd['match_situation'], 64), 'ln_match': ln(64),
        'fc_psit': lin(fd['player_situation'], 64), 'ln_psit': ln(64),
        'fc_bsit': lin(fd['ball_situation'], 64), 'ln_bsit': ln(64),
        'fc_pstate': lin(fd['player_state'], 48), 'ln_pstate': ln(48),
        'fc_bstate': lin(fd['ball_state'], 48), 'ln_bstate': ln(48),
        'fc_left': lin(fd['left_team_state'], 48), 'ln_left': ln(48),
        'fc_right': lin(fd['right_team_state'], 48), 'ln_right': ln(48),
        'att1_att_ws': lin(48, 48), 'att1_att_as': lin(96, 1),
        'att2_att_ws': lin(96, 96), 'att2_att_as': lin(192, 1),
        'att1_def_ws': lin(48, 48), 'att1_def_as': lin(96, 1),
        'fc_cat': lin(64 * 3 + 48 * 3 + 96, D), 'ln_cat': ln(D),
        'fc_pi_a1': lin(D, 164), 'ln_pi_a1': ln(164), 'fc_pi_a2': lin(164, 12),
        'fc_pi_m1': lin(D, 164), 'ln_pi_m1': ln(164), 'fc_pi_m2': lin(164, 8),
        'fc_v1': lin(D, 164), 'ln_v1': ln(164), 'fc_v2': lin(164, 1, bias=False),
        'lstm': {
            'wih': jax.random.uniform(next(keys), (D, 4 * D), F32, -bnd, bnd),
            'whh': jax.random.uniform(next(keys), (D, 4 * D), F32, -bnd, bnd),
            'b_ih': jax.random.uniform(next(keys), (4 * D,), F32, -bnd, bnd),
            'b_hh': jax.random.uniform(next(keys), (4 * D,), F32, -bnd, bnd),
        },
    }


if __name__ == "__main__":
    fd = {
        'match_situation': 5,
        'player_situation': 6,
        'ball_situation': 9,
        'player_state': 7,
        'ball_state': 11,
        'left_team_state': 7,
        'right_team_state': 7,
    }
    lstm_size = 128
    H, B, n_left, n_right = 8, 2, 10, 11

    root = jax.random.PRNGKey(0)
    kp, kd, kn = jax.random.split(root, 3)
    params = init_params(kp, fd, lstm_size)

    ks = iter(jax.random.split(kd, 16))
    state = {
        'match_situation': jax.random.normal(next(ks), (H, B, fd['match_situation']), F32),
        'player_situation': jax.random.normal(next(ks), (H, B, fd['player_situation']), F32),
        'ball_situation': jax.random.normal(next(ks), (H, B, fd['ball_situation']), F32),
        'player_state': jax.random.normal(next(ks), (H, B, fd['player_state']), F32),
        'ball_state': jax.random.normal(next(ks), (H, B, fd['ball_state']), F32),
        'left_team_state': jax.random.normal(next(ks), (H, B, n_left, fd['left_team_state']), F32),
        'left_closest': jax.random.normal(next(ks), (H, B, fd['left_team_state']), F32),
        'right_team_state': jax.random.normal(next(ks), (H, B, n_right, fd['right_team_state']), F32),
        'right_closest': jax.random.normal(next(ks), (H, B, fd['right_team_state']), F32),
        'avail': (jax.random.uniform(next(ks), (H, B, 12)) > 0.3).astype(F32).at[..., 0].set(1.0),
        'hidden': (jax.random.normal(next(ks), (1, B, lstm_size), F32) * 0.1,
                   jax.random.normal(next(ks), (1, B, lstm_size), F32) * 0.1),
    }

    prob, prob_m, v, (h_out, c_out) = jax.jit(forward)(params, state, kn)
    jax.block_until_ready((prob, prob_m, v, h_out, c_out))

    assert prob.shape == (H, B, 12)
    assert prob_m.shape == (H, B, 8)
    assert v.shape == (H, B, 1)
    assert h_out.shape == (1, B, lstm_size) and c_out.shape == (1, B, lstm_size)
    print("KERNEL_OK")
</pallas_src>

<mosaic_0001>
module attributes {stable_mosaic.version = 11 : i64} {
  func.func @_packed_embed_kernel(%arg0: memref<16x38xf32, #tpu.memory_space<vmem>>, %arg1: memref<38x640xf32, #tpu.memory_space<vmem>>, %arg2: memref<1x640xf32, #tpu.memory_space<vmem>>, %arg3: memref<1x640xf32, #tpu.memory_space<vmem>>, %arg4: memref<1x640xf32, #tpu.memory_space<vmem>>, %arg5: memref<16x64xf32, #tpu.memory_space<vmem>>, %arg6: memref<16x64xf32, #tpu.memory_space<vmem>>, %arg7: memref<16x64xf32, #tpu.memory_space<vmem>>, %arg8: memref<16x48xf32, #tpu.memory_space<vmem>>, %arg9: memref<16x48xf32, #tpu.memory_space<vmem>>) attributes {dimension_semantics = [], scalar_prefetch = 0 : i64, scratch_operands = 0 : i64, tpu.core_type = #tpu.core_type<tc>} {
    %c0 = arith.constant 0 : index
    %c0_0 = arith.constant 0 : index
    %0 = vector.load %arg0[%c0, %c0_0] : memref<16x38xf32, #tpu.memory_space<vmem>>, vector<16x38xf32>
    %c0_1 = arith.constant 0 : index
    %c0_2 = arith.constant 0 : index
    %1 = vector.load %arg1[%c0_1, %c0_2] : memref<38x640xf32, #tpu.memory_space<vmem>>, vector<38x640xf32>
    %cst = arith.constant dense<0.000000e+00> : vector<16x640xf32>
    %2 = tpu.matmul %0, %1, %cst {dimension_numbers = #tpu.dot_dimension_numbers<[1], [0], [0], [1], [0, 0, 1, 1], [], []>} : vector<16x38xf32>, vector<38x640xf32>, vector<16x640xf32> -> vector<16x640xf32>
    %c0_3 = arith.constant 0 : index
    %c0_4 = arith.constant 0 : index
    %3 = vector.load %arg2[%c0_3, %c0_4] : memref<1x640xf32, #tpu.memory_space<vmem>>, vector<1x640xf32>
    %4 = vector.broadcast %3 : vector<1x640xf32> to vector<16x640xf32>
    %5 = arith.addf %2, %4 : vector<16x640xf32>
    %6 = vector.extract_strided_slice %5 {offsets = [0, 0], sizes = [16, 64], strides = [1, 1]} : vector<16x640xf32> to vector<16x64xf32>
    %c0_5 = arith.constant 0 : index
    %c0_6 = arith.constant 0 : index
    %7 = vector.load %arg3[%c0_5, %c0_6] : memref<1x640xf32, #tpu.memory_space<vmem>>, vector<1x64xf32>
    %c0_7 = arith.constant 0 : index
    %c0_8 = arith.constant 0 : index
    %8 = vector.load %arg4[%c0_7, %c0_8] : memref<1x640xf32, #tpu.memory_space<vmem>>, vector<1x64xf32>
    %cst_9 = arith.constant dense<0.000000e+00> : vector<16xf32>
    %9 = vector.multi_reduction <add>, %6, %cst_9 [1] : vector<16x64xf32> to vector<16xf32>
    %10 = vector.shape_cast %9 : vector<16xf32> to vector<16x1xf32>
    %cst_10 = arith.constant 6.400000e+01 : f32
    %11 = vector.broadcast %cst_10 : f32 to vector<16x1xf32>
    %12 = arith.divf %10, %11 : vector<16x1xf32>
    %13 = vector.broadcast %12 : vector<16x1xf32> to vector<16x64xf32>
    %14 = arith.subf %6, %13 : vector<16x64xf32>
    %15 = arith.mulf %14, %14 : vector<16x64xf32>
    %cst_11 = arith.constant dense<0.000000e+00> : vector<16xf32>
    %16 = vector.multi_reduction <add>, %15, %cst_11 [1] : vector<16x64xf32> to vector<16xf32>
    %17 = vector.shape_cast %16 : vector<16xf32> to vector<16x1xf32>
    %cst_12 = arith.constant 6.400000e+01 : f32
    %18 = vector.broadcast %cst_12 : f32 to vector<16x1xf32>
    %19 = arith.divf %17, %18 : vector<16x1xf32>
    %20 = vector.broadcast %12 : vector<16x1xf32> to vector<16x64xf32>
    %21 = arith.subf %6, %20 : vector<16x64xf32>
    %cst_13 = arith.constant 9.99999974E-6 : f32
    %22 = vector.broadcast %cst_13 : f32 to vector<16x1xf32>
    %23 = arith.addf %19, %22 : vector<16x1xf32>
    %24 = math.rsqrt %23 : vector<16x1xf32>
    %25 = vector.broadcast %24 : vector<16x1xf32> to vector<16x64xf32>
    %26 = arith.mulf %21, %25 : vector<16x64xf32>
    %27 = vector.broadcast %7 : vector<1x64xf32> to vector<16x64xf32>
    %28 = arith.mulf %26, %27 : vector<16x64xf32>
    %29 = vector.broadcast %8 : vector<1x64xf32> to vector<16x64xf32>
    %30 = arith.addf %28, %29 : vector<16x64xf32>
    %cst_14 = arith.constant 0.000000e+00 : f32
    %31 = vector.broadcast %cst_14 : f32 to vector<16x64xf32>
    %32 = arith.maximumf %30, %31 : vector<16x64xf32>
    %c0_15 = arith.constant 0 : index
    %c0_16 = arith.constant 0 : index
    %33 = vector.load %arg5[%c0_15, %c0_16] : memref<16x64xf32, #tpu.memory_space<vmem>>, vector<16x64xf32>
    tpu.vector_store %arg5[%c0_15, %c0_16], %32 {strides = array<i32>} : memref<16x64xf32, #tpu.memory_space<vmem>>, vector<16x64xf32>,
    %34 = vector.extract_strided_slice %5 {offsets = [0, 128], sizes = [16, 64], strides = [1, 1]} : vector<16x640xf32> to vector<16x64xf32>
    %c0_17 = arith.constant 0 : index
    %c128 = arith.constant 128 : index
    %35 = vector.load %arg3[%c0_17, %c128] : memref<1x640xf32, #tpu.memory_space<vmem>>, vector<1x64xf32>
    %c0_18 = arith.constant 0 : index
    %c128_19 = arith.constant 128 : index
    %36 = vector.load %arg4[%c0_18, %c128_19] : memref<1x640xf32, #tpu.memory_space<vmem>>, vector<1x64xf32>
    %cst_20 = arith.constant dense<0.000000e+00> : vector<16xf32>
    %37 = vector.multi_reduction <add>, %34, %cst_20 [1] : vector<16x64xf32> to vector<16xf32>
    %38 = vector.shape_cast %37 : vector<16xf32> to vector<16x1xf32>
    %cst_21 = arith.constant 6.400000e+01 : f32
    %39 = vector.broadcast %cst_21 : f32 to vector<16x1xf32>
    %40 = arith.divf %38, %39 : vector<16x1xf32>
    %41 = vector.broadcast %40 : vector<16x1xf32> to vector<16x64xf32>
    %42 = arith.subf %34, %41 : vector<16x64xf32>
    %43 = arith.mulf %42, %42 : vector<16x64xf32>
    %cst_22 = arith.constant dense<0.000000e+00> : vector<16xf32>
    %44 = vector.multi_reduction <add>, %43, %cst_22 [1] : vector<16x64xf32> to vector<16xf32>
    %45 = vector.shape_cast %44 : vector<16xf32> to vector<16x1xf32>
    %cst_23 = arith.constant 6.400000e+01 : f32
    %46 = vector.broadcast %cst_23 : f32 to vector<16x1xf32>
    %47 = arith.divf %45, %46 : vector<16x1xf32>
    %48 = vector.broadcast %40 : vector<16x1xf32> to vector<16x64xf32>
    %49 = arith.subf %34, %48 : vector<16x64xf32>
    %cst_24 = arith.constant 9.99999974E-6 : f32
    %50 = vector.broadcast %cst_24 : f32 to vector<16x1xf32>
    %51 = arith.addf %47, %50 : vector<16x1xf32>
    %52 = math.rsqrt %51 : vector<16x1xf32>
    %53 = vector.broadcast %52 : vector<16x1xf32> to vector<16x64xf32>
    %54 = arith.mulf %49, %53 : vector<16x64xf32>
    %55 = vector.broadcast %35 : vector<1x64xf32> to vector<16x64xf32>
    %56 = arith.mulf %54, %55 : vector<16x64xf32>
    %57 = vector.broadcast %36 : vector<1x64xf32> to vector<16x64xf32>
    %58 = arith.addf %56, %57 : vector<16x64xf32>
    %cst_25 = arith.constant 0.000000e+00 : f32
    %59 = vector.broadcast %cst_25 : f32 to vector<16x64xf32>
    %60 = arith.maximumf %58, %59 : vector<16x64xf32>
    %c0_26 = arith.constant 0 : index
    %c0_27 = arith.constant 0 : index
    %61 = vector.load %arg6[%c0_26, %c0_27] : memref<16x64xf32, #tpu.memory_space<vmem>>, vector<16x64xf32>
    tpu.vector_store %arg6[%c0_26, %c0_27], %60 {strides = array<i32>} : memref<16x64xf32, #tpu.memory_space<vmem>>, vector<16x64xf32>,
    %62 = vector.extract_strided_slice %5 {offsets = [0, 256], sizes = [16, 64], strides = [1, 1]} : vector<16x640xf32> to vector<16x64xf32>
    %c0_28 = arith.constant 0 : index
    %c256 = arith.constant 256 : index
    %63 = vector.load %arg3[%c0_28, %c256] : memref<1x640xf32, #tpu.memory_space<vmem>>, vector<1x64xf32>
    %c0_29 = arith.constant 0 : index
    %c256_30 = arith.constant 256 : index
    %64 = vector.load %arg4[%c0_29, %c256_30] : memref<1x640xf32, #tpu.memory_space<vmem>>, vector<1x64xf32>
    %cst_31 = arith.constant dense<0.000000e+00> : vector<16xf32>
    %65 = vector.multi_reduction <add>, %62, %cst_31 [1] : vector<16x64xf32> to vector<16xf32>
    %66 = vector.shape_cast %65 : vector<16xf32> to vector<16x1xf32>
    %cst_32 = arith.constant 6.400000e+01 : f32
    %67 = vector.broadcast %cst_32 : f32 to vector<16x1xf32>
    %68 = arith.divf %66, %67 : vector<16x1xf32>
    %69 = vector.broadcast %68 : vector<16x1xf32> to vector<16x64xf32>
    %70 = arith.subf %62, %69 : vector<16x64xf32>
    %71 = arith.mulf %70, %70 : vector<16x64xf32>
    %cst_33 = arith.constant dense<0.000000e+00> : vector<16xf32>
    %72 = vector.multi_reduction <add>, %71, %cst_33 [1] : vector<16x64xf32> to vector<16xf32>
    %73 = vector.shape_cast %72 : vector<16xf32> to vector<16x1xf32>
    %cst_34 = arith.constant 6.400000e+01 : f32
    %74 = vector.broadcast %cst_34 : f32 to vector<16x1xf32>
    %75 = arith.divf %73, %74 : vector<16x1xf32>
    %76 = vector.broadcast %68 : vector<16x1xf32> to vector<16x64xf32>
    %77 = arith.subf %62, %76 : vector<16x64xf32>
    %cst_35 = arith.constant 9.99999974E-6 : f32
    %78 = vector.broadcast %cst_35 : f32 to vector<16x1xf32>
    %79 = arith.addf %75, %78 : vector<16x1xf32>
    %80 = math.rsqrt %79 : vector<16x1xf32>
    %81 = vector.broadcast %80 : vector<16x1xf32> to vector<16x64xf32>
    %82 = arith.mulf %77, %81 : vector<16x64xf32>
    %83 = vector.broadcast %63 : vector<1x64xf32> to vector<16x64xf32>
    %84 = arith.mulf %82, %83 : vector<16x64xf32>
    %85 = vector.broadcast %64 : vector<1x64xf32> to vector<16x64xf32>
    %86 = arith.addf %84, %85 : vector<16x64xf32>
    %cst_36 = arith.constant 0.000000e+00 : f32
    %87 = vector.broadcast %cst_36 : f32 to vector<16x64xf32>
    %88 = arith.maximumf %86, %87 : vector<16x64xf32>
    %c0_37 = arith.constant 0 : index
    %c0_38 = arith.constant 0 : index
    %89 = vector.load %arg7[%c0_37, %c0_38] : memref<16x64xf32, #tpu.memory_space<vmem>>, vector<16x64xf32>
    tpu.vector_store %arg7[%c0_37, %c0_38], %88 {strides = array<i32>} : memref<16x64xf32, #tpu.memory_space<vmem>>, vector<16x64xf32>,
    %90 = vector.extract_strided_slice %5 {offsets = [0, 384], sizes = [16, 48], strides = [1, 1]} : vector<16x640xf32> to vector<16x48xf32>
    %c0_39 = arith.constant 0 : index
    %c384 = arith.constant 384 : index
    %91 = vector.load %arg3[%c0_39, %c384] : memref<1x640xf32, #tpu.memory_space<vmem>>, vector<1x48xf32>
    %c0_40 = arith.constant 0 : index
    %c384_41 = arith.constant 384 : index
    %92 = vector.load %arg4[%c0_40, %c384_41] : memref<1x640xf32, #tpu.memory_space<vmem>>, vector<1x48xf32>
    %cst_42 = arith.constant dense<0.000000e+00> : vector<16xf32>
    %93 = vector.multi_reduction <add>, %90, %cst_42 [1] : vector<16x48xf32> to vector<16xf32>
    %94 = vector.shape_cast %93 : vector<16xf32> to vector<16x1xf32>
    %cst_43 = arith.constant 4.800000e+01 : f32
    %95 = vector.broadcast %cst_43 : f32 to vector<16x1xf32>
    %96 = arith.divf %94, %95 : vector<16x1xf32>
    %97 = vector.broadcast %96 : vector<16x1xf32> to vector<16x48xf32>
    %98 = arith.subf %90, %97 : vector<16x48xf32>
    %99 = arith.mulf %98, %98 : vector<16x48xf32>
    %cst_44 = arith.constant dense<0.000000e+00> : vector<16xf32>
    %100 = vector.multi_reduction <add>, %99, %cst_44 [1] : vector<16x48xf32> to vector<16xf32>
    %101 = vector.shape_cast %100 : vector<16xf32> to vector<16x1xf32>
    %cst_45 = arith.constant 4.800000e+01 : f32
    %102 = vector.broadcast %cst_45 : f32 to vector<16x1xf32>
    %103 = arith.divf %101, %102 : vector<16x1xf32>
    %104 = vector.broadcast %96 : vector<16x1xf32> to vector<16x48xf32>
    %105 = arith.subf %90, %104 : vector<16x48xf32>
    %cst_46 = arith.constant 9.99999974E-6 : f32
    %106 = vector.broadcast %cst_46 : f32 to vector<16x1xf32>
    %107 = arith.addf %103, %106 : vector<16x1xf32>
    %108 = math.rsqrt %107 : vector<16x1xf32>
    %109 = vector.broadcast %108 : vector<16x1xf32> to vector<16x48xf32>
    %110 = arith.mulf %105, %109 : vector<16x48xf32>
    %111 = vector.broadcast %91 : vector<1x48xf32> to vector<16x48xf32>
    %112 = arith.mulf %110, %111 : vector<16x48xf32>
    %113 = vector.broadcast %92 : vector<1x48xf32> to vector<16x48xf32>
    %114 = arith.addf %112, %113 : vector<16x48xf32>
    %cst_47 = arith.constant 0.000000e+00 : f32
    %115 = vector.broadcast %cst_47 : f32 to vector<16x48xf32>
    %116 = arith.maximumf %114, %115 : vector<16x48xf32>
    %c0_48 = arith.constant 0 : index
    %c0_49 = arith.constant 0 : index
    %117 = vector.load %arg8[%c0_48, %c0_49] : memref<16x48xf32, #tpu.memory_space<vmem>>, vector<16x48xf32>
    tpu.vector_store %arg8[%c0_48, %c0_49], %116 {strides = array<i32>} : memref<16x48xf32, #tpu.memory_space<vmem>>, vector<16x48xf32>,
    %118 = vector.extract_strided_slice %5 {offsets = [0, 512], sizes = [16, 48], strides = [1, 1]} : vector<16x640xf32> to vector<16x48xf32>
    %c0_50 = arith.constant 0 : index
    %c512 = arith.constant 512 : index
    %119 = vector.load %arg3[%c0_50, %c512] : memref<1x640xf32, #tpu.memory_space<vmem>>, vector<1x48xf32>
    %c0_51 = arith.constant 0 : index
    %c512_52 = arith.constant 512 : index
    %120 = vector.load %arg4[%c0_51, %c512_52] : memref<1x640xf32, #tpu.memory_space<vmem>>, vector<1x48xf32>
    %cst_53 = arith.constant dense<0.000000e+00> : vector<16xf32>
    %121 = vector.multi_reduction <add>, %118, %cst_53 [1] : vector<16x48xf32> to vector<16xf32>
    %122 = vector.shape_cast %121 : vector<16xf32> to vector<16x1xf32>
    %cst_54 = arith.constant 4.800000e+01 : f32
    %123 = vector.broadcast %cst_54 : f32 to vector<16x1xf32>
    %124 = arith.divf %122, %123 : vector<16x1xf32>
    %125 = vector.broadcast %124 : vector<16x1xf32> to vector<16x48xf32>
    %126 = arith.subf %118, %125 : vector<16x48xf32>
    %127 = arith.mulf %126, %126 : vector<16x48xf32>
    %cst_55 = arith.constant dense<0.000000e+00> : vector<16xf32>
    %128 = vector.multi_reduction <add>, %127, %cst_55 [1] : vector<16x48xf32> to vector<16xf32>
    %129 = vector.shape_cast %128 : vector<16xf32> to vector<16x1xf32>
    %cst_56 = arith.constant 4.800000e+01 : f32
    %130 = vector.broadcast %cst_56 : f32 to vector<16x1xf32>
    %131 = arith.divf %129, %130 : vector<16x1xf32>
    %132 = vector.broadcast %124 : vector<16x1xf32> to vector<16x48xf32>
    %133 = arith.subf %118, %132 : vector<16x48xf32>
    %cst_57 = arith.constant 9.99999974E-6 : f32
    %134 = vector.broadcast %cst_57 : f32 to vector<16x1xf32>
    %135 = arith.addf %131, %134 : vector<16x1xf32>
    %136 = math.rsqrt %135 : vector<16x1xf32>
    %137 = vector.broadcast %136 : vector<16x1xf32> to vector<16x48xf32>
    %138 = arith.mulf %133, %137 : vector<16x48xf32>
    %139 = vector.broadcast %119 : vector<1x48xf32> to vector<16x48xf32>
    %140 = arith.mulf %138, %139 : vector<16x48xf32>
    %141 = vector.broadcast %120 : vector<1x48xf32> to vector<16x48xf32>
    %142 = arith.addf %140, %141 : vector<16x48xf32>
    %cst_58 = arith.constant 0.000000e+00 : f32
    %143 = vector.broadcast %cst_58 : f32 to vector<16x48xf32>
    %144 = arith.maximumf %142, %143 : vector<16x48xf32>
    %c0_59 = arith.constant 0 : index
    %c0_60 = arith.constant 0 : index
    %145 = vector.load %arg9[%c0_59, %c0_60] : memref<16x48xf32, #tpu.memory_space<vmem>>, vector<16x48xf32>
    tpu.vector_store %arg9[%c0_59, %c0_60], %144 {strides = array<i32>} : memref<16x48xf32, #tpu.memory_space<vmem>>, vector<16x48xf32>,
    return
  }
}

module attributes {stable_mosaic.version = 11 : i64} {
  func.func @_lin_ln_relu_kernel(%arg0: memref<176x7xf32, #tpu.memory_space<vmem>>, %arg1: memref<7x48xf32, #tpu.memory_space<vmem>>, %arg2: memref<1x48xf32, #tpu.memory_space<vmem>>, %arg3: memref<1x48xf32, #tpu.memory_space<vmem>>, %arg4: memref<1x48xf32, #tpu.memory_space<vmem>>, %arg5: memref<176x48xf32, #tpu.memory_space<vmem>>) attributes {dimension_semantics = [], scalar_prefetch = 0 : i64, scratch_operands = 0 : i64, tpu.core_type = #tpu.core_type<tc>} {
    %c0 = arith.constant 0 : index
    %c0_0 = arith.constant 0 : index
    %0 = vector.load %arg0[%c0, %c0_0] : memref<176x7xf32, #tpu.memory_space<vmem>>, vector<176x7xf32>
    %c0_1 = arith.constant 0 : index
    %c0_2 = arith.constant 0 : index
    %1 = vector.load %arg1[%c0_1, %c0_2] : memref<7x48xf32, #tpu.memory_space<vmem>>, vector<7x48xf32>
    %cst = arith.constant dense<0.000000e+00> : vector<176x48xf32>
    %2 = tpu.matmul %0, %1, %cst {dimension_numbers = #tpu.dot_dimension_numbers<[1], [0], [0], [1], [0, 0, 1, 1], [], []>} : vector<176x7xf32>, vector<7x48xf32>, vector<176x48xf32> -> vector<176x48xf32>
    %c0_3 = arith.constant 0 : index
    %c0_4 = arith.constant 0 : index
    %3 = vector.load %arg2[%c0_3, %c0_4] : memref<1x48xf32, #tpu.memory_space<vmem>>, vector<1x48xf32>
    %4 = vector.broadcast %3 : vector<1x48xf32> to vector<176x48xf32>
    %5 = arith.addf %2, %4 : vector<176x48xf32>
    %cst_5 = arith.constant dense<0.000000e+00> : vector<176xf32>
    %6 = vector.multi_reduction <add>, %5, %cst_5 [1] : vector<176x48xf32> to vector<176xf32>
    %7 = vector.shape_cast %6 : vector<176xf32> to vector<176x1xf32>
    %cst_6 = arith.constant 4.800000e+01 : f32
    %8 = vector.broadcast %cst_6 : f32 to vector<176x1xf32>
    %9 = arith.divf %7, %8 : vector<176x1xf32>
    %10 = vector.broadcast %9 : vector<176x1xf32> to vector<176x48xf32>
    %11 = arith.subf %5, %10 : vector<176x48xf32>
    %12 = arith.mulf %11, %11 : vector<176x48xf32>
    %cst_7 = arith.constant dense<0.000000e+00> : vector<176xf32>
    %13 = vector.multi_reduction <add>, %12, %cst_7 [1] : vector<176x48xf32> to vector<176xf32>
    %14 = vector.shape_cast %13 : vector<176xf32> to vector<176x1xf32>
    %cst_8 = arith.constant 4.800000e+01 : f32
    %15 = vector.broadcast %cst_8 : f32 to vector<176x1xf32>
    %16 = arith.divf %14, %15 : vector<176x1xf32>
    %17 = vector.broadcast %9 : vector<176x1xf32> to vector<176x48xf32>
    %18 = arith.subf %5, %17 : vector<176x48xf32>
    %cst_9 = arith.constant 9.99999974E-6 : f32
    %19 = vector.broadcast %cst_9 : f32 to vector<176x1xf32>
    %20 = arith.addf %16, %19 : vector<176x1xf32>
    %21 = math.rsqrt %20 : vector<176x1xf32>
    %22 = vector.broadcast %21 : vector<176x1xf32> to vector<176x48xf32>
    %23 = arith.mulf %18, %22 : vector<176x48xf32>
    %c0_10 = arith.constant 0 : index
    %c0_11 = arith.constant 0 : index
    %24 = vector.load %arg3[%c0_10, %c0_11] : memref<1x48xf32, #tpu.memory_space<vmem>>, vector<1x48xf32>
    %25 = vector.broadcast %24 : vector<1x48xf32> to vector<176x48xf32>
    %26 = arith.mulf %23, %25 : vector<176x48xf32>
    %c0_12 = arith.constant 0 : index
    %c0_13 = arith.constant 0 : index
    %27 = vector.load %arg4[%c0_12, %c0_13] : memref<1x48xf32, #tpu.memory_space<vmem>>, vector<1x48xf32>
    %28 = vector.broadcast %27 : vector<1x48xf32> to vector<176x48xf32>
    %29 = arith.addf %26, %28 : vector<176x48xf32>
    %cst_14 = arith.constant 0.000000e+00 : f32
    %30 = vector.broadcast %cst_14 : f32 to vector<176x48xf32>
    %31 = arith.maximumf %29, %30 : vector<176x48xf32>
    %c0_15 = arith.constant 0 : index
    %c0_16 = arith.constant 0 : index
    %32 = vector.load %arg5[%c0_15, %c0_16] : memref<176x48xf32, #tpu.memory_space<vmem>>, vector<176x48xf32>
    tpu.vector_store %arg5[%c0_15, %c0_16], %31 {strides = array<i32>} : memref<176x48xf32, #tpu.memory_space<vmem>>, vector<176x48xf32>,
    return
  }
}

module attributes {stable_mosaic.version = 11 : i64} {
  func.func @_lin_ln_relu_kernel(%arg0: memref<192x7xf32, #tpu.memory_space<vmem>>, %arg1: memref<7x48xf32, #tpu.memory_space<vmem>>, %arg2: memref<1x48xf32, #tpu.memory_space<vmem>>, %arg3: memref<1x48xf32, #tpu.memory_space<vmem>>, %arg4: memref<1x48xf32, #tpu.memory_space<vmem>>, %arg5: memref<192x48xf32, #tpu.memory_space<vmem>>) attributes {dimension_semantics = [], scalar_prefetch = 0 : i64, scratch_operands = 0 : i64, tpu.core_type = #tpu.core_type<tc>} {
    %c0 = arith.constant 0 : index
    %c0_0 = arith.constant 0 : index
    %0 = vector.load %arg0[%c0, %c0_0] : memref<192x7xf32, #tpu.memory_space<vmem>>, vector<192x7xf32>
    %c0_1 = arith.constant 0 : index
    %c0_2 = arith.constant 0 : index
    %1 = vector.load %arg1[%c0_1, %c0_2] : memref<7x48xf32, #tpu.memory_space<vmem>>, vector<7x48xf32>
    %cst = arith.constant dense<0.000000e+00> : vector<192x48xf32>
    %2 = tpu.matmul %0, %1, %cst {dimension_numbers = #tpu.dot_dimension_numbers<[1], [0], [0], [1], [0, 0, 1, 1], [], []>} : vector<192x7xf32>, vector<7x48xf32>, vector<192x48xf32> -> vector<192x48xf32>
    %c0_3 = arith.constant 0 : index
    %c0_4 = arith.constant 0 : index
    %3 = vector.load %arg2[%c0_3, %c0_4] : memref<1x48xf32, #tpu.memory_space<vmem>>, vector<1x48xf32>
    %4 = vector.broadcast %3 : vector<1x48xf32> to vector<192x48xf32>
    %5 = arith.addf %2, %4 : vector<192x48xf32>
    %cst_5 = arith.constant dense<0.000000e+00> : vector<192xf32>
    %6 = vector.multi_reduction <add>, %5, %cst_5 [1] : vector<192x48xf32> to vector<192xf32>
    %7 = vector.shape_cast %6 : vector<192xf32> to vector<192x1xf32>
    %cst_6 = arith.constant 4.800000e+01 : f32
    %8 = vector.broadcast %cst_6 : f32 to vector<192x1xf32>
    %9 = arith.divf %7, %8 : vector<192x1xf32>
    %10 = vector.broadcast %9 : vector<192x1xf32> to vector<192x48xf32>
    %11 = arith.subf %5, %10 : vector<192x48xf32>
    %12 = arith.mulf %11, %11 : vector<192x48xf32>
    %cst_7 = arith.constant dense<0.000000e+00> : vector<192xf32>
    %13 = vector.multi_reduction <add>, %12, %cst_7 [1] : vector<192x48xf32> to vector<192xf32>
    %14 = vector.shape_cast %13 : vector<192xf32> to vector<192x1xf32>
    %cst_8 = arith.constant 4.800000e+01 : f32
    %15 = vector.broadcast %cst_8 : f32 to vector<192x1xf32>
    %16 = arith.divf %14, %15 : vector<192x1xf32>
    %17 = vector.broadcast %9 : vector<192x1xf32> to vector<192x48xf32>
    %18 = arith.subf %5, %17 : vector<192x48xf32>
    %cst_9 = arith.constant 9.99999974E-6 : f32
    %19 = vector.broadcast %cst_9 : f32 to vector<192x1xf32>
    %20 = arith.addf %16, %19 : vector<192x1xf32>
    %21 = math.rsqrt %20 : vector<192x1xf32>
    %22 = vector.broadcast %21 : vector<192x1xf32> to vector<192x48xf32>
    %23 = arith.mulf %18, %22 : vector<192x48xf32>
    %c0_10 = arith.constant 0 : index
    %c0_11 = arith.constant 0 : index
    %24 = vector.load %arg3[%c0_10, %c0_11] : memref<1x48xf32, #tpu.memory_space<vmem>>, vector<1x48xf32>
    %25 = vector.broadcast %24 : vector<1x48xf32> to vector<192x48xf32>
    %26 = arith.mulf %23, %25 : vector<192x48xf32>
    %c0_12 = arith.constant 0 : index
    %c0_13 = arith.constant 0 : index
    %27 = vector.load %arg4[%c0_12, %c0_13] : memref<1x48xf32, #tpu.memory_space<vmem>>, vector<1x48xf32>
    %28 = vector.broadcast %27 : vector<1x48xf32> to vector<192x48xf32>
    %29 = arith.addf %26, %28 : vector<192x48xf32>
    %cst_14 = arith.constant 0.000000e+00 : f32
    %30 = vector.broadcast %cst_14 : f32 to vector<192x48xf32>
    %31 = arith.maximumf %29, %30 : vector<192x48xf32>
    %c0_15 = arith.constant 0 : index
    %c0_16 = arith.constant 0 : index
    %32 = vector.load %arg5[%c0_15, %c0_16] : memref<192x48xf32, #tpu.memory_space<vmem>>, vector<192x48xf32>
    tpu.vector_store %arg5[%c0_15, %c0_16], %31 {strides = array<i32>} : memref<192x48xf32, #tpu.memory_space<vmem>>, vector<192x48xf32>,
    return
  }
}

module attributes {stable_mosaic.version = 11 : i64} {
  func.func @_lin_kernel(%arg0: memref<352x48xf32, #tpu.memory_space<vmem>>, %arg1: memref<48x50xf32, #tpu.memory_space<vmem>>, %arg2: memref<1x50xf32, #tpu.memory_space<vmem>>, %arg3: memref<352x50xf32, #tpu.memory_space<vmem>>) attributes {dimension_semantics = [], scalar_prefetch = 0 : i64, scratch_operands = 0 : i64, tpu.core_type = #tpu.core_type<tc>} {
    %c0 = arith.constant 0 : index
    %c0_0 = arith.constant 0 : index
    %0 = vector.load %arg0[%c0, %c0_0] : memref<352x48xf32, #tpu.memory_space<vmem>>, vector<352x48xf32>
    %c0_1 = arith.constant 0 : index
    %c0_2 = arith.constant 0 : index
    %1 = vector.load %arg1[%c0_1, %c0_2] : memref<48x50xf32, #tpu.memory_space<vmem>>, vector<48x50xf32>
    %cst = arith.constant dense<0.000000e+00> : vector<352x50xf32>
    %2 = tpu.matmul %0, %1, %cst {dimension_numbers = #tpu.dot_dimension_numbers<[1], [0], [0], [1], [0, 0, 1, 1], [], []>} : vector<352x48xf32>, vector<48x50xf32>, vector<352x50xf32> -> vector<352x50xf32>
    %c0_3 = arith.constant 0 : index
    %c0_4 = arith.constant 0 : index
    %3 = vector.load %arg2[%c0_3, %c0_4] : memref<1x50xf32, #tpu.memory_space<vmem>>, vector<1x50xf32>
    %4 = vector.broadcast %3 : vector<1x50xf32> to vector<352x50xf32>
    %5 = arith.addf %2, %4 : vector<352x50xf32>
    %c0_5 = arith.constant 0 : index
    %c0_6 = arith.constant 0 : index
    %6 = vector.load %arg3[%c0_5, %c0_6] : memref<352x50xf32, #tpu.memory_space<vmem>>, vector<352x50xf32>
    tpu.vector_store %arg3[%c0_5, %c0_6], %5 {strides = array<i32>} : memref<352x50xf32, #tpu.memory_space<vmem>>, vector<352x50xf32>,
    return
  }
}

module attributes {stable_mosaic.version = 11 : i64} {
  func.func @_lin_kernel(%arg0: memref<176x96xf32, #tpu.memory_space<vmem>>, %arg1: memref<96x98xf32, #tpu.memory_space<vmem>>, %arg2: memref<1x98xf32, #tpu.memory_space<vmem>>, %arg3: memref<176x98xf32, #tpu.memory_space<vmem>>) attributes {dimension_semantics = [], scalar_prefetch = 0 : i64, scratch_operands = 0 : i64, tpu.core_type = #tpu.core_type<tc>} {
    %c0 = arith.constant 0 : index
    %c0_0 = arith.constant 0 : index
    %0 = vector.load %arg0[%c0, %c0_0] : memref<176x96xf32, #tpu.memory_space<vmem>>, vector<176x96xf32>
    %c0_1 = arith.constant 0 : index
    %c0_2 = arith.constant 0 : index
    %1 = vector.load %arg1[%c0_1, %c0_2] : memref<96x98xf32, #tpu.memory_space<vmem>>, vector<96x98xf32>
    %cst = arith.constant dense<0.000000e+00> : vector<176x98xf32>
    %2 = tpu.matmul %0, %1, %cst {dimension_numbers = #tpu.dot_dimension_numbers<[1], [0], [0], [1], [0, 0, 1, 1], [], []>} : vector<176x96xf32>, vector<96x98xf32>, vector<176x98xf32> -> vector<176x98xf32>
    %c0_3 = arith.constant 0 : index
    %c0_4 = arith.constant 0 : index
    %3 = vector.load %arg2[%c0_3, %c0_4] : memref<1x98xf32, #tpu.memory_space<vmem>>, vector<1x98xf32>
    %4 = vector.broadcast %3 : vector<1x98xf32> to vector<176x98xf32>
    %5 = arith.addf %2, %4 : vector<176x98xf32>
    %c0_5 = arith.constant 0 : index
    %c0_6 = arith.constant 0 : index
    %6 = vector.load %arg3[%c0_5, %c0_6] : memref<176x98xf32, #tpu.memory_space<vmem>>, vector<176x98xf32>
    tpu.vector_store %arg3[%c0_5, %c0_6], %5 {strides = array<i32>} : memref<176x98xf32, #tpu.memory_space<vmem>>, vector<176x98xf32>,
    return
  }
}

module attributes {stable_mosaic.version = 11 : i64} {
  func.func @_lin_kernel(%arg0: memref<192x48xf32, #tpu.memory_space<vmem>>, %arg1: memref<48x50xf32, #tpu.memory_space<vmem>>, %arg2: memref<1x50xf32, #tpu.memory_space<vmem>>, %arg3: memref<192x50xf32, #tpu.memory_space<vmem>>) attributes {dimension_semantics = [], scalar_prefetch = 0 : i64, scratch_operands = 0 : i64, tpu.core_type = #tpu.core_type<tc>} {
    %c0 = arith.constant 0 : index
    %c0_0 = arith.constant 0 : index
    %0 = vector.load %arg0[%c0, %c0_0] : memref<192x48xf32, #tpu.memory_space<vmem>>, vector<192x48xf32>
    %c0_1 = arith.constant 0 : index
    %c0_2 = arith.constant 0 : index
    %1 = vector.load %arg1[%c0_1, %c0_2] : memref<48x50xf32, #tpu.memory_space<vmem>>, vector<48x50xf32>
    %cst = arith.constant dense<0.000000e+00> : vector<192x50xf32>
    %2 = tpu.matmul %0, %1, %cst {dimension_numbers = #tpu.dot_dimension_numbers<[1], [0], [0], [1], [0, 0, 1, 1], [], []>} : vector<192x48xf32>, vector<48x50xf32>, vector<192x50xf32> -> vector<192x50xf32>
    %c0_3 = arith.constant 0 : index
    %c0_4 = arith.constant 0 : index
    %3 = vector.load %arg2[%c0_3, %c0_4] : memref<1x50xf32, #tpu.memory_space<vmem>>, vector<1x50xf32>
    %4 = vector.broadcast %3 : vector<1x50xf32> to vector<192x50xf32>
    %5 = arith.addf %2, %4 : vector<192x50xf32>
    %c0_5 = arith.constant 0 : index
    %c0_6 = arith.constant 0 : index
    %6 = vector.load %arg3[%c0_5, %c0_6] : memref<192x50xf32, #tpu.memory_space<vmem>>, vector<192x50xf32>
    tpu.vector_store %arg3[%c0_5, %c0_6], %5 {strides = array<i32>} : memref<192x50xf32, #tpu.memory_space<vmem>>, vector<192x50xf32>,
    return
  }
}

module attributes {stable_mosaic.version = 11 : i64} {
  func.func @_lstm_kernel(%arg0: memref<8x2x512xf32, #tpu.memory_space<vmem>>, %arg1: memref<2x128xf32, #tpu.memory_space<vmem>>, %arg2: memref<2x128xf32, #tpu.memory_space<vmem>>, %arg3: memref<128x512xf32, #tpu.memory_space<vmem>>, %arg4: memref<8x2x128xf32, #tpu.memory_space<vmem>>, %arg5: memref<2x128xf32, #tpu.memory_space<vmem>>, %arg6: memref<2x128xf32, #tpu.memory_space<vmem>>) attributes {dimension_semantics = [], scalar_prefetch = 0 : i64, scratch_operands = 0 : i64, tpu.core_type = #tpu.core_type<tc>} {
    %c0 = arith.constant 0 : index
    %c0_0 = arith.constant 0 : index
    %0 = vector.load %arg1[%c0, %c0_0] : memref<2x128xf32, #tpu.memory_space<vmem>>, vector<2x128xf32>
    %c0_1 = arith.constant 0 : index
    %c0_2 = arith.constant 0 : index
    %1 = vector.load %arg2[%c0_1, %c0_2] : memref<2x128xf32, #tpu.memory_space<vmem>>, vector<2x128xf32>
    %c0_3 = arith.constant 0 : index
    %c0_4 = arith.constant 0 : index
    %2 = vector.load %arg3[%c0_3, %c0_4] : memref<128x512xf32, #tpu.memory_space<vmem>>, vector<128x512xf32>
    %c0_5 = arith.constant 0 : index
    %c0_6 = arith.constant 0 : index
    %c0_7 = arith.constant 0 : index
    %3 = vector.load %arg0[%c0_5, %c0_6, %c0_7] : memref<8x2x512xf32, #tpu.memory_space<vmem>>, vector<1x2x512xf32>
    %4 = vector.shape_cast %3 : vector<1x2x512xf32> to vector<2x512xf32>
    %cst = arith.constant dense<0.000000e+00> : vector<2x512xf32>
    %5 = tpu.matmul %0, %2, %cst {dimension_numbers = #tpu.dot_dimension_numbers<[1], [0], [0], [1], [0, 0, 1, 1], [], []>} : vector<2x128xf32>, vector<128x512xf32>, vector<2x512xf32> -> vector<2x512xf32>
    %6 = arith.addf %4, %5 : vector<2x512xf32>
    %7 = vector.extract_strided_slice %6 {offsets = [0, 0], sizes = [2, 128], strides = [1, 1]} : vector<2x512xf32> to vector<2x128xf32>
    %8 = arith.negf %7 : vector<2x128xf32>
    %9 = math.exp %8 : vector<2x128xf32>
    %cst_8 = arith.constant 1.000000e+00 : f32
    %10 = vector.broadcast %cst_8 : f32 to vector<2x128xf32>
    %11 = arith.addf %10, %9 : vector<2x128xf32>
    %12 = arith.divf %10, %11 : vector<2x128xf32>
    %13 = vector.extract_strided_slice %6 {offsets = [0, 128], sizes = [2, 128], strides = [1, 1]} : vector<2x512xf32> to vector<2x128xf32>
    %14 = arith.negf %13 : vector<2x128xf32>
    %15 = math.exp %14 : vector<2x128xf32>
    %cst_9 = arith.constant 1.000000e+00 : f32
    %16 = vector.broadcast %cst_9 : f32 to vector<2x128xf32>
    %17 = arith.addf %16, %15 : vector<2x128xf32>
    %18 = arith.divf %16, %17 : vector<2x128xf32>
    %19 = vector.extract_strided_slice %6 {offsets = [0, 256], sizes = [2, 128], strides = [1, 1]} : vector<2x512xf32> to vector<2x128xf32>
    %20 = math.tanh %19 : vector<2x128xf32>
    %21 = vector.extract_strided_slice %6 {offsets = [0, 384], sizes = [2, 128], strides = [1, 1]} : vector<2x512xf32> to vector<2x128xf32>
    %22 = arith.negf %21 : vector<2x128xf32>
    %23 = math.exp %22 : vector<2x128xf32>
    %cst_10 = arith.constant 1.000000e+00 : f32
    %24 = vector.broadcast %cst_10 : f32 to vector<2x128xf32>
    %25 = arith.addf %24, %23 : vector<2x128xf32>
    %26 = arith.divf %24, %25 : vector<2x128xf32>
    %27 = arith.mulf %18, %1 : vector<2x128xf32>
    %28 = arith.mulf %12, %20 : vector<2x128xf32>
    %29 = arith.addf %27, %28 : vector<2x128xf32>
    %30 = math.tanh %29 : vector<2x128xf32>
    %31 = arith.mulf %26, %30 : vector<2x128xf32>
    %c0_11 = arith.constant 0 : index
    %c0_12 = arith.constant 0 : index
    %c0_13 = arith.constant 0 : index
    %32 = vector.load %arg4[%c0_11, %c0_12, %c0_13] : memref<8x2x128xf32, #tpu.memory_space<vmem>>, vector<1x2x128xf32>
    %33 = vector.shape_cast %32 : vector<1x2x128xf32> to vector<2x128xf32>
    %34 = vector.shape_cast %31 : vector<2x128xf32> to vector<1x2x128xf32>
    tpu.vector_store %arg4[%c0_11, %c0_12, %c0_13], %34 {strides = array<i32>} : memref<8x2x128xf32, #tpu.memory_space<vmem>>, vector<1x2x128xf32>,
    %c1 = arith.constant 1 : index
    %c0_14 = arith.constant 0 : index
    %c0_15 = arith.constant 0 : index
    %35 = vector.load %arg0[%c1, %c0_14, %c0_15] : memref<8x2x512xf32, #tpu.memory_space<vmem>>, vector<1x2x512xf32>
    %36 = vector.shape_cast %35 : vector<1x2x512xf32> to vector<2x512xf32>
    %cst_16 = arith.constant dense<0.000000e+00> : vector<2x512xf32>
    %37 = tpu.matmul %31, %2, %cst_16 {dimension_numbers = #tpu.dot_dimension_numbers<[1], [0], [0], [1], [0, 0, 1, 1], [], []>} : vector<2x128xf32>, vector<128x512xf32>, vector<2x512xf32> -> vector<2x512xf32>
    %38 = arith.addf %36, %37 : vector<2x512xf32>
    %39 = vector.extract_strided_slice %38 {offsets = [0, 0], sizes = [2, 128], strides = [1, 1]} : vector<2x512xf32> to vector<2x128xf32>
    %40 = arith.negf %39 : vector<2x128xf32>
    %41 = math.exp %40 : vector<2x128xf32>
    %cst_17 = arith.constant 1.000000e+00 : f32
    %42 = vector.broadcast %cst_17 : f32 to vector<2x128xf32>
    %43 = arith.addf %42, %41 : vector<2x128xf32>
    %44 = arith.divf %42, %43 : vector<2x128xf32>
    %45 = vector.extract_strided_slice %38 {offsets = [0, 128], sizes = [2, 128], strides = [1, 1]} : vector<2x512xf32> to vector<2x128xf32>
    %46 = arith.negf %45 : vector<2x128xf32>
    %47 = math.exp %46 : vector<2x128xf32>
    %cst_18 = arith.constant 1.000000e+00 : f32
    %48 = vector.broadcast %cst_18 : f32 to vector<2x128xf32>
    %49 = arith.addf %48, %47 : vector<2x128xf32>
    %50 = arith.divf %48, %49 : vector<2x128xf32>
    %51 = vector.extract_strided_slice %38 {offsets = [0, 256], sizes = [2, 128], strides = [1, 1]} : vector<2x512xf32> to vector<2x128xf32>
    %52 = math.tanh %51 : vector<2x128xf32>
    %53 = vector.extract_strided_slice %38 {offsets = [0, 384], sizes = [2, 128], strides = [1, 1]} : vector<2x512xf32> to vector<2x128xf32>
    %54 = arith.negf %53 : vector<2x128xf32>
    %55 = math.exp %54 : vector<2x128xf32>
    %cst_19 = arith.constant 1.000000e+00 : f32
    %56 = vector.broadcast %cst_19 : f32 to vector<2x128xf32>
    %57 = arith.addf %56, %55 : vector<2x128xf32>
    %58 = arith.divf %56, %57 : vector<2x128xf32>
    %59 = arith.mulf %50, %29 : vector<2x128xf32>
    %60 = arith.mulf %44, %52 : vector<2x128xf32>
    %61 = arith.addf %59, %60 : vector<2x128xf32>
    %62 = math.tanh %61 : vector<2x128xf32>
    %63 = arith.mulf %58, %62 : vector<2x128xf32>
    %c1_20 = arith.constant 1 : index
    %c0_21 = arith.constant 0 : index
    %c0_22 = arith.constant 0 : index
    %64 = vector.load %arg4[%c1_20, %c0_21, %c0_22] : memref<8x2x128xf32, #tpu.memory_space<vmem>>, vector<1x2x128xf32>
    %65 = vector.shape_cast %64 : vector<1x2x128xf32> to vector<2x128xf32>
    %66 = vector.shape_cast %63 : vector<2x128xf32> to vector<1x2x128xf32>
    tpu.vector_store %arg4[%c1_20, %c0_21, %c0_22], %66 {strides = array<i32>} : memref<8x2x128xf32, #tpu.memory_space<vmem>>, vector<1x2x128xf32>,
    %c2 = arith.constant 2 : index
    %c0_23 = arith.constant 0 : index
    %c0_24 = arith.constant 0 : index
    %67 = vector.load %arg0[%c2, %c0_23, %c0_24] : memref<8x2x512xf32, #tpu.memory_space<vmem>>, vector<1x2x512xf32>
    %68 = vector.shape_cast %67 : vector<1x2x512xf32> to vector<2x512xf32>
    %cst_25 = arith.constant dense<0.000000e+00> : vector<2x512xf32>
    %69 = tpu.matmul %63, %2, %cst_25 {dimension_numbers = #tpu.dot_dimension_numbers<[1], [0], [0], [1], [0, 0, 1, 1], [], []>} : vector<2x128xf32>, vector<128x512xf32>, vector<2x512xf32> -> vector<2x512xf32>
    %70 = arith.addf %68, %69 : vector<2x512xf32>
    %71 = vector.extract_strided_slice %70 {offsets = [0, 0], sizes = [2, 128], strides = [1, 1]} : vector<2x512xf32> to vector<2x128xf32>
    %72 = arith.negf %71 : vector<2x128xf32>
    %73 = math.exp %72 : vector<2x128xf32>
    %cst_26 = arith.constant 1.000000e+00 : f32
    %74 = vector.broadcast %cst_26 : f32 to vector<2x128xf32>
    %75 = arith.addf %74, %73 : vector<2x128xf32>
    %76 = arith.divf %74, %75 : vector<2x128xf32>
    %77 = vector.extract_strided_slice %70 {offsets = [0, 128], sizes = [2, 128], strides = [1, 1]} : vector<2x512xf32> to vector<2x128xf32>
    %78 = arith.negf %77 : vector<2x128xf32>
    %79 = math.exp %78 : vector<2x128xf32>
    %cst_27 = arith.constant 1.000000e+00 : f32
    %80 = vector.broadcast %cst_27 : f32 to vector<2x128xf32>
    %81 = arith.addf %80, %79 : vector<2x128xf32>
    %82 = arith.divf %80, %81 : vector<2x128xf32>
    %83 = vector.extract_strided_slice %70 {offsets = [0, 256], sizes = [2, 128], strides = [1, 1]} : vector<2x512xf32> to vector<2x128xf32>
    %84 = math.tanh %83 : vector<2x128xf32>
    %85 = vector.extract_strided_slice %70 {offsets = [0, 384], sizes = [2, 128], strides = [1, 1]} : vector<2x512xf32> to vector<2x128xf32>
    %86 = arith.negf %85 : vector<2x128xf32>
    %87 = math.exp %86 : vector<2x128xf32>
    %cst_28 = arith.constant 1.000000e+00 : f32
    %88 = vector.broadcast %cst_28 : f32 to vector<2x128xf32>
    %89 = arith.addf %88, %87 : vector<2x128xf32>
    %90 = arith.divf %88, %89 : vector<2x128xf32>
    %91 = arith.mulf %82, %61 : vector<2x128xf32>
    %92 = arith.mulf %76, %84 : vector<2x128xf32>
    %93 = arith.addf %91, %92 : vector<2x128xf32>
    %94 = math.tanh %93 : vector<2x128xf32>
    %95 = arith.mulf %90, %94 : vector<2x128xf32>
    %c2_29 = arith.constant 2 : index
    %c0_30 = arith.constant 0 : index
    %c0_31 = arith.constant 0 : index
    %96 = vector.load %arg4[%c2_29, %c0_30, %c0_31] : memref<8x2x128xf32, #tpu.memory_space<vmem>>, vector<1x2x128xf32>
    %97 = vector.shape_cast %96 : vector<1x2x128xf32> to vector<2x128xf32>
    %98 = vector.shape_cast %95 : vector<2x128xf32> to vector<1x2x128xf32>
    tpu.vector_store %arg4[%c2_29, %c0_30, %c0_31], %98 {strides = array<i32>} : memref<8x2x128xf32, #tpu.memory_space<vmem>>, vector<1x2x128xf32>,
    %c3 = arith.constant 3 : index
    %c0_32 = arith.constant 0 : index
    %c0_33 = arith.constant 0 : index
    %99 = vector.load %arg0[%c3, %c0_32, %c0_33] : memref<8x2x512xf32, #tpu.memory_space<vmem>>, vector<1x2x512xf32>
    %100 = vector.shape_cast %99 : vector<1x2x512xf32> to vector<2x512xf32>
    %cst_34 = arith.constant dense<0.000000e+00> : vector<2x512xf32>
    %101 = tpu.matmul %95, %2, %cst_34 {dimension_numbers = #tpu.dot_dimension_numbers<[1], [0], [0], [1], [0, 0, 1, 1], [], []>} : vector<2x128xf32>, vector<128x512xf32>, vector<2x512xf32> -> vector<2x512xf32>
    %102 = arith.addf %100, %101 : vector<2x512xf32>
    %103 = vector.extract_strided_slice %102 {offsets = [0, 0], sizes = [2, 128], strides = [1, 1]} : vector<2x512xf32> to vector<2x128xf32>
    %104 = arith.negf %103 : vector<2x128xf32>
    %105 = math.exp %104 : vector<2x128xf32>
    %cst_35 = arith.constant 1.000000e+00 : f32
    %106 = vector.broadcast %cst_35 : f32 to vector<2x128xf32>
    %107 = arith.addf %106, %105 : vector<2x128xf32>
    %108 = arith.divf %106, %107 : vector<2x128xf32>
    %109 = vector.extract_strided_slice %102 {offsets = [0, 128], sizes = [2, 128], strides = [1, 1]} : vector<2x512xf32> to vector<2x128xf32>
    %110 = arith.negf %109 : vector<2x128xf32>
    %111 = math.exp %110 : vector<2x128xf32>
    %cst_36 = arith.constant 1.000000e+00 : f32
    %112 = vector.broadcast %cst_36 : f32 to vector<2x128xf32>
    %113 = arith.addf %112, %111 : vector<2x128xf32>
    %114 = arith.divf %112, %113 : vector<2x128xf32>
    %115 = vector.extract_strided_slice %102 {offsets = [0, 256], sizes = [2, 128], strides = [1, 1]} : vector<2x512xf32> to vector<2x128xf32>
    %116 = math.tanh %115 : vector<2x128xf32>
    %117 = vector.extract_strided_slice %102 {offsets = [0, 384], sizes = [2, 128], strides = [1, 1]} : vector<2x512xf32> to vector<2x128xf32>
    %118 = arith.negf %117 : vector<2x128xf32>
    %119 = math.exp %118 : vector<2x128xf32>
    %cst_37 = arith.constant 1.000000e+00 : f32
    %120 = vector.broadcast %cst_37 : f32 to vector<2x128xf32>
    %121 = arith.addf %120, %119 : vector<2x128xf32>
    %122 = arith.divf %120, %121 : vector<2x128xf32>
    %123 = arith.mulf %114, %93 : vector<2x128xf32>
    %124 = arith.mulf %108, %116 : vector<2x128xf32>
    %125 = arith.addf %123, %124 : vector<2x128xf32>
    %126 = math.tanh %125 : vector<2x128xf32>
    %127 = arith.mulf %122, %126 : vector<2x128xf32>
    %c3_38 = arith.constant 3 : index
    %c0_39 = arith.constant 0 : index
    %c0_40 = arith.constant 0 : index
    %128 = vector.load %arg4[%c3_38, %c0_39, %c0_40] : memref<8x2x128xf32, #tpu.memory_space<vmem>>, vector<1x2x128xf32>
    %129 = vector.shape_cast %128 : vector<1x2x128xf32> to vector<2x128xf32>
    %130 = vector.shape_cast %127 : vector<2x128xf32> to vector<1x2x128xf32>
    tpu.vector_store %arg4[%c3_38, %c0_39, %c0_40], %130 {strides = array<i32>} : memref<8x2x128xf32, #tpu.memory_space<vmem>>, vector<1x2x128xf32>,
    %c4 = arith.constant 4 : index
    %c0_41 = arith.constant 0 : index
    %c0_42 = arith.constant 0 : index
    %131 = vector.load %arg0[%c4, %c0_41, %c0_42] : memref<8x2x512xf32, #tpu.memory_space<vmem>>, vector<1x2x512xf32>
    %132 = vector.shape_cast %131 : vector<1x2x512xf32> to vector<2x512xf32>
    %cst_43 = arith.constant dense<0.000000e+00> : vector<2x512xf32>
    %133 = tpu.matmul %127, %2, %cst_43 {dimension_numbers = #tpu.dot_dimension_numbers<[1], [0], [0], [1], [0, 0, 1, 1], [], []>} : vector<2x128xf32>, vector<128x512xf32>, vector<2x512xf32> -> vector<2x512xf32>
    %134 = arith.addf %132, %133 : vector<2x512xf32>
    %135 = vector.extract_strided_slice %134 {offsets = [0, 0], sizes = [2, 128], strides = [1, 1]} : vector<2x512xf32> to vector<2x128xf32>
    %136 = arith.negf %135 : vector<2x128xf32>
    %137 = math.exp %136 : vector<2x128xf32>
    %cst_44 = arith.constant 1.000000e+00 : f32
    %138 = vector.broadcast %cst_44 : f32 to vector<2x128xf32>
    %139 = arith.addf %138, %137 : vector<2x128xf32>
    %140 = arith.divf %138, %139 : vector<2x128xf32>
    %141 = vector.extract_strided_slice %134 {offsets = [0, 128], sizes = [2, 128], strides = [1, 1]} : vector<2x512xf32> to vector<2x128xf32>
    %142 = arith.negf %141 : vector<2x128xf32>
    %143 = math.exp %142 : vector<2x128xf32>
    %cst_45 = arith.constant 1.000000e+00 : f32
    %144 = vector.broadcast %cst_45 : f32 to vector<2x128xf32>
    %145 = arith.addf %144, %143 : vector<2x128xf32>
    %146 = arith.divf %144, %145 : vector<2x128xf32>
    %147 = vector.extract_strided_slice %134 {offsets = [0, 256], sizes = [2, 128], strides = [1, 1]} : vector<2x512xf32> to vector<2x128xf32>
    %148 = math.tanh %147 : vector<2x128xf32>
    %149 = vector.extract_strided_slice %134 {offsets = [0, 384], sizes = [2, 128], strides = [1, 1]} : vector<2x512xf32> to vector<2x128xf32>
    %150 = arith.negf %149 : vector<2x128xf32>
    %151 = math.exp %150 : vector<2x128xf32>
    %cst_46 = arith.constant 1.000000e+00 : f32
    %152 = vector.broadcast %cst_46 : f32 to vector<2x128xf32>
    %153 = arith.addf %152, %151 : vector<2x128xf32>
    %154 = arith.divf %152, %153 : vector<2x128xf32>
    %155 = arith.mulf %146, %125 : vector<2x128xf32>
    %156 = arith.mulf %140, %148 : vector<2x128xf32>
    %157 = arith.addf %155, %156 : vector<2x128xf32>
    %158 = math.tanh %157 : vector<2x128xf32>
    %159 = arith.mulf %154, %158 : vector<2x128xf32>
    %c4_47 = arith.constant 4 : index
    %c0_48 = arith.constant 0 : index
    %c0_49 = arith.constant 0 : index
    %160 = vector.load %arg4[%c4_47, %c0_48, %c0_49] : memref<8x2x128xf32, #tpu.memory_space<vmem>>, vector<1x2x128xf32>
    %161 = vector.shape_cast %160 : vector<1x2x128xf32> to vector<2x128xf32>
    %162 = vector.shape_cast %159 : vector<2x128xf32> to vector<1x2x128xf32>
    tpu.vector_store %arg4[%c4_47, %c0_48, %c0_49], %162 {strides = array<i32>} : memref<8x2x128xf32, #tpu.memory_space<vmem>>, vector<1x2x128xf32>,
    %c5 = arith.constant 5 : index
    %c0_50 = arith.constant 0 : index
    %c0_51 = arith.constant 0 : index
    %163 = vector.load %arg0[%c5, %c0_50, %c0_51] : memref<8x2x512xf32, #tpu.memory_space<vmem>>, vector<1x2x512xf32>
    %164 = vector.shape_cast %163 : vector<1x2x512xf32> to vector<2x512xf32>
    %cst_52 = arith.constant dense<0.000000e+00> : vector<2x512xf32>
    %165 = tpu.matmul %159, %2, %cst_52 {dimension_numbers = #tpu.dot_dimension_numbers<[1], [0], [0], [1], [0, 0, 1, 1], [], []>} : vector<2x128xf32>, vector<128x512xf32>, vector<2x512xf32> -> vector<2x512xf32>
    %166 = arith.addf %164, %165 : vector<2x512xf32>
    %167 = vector.extract_strided_slice %166 {offsets = [0, 0], sizes = [2, 128], strides = [1, 1]} : vector<2x512xf32> to vector<2x128xf32>
    %168 = arith.negf %167 : vector<2x128xf32>
    %169 = math.exp %168 : vector<2x128xf32>
    %cst_53 = arith.constant 1.000000e+00 : f32
    %170 = vector.broadcast %cst_53 : f32 to vector<2x128xf32>
    %171 = arith.addf %170, %169 : vector<2x128xf32>
    %172 = arith.divf %170, %171 : vector<2x128xf32>
    %173 = vector.extract_strided_slice %166 {offsets = [0, 128], sizes = [2, 128], strides = [1, 1]} : vector<2x512xf32> to vector<2x128xf32>
    %174 = arith.negf %173 : vector<2x128xf32>
    %175 = math.exp %174 : vector<2x128xf32>
    %cst_54 = arith.constant 1.000000e+00 : f32
    %176 = vector.broadcast %cst_54 : f32 to vector<2x128xf32>
    %177 = arith.addf %176, %175 : vector<2x128xf32>
    %178 = arith.divf %176, %177 : vector<2x128xf32>
    %179 = vector.extract_strided_slice %166 {offsets = [0, 256], sizes = [2, 128], strides = [1, 1]} : vector<2x512xf32> to vector<2x128xf32>
    %180 = math.tanh %179 : vector<2x128xf32>
    %181 = vector.extract_strided_slice %166 {offsets = [0, 384], sizes = [2, 128], strides = [1, 1]} : vector<2x512xf32> to vector<2x128xf32>
    %182 = arith.negf %181 : vector<2x128xf32>
    %183 = math.exp %182 : vector<2x128xf32>
    %cst_55 = arith.constant 1.000000e+00 : f32
    %184 = vector.broadcast %cst_55 : f32 to vector<2x128xf32>
    %185 = arith.addf %184, %183 : vector<2x128xf32>
    %186 = arith.divf %184, %185 : vector<2x128xf32>
    %187 = arith.mulf %178, %157 : vector<2x128xf32>
    %188 = arith.mulf %172, %180 : vector<2x128xf32>
    %189 = arith.addf %187, %188 : vector<2x128xf32>
    %190 = math.tanh %189 : vector<2x128xf32>
    %191 = arith.mulf %186, %190 : vector<2x128xf32>
    %c5_56 = arith.constant 5 : index
    %c0_57 = arith.constant 0 : index
    %c0_58 = arith.constant 0 : index
    %192 = vector.load %arg4[%c5_56, %c0_57, %c0_58] : memref<8x2x128xf32, #tpu.memory_space<vmem>>, vector<1x2x128xf32>
    %193 = vector.shape_cast %192 : vector<1x2x128xf32> to vector<2x128xf32>
    %194 = vector.shape_cast %191 : vector<2x128xf32> to vector<1x2x128xf32>
    tpu.vector_store %arg4[%c5_56, %c0_57, %c0_58], %194 {strides = array<i32>} : memref<8x2x128xf32, #tpu.memory_space<vmem>>, vector<1x2x128xf32>,
    %c6 = arith.constant 6 : index
    %c0_59 = arith.constant 0 : index
    %c0_60 = arith.constant 0 : index
    %195 = vector.load %arg0[%c6, %c0_59, %c0_60] : memref<8x2x512xf32, #tpu.memory_space<vmem>>, vector<1x2x512xf32>
    %196 = vector.shape_cast %195 : vector<1x2x512xf32> to vector<2x512xf32>
    %cst_61 = arith.constant dense<0.000000e+00> : vector<2x512xf32>
    %197 = tpu.matmul %191, %2, %cst_61 {dimension_numbers = #tpu.dot_dimension_numbers<[1], [0], [0], [1], [0, 0, 1, 1], [], []>} : vector<2x128xf32>, vector<128x512xf32>, vector<2x512xf32> -> vector<2x512xf32>
    %198 = arith.addf %196, %197 : vector<2x512xf32>
    %199 = vector.extract_strided_slice %198 {offsets = [0, 0], sizes = [2, 128], strides = [1, 1]} : vector<2x512xf32> to vector<2x128xf32>
    %200 = arith.negf %199 : vector<2x128xf32>
    %201 = math.exp %200 : vector<2x128xf32>
    %cst_62 = arith.constant 1.000000e+00 : f32
    %202 = vector.broadcast %cst_62 : f32 to vector<2x128xf32>
    %203 = arith.addf %202, %201 : vector<2x128xf32>
    %204 = arith.divf %202, %203 : vector<2x128xf32>
    %205 = vector.extract_strided_slice %198 {offsets = [0, 128], sizes = [2, 128], strides = [1, 1]} : vector<2x512xf32> to vector<2x128xf32>
    %206 = arith.negf %205 : vector<2x128xf32>
    %207 = math.exp %206 : vector<2x128xf32>
    %cst_63 = arith.constant 1.000000e+00 : f32
    %208 = vector.broadcast %cst_63 : f32 to vector<2x128xf32>
    %209 = arith.addf %208, %207 : vector<2x128xf32>
    %210 = arith.divf %208, %209 : vector<2x128xf32>
    %211 = vector.extract_strided_slice %198 {offsets = [0, 256], sizes = [2, 128], strides = [1, 1]} : vector<2x512xf32> to vector<2x128xf32>
    %212 = math.tanh %211 : vector<2x128xf32>
    %213 = vector.extract_strided_slice %198 {offsets = [0, 384], sizes = [2, 128], strides = [1, 1]} : vector<2x512xf32> to vector<2x128xf32>
    %214 = arith.negf %213 : vector<2x128xf32>
    %215 = math.exp %214 : vector<2x128xf32>
    %cst_64 = arith.constant 1.000000e+00 : f32
    %216 = vector.broadcast %cst_64 : f32 to vector<2x128xf32>
    %217 = arith.addf %216, %215 : vector<2x128xf32>
    %218 = arith.divf %216, %217 : vector<2x128xf32>
    %219 = arith.mulf %210, %189 : vector<2x128xf32>
    %220 = arith.mulf %204, %212 : vector<2x128xf32>
    %221 = arith.addf %219, %220 : vector<2x128xf32>
    %222 = math.tanh %221 : vector<2x128xf32>
    %223 = arith.mulf %218, %222 : vector<2x128xf32>
    %c6_65 = arith.constant 6 : index
    %c0_66 = arith.constant 0 : index
    %c0_67 = arith.constant 0 : index
    %224 = vector.load %arg4[%c6_65, %c0_66, %c0_67] : memref<8x2x128xf32, #tpu.memory_space<vmem>>, vector<1x2x128xf32>
    %225 = vector.shape_cast %224 : vector<1x2x128xf32> to vector<2x128xf32>
    %226 = vector.shape_cast %223 : vector<2x128xf32> to vector<1x2x128xf32>
    tpu.vector_store %arg4[%c6_65, %c0_66, %c0_67], %226 {strides = array<i32>} : memref<8x2x128xf32, #tpu.memory_space<vmem>>, vector<1x2x128xf32>,
    %c7 = arith.constant 7 : index
    %c0_68 = arith.constant 0 : index
    %c0_69 = arith.constant 0 : index
    %227 = vector.load %arg0[%c7, %c0_68, %c0_69] : memref<8x2x512xf32, #tpu.memory_space<vmem>>, vector<1x2x512xf32>
    %228 = vector.shape_cast %227 : vector<1x2x512xf32> to vector<2x512xf32>
    %cst_70 = arith.constant dense<0.000000e+00> : vector<2x512xf32>
    %229 = tpu.matmul %223, %2, %cst_70 {dimension_numbers = #tpu.dot_dimension_numbers<[1], [0], [0], [1], [0, 0, 1, 1], [], []>} : vector<2x128xf32>, vector<128x512xf32>, vector<2x512xf32> -> vector<2x512xf32>
    %230 = arith.addf %228, %229 : vector<2x512xf32>
    %231 = vector.extract_strided_slice %230 {offsets = [0, 0], sizes = [2, 128], strides = [1, 1]} : vector<2x512xf32> to vector<2x128xf32>
    %232 = arith.negf %231 : vector<2x128xf32>
    %233 = math.exp %232 : vector<2x128xf32>
    %cst_71 = arith.constant 1.000000e+00 : f32
    %234 = vector.broadcast %cst_71 : f32 to vector<2x128xf32>
    %235 = arith.addf %234, %233 : vector<2x128xf32>
    %236 = arith.divf %234, %235 : vector<2x128xf32>
    %237 = vector.extract_strided_slice %230 {offsets = [0, 128], sizes = [2, 128], strides = [1, 1]} : vector<2x512xf32> to vector<2x128xf32>
    %238 = arith.negf %237 : vector<2x128xf32>
    %239 = math.exp %238 : vector<2x128xf32>
    %cst_72 = arith.constant 1.000000e+00 : f32
    %240 = vector.broadcast %cst_72 : f32 to vector<2x128xf32>
    %241 = arith.addf %240, %239 : vector<2x128xf32>
    %242 = arith.divf %240, %241 : vector<2x128xf32>
    %243 = vector.extract_strided_slice %230 {offsets = [0, 256], sizes = [2, 128], strides = [1, 1]} : vector<2x512xf32> to vector<2x128xf32>
    %244 = math.tanh %243 : vector<2x128xf32>
    %245 = vector.extract_strided_slice %230 {offsets = [0, 384], sizes = [2, 128], strides = [1, 1]} : vector<2x512xf32> to vector<2x128xf32>
    %246 = arith.negf %245 : vector<2x128xf32>
    %247 = math.exp %246 : vector<2x128xf32>
    %cst_73 = arith.constant 1.000000e+00 : f32
    %248 = vector.broadcast %cst_73 : f32 to vector<2x128xf32>
    %249 = arith.addf %248, %247 : vector<2x128xf32>
    %250 = arith.divf %248, %249 : vector<2x128xf32>
    %251 = arith.mulf %242, %221 : vector<2x128xf32>
    %252 = arith.mulf %236, %244 : vector<2x128xf32>
    %253 = arith.addf %251, %252 : vector<2x128xf32>
    %254 = math.tanh %253 : vector<2x128xf32>
    %255 = arith.mulf %250, %254 : vector<2x128xf32>
    %c7_74 = arith.constant 7 : index
    %c0_75 = arith.constant 0 : index
    %c0_76 = arith.constant 0 : index
    %256 = vector.load %arg4[%c7_74, %c0_75, %c0_76] : memref<8x2x128xf32, #tpu.memory_space<vmem>>, vector<1x2x128xf32>
    %257 = vector.shape_cast %256 : vector<1x2x128xf32> to vector<2x128xf32>
    %258 = vector.shape_cast %255 : vector<2x128xf32> to vector<1x2x128xf32>
    tpu.vector_store %arg4[%c7_74, %c0_75, %c0_76], %258 {strides = array<i32>} : memref<8x2x128xf32, #tpu.memory_space<vmem>>, vector<1x2x128xf32>,
    %c0_77 = arith.constant 0 : index
    %c0_78 = arith.constant 0 : index
    %259 = vector.load %arg5[%c0_77, %c0_78] : memref<2x128xf32, #tpu.memory_space<vmem>>, vector<2x128xf32>
    tpu.vector_store %arg5[%c0_77, %c0_78], %255 {strides = array<i32>} : memref<2x128xf32, #tpu.memory_space<vmem>>, vector<2x128xf32>,
    %c0_79 = arith.constant 0 : index
    %c0_80 = arith.constant 0 : index
    %260 = vector.load %arg6[%c0_79, %c0_80] : memref<2x128xf32, #tpu.memory_space<vmem>>, vector<2x128xf32>
    tpu.vector_store %arg6[%c0_79, %c0_80], %253 {strides = array<i32>} : memref<2x128xf32, #tpu.memory_space<vmem>>, vector<2x128xf32>,
    return
  }
}

module attributes {stable_mosaic.version = 11 : i64} {
  func.func @_cat_gates_kernel(%arg0: memref<16x432xf32, #tpu.memory_space<vmem>>, %arg1: memref<432x128xf32, #tpu.memory_space<vmem>>, %arg2: memref<1x128xf32, #tpu.memory_space<vmem>>, %arg3: memref<1x128xf32, #tpu.memory_space<vmem>>, %arg4: memref<1x128xf32, #tpu.memory_space<vmem>>, %arg5: memref<128x512xf32, #tpu.memory_space<vmem>>, %arg6: memref<1x512xf32, #tpu.memory_space<vmem>>, %arg7: memref<16x512xf32, #tpu.memory_space<vmem>>) attributes {dimension_semantics = [], scalar_prefetch = 0 : i64, scratch_operands = 0 : i64, tpu.core_type = #tpu.core_type<tc>} {
    %c0 = arith.constant 0 : index
    %c0_0 = arith.constant 0 : index
    %0 = vector.load %arg0[%c0, %c0_0] : memref<16x432xf32, #tpu.memory_space<vmem>>, vector<16x432xf32>
    %c0_1 = arith.constant 0 : index
    %c0_2 = arith.constant 0 : index
    %1 = vector.load %arg1[%c0_1, %c0_2] : memref<432x128xf32, #tpu.memory_space<vmem>>, vector<432x128xf32>
    %cst = arith.constant dense<0.000000e+00> : vector<16x128xf32>
    %2 = tpu.matmul %0, %1, %cst {dimension_numbers = #tpu.dot_dimension_numbers<[1], [0], [0], [1], [0, 0, 1, 1], [], []>} : vector<16x432xf32>, vector<432x128xf32>, vector<16x128xf32> -> vector<16x128xf32>
    %c0_3 = arith.constant 0 : index
    %c0_4 = arith.constant 0 : index
    %3 = vector.load %arg2[%c0_3, %c0_4] : memref<1x128xf32, #tpu.memory_space<vmem>>, vector<1x128xf32>
    %4 = vector.broadcast %3 : vector<1x128xf32> to vector<16x128xf32>
    %5 = arith.addf %2, %4 : vector<16x128xf32>
    %cst_5 = arith.constant dense<0.000000e+00> : vector<16xf32>
    %6 = vector.multi_reduction <add>, %5, %cst_5 [1] : vector<16x128xf32> to vector<16xf32>
    %7 = vector.shape_cast %6 : vector<16xf32> to vector<16x1xf32>
    %cst_6 = arith.constant 1.280000e+02 : f32
    %8 = vector.broadcast %cst_6 : f32 to vector<16x1xf32>
    %9 = arith.divf %7, %8 : vector<16x1xf32>
    %10 = vector.broadcast %9 : vector<16x1xf32> to vector<16x128xf32>
    %11 = arith.subf %5, %10 : vector<16x128xf32>
    %12 = arith.mulf %11, %11 : vector<16x128xf32>
    %cst_7 = arith.constant dense<0.000000e+00> : vector<16xf32>
    %13 = vector.multi_reduction <add>, %12, %cst_7 [1] : vector<16x128xf32> to vector<16xf32>
    %14 = vector.shape_cast %13 : vector<16xf32> to vector<16x1xf32>
    %cst_8 = arith.constant 1.280000e+02 : f32
    %15 = vector.broadcast %cst_8 : f32 to vector<16x1xf32>
    %16 = arith.divf %14, %15 : vector<16x1xf32>
    %17 = vector.broadcast %9 : vector<16x1xf32> to vector<16x128xf32>
    %18 = arith.subf %5, %17 : vector<16x128xf32>
    %cst_9 = arith.constant 9.99999974E-6 : f32
    %19 = vector.broadcast %cst_9 : f32 to vector<16x1xf32>
    %20 = arith.addf %16, %19 : vector<16x1xf32>
    %21 = math.rsqrt %20 : vector<16x1xf32>
    %22 = vector.broadcast %21 : vector<16x1xf32> to vector<16x128xf32>
    %23 = arith.mulf %18, %22 : vector<16x128xf32>
    %c0_10 = arith.constant 0 : index
    %c0_11 = arith.constant 0 : index
    %24 = vector.load %arg3[%c0_10, %c0_11] : memref<1x128xf32, #tpu.memory_space<vmem>>, vector<1x128xf32>
    %25 = vector.broadcast %24 : vector<1x128xf32> to vector<16x128xf32>
    %26 = arith.mulf %23, %25 : vector<16x128xf32>
    %c0_12 = arith.constant 0 : index
    %c0_13 = arith.constant 0 : index
    %27 = vector.load %arg4[%c0_12, %c0_13] : memref<1x128xf32, #tpu.memory_space<vmem>>, vector<1x128xf32>
    %28 = vector.broadcast %27 : vector<1x128xf32> to vector<16x128xf32>
    %29 = arith.addf %26, %28 : vector<16x128xf32>
    %cst_14 = arith.constant 0.000000e+00 : f32
    %30 = vector.broadcast %cst_14 : f32 to vector<16x128xf32>
    %31 = arith.maximumf %29, %30 : vector<16x128xf32>
    %c0_15 = arith.constant 0 : index
    %c0_16 = arith.constant 0 : index
    %32 = vector.load %arg5[%c0_15, %c0_16] : memref<128x512xf32, #tpu.memory_space<vmem>>, vector<128x512xf32>
    %cst_17 = arith.constant dense<0.000000e+00> : vector<16x512xf32>
    %33 = tpu.matmul %31, %32, %cst_17 {dimension_numbers = #tpu.dot_dimension_numbers<[1], [0], [0], [1], [0, 0, 1, 1], [], []>} : vector<16x128xf32>, vector<128x512xf32>, vector<16x512xf32> -> vector<16x512xf32>
    %c0_18 = arith.constant 0 : index
    %c0_19 = arith.constant 0 : index
    %34 = vector.load %arg6[%c0_18, %c0_19] : memref<1x512xf32, #tpu.memory_space<vmem>>, vector<1x512xf32>
    %35 = vector.broadcast %34 : vector<1x512xf32> to vector<16x512xf32>
    %36 = arith.addf %33, %35 : vector<16x512xf32>
    %c0_20 = arith.constant 0 : index
    %c0_21 = arith.constant 0 : index
    %37 = vector.load %arg7[%c0_20, %c0_21] : memref<16x512xf32, #tpu.memory_space<vmem>>, vector<16x512xf32>
    tpu.vector_store %arg7[%c0_20, %c0_21], %36 {strides = array<i32>} : memref<16x512xf32, #tpu.memory_space<vmem>>, vector<16x512xf32>,
    return
  }
}

module attributes {stable_mosaic.version = 11 : i64} {
  func.func @_heads_kernel(%arg0: memref<16x128xf32, #tpu.memory_space<vmem>>, %arg1: memref<128x768xf32, #tpu.memory_space<vmem>>, %arg2: memref<1x768xf32, #tpu.memory_space<vmem>>, %arg3: memref<1x768xf32, #tpu.memory_space<vmem>>, %arg4: memref<1x768xf32, #tpu.memory_space<vmem>>, %arg5: memref<164x12xf32, #tpu.memory_space<vmem>>, %arg6: memref<1x12xf32, #tpu.memory_space<vmem>>, %arg7: memref<164x8xf32, #tpu.memory_space<vmem>>, %arg8: memref<1x8xf32, #tpu.memory_space<vmem>>, %arg9: memref<164x1xf32, #tpu.memory_space<vmem>>, %arg10: memref<16x12xf32, #tpu.memory_space<vmem>>, %arg11: memref<16x12xf32, #tpu.memory_space<vmem>>, %arg12: memref<16x8xf32, #tpu.memory_space<vmem>>, %arg13: memref<16x1xf32, #tpu.memory_space<vmem>>) attributes {dimension_semantics = [], scalar_prefetch = 0 : i64, scratch_operands = 0 : i64, tpu.core_type = #tpu.core_type<tc>} {
    %c0 = arith.constant 0 : index
    %c0_0 = arith.constant 0 : index
    %0 = vector.load %arg0[%c0, %c0_0] : memref<16x128xf32, #tpu.memory_space<vmem>>, vector<16x128xf32>
    %c0_1 = arith.constant 0 : index
    %c0_2 = arith.constant 0 : index
    %1 = vector.load %arg1[%c0_1, %c0_2] : memref<128x768xf32, #tpu.memory_space<vmem>>, vector<128x768xf32>
    %cst = arith.constant dense<0.000000e+00> : vector<16x768xf32>
    %2 = tpu.matmul %0, %1, %cst {dimension_numbers = #tpu.dot_dimension_numbers<[1], [0], [0], [1], [0, 0, 1, 1], [], []>} : vector<16x128xf32>, vector<128x768xf32>, vector<16x768xf32> -> vector<16x768xf32>
    %c0_3 = arith.constant 0 : index
    %c0_4 = arith.constant 0 : index
    %3 = vector.load %arg2[%c0_3, %c0_4] : memref<1x768xf32, #tpu.memory_space<vmem>>, vector<1x768xf32>
    %4 = vector.broadcast %3 : vector<1x768xf32> to vector<16x768xf32>
    %5 = arith.addf %2, %4 : vector<16x768xf32>
    %6 = vector.extract_strided_slice %5 {offsets = [0, 0], sizes = [16, 164], strides = [1, 1]} : vector<16x768xf32> to vector<16x164xf32>
    %c0_5 = arith.constant 0 : index
    %c0_6 = arith.constant 0 : index
    %7 = vector.load %arg3[%c0_5, %c0_6] : memref<1x768xf32, #tpu.memory_space<vmem>>, vector<1x164xf32>
    %c0_7 = arith.constant 0 : index
    %c0_8 = arith.constant 0 : index
    %8 = vector.load %arg4[%c0_7, %c0_8] : memref<1x768xf32, #tpu.memory_space<vmem>>, vector<1x164xf32>
    %cst_9 = arith.constant dense<0.000000e+00> : vector<16xf32>
    %9 = vector.multi_reduction <add>, %6, %cst_9 [1] : vector<16x164xf32> to vector<16xf32>
    %10 = vector.shape_cast %9 : vector<16xf32> to vector<16x1xf32>
    %cst_10 = arith.constant 1.640000e+02 : f32
    %11 = vector.broadcast %cst_10 : f32 to vector<16x1xf32>
    %12 = arith.divf %10, %11 : vector<16x1xf32>
    %13 = vector.broadcast %12 : vector<16x1xf32> to vector<16x164xf32>
    %14 = arith.subf %6, %13 : vector<16x164xf32>
    %15 = arith.mulf %14, %14 : vector<16x164xf32>
    %cst_11 = arith.constant dense<0.000000e+00> : vector<16xf32>
    %16 = vector.multi_reduction <add>, %15, %cst_11 [1] : vector<16x164xf32> to vector<16xf32>
    %17 = vector.shape_cast %16 : vector<16xf32> to vector<16x1xf32>
    %cst_12 = arith.constant 1.640000e+02 : f32
    %18 = vector.broadcast %cst_12 : f32 to vector<16x1xf32>
    %19 = arith.divf %17, %18 : vector<16x1xf32>
    %20 = vector.broadcast %12 : vector<16x1xf32> to vector<16x164xf32>
    %21 = arith.subf %6, %20 : vector<16x164xf32>
    %cst_13 = arith.constant 9.99999974E-6 : f32
    %22 = vector.broadcast %cst_13 : f32 to vector<16x1xf32>
    %23 = arith.addf %19, %22 : vector<16x1xf32>
    %24 = math.rsqrt %23 : vector<16x1xf32>
    %25 = vector.broadcast %24 : vector<16x1xf32> to vector<16x164xf32>
    %26 = arith.mulf %21, %25 : vector<16x164xf32>
    %27 = vector.broadcast %7 : vector<1x164xf32> to vector<16x164xf32>
    %28 = arith.mulf %26, %27 : vector<16x164xf32>
    %29 = vector.broadcast %8 : vector<1x164xf32> to vector<16x164xf32>
    %30 = arith.addf %28, %29 : vector<16x164xf32>
    %cst_14 = arith.constant 0.000000e+00 : f32
    %31 = vector.broadcast %cst_14 : f32 to vector<16x164xf32>
    %32 = arith.maximumf %30, %31 : vector<16x164xf32>
    %33 = vector.extract_strided_slice %5 {offsets = [0, 256], sizes = [16, 164], strides = [1, 1]} : vector<16x768xf32> to vector<16x164xf32>
    %c0_15 = arith.constant 0 : index
    %c256 = arith.constant 256 : index
    %34 = vector.load %arg3[%c0_15, %c256] : memref<1x768xf32, #tpu.memory_space<vmem>>, vector<1x164xf32>
    %c0_16 = arith.constant 0 : index
    %c256_17 = arith.constant 256 : index
    %35 = vector.load %arg4[%c0_16, %c256_17] : memref<1x768xf32, #tpu.memory_space<vmem>>, vector<1x164xf32>
    %cst_18 = arith.constant dense<0.000000e+00> : vector<16xf32>
    %36 = vector.multi_reduction <add>, %33, %cst_18 [1] : vector<16x164xf32> to vector<16xf32>
    %37 = vector.shape_cast %36 : vector<16xf32> to vector<16x1xf32>
    %cst_19 = arith.constant 1.640000e+02 : f32
    %38 = vector.broadcast %cst_19 : f32 to vector<16x1xf32>
    %39 = arith.divf %37, %38 : vector<16x1xf32>
    %40 = vector.broadcast %39 : vector<16x1xf32> to vector<16x164xf32>
    %41 = arith.subf %33, %40 : vector<16x164xf32>
    %42 = arith.mulf %41, %41 : vector<16x164xf32>
    %cst_20 = arith.constant dense<0.000000e+00> : vector<16xf32>
    %43 = vector.multi_reduction <add>, %42, %cst_20 [1] : vector<16x164xf32> to vector<16xf32>
    %44 = vector.shape_cast %43 : vector<16xf32> to vector<16x1xf32>
    %cst_21 = arith.constant 1.640000e+02 : f32
    %45 = vector.broadcast %cst_21 : f32 to vector<16x1xf32>
    %46 = arith.divf %44, %45 : vector<16x1xf32>
    %47 = vector.broadcast %39 : vector<16x1xf32> to vector<16x164xf32>
    %48 = arith.subf %33, %47 : vector<16x164xf32>
    %cst_22 = arith.constant 9.99999974E-6 : f32
    %49 = vector.broadcast %cst_22 : f32 to vector<16x1xf32>
    %50 = arith.addf %46, %49 : vector<16x1xf32>
    %51 = math.rsqrt %50 : vector<16x1xf32>
    %52 = vector.broadcast %51 : vector<16x1xf32> to vector<16x164xf32>
    %53 = arith.mulf %48, %52 : vector<16x164xf32>
    %54 = vector.broadcast %34 : vector<1x164xf32> to vector<16x164xf32>
    %55 = arith.mulf %53, %54 : vector<16x164xf32>
    %56 = vector.broadcast %35 : vector<1x164xf32> to vector<16x164xf32>
    %57 = arith.addf %55, %56 : vector<16x164xf32>
    %cst_23 = arith.constant 0.000000e+00 : f32
    %58 = vector.broadcast %cst_23 : f32 to vector<16x164xf32>
    %59 = arith.maximumf %57, %58 : vector<16x164xf32>
    %60 = vector.extract_strided_slice %5 {offsets = [0, 512], sizes = [16, 164], strides = [1, 1]} : vector<16x768xf32> to vector<16x164xf32>
    %c0_24 = arith.constant 0 : index
    %c512 = arith.constant 512 : index
    %61 = vector.load %arg3[%c0_24, %c512] : memref<1x768xf32, #tpu.memory_space<vmem>>, vector<1x164xf32>
    %c0_25 = arith.constant 0 : index
    %c512_26 = arith.constant 512 : index
    %62 = vector.load %arg4[%c0_25, %c512_26] : memref<1x768xf32, #tpu.memory_space<vmem>>, vector<1x164xf32>
    %cst_27 = arith.constant dense<0.000000e+00> : vector<16xf32>
    %63 = vector.multi_reduction <add>, %60, %cst_27 [1] : vector<16x164xf32> to vector<16xf32>
    %64 = vector.shape_cast %63 : vector<16xf32> to vector<16x1xf32>
    %cst_28 = arith.constant 1.640000e+02 : f32
    %65 = vector.broadcast %cst_28 : f32 to vector<16x1xf32>
    %66 = arith.divf %64, %65 : vector<16x1xf32>
    %67 = vector.broadcast %66 : vector<16x1xf32> to vector<16x164xf32>
    %68 = arith.subf %60, %67 : vector<16x164xf32>
    %69 = arith.mulf %68, %68 : vector<16x164xf32>
    %cst_29 = arith.constant dense<0.000000e+00> : vector<16xf32>
    %70 = vector.multi_reduction <add>, %69, %cst_29 [1] : vector<16x164xf32> to vector<16xf32>
    %71 = vector.shape_cast %70 : vector<16xf32> to vector<16x1xf32>
    %cst_30 = arith.constant 1.640000e+02 : f32
    %72 = vector.broadcast %cst_30 : f32 to vector<16x1xf32>
    %73 = arith.divf %71, %72 : vector<16x1xf32>
    %74 = vector.broadcast %66 : vector<16x1xf32> to vector<16x164xf32>
    %75 = arith.subf %60, %74 : vector<16x164xf32>
    %cst_31 = arith.constant 9.99999974E-6 : f32
    %76 = vector.broadcast %cst_31 : f32 to vector<16x1xf32>
    %77 = arith.addf %73, %76 : vector<16x1xf32>
    %78 = math.rsqrt %77 : vector<16x1xf32>
    %79 = vector.broadcast %78 : vector<16x1xf32> to vector<16x164xf32>
    %80 = arith.mulf %75, %79 : vector<16x164xf32>
    %81 = vector.broadcast %61 : vector<1x164xf32> to vector<16x164xf32>
    %82 = arith.mulf %80, %81 : vector<16x164xf32>
    %83 = vector.broadcast %62 : vector<1x164xf32> to vector<16x164xf32>
    %84 = arith.addf %82, %83 : vector<16x164xf32>
    %cst_32 = arith.constant 0.000000e+00 : f32
    %85 = vector.broadcast %cst_32 : f32 to vector<16x164xf32>
    %86 = arith.maximumf %84, %85 : vector<16x164xf32>
    %c0_33 = arith.constant 0 : index
    %c0_34 = arith.constant 0 : index
    %87 = vector.load %arg5[%c0_33, %c0_34] : memref<164x12xf32, #tpu.memory_space<vmem>>, vector<164x12xf32>
    %cst_35 = arith.constant dense<0.000000e+00> : vector<16x12xf32>
    %88 = tpu.matmul %32, %87, %cst_35 {dimension_numbers = #tpu.dot_dimension_numbers<[1], [0], [0], [1], [0, 0, 1, 1], [], []>} : vector<16x164xf32>, vector<164x12xf32>, vector<16x12xf32> -> vector<16x12xf32>
    %c0_36 = arith.constant 0 : index
    %c0_37 = arith.constant 0 : index
    %89 = vector.load %arg6[%c0_36, %c0_37] : memref<1x12xf32, #tpu.memory_space<vmem>>, vector<1x12xf32>
    %90 = vector.broadcast %89 : vector<1x12xf32> to vector<16x12xf32>
    %91 = arith.addf %88, %90 : vector<16x12xf32>
    %c0_38 = arith.constant 0 : index
    %c0_39 = arith.constant 0 : index
    %92 = vector.load %arg7[%c0_38, %c0_39] : memref<164x8xf32, #tpu.memory_space<vmem>>, vector<164x8xf32>
    %cst_40 = arith.constant dense<0.000000e+00> : vector<16x8xf32>
    %93 = tpu.matmul %59, %92, %cst_40 {dimension_numbers = #tpu.dot_dimension_numbers<[1], [0], [0], [1], [0, 0, 1, 1], [], []>} : vector<16x164xf32>, vector<164x8xf32>, vector<16x8xf32> -> vector<16x8xf32>
    %c0_41 = arith.constant 0 : index
    %c0_42 = arith.constant 0 : index
    %94 = vector.load %arg8[%c0_41, %c0_42] : memref<1x8xf32, #tpu.memory_space<vmem>>, vector<1x8xf32>
    %95 = vector.broadcast %94 : vector<1x8xf32> to vector<16x8xf32>
    %96 = arith.addf %93, %95 : vector<16x8xf32>
    %c0_43 = arith.constant 0 : index
    %c0_44 = arith.constant 0 : index
    %97 = vector.load %arg9[%c0_43, %c0_44] : memref<164x1xf32, #tpu.memory_space<vmem>>, vector<164x1xf32>
    %cst_45 = arith.constant dense<0.000000e+00> : vector<16x1xf32>
    %98 = tpu.matmul %86, %97, %cst_45 {dimension_numbers = #tpu.dot_dimension_numbers<[1], [0], [0], [1], [0, 0, 1, 1], [], []>} : vector<16x164xf32>, vector<164x1xf32>, vector<16x1xf32> -> vector<16x1xf32>
    %c0_46 = arith.constant 0 : index
    %c0_47 = arith.constant 0 : index
    %99 = vector.load %arg10[%c0_46, %c0_47] : memref<16x12xf32, #tpu.memory_space<vmem>>, vector<16x12xf32>
    %cst_48 = arith.constant 1.000000e+00 : f32
    %100 = vector.broadcast %cst_48 : f32 to vector<16x12xf32>
    %101 = arith.subf %99, %100 : vector<16x12xf32>
    %cst_49 = arith.constant 1.000000e+07 : f32
    %102 = vector.broadcast %cst_49 : f32 to vector<16x12xf32>
    %103 = arith.mulf %101, %102 : vector<16x12xf32>
    %104 = arith.addf %91, %103 : vector<16x12xf32>
    %cst_50 = arith.constant dense<0xFF800000> : vector<16xf32>
    %105 = vector.multi_reduction <maximumf>, %104, %cst_50 [1] : vector<16x12xf32> to vector<16xf32>
    %106 = vector.shape_cast %105 : vector<16xf32> to vector<16x1xf32>
    %107 = vector.broadcast %106 : vector<16x1xf32> to vector<16x12xf32>
    %108 = arith.subf %104, %107 : vector<16x12xf32>
    %109 = math.exp %108 : vector<16x12xf32>
    %cst_51 = arith.constant dense<0.000000e+00> : vector<16xf32>
    %110 = vector.multi_reduction <add>, %109, %cst_51 [1] : vector<16x12xf32> to vector<16xf32>
    %111 = vector.shape_cast %110 : vector<16xf32> to vector<16x1xf32>
    %112 = vector.broadcast %111 : vector<16x1xf32> to vector<16x12xf32>
    %113 = arith.divf %109, %112 : vector<16x12xf32>
    %c0_52 = arith.constant 0 : index
    %c0_53 = arith.constant 0 : index
    %114 = vector.load %arg11[%c0_52, %c0_53] : memref<16x12xf32, #tpu.memory_space<vmem>>, vector<16x12xf32>
    tpu.vector_store %arg11[%c0_52, %c0_53], %113 {strides = array<i32>} : memref<16x12xf32, #tpu.memory_space<vmem>>, vector<16x12xf32>,
    %cst_54 = arith.constant dense<0xFF800000> : vector<16xf32>
    %115 = vector.multi_reduction <maximumf>, %96, %cst_54 [1] : vector<16x8xf32> to vector<16xf32>
    %116 = vector.shape_cast %115 : vector<16xf32> to vector<16x1xf32>
    %117 = vector.broadcast %116 : vector<16x1xf32> to vector<16x8xf32>
    %118 = arith.subf %96, %117 : vector<16x8xf32>
    %119 = math.exp %118 : vector<16x8xf32>
    %cst_55 = arith.constant dense<0.000000e+00> : vector<16xf32>
    %120 = vector.multi_reduction <add>, %119, %cst_55 [1] : vector<16x8xf32> to vector<16xf32>
    %121 = vector.shape_cast %120 : vector<16xf32> to vector<16x1xf32>
    %122 = vector.broadcast %121 : vector<16x1xf32> to vector<16x8xf32>
    %123 = arith.divf %119, %122 : vector<16x8xf32>
    %c0_56 = arith.constant 0 : index
    %c0_57 = arith.constant 0 : index
    %124 = vector.load %arg12[%c0_56, %c0_57] : memref<16x8xf32, #tpu.memory_space<vmem>>, vector<16x8xf32>
    tpu.vector_store %arg12[%c0_56, %c0_57], %123 {strides = array<i32>} : memref<16x8xf32, #tpu.memory_space<vmem>>, vector<16x8xf32>,
    %c0_58 = arith.constant 0 : index
    %c0_59 = arith.constant 0 : index
    %125 = vector.load %arg13[%c0_58, %c0_59] : memref<16x1xf32, #tpu.memory_space<vmem>>, vector<16x1xf32>
    tpu.vector_store %arg13[%c0_58, %c0_59], %98 {strides = array<i32>} : memref<16x1xf32, #tpu.memory_space<vmem>>, vector<16x1xf32>,
    return
  }
}

</mosaic_0001>

<llo_original>
// kernel: forward.9
$region0: #{forward.9}
  #allocation0 [shape = 'u32[]', space=smem, size = 0x4, offset = 0x4, fixed_abs, tag = 'smem constant byte address 0x4 - core index']
  #allocation1 [shape = 'u32[144,128]{1,0:T(1,128)}', space=vmem, size = 0x12000, scoped, tag = 'internal scratch']
  %s0 = inlined_call_operand.vmem [shape: f32[16,38], index: 0, kind: input, shape index: {}]
  %s1 = inlined_call_operand.vmem [shape: f32[38,640], index: 1, kind: input, shape index: {}]
  %s2 = inlined_call_operand.vmem [shape: f32[1,640], index: 2, kind: input, shape index: {}]
  %s3 = inlined_call_operand.vmem [shape: f32[1,640], index: 3, kind: input, shape index: {}]
  %s4 = inlined_call_operand.vmem [shape: f32[1,640], index: 4, kind: input, shape index: {}]
  %s5 = inlined_call_operand.vmem [shape: f32[16,64], index: 5, kind: output, shape index: {0}]
  %s6 = inlined_call_operand.vmem [shape: f32[16,64], index: 6, kind: output, shape index: {1}]
  %s7 = inlined_call_operand.vmem [shape: f32[16,64], index: 7, kind: output, shape index: {2}]
  %s8 = inlined_call_operand.vmem [shape: f32[16,48], index: 8, kind: output, shape index: {3}]
  %s9 = inlined_call_operand.vmem [shape: f32[16,48], index: 9, kind: output, shape index: {4}]
  %10 = xla_tuple %s5, %s6, %s7, %s8, %s9
  %s11 = sld [smem:[#allocation0]]
  $region62: #{forward.9} parent=0
    _
  %s13 = ssub.s32 1, %s11
  %s14 = scalar_select 0, %s13, %s11
  // Predicated region
  $region2: #{forward.9} parent=0 // pred_check
    _
  $region3: #{forward.9} parent=0 // pred_check_branch
    %16 = sbr.rel (0) target = $region5
  $region4: #{forward.9} parent=0 // pred_region
    _
  $region5: #{forward.9} parent=0 // pred_fallthru
    _
  // Predicated region
  $region6: #{forward.9} parent=0 // pred_check
    _
  $region7: #{forward.9} parent=0 // pred_check_branch
    %18 = sbr.rel (0) target = $region9
  $region8: #{forward.9} parent=0 // pred_region
    _
  $region9: #{forward.9} parent=0 // pred_fallthru
    _
  // Predicated region
  $region10: #{forward.9} parent=0 // pred_check
    _
  $region11: #{forward.9} parent=0 // pred_check_branch
    %20 = sbr.rel (0) target = $region13
  $region12: #{forward.9} parent=0 // pred_region
    _
  $region13: #{forward.9} parent=0 // pred_fallthru
    _
  // Predicated region
  $region14: #{forward.9} parent=0 // pred_check
    _
  $region15: #{forward.9} parent=0 // pred_check_branch
    %22 = sbr.rel (0) target = $region17
  $region16: #{forward.9} parent=0 // pred_region
    _
  $region17: #{forward.9} parent=0 // pred_fallthru
    _
  // Predicated region
  $region18: #{forward.9} parent=0 // pred_check
    _
  $region19: #{forward.9} parent=0 // pred_check_branch
    %24 = sbr.rel (0) target = $region21
  $region20: #{forward.9} parent=0 // pred_region
    _
  $region21: #{forward.9} parent=0 // pred_fallthru
    _
  %v25 = vld [vmem:[%s0] sm:$0xff]
  %v26 = vld [vmem:[%s0 + $0x8] sm:$0xff]
  %v27 = vld [vmem:[%s1] sm:$0xff]
  %v28 = vld [vmem:[%s1 + $0x8] sm:$0xff]
  %v29 = vld [vmem:[%s1 + $0x10] sm:$0xff]
  %v30 = vld [vmem:[%s1 + $0x18] sm:$0xff]
  %v31 = vld [vmem:[%s1 + $0x20] sm:$0xff]
  %v32 = vld [vmem:[%s1 + $0x28] sm:$0xff]
  %v33 = vld [vmem:[%s1 + $0x30] sm:$0xff]
  %v34 = vld [vmem:[%s1 + $0x38] sm:$0xff]
  %v35 = vld [vmem:[%s1 + $0x40] sm:$0xff]
  %v36 = vld [vmem:[%s1 + $0x48] sm:$0xff]
  %v37 = vld [vmem:[%s1 + $0x50] sm:$0xff]
  %v38 = vld [vmem:[%s1 + $0x58] sm:$0xff]
  %v39 = vld [vmem:[%s1 + $0x60] sm:$0xff]
  %v40 = vld [vmem:[%s1 + $0x68] sm:$0xff]
  %v41 = vld [vmem:[%s1 + $0x70] sm:$0xff]
  %v42 = vld [vmem:[%s1 + $0x78] sm:$0xff]
  %v43 = vld [vmem:[%s1 + $0x80] sm:$0xff]
  %v44 = vld [vmem:[%s1 + $0x88] sm:$0xff]
  %v45 = vld [vmem:[%s1 + $0x90] sm:$0xff]
  %v46 = vld [vmem:[%s1 + $0x98] sm:$0xff]
  %v47 = vld [vmem:[%s1 + $0xa0] sm:$0x3f]
  %v48 = vld [vmem:[%s1 + $0xa8] sm:$0x3f]
  %v49 = vld [vmem:[%s1 + $0xb0] sm:$0x3f]
  %v50 = vld [vmem:[%s1 + $0xb8] sm:$0x3f]
  %v51 = vld [vmem:[%s1 + $0xc0] sm:$0x3f]
  %v52 = vld [vmem:[%s2] sm:$0x1f]
  %v54 = vlaneseq
  %v55 = vshrl.u32 %v54, 7
  %v56 = vsub.s32 0, %v55
  %v57 = vrot.slane %v52, %v56
  %v58 = vlaneseq
  %v59 = vshrl.u32 %v58, 7
  %v60 = vsub.s32 1, %v59
  %v61 = vrot.slane %v52, %v60
  %v62 = vlaneseq
  %v63 = vshrl.u32 %v62, 7
  %v64 = vsub.s32 2, %v63
  %v65 = vrot.slane %v52, %v64
  %v66 = vlaneseq
  %v67 = vshrl.u32 %v66, 7
  %v68 = vsub.s32 3, %v67
  %v69 = vrot.slane %v52, %v68
  %v70 = vlaneseq
  %v71 = vshrl.u32 %v70, 7
  %v72 = vsub.s32 4, %v71
  %v73 = vrot.slane %v52, %v72
  %vm79 = vcmask 310272
  %v81 = vsel %vm79, %v25, 0
  %v84 = vsel %vm79, %v26, 0
  %vm86 = vcmask 1045504
  %v88 = vsel %vm86, %v47, 0
  %v91 = vsel %vm86, %v48, 0
  %v94 = vsel %vm86, %v49, 0
  %v97 = vsel %vm86, %v50, 0
  %v100 = vsel %vm86, %v51, 0
  %102 = vmatprep.subr.mxu0 %v28
  %103 = vmatpush1.msra.mxu0 %v27
  %104 = vmatprep.subr.mxu0 %v33
  %105 = vmatpush1.msra.mxu0 %v32
  %106 = vmatprep.subr.mxu0 %v38
  %107 = vmatpush1.msra.mxu0 %v37
  %108 = vmatprep.subr.mxu0 %v43
  %109 = vmatpush1.msra.mxu0 %v42
  %110 = vmatprep.subr.mxu0 %v91
  %111 = vmatpush1.msra.mxu0 %v88
  %112 = vmatprep.subr.mxu0 0.0
  %113 = vmatpush1.msra.mxu0 0.0
  %114 = vmatprep.subr.mxu0 0.0
  %115 = vmatpush1.msra.mxu0 0.0
  %116 = vmatprep.subr.mxu0 0.0
  %117 = vmatpush1.msra.mxu0 0.0
  %118 = vmatprep.subr.mxu0 0.0
  %119 = vmatpush1.msra.mxu0 0.0
  %120 = vmatprep.subr.mxu0 0.0
  %121 = vmatpush1.msra.mxu0 0.0
  %122 = vmatprep.subr.mxu0 0.0
  %123 = vmatpush1.msra.mxu0 0.0
  %124 = vmatprep.subr.mxu0 0.0
  %125 = vmatpush1.msra.mxu0 0.0
  %126 = vmatprep.subr.mxu0 0.0
  %127 = vmatpush1.msra.mxu0 0.0
  %128 = vmatprep.subr.mxu0 0.0
  %129 = vmatpush1.msra.mxu0 0.0
  %130 = vmatprep.subr.mxu0 0.0
  %131 = vmatpush1.msra.mxu0 0.0
  %132 = vmatprep.subr.mxu0 0.0
  %133 = vmatpush1.msra.mxu0 0.0
  %134 = vmatprep.subr.mxu0 0.0
  %135 = vmatpush1.msra.mxu0 0.0
  %136 = vmatprep.subr.mxu0 0.0
  %137 = vmatpush1.msra.mxu0 0.0
  %138 = vmatprep.subr.mxu0 0.0
  %139 = vmatpush1.msra.mxu0 0.0
  %140 = vmatprep.subr.mxu0 0.0
  %141 = vmatpush1.msra.mxu0 0.0
  %142 = vmatprep.subr.mxu0 0.0
  %143 = vmatpush1.msra.mxu0 0.0
  %144 = vmatprep.subr.mxu0 0.0
  %145 = vmatpush1.msra.mxu0 0.0
  %146 = vmatprep.subr.mxu0 0.0
  %147 = vmatpush1.msra.mxu0 0.0
  %148 = vmatprep.subr.mxu0 0.0
  %149 = vmatpush1.msra.mxu0 0.0
  %150 = vmatprep.subr.mxu0 0.0
  %151 = vmatpush1.msra.mxu0 0.0
  %152 = vmatprep.subr.mxu0 0.0
  %153 = vmatpush1.msra.mxu0 0.0
  %154 = vmatprep.subr.mxu0 0.0
  %155 = vmatpush1.msra.mxu0 0.0
  %156 = vmatprep.subr.mxu0 0.0
  %157 = vmatpush1.msra.mxu0 0.0
  %158 = vmatprep.subr.mxu0 0.0
  %159 = vmatpush1.msra.mxu0 0.0
  %160 = vmatprep.subr.mxu0 0.0
  %161 = vmatpush1.msra.mxu0 0.0
  %162 = vmatprep.subr.mxu0 0.0
  %163 = vmatpush1.msra.mxu0 0.0
  %164 = vmatprep.subr.mxu0 0.0
  %165 = vmatpush1.msra.mxu0 0.0
  %166 = vmatprep.mubr.f32.mxu0 0.0
  %167 = vmatmul.mubr.f32.gmra.mrb[0].mxu0 %v81
  %v168 = vpop.f32.mrb[0].mxu0
  %v169 = vadd.f32 %v57, %v168
  %v170 = vpop.f32.mrb[0].mxu0
  %v171 = vadd.f32 %v61, %v170
  %172 = vmatprep.mubr.f32.mxu0 0.0
  %173 = vmatmul.mubr.f32.gmra.mrb[0].mxu0 %v84
  %v174 = vpop.f32.mrb[0].mxu0
  %v175 = vadd.f32 %v57, %v174
  %v176 = vpop.f32.mrb[0].mxu0
  %v177 = vadd.f32 %v61, %v176
  %178 = vdwg.mxu0
  %179 = vmatprep.subr.mxu0 %v30
  %180 = vmatpush1.msra.mxu0 %v29
  %181 = vmatprep.subr.mxu0 %v35
  %182 = vmatpush1.msra.mxu0 %v34
  %183 = vmatprep.subr.mxu0 %v40
  %184 = vmatpush1.msra.mxu0 %v39
  %185 = vmatprep.subr.mxu0 %v45
  %186 = vmatpush1.msra.mxu0 %v44
  %187 = vmatprep.subr.mxu0 %v97
  %188 = vmatpush1.msra.mxu0 %v94
  %189 = vmatprep.subr.mxu0 0.0
  %190 = vmatpush1.msra.mxu0 0.0
  %191 = vmatprep.subr.mxu0 0.0
  %192 = vmatpush1.msra.mxu0 0.0
  %193 = vmatprep.subr.mxu0 0.0
  %194 = vmatpush1.msra.mxu0 0.0
  %195 = vmatprep.subr.mxu0 0.0
  %196 = vmatpush1.msra.mxu0 0.0
  %197 = vmatprep.subr.mxu0 0.0
  %198 = vmatpush1.msra.mxu0 0.0
  %199 = vmatprep.subr.mxu0 0.0
  %200 = vmatpush1.msra.mxu0 0.0
  %201 = vmatprep.subr.mxu0 0.0
  %202 = vmatpush1.msra.mxu0 0.0
  %203 = vmatprep.subr.mxu0 0.0
  %204 = vmatpush1.msra.mxu0 0.0
  %205 = vmatprep.subr.mxu0 0.0
  %206 = vmatpush1.msra.mxu0 0.0
  %207 = vmatprep.subr.mxu0 0.0
  %208 = vmatpush1.msra.mxu0 0.0
  %209 = vmatprep.subr.mxu0 0.0
  %210 = vmatpush1.msra.mxu0 0.0
  %211 = vmatprep.subr.mxu0 0.0
  %212 = vmatpush1.msra.mxu0 0.0
  %213 = vmatprep.subr.mxu0 0.0
  %214 = vmatpush1.msra.mxu0 0.0
  %215 = vmatprep.subr.mxu0 0.0
  %216 = vmatpush1.msra.mxu0 0.0
  %217 = vmatprep.subr.mxu0 0.0
  %218 = vmatpush1.msra.mxu0 0.0
  %219 = vmatprep.subr.mxu0 0.0
  %220 = vmatpush1.msra.mxu0 0.0
  %221 = vmatprep.subr.mxu0 0.0
  %222 = vmatpush1.msra.mxu0 0.0
  %223 = vmatprep.subr.mxu0 0.0
  %224 = vmatpush1.msra.mxu0 0.0
  %225 = vmatprep.subr.mxu0 0.0
  %226 = vmatpush1.msra.mxu0 0.0
  %227 = vmatprep.subr.mxu0 0.0
  %228 = vmatpush1.msra.mxu0 0.0
  %229 = vmatprep.subr.mxu0 0.0
  %230 = vmatpush1.msra.mxu0 0.0
  %231 = vmatprep.subr.mxu0 0.0
  %232 = vmatpush1.msra.mxu0 0.0
  %233 = vmatprep.subr.mxu0 0.0
  %234 = vmatpush1.msra.mxu0 0.0
  %235 = vmatprep.subr.mxu0 0.0
  %236 = vmatpush1.msra.mxu0 0.0
  %237 = vmatprep.subr.mxu0 0.0
  %238 = vmatpush1.msra.mxu0 0.0
  %239 = vmatprep.subr.mxu0 0.0
  %240 = vmatpush1.msra.mxu0 0.0
  %241 = vmatprep.subr.mxu0 0.0
  %242 = vmatpush1.msra.mxu0 0.0
  %243 = vmatprep.mubr.f32.mxu0 0.0
  %244 = vmatmul.mubr.f32.gmra.mrb[0].mxu0 %v81
  %v245 = vpop.f32.mrb[0].mxu0
  %v246 = vadd.f32 %v65, %v245
  %v247 = vpop.f32.mrb[0].mxu0
  %v248 = vadd.f32 %v69, %v247
  %249 = vmatprep.mubr.f32.mxu0 0.0
  %250 = vmatmul.mubr.f32.gmra.mrb[0].mxu0 %v84
  %v251 = vpop.f32.mrb[0].mxu0
  %v252 = vadd.f32 %v65, %v251
  %v253 = vpop.f32.mrb[0].mxu0
  %v254 = vadd.f32 %v69, %v253
  %255 = vdwg.mxu0
  %256 = vmatprep.subr.mxu0 0.0
  %257 = vmatpush1.msra.mxu0 %v31
  %258 = vmatprep.subr.mxu0 0.0
  %259 = vmatpush1.msra.mxu0 %v36
  %260 = vmatprep.subr.mxu0 0.0
  %261 = vmatpush1.msra.mxu0 %v41
  %262 = vmatprep.subr.mxu0 0.0
  %263 = vmatpush1.msra.mxu0 %v46
  %264 = vmatprep.subr.mxu0 0.0
  %265 = vmatpush1.msra.mxu0 %v100
  %266 = vmatprep.subr.mxu0 0.0
  %267 = vmatpush1.msra.mxu0 0.0
  %268 = vmatprep.subr.mxu0 0.0
  %269 = vmatpush1.msra.mxu0 0.0
  %270 = vmatprep.subr.mxu0 0.0
  %271 = vmatpush1.msra.mxu0 0.0
  %272 = vmatprep.subr.mxu0 0.0
  %273 = vmatpush1.msra.mxu0 0.0
  %274 = vmatprep.subr.mxu0 0.0
  %275 = vmatpush1.msra.mxu0 0.0
  %276 = vmatprep.subr.mxu0 0.0
  %277 = vmatpush1.msra.mxu0 0.0
  %278 = vmatprep.subr.mxu0 0.0
  %279 = vmatpush1.msra.mxu0 0.0
  %280 = vmatprep.subr.mxu0 0.0
  %281 = vmatpush1.msra.mxu0 0.0
  %282 = vmatprep.subr.mxu0 0.0
  %283 = vmatpush1.msra.mxu0 0.0
  %284 = vmatprep.subr.mxu0 0.0
  %285 = vmatpush1.msra.mxu0 0.0
  %286 = vmatprep.subr.mxu0 0.0
  %287 = vmatpush1.msra.mxu0 0.0
  %288 = vmatprep.subr.mxu0 0.0
  %289 = vmatpush1.msra.mxu0 0.0
  %290 = vmatprep.subr.mxu0 0.0
  %291 = vmatpush1.msra.mxu0 0.0
  %292 = vmatprep.subr.mxu0 0.0
  %293 = vmatpush1.msra.mxu0 0.0
  %294 = vmatprep.subr.mxu0 0.0
  %295 = vmatpush1.msra.mxu0 0.0
  %296 = vmatprep.subr.mxu0 0.0
  %297 = vmatpush1.msra.mxu0 0.0
  %298 = vmatprep.subr.mxu0 0.0
  %299 = vmatpush1.msra.mxu0 0.0
  %300 = vmatprep.subr.mxu0 0.0
  %301 = vmatpush1.msra.mxu0 0.0
  %302 = vmatprep.subr.mxu0 0.0
  %303 = vmatpush1.msra.mxu0 0.0
  %304 = vmatprep.subr.mxu0 0.0
  %305 = vmatpush1.msra.mxu0 0.0
  %306 = vmatprep.subr.mxu0 0.0
  %307 = vmatpush1.msra.mxu0 0.0
  %308 = vmatprep.subr.mxu0 0.0
  %309 = vmatpush1.msra.mxu0 0.0
  %310 = vmatprep.subr.mxu0 0.0
  %311 = vmatpush1.msra.mxu0 0.0
  %312 = vmatprep.subr.mxu0 0.0
  %313 = vmatpush1.msra.mxu0 0.0
  %314 = vmatprep.subr.mxu0 0.0
  %315 = vmatpush1.msra.mxu0 0.0
  %316 = vmatprep.subr.mxu0 0.0
  %317 = vmatpush1.msra.mxu0 0.0
  %318 = vmatprep.subr.mxu0 0.0
  %319 = vmatpush1.msra.mxu0 0.0
  %320 = vmatprep.mubr.f32.mxu0 0.0
  %321 = vmatmul.mubr.f32.gmra.mrb[0].mxu0 %v81
  %v322 = vpop.f32.mrb[0].mxu0
  %v323 = vadd.f32 %v73, %v322
  %v324 = vpop.f32.mrb[0].mxu0
  %325 = vmatprep.mubr.f32.mxu0 0.0
  %326 = vmatmul.mubr.f32.gmra.mrb[0].mxu0 %v84
  %v327 = vpop.f32.mrb[0].mxu0
  %v328 = vadd.f32 %v73, %v327
  %v329 = vpop.f32.mrb[0].mxu0
  %330 = vdwg.mxu0
  %v331 = vld [vmem:[%s3] sm:$0x1]
  %v332 = vld [vmem:[%s4] sm:$0x1]
  %vm333 = vcmask 523264
  %v334 = vsel %vm333, %v169, 0.0
  %335 = vadd.xlane.f32.xlu0 %v334
  %v336 = vpop.xlane.xlu0 %335
  %v337 = vsel %vm333, %v175, 0.0
  %338 = vadd.xlane.f32.xlu0 %v337
  %v339 = vpop.xlane.xlu0 %338
  %v340 = vrcp.pop 64.0
  %v341 = vmul.f32 %v336, %v340
  %v342 = vmul.f32 %v339, %v340
  %v343 = vsub.f32 %v169, %v341
  %v344 = vsub.f32 %v175, %v342
  %v345 = vmul.f32 %v343, %v343
  %v346 = vmul.f32 %v344, %v344
  %v347 = vsel %vm333, %v345, 0.0
  %348 = vadd.xlane.f32.xlu0 %v347
  %v349 = vpop.xlane.xlu0 %348
  %v350 = vsel %vm333, %v346, 0.0
  %351 = vadd.xlane.f32.xlu0 %v350
  %v352 = vpop.xlane.xlu0 %351
  %v353 = vmul.f32 %v349, %v340
  %v354 = vmul.f32 %v352, %v340
  %v355 = vadd.f32 %v353, 1e-05
  %v356 = vadd.f32 %v354, 1e-05
  %v357 = vrsqrt.pop %v355
  %v358 = vrsqrt.pop %v356
  %v359 = vmul.f32 %v343, %v357
  %v360 = vmul.f32 %v344, %v358
  %v362 = vlaneseq
  %v363 = vshrl.u32 %v362, 7
  %v364 = vsub.s32 0, %v363
  %v365 = vrot.slane %v331, %v364
  %v367 = vmul.f32 %v359, %v365
  %v368 = vmul.f32 %v360, %v365
  %v370 = vlaneseq
  %v371 = vshrl.u32 %v370, 7
  %v372 = vsub.s32 0, %v371
  %v373 = vrot.slane %v332, %v372
  %v375 = vadd.f32 %v367, %v373
  %v376 = vadd.f32 %v368, %v373
  %v377 = vmax.f32 %v375, 0.0
  %v378 = vmax.f32 %v376, 0.0
  %379 = vst.msk [vmem:[%s5] sm:$0xff] %vm333, %v377
  %380 = vst.msk [vmem:[%s5 + $0x8] sm:$0xff] %vm333, %v378
  %v381 = vld [vmem:[%s3 + $0x1] sm:$0x1]
  %v382 = vld [vmem:[%s4 + $0x1] sm:$0x1]
  %v383 = vsel %vm333, %v171, 0.0
  %384 = vadd.xlane.f32.xlu0 %v383
  %v385 = vpop.xlane.xlu0 %384
  %v386 = vsel %vm333, %v177, 0.0
  %387 = vadd.xlane.f32.xlu0 %v386
  %v388 = vpop.xlane.xlu0 %387
  %v389 = vmul.f32 %v385, %v340
  %v390 = vmul.f32 %v388, %v340
  %v391 = vsub.f32 %v171, %v389
  %v392 = vsub.f32 %v177, %v390
  %v393 = vmul.f32 %v391, %v391
  %v394 = vmul.f32 %v392, %v392
  %v395 = vsel %vm333, %v393, 0.0
  %396 = vadd.xlane.f32.xlu0 %v395
  %v397 = vpop.xlane.xlu0 %396
  %v398 = vsel %vm333, %v394, 0.0
  %399 = vadd.xlane.f32.xlu0 %v398
  %v400 = vpop.xlane.xlu0 %399
  %v401 = vmul.f32 %v397, %v340
  %v402 = vmul.f32 %v400, %v340
  %v403 = vadd.f32 %v401, 1e-05
  %v404 = vadd.f32 %v402, 1e-05
  %v405 = vrsqrt.pop %v403
  %v406 = vrsqrt.pop %v404
  %v407 = vmul.f32 %v391, %v405
  %v408 = vmul.f32 %v392, %v406
  %v410 = vlaneseq
  %v411 = vshrl.u32 %v410, 7
  %v412 = vsub.s32 0, %v411
  %v413 = vrot.slane %v381, %v412
  %v415 = vmul.f32 %v407, %v413
  %v416 = vmul.f32 %v408, %v413
  %v418 = vlaneseq
  %v419 = vshrl.u32 %v418, 7
  %v420 = vsub.s32 0, %v419
  %v421 = vrot.slane %v382, %v420
  %v423 = vadd.f32 %v415, %v421
  %v424 = vadd.f32 %v416, %v421
  %v425 = vmax.f32 %v423, 0.0
  %v426 = vmax.f32 %v424, 0.0
  %427 = vst.msk [vmem:[%s6] sm:$0xff] %vm333, %v425
  %428 = vst.msk [vmem:[%s6 + $0x8] sm:$0xff] %vm333, %v426
  %v429 = vld [vmem:[%s3 + $0x2] sm:$0x1]
  %v430 = vld [vmem:[%s4 + $0x2] sm:$0x1]
  %v431 = vsel %vm333, %v246, 0.0
  %432 = vadd.xlane.f32.xlu0 %v431
  %v433 = vpop.xlane.xlu0 %432
  %v434 = vsel %vm333, %v252, 0.0
  %435 = vadd.xlane.f32.xlu0 %v434
  %v436 = vpop.xlane.xlu0 %435
  %v437 = vmul.f32 %v433, %v340
  %v438 = vmul.f32 %v436, %v340
  %v439 = vsub.f32 %v246, %v437
  %v440 = vsub.f32 %v252, %v438
  %v441 = vmul.f32 %v439, %v439
  %v442 = vmul.f32 %v440, %v440
  %v443 = vsel %vm333, %v441, 0.0
  %444 = vadd.xlane.f32.xlu0 %v443
  %v445 = vpop.xlane.xlu0 %444
  %v446 = vsel %vm333, %v442, 0.0
  %447 = vadd.xlane.f32.xlu0 %v446
  %v448 = vpop.xlane.xlu0 %447
  %v449 = vmul.f32 %v445, %v340
  %v450 = vmul.f32 %v448, %v340
  %v451 = vadd.f32 %v449, 1e-05
  %v452 = vadd.f32 %v450, 1e-05
  %v453 = vrsqrt.pop %v451
  %v454 = vrsqrt.pop %v452
  %v455 = vmul.f32 %v439, %v453
  %v456 = vmul.f32 %v440, %v454
  %v458 = vlaneseq
  %v459 = vshrl.u32 %v458, 7
  %v460 = vsub.s32 0, %v459
  %v461 = vrot.slane %v429, %v460
  %v463 = vmul.f32 %v455, %v461
  %v464 = vmul.f32 %v456, %v461
  %v466 = vlaneseq
  %v467 = vshrl.u32 %v466, 7
  %v468 = vsub.s32 0, %v467
  %v469 = vrot.slane %v430, %v468
  %v471 = vadd.f32 %v463, %v469
  %v472 = vadd.f32 %v464, %v469
  %v473 = vmax.f32 %v471, 0.0
  %v474 = vmax.f32 %v472, 0.0
  %475 = vst.msk [vmem:[%s7] sm:$0xff] %vm333, %v473
  %476 = vst.msk [vmem:[%s7 + $0x8] sm:$0xff] %vm333, %v474
  %v477 = vld [vmem:[%s3 + $0x3] sm:$0x1]
  %v478 = vld [vmem:[%s4 + $0x3] sm:$0x1]
  %vm479 = vcmask 392192
  %v480 = vsel %vm479, %v248, 0.0
  %481 = vadd.xlane.f32.xlu0 %v480
  %v482 = vpop.xlane.xlu0 %481
  %v483 = vsel %vm479, %v254, 0.0
  %484 = vadd.xlane.f32.xlu0 %v483
  %v485 = vpop.xlane.xlu0 %484
  %v486 = vrcp.pop 48.0
  %v487 = vmul.f32 %v482, %v486
  %v488 = vmul.f32 %v485, %v486
  %v489 = vsub.f32 %v248, %v487
  %v490 = vsub.f32 %v254, %v488
  %v491 = vmul.f32 %v489, %v489
  %v492 = vmul.f32 %v490, %v490
  %v493 = vsel %vm479, %v491, 0.0
  %494 = vadd.xlane.f32.xlu0 %v493
  %v495 = vpop.xlane.xlu0 %494
  %v496 = vsel %vm479, %v492, 0.0
  %497 = vadd.xlane.f32.xlu0 %v496
  %v498 = vpop.xlane.xlu0 %497
  %v499 = vmul.f32 %v495, %v486
  %v500 = vmul.f32 %v498, %v486
  %v501 = vadd.f32 %v499, 1e-05
  %v502 = vadd.f32 %v500, 1e-05
  %v503 = vrsqrt.pop %v501
  %v504 = vrsqrt.pop %v502
  %v505 = vmul.f32 %v489, %v503
  %v506 = vmul.f32 %v490, %v504
  %v508 = vlaneseq
  %v509 = vshrl.u32 %v508, 7
  %v510 = vsub.s32 0, %v509
  %v511 = vrot.slane %v477, %v510
  %v513 = vmul.f32 %v505, %v511
  %v514 = vmul.f32 %v506, %v511
  %v516 = vlaneseq
  %v517 = vshrl.u32 %v516, 7
  %v518 = vsub.s32 0, %v517
  %v519 = vrot.slane %v478, %v518
  %v521 = vadd.f32 %v513, %v519
  %v522 = vadd.f32 %v514, %v519
  %v523 = vmax.f32 %v521, 0.0
  %v524 = vmax.f32 %v522, 0.0
  %525 = vst.msk [vmem:[%s8] sm:$0xff] %vm479, %v523
  %526 = vst.msk [vmem:[%s8 + $0x8] sm:$0xff] %vm479, %v524
  %v527 = vld [vmem:[%s3 + $0x4] sm:$0x1]
  %v528 = vld [vmem:[%s4 + $0x4] sm:$0x1]
  %v529 = vsel %vm479, %v323, 0.0
  %530 = vadd.xlane.f32.xlu0 %v529
  %v531 = vpop.xlane.xlu0 %530
  %v532 = vsel %vm479, %v328, 0.0
  %533 = vadd.xlane.f32.xlu0 %v532
  %v534 = vpop.xlane.xlu0 %533
  %v535 = vmul.f32 %v531, %v486
  %v536 = vmul.f32 %v534, %v486
  %v537 = vsub.f32 %v323, %v535
  %v538 = vsub.f32 %v328, %v536
  %v539 = vmul.f32 %v537, %v537
  %v540 = vmul.f32 %v538, %v538
  %v541 = vsel %vm479, %v539, 0.0
  %542 = vadd.xlane.f32.xlu0 %v541
  %v543 = vpop.xlane.xlu0 %542
  %v544 = vsel %vm479, %v540, 0.0
  %545 = vadd.xlane.f32.xlu0 %v544
  %v546 = vpop.xlane.xlu0 %545
  %v547 = vmul.f32 %v543, %v486
  %v548 = vmul.f32 %v546, %v486
  %v549 = vadd.f32 %v547, 1e-05
  %v550 = vadd.f32 %v548, 1e-05
  %v551 = vrsqrt.pop %v549
  %v552 = vrsqrt.pop %v550
  %v553 = vmul.f32 %v537, %v551
  %v554 = vmul.f32 %v538, %v552
  %v556 = vlaneseq
  %v557 = vshrl.u32 %v556, 7
  %v558 = vsub.s32 0, %v557
  %v559 = vrot.slane %v527, %v558
  %v561 = vmul.f32 %v553, %v559
  %v562 = vmul.f32 %v554, %v559
  %v564 = vlaneseq
  %v565 = vshrl.u32 %v564, 7
  %v566 = vsub.s32 0, %v565
  %v567 = vrot.slane %v528, %v566
  %v569 = vadd.f32 %v561, %v567
  %v570 = vadd.f32 %v562, %v567
  %v571 = vmax.f32 %v569, 0.0
  %v572 = vmax.f32 %v570, 0.0
  %573 = vst.msk [vmem:[%s9] sm:$0xff] %vm479, %v571
  %574 = vst.msk [vmem:[%s9 + $0x8] sm:$0xff] %vm479, %v572
  // Predicated region
  $region22: #{forward.9} parent=0 // pred_check
    _
  $region23: #{forward.9} parent=0 // pred_check_branch
    %576 = sbr.rel (0) target = $region25
  $region24: #{forward.9} parent=0 // pred_region
    _
  $region25: #{forward.9} parent=0 // pred_fallthru
    _
  // Predicated region
  $region26: #{forward.9} parent=0 // pred_check
    _
  $region27: #{forward.9} parent=0 // pred_check_branch
    %578 = sbr.rel (0) target = $region29
  $region28: #{forward.9} parent=0 // pred_region
    _
  $region29: #{forward.9} parent=0 // pred_fallthru
    _
  // Predicated region
  $region30: #{forward.9} parent=0 // pred_check
    _
  $region31: #{forward.9} parent=0 // pred_check_branch
    %580 = sbr.rel (0) target = $region33
  $region32: #{forward.9} parent=0 // pred_region
    _
  $region33: #{forward.9} parent=0 // pred_fallthru
    _
  // Predicated region
  $region34: #{forward.9} parent=0 // pred_check
    _
  $region35: #{forward.9} parent=0 // pred_check_branch
    %582 = sbr.rel (0) target = $region37
  $region36: #{forward.9} parent=0 // pred_region
    _
  $region37: #{forward.9} parent=0 // pred_fallthru
    _
  // Predicated region
  $region38: #{forward.9} parent=0 // pred_check
    _
  $region39: #{forward.9} parent=0 // pred_check_branch
    %584 = sbr.rel (0) target = $region41
  $region40: #{forward.9} parent=0 // pred_region
    _
  $region41: #{forward.9} parent=0 // pred_fallthru
    _
  // Predicated region
  $region42: #{forward.9} parent=0 // pred_check
    _
  $region43: #{forward.9} parent=0 // pred_check_branch
    %586 = sbr.rel (0) target = $region45
  $region44: #{forward.9} parent=0 // pred_region
    _
  $region45: #{forward.9} parent=0 // pred_fallthru
    _
  // Predicated region
  $region46: #{forward.9} parent=0 // pred_check
    _
  $region47: #{forward.9} parent=0 // pred_check_branch
    %588 = sbr.rel (0) target = $region49
  $region48: #{forward.9} parent=0 // pred_region
    _
  $region49: #{forward.9} parent=0 // pred_fallthru
    _
  // Predicated region
  $region50: #{forward.9} parent=0 // pred_check
    _
  $region51: #{forward.9} parent=0 // pred_check_branch
    %590 = sbr.rel (0) target = $region53
  $region52: #{forward.9} parent=0 // pred_region
    _
  $region53: #{forward.9} parent=0 // pred_fallthru
    _
  // Predicated region
  $region54: #{forward.9} parent=0 // pred_check
    _
  $region55: #{forward.9} parent=0 // pred_check_branch
    %592 = sbr.rel (0) target = $region57
  $region56: #{forward.9} parent=0 // pred_region
    _
  $region57: #{forward.9} parent=0 // pred_fallthru
    _
  // Predicated region
  $region58: #{forward.9} parent=0 // pred_check
    _
  $region59: #{forward.9} parent=0 // pred_check_branch
    %594 = sbr.rel (0) target = $region61
  $region60: #{forward.9} parent=0 // pred_region
    _
  $region61: #{forward.9} parent=0 // pred_fallthru
    _

// kernel: forward.10
$region0: #{forward.10}
  #allocation0 [shape = 'u32[]', space=smem, size = 0x4, offset = 0x4, fixed_abs, tag = 'smem constant byte address 0x4 - core index']
  #allocation1 [shape = 'u32[144,128]{1,0:T(1,128)}', space=vmem, size = 0x12000, scoped, tag = 'internal scratch']
  %s0 = inlined_call_operand.vmem [shape: f32[176,7], index: 0, kind: input, shape index: {}]
  %s1 = inlined_call_operand.vmem [shape: f32[7,48], index: 1, kind: input, shape index: {}]
  %s2 = inlined_call_operand.vmem [shape: f32[1,48], index: 2, kind: input, shape index: {}]
  %s3 = inlined_call_operand.vmem [shape: f32[1,48], index: 3, kind: input, shape index: {}]
  %s4 = inlined_call_operand.vmem [shape: f32[1,48], index: 4, kind: input, shape index: {}]
  %s5 = inlined_call_operand.vmem [shape: f32[176,48], index: 5, kind: output, shape index: {}]
  %s6 = sld [smem:[#allocation0]]
  $region30: #{forward.10} parent=0
    _
  %s8 = ssub.s32 1, %s6
  %s9 = scalar_select 0, %s8, %s6
  // Predicated region
  $region2: #{forward.10} parent=0 // pred_check
    _
  $region3: #{forward.10} parent=0 // pred_check_branch
    %11 = sbr.rel (0) target = $region5
  $region4: #{forward.10} parent=0 // pred_region
    _
  $region5: #{forward.10} parent=0 // pred_fallthru
    _
  // Predicated region
  $region6: #{forward.10} parent=0 // pred_check
    _
  $region7: #{forward.10} parent=0 // pred_check_branch
    %13 = sbr.rel (0) target = $region9
  $region8: #{forward.10} parent=0 // pred_region
    _
  $region9: #{forward.10} parent=0 // pred_fallthru
    _
  // Predicated region
  $region10: #{forward.10} parent=0 // pred_check
    _
  $region11: #{forward.10} parent=0 // pred_check_branch
    %15 = sbr.rel (0) target = $region13
  $region12: #{forward.10} parent=0 // pred_region
    _
  $region13: #{forward.10} parent=0 // pred_fallthru
    _
  // Predicated region
  $region14: #{forward.10} parent=0 // pred_check
    _
  $region15: #{forward.10} parent=0 // pred_check_branch
    %17 = sbr.rel (0) target = $region17
  $region16: #{forward.10} parent=0 // pred_region
    _
  $region17: #{forward.10} parent=0 // pred_fallthru
    _
  // Predicated region
  $region18: #{forward.10} parent=0 // pred_check
    _
  $region19: #{forward.10} parent=0 // pred_check_branch
    %19 = sbr.rel (0) target = $region21
  $region20: #{forward.10} parent=0 // pred_region
    _
  $region21: #{forward.10} parent=0 // pred_fallthru
    _
  %v20 = vld [vmem:[%s0] sm:$0xff]
  %v21 = vld [vmem:[%s0 + $0x8] sm:$0xff]
  %v22 = vld [vmem:[%s0 + $0x10] sm:$0xff]
  %v23 = vld [vmem:[%s0 + $0x18] sm:$0xff]
  %v24 = vld [vmem:[%s0 + $0x20] sm:$0xff]
  %v25 = vld [vmem:[%s0 + $0x28] sm:$0xff]
  %v26 = vld [vmem:[%s0 + $0x30] sm:$0xff]
  %v27 = vld [vmem:[%s0 + $0x38] sm:$0xff]
  %v28 = vld [vmem:[%s0 + $0x40] sm:$0xff]
  %v29 = vld [vmem:[%s0 + $0x48] sm:$0xff]
  %v30 = vld [vmem:[%s0 + $0x50] sm:$0xff]
  %v31 = vld [vmem:[%s0 + $0x58] sm:$0xff]
  %v32 = vld [vmem:[%s0 + $0x60] sm:$0xff]
  %v33 = vld [vmem:[%s0 + $0x68] sm:$0xff]
  %v34 = vld [vmem:[%s0 + $0x70] sm:$0xff]
  %v35 = vld [vmem:[%s0 + $0x78] sm:$0xff]
  %v36 = vld [vmem:[%s0 + $0x80] sm:$0xff]
  %v37 = vld [vmem:[%s0 + $0x88] sm:$0xff]
  %v38 = vld [vmem:[%s0 + $0x90] sm:$0xff]
  %v39 = vld [vmem:[%s0 + $0x98] sm:$0xff]
  %v40 = vld [vmem:[%s0 + $0xa0] sm:$0xff]
  %v41 = vld [vmem:[%s0 + $0xa8] sm:$0xff]
  %v42 = vld [vmem:[%s1] sm:$0x7f]
  %v43 = vld [vmem:[%s2] sm:$0x1]
  %v45 = vlaneseq
  %v46 = vshrl.u32 %v45, 7
  %v47 = vsub.s32 0, %v46
  %v48 = vrot.slane %v43, %v47
  %vm50 = vcmask 56320
  %v52 = vsel %vm50, %v20, 0
  %v55 = vsel %vm50, %v21, 0
  %v58 = vsel %vm50, %v22, 0
  %v61 = vsel %vm50, %v23, 0
  %v64 = vsel %vm50, %v24, 0
  %v67 = vsel %vm50, %v25, 0
  %v70 = vsel %vm50, %v26, 0
  %v73 = vsel %vm50, %v27, 0
  %v76 = vsel %vm50, %v28, 0
  %v79 = vsel %vm50, %v29, 0
  %v82 = vsel %vm50, %v30, 0
  %v85 = vsel %vm50, %v31, 0
  %v88 = vsel %vm50, %v32, 0
  %v91 = vsel %vm50, %v33, 0
  %v94 = vsel %vm50, %v34, 0
  %v97 = vsel %vm50, %v35, 0
  %v100 = vsel %vm50, %v36, 0
  %v103 = vsel %vm50, %v37, 0
  %v106 = vsel %vm50, %v38, 0
  %v109 = vsel %vm50, %v39, 0
  %v112 = vsel %vm50, %v40, 0
  %v115 = vsel %vm50, %v41, 0
  %vm117 = vcmask 1046528
  %v119 = vsel %vm117, %v42, 0
  %121 = vmatprep.subr.mxu0 0.0
  %122 = vmatpush1.msra.mxu0 %v119
  %123 = vmatprep.subr.mxu0 0.0
  %124 = vmatpush1.msra.mxu0 0.0
  %125 = vmatprep.subr.mxu0 0.0
  %126 = vmatpush1.msra.mxu0 0.0
  %127 = vmatprep.subr.mxu0 0.0
  %128 = vmatpush1.msra.mxu0 0.0
  %129 = vmatprep.subr.mxu0 0.0
  %130 = vmatpush1.msra.mxu0 0.0
  %131 = vmatprep.subr.mxu0 0.0
  %132 = vmatpush1.msra.mxu0 0.0
  %133 = vmatprep.subr.mxu0 0.0
  %134 = vmatpush1.msra.mxu0 0.0
  %135 = vmatprep.subr.mxu0 0.0
  %136 = vmatpush1.msra.mxu0 0.0
  %137 = vmatprep.subr.mxu0 0.0
  %138 = vmatpush1.msra.mxu0 0.0
  %139 = vmatprep.subr.mxu0 0.0
  %140 = vmatpush1.msra.mxu0 0.0
  %141 = vmatprep.subr.mxu0 0.0
  %142 = vmatpush1.msra.mxu0 0.0
  %143 = vmatprep.subr.mxu0 0.0
  %144 = vmatpush1.msra.mxu0 0.0
  %145 = vmatprep.subr.mxu0 0.0
  %146 = vmatpush1.msra.mxu0 0.0
  %147 = vmatprep.subr.mxu0 0.0
  %148 = vmatpush1.msra.mxu0 0.0
  %149 = vmatprep.subr.mxu0 0.0
  %150 = vmatpush1.msra.mxu0 0.0
  %151 = vmatprep.subr.mxu0 0.0
  %152 = vmatpush1.msra.mxu0 0.0
  %153 = vmatprep.subr.mxu0 0.0
  %154 = vmatpush1.msra.mxu0 0.0
  %155 = vmatprep.subr.mxu0 0.0
  %156 = vmatpush1.msra.mxu0 0.0
  %157 = vmatprep.subr.mxu0 0.0
  %158 = vmatpush1.msra.mxu0 0.0
  %159 = vmatprep.subr.mxu0 0.0
  %160 = vmatpush1.msra.mxu0 0.0
  %161 = vmatprep.subr.mxu0 0.0
  %162 = vmatpush1.msra.mxu0 0.0
  %163 = vmatprep.subr.mxu0 0.0
  %164 = vmatpush1.msra.mxu0 0.0
  %165 = vmatprep.subr.mxu0 0.0
  %166 = vmatpush1.msra.mxu0 0.0
  %167 = vmatprep.subr.mxu0 0.0
  %168 = vmatpush1.msra.mxu0 0.0
  %169 = vmatprep.subr.mxu0 0.0
  %170 = vmatpush1.msra.mxu0 0.0
  %171 = vmatprep.subr.mxu0 0.0
  %172 = vmatpush1.msra.mxu0 0.0
  %173 = vmatprep.subr.mxu0 0.0
  %174 = vmatpush1.msra.mxu0 0.0
  %175 = vmatprep.subr.mxu0 0.0
  %176 = vmatpush1.msra.mxu0 0.0
  %177 = vmatprep.subr.mxu0 0.0
  %178 = vmatpush1.msra.mxu0 0.0
  %179 = vmatprep.subr.mxu0 0.0
  %180 = vmatpush1.msra.mxu0 0.0
  %181 = vmatprep.subr.mxu0 0.0
  %182 = vmatpush1.msra.mxu0 0.0
  %183 = vmatprep.subr.mxu0 0.0
  %184 = vmatpush1.msra.mxu0 0.0
  %185 = vmatprep.mubr.f32.mxu0 0.0
  %186 = vmatmul.mubr.f32.gmra.mrb[0].mxu0 %v52
  %v187 = vpop.f32.mrb[0].mxu0
  %v188 = vadd.f32 %v48, %v187
  %v189 = vpop.f32.mrb[0].mxu0
  %190 = vmatprep.mubr.f32.mxu0 0.0
  %191 = vmatmul.mubr.f32.gmra.mrb[0].mxu0 %v55
  %v192 = vpop.f32.mrb[0].mxu0
  %v193 = vadd.f32 %v48, %v192
  %v194 = vpop.f32.mrb[0].mxu0
  %195 = vmatprep.mubr.f32.mxu0 0.0
  %196 = vmatmul.mubr.f32.gmra.mrb[0].mxu0 %v58
  %v197 = vpop.f32.mrb[0].mxu0
  %v198 = vadd.f32 %v48, %v197
  %v199 = vpop.f32.mrb[0].mxu0
  %200 = vmatprep.mubr.f32.mxu0 0.0
  %201 = vmatmul.mubr.f32.gmra.mrb[0].mxu0 %v61
  %v202 = vpop.f32.mrb[0].mxu0
  %v203 = vadd.f32 %v48, %v202
  %v204 = vpop.f32.mrb[0].mxu0
  %205 = vmatprep.mubr.f32.mxu0 0.0
  %206 = vmatmul.mubr.f32.gmra.mrb[0].mxu0 %v64
  %v207 = vpop.f32.mrb[0].mxu0
  %v208 = vadd.f32 %v48, %v207
  %v209 = vpop.f32.mrb[0].mxu0
  %210 = vmatprep.mubr.f32.mxu0 0.0
  %211 = vmatmul.mubr.f32.gmra.mrb[0].mxu0 %v67
  %v212 = vpop.f32.mrb[0].mxu0
  %v213 = vadd.f32 %v48, %v212
  %v214 = vpop.f32.mrb[0].mxu0
  %215 = vmatprep.mubr.f32.mxu0 0.0
  %216 = vmatmul.mubr.f32.gmra.mrb[0].mxu0 %v70
  %v217 = vpop.f32.mrb[0].mxu0
  %v218 = vadd.f32 %v48, %v217
  %v219 = vpop.f32.mrb[0].mxu0
  %220 = vmatprep.mubr.f32.mxu0 0.0
  %221 = vmatmul.mubr.f32.gmra.mrb[0].mxu0 %v73
  %v222 = vpop.f32.mrb[0].mxu0
  %v223 = vadd.f32 %v48, %v222
  %v224 = vpop.f32.mrb[0].mxu0
  %225 = vmatprep.mubr.f32.mxu0 0.0
  %226 = vmatmul.mubr.f32.gmra.mrb[0].mxu0 %v76
  %v227 = vpop.f32.mrb[0].mxu0
  %v228 = vadd.f32 %v48, %v227
  %v229 = vpop.f32.mrb[0].mxu0
  %230 = vmatprep.mubr.f32.mxu0 0.0
  %231 = vmatmul.mubr.f32.gmra.mrb[0].mxu0 %v79
  %v232 = vpop.f32.mrb[0].mxu0
  %v233 = vadd.f32 %v48, %v232
  %v234 = vpop.f32.mrb[0].mxu0
  %235 = vmatprep.mubr.f32.mxu0 0.0
  %236 = vmatmul.mubr.f32.gmra.mrb[0].mxu0 %v82
  %v237 = vpop.f32.mrb[0].mxu0
  %v238 = vadd.f32 %v48, %v237
  %v239 = vpop.f32.mrb[0].mxu0
  %240 = vmatprep.mubr.f32.mxu0 0.0
  %241 = vmatmul.mubr.f32.gmra.mrb[0].mxu0 %v85
  %v242 = vpop.f32.mrb[0].mxu0
  %v243 = vadd.f32 %v48, %v242
  %v244 = vpop.f32.mrb[0].mxu0
  %245 = vmatprep.mubr.f32.mxu0 0.0
  %246 = vmatmul.mubr.f32.gmra.mrb[0].mxu0 %v88
  %v247 = vpop.f32.mrb[0].mxu0
  %v248 = vadd.f32 %v48, %v247
  %v249 = vpop.f32.mrb[0].mxu0
  %250 = vmatprep.mubr.f32.mxu0 0.0
  %251 = vmatmul.mubr.f32.gmra.mrb[0].mxu0 %v91
  %v252 = vpop.f32.mrb[0].mxu0
  %v253 = vadd.f32 %v48, %v252
  %v254 = vpop.f32.mrb[0].mxu0
  %255 = vmatprep.mubr.f32.mxu0 0.0
  %256 = vmatmul.mubr.f32.gmra.mrb[0].mxu0 %v94
  %v257 = vpop.f32.mrb[0].mxu0
  %v258 = vadd.f32 %v48, %v257
  %v259 = vpop.f32.mrb[0].mxu0
  %260 = vmatprep.mubr.f32.mxu0 0.0
  %261 = vmatmul.mubr.f32.gmra.mrb[0].mxu0 %v97
  %v262 = vpop.f32.mrb[0].mxu0
  %v263 = vadd.f32 %v48, %v262
  %v264 = vpop.f32.mrb[0].mxu0
  %265 = vmatprep.mubr.f32.mxu0 0.0
  %266 = vmatmul.mubr.f32.gmra.mrb[0].mxu0 %v100
  %v267 = vpop.f32.mrb[0].mxu0
  %v268 = vadd.f32 %v48, %v267
  %v269 = vpop.f32.mrb[0].mxu0
  %270 = vmatprep.mubr.f32.mxu0 0.0
  %271 = vmatmul.mubr.f32.gmra.mrb[0].mxu0 %v103
  %v272 = vpop.f32.mrb[0].mxu0
  %v273 = vadd.f32 %v48, %v272
  %v274 = vpop.f32.mrb[0].mxu0
  %275 = vmatprep.mubr.f32.mxu0 0.0
  %276 = vmatmul.mubr.f32.gmra.mrb[0].mxu0 %v106
  %v277 = vpop.f32.mrb[0].mxu0
  %v278 = vadd.f32 %v48, %v277
  %v279 = vpop.f32.mrb[0].mxu0
  %280 = vmatprep.mubr.f32.mxu0 0.0
  %281 = vmatmul.mubr.f32.gmra.mrb[0].mxu0 %v109
  %v282 = vpop.f32.mrb[0].mxu0
  %v283 = vadd.f32 %v48, %v282
  %v284 = vpop.f32.mrb[0].mxu0
  %285 = vmatprep.mubr.f32.mxu0 0.0
  %286 = vmatmul.mubr.f32.gmra.mrb[0].mxu0 %v112
  %v287 = vpop.f32.mrb[0].mxu0
  %v288 = vadd.f32 %v48, %v287
  %v289 = vpop.f32.mrb[0].mxu0
  %290 = vmatprep.mubr.f32.mxu0 0.0
  %291 = vmatmul.mubr.f32.gmra.mrb[0].mxu0 %v115
  %v292 = vpop.f32.mrb[0].mxu0
  %v293 = vadd.f32 %v48, %v292
  %v294 = vpop.f32.mrb[0].mxu0
  %295 = vdwg.mxu0
  %vm296 = vcmask 392192
  %v297 = vsel %vm296, %v188, 0.0
  %298 = vadd.xlane.f32.xlu0 %v297
  %v299 = vpop.xlane.xlu0 %298
  %v300 = vsel %vm296, %v193, 0.0
  %301 = vadd.xlane.f32.xlu0 %v300
  %v302 = vpop.xlane.xlu0 %301
  %v303 = vsel %vm296, %v198, 0.0
  %304 = vadd.xlane.f32.xlu0 %v303
  %v305 = vpop.xlane.xlu0 %304
  %v306 = vsel %vm296, %v203, 0.0
  %307 = vadd.xlane.f32.xlu0 %v306
  %v308 = vpop.xlane.xlu0 %307
  %v309 = vsel %vm296, %v208, 0.0
  %310 = vadd.xlane.f32.xlu0 %v309
  %v311 = vpop.xlane.xlu0 %310
  %v312 = vsel %vm296, %v213, 0.0
  %313 = vadd.xlane.f32.xlu0 %v312
  %v314 = vpop.xlane.xlu0 %313
  %v315 = vsel %vm296, %v218, 0.0
  %316 = vadd.xlane.f32.xlu0 %v315
  %v317 = vpop.xlane.xlu0 %316
  %v318 = vsel %vm296, %v223, 0.0
  %319 = vadd.xlane.f32.xlu0 %v318
  %v320 = vpop.xlane.xlu0 %319
  %v321 = vsel %vm296, %v228, 0.0
  %322 = vadd.xlane.f32.xlu0 %v321
  %v323 = vpop.xlane.xlu0 %322
  %v324 = vsel %vm296, %v233, 0.0
  %325 = vadd.xlane.f32.xlu0 %v324
  %v326 = vpop.xlane.xlu0 %325
  %v327 = vsel %vm296, %v238, 0.0
  %328 = vadd.xlane.f32.xlu0 %v327
  %v329 = vpop.xlane.xlu0 %328
  %v330 = vsel %vm296, %v243, 0.0
  %331 = vadd.xlane.f32.xlu0 %v330
  %v332 = vpop.xlane.xlu0 %331
  %v333 = vsel %vm296, %v248, 0.0
  %334 = vadd.xlane.f32.xlu0 %v333
  %v335 = vpop.xlane.xlu0 %334
  %v336 = vsel %vm296, %v253, 0.0
  %337 = vadd.xlane.f32.xlu0 %v336
  %v338 = vpop.xlane.xlu0 %337
  %v339 = vsel %vm296, %v258, 0.0
  %340 = vadd.xlane.f32.xlu0 %v339
  %v341 = vpop.xlane.xlu0 %340
  %v342 = vsel %vm296, %v263, 0.0
  %343 = vadd.xlane.f32.xlu0 %v342
  %v344 = vpop.xlane.xlu0 %343
  %v345 = vsel %vm296, %v268, 0.0
  %346 = vadd.xlane.f32.xlu0 %v345
  %v347 = vpop.xlane.xlu0 %346
  %v348 = vsel %vm296, %v273, 0.0
  %349 = vadd.xlane.f32.xlu0 %v348
  %v350 = vpop.xlane.xlu0 %349
  %v351 = vsel %vm296, %v278, 0.0
  %352 = vadd.xlane.f32.xlu0 %v351
  %v353 = vpop.xlane.xlu0 %352
  %v354 = vsel %vm296, %v283, 0.0
  %355 = vadd.xlane.f32.xlu0 %v354
  %v356 = vpop.xlane.xlu0 %355
  %v357 = vsel %vm296, %v288, 0.0
  %358 = vadd.xlane.f32.xlu0 %v357
  %v359 = vpop.xlane.xlu0 %358
  %v360 = vsel %vm296, %v293, 0.0
  %361 = vadd.xlane.f32.xlu0 %v360
  %v362 = vpop.xlane.xlu0 %361
  %v363 = vrcp.pop 48.0
  %v364 = vmul.f32 %v299, %v363
  %v365 = vmul.f32 %v302, %v363
  %v366 = vmul.f32 %v305, %v363
  %v367 = vmul.f32 %v308, %v363
  %v368 = vmul.f32 %v311, %v363
  %v369 = vmul.f32 %v314, %v363
  %v370 = vmul.f32 %v317, %v363
  %v371 = vmul.f32 %v320, %v363
  %v372 = vmul.f32 %v323, %v363
  %v373 = vmul.f32 %v326, %v363
  %v374 = vmul.f32 %v329, %v363
  %v375 = vmul.f32 %v332, %v363
  %v376 = vmul.f32 %v335, %v363
  %v377 = vmul.f32 %v338, %v363
  %v378 = vmul.f32 %v341, %v363
  %v379 = vmul.f32 %v344, %v363
  %v380 = vmul.f32 %v347, %v363
  %v381 = vmul.f32 %v350, %v363
  %v382 = vmul.f32 %v353, %v363
  %v383 = vmul.f32 %v356, %v363
  %v384 = vmul.f32 %v359, %v363
  %v385 = vmul.f32 %v362, %v363
  %v386 = vsub.f32 %v188, %v364
  %v387 = vsub.f32 %v193, %v365
  %v388 = vsub.f32 %v198, %v366
  %v389 = vsub.f32 %v203, %v367
  %v390 = vsub.f32 %v208, %v368
  %v391 = vsub.f32 %v213, %v369
  %v392 = vsub.f32 %v218, %v370
  %v393 = vsub.f32 %v223, %v371
  %v394 = vsub.f32 %v228, %v372
  %v395 = vsub.f32 %v233, %v373
  %v396 = vsub.f32 %v238, %v374
  %v397 = vsub.f32 %v243, %v375
  %v398 = vsub.f32 %v248, %v376
  %v399 = vsub.f32 %v253, %v377
  %v400 = vsub.f32 %v258, %v378
  %v401 = vsub.f32 %v263, %v379
  %v402 = vsub.f32 %v268, %v380
  %v403 = vsub.f32 %v273, %v381
  %v404 = vsub.f32 %v278, %v382
  %v405 = vsub.f32 %v283, %v383
  %v406 = vsub.f32 %v288, %v384
  %v407 = vsub.f32 %v293, %v385
  %v408 = vmul.f32 %v386, %v386
  %v409 = vmul.f32 %v387, %v387
  %v410 = vmul.f32 %v388, %v388
  %v411 = vmul.f32 %v389, %v389
  %v412 = vmul.f32 %v390, %v390
  %v413 = vmul.f32 %v391, %v391
  %v414 = vmul.f32 %v392, %v392
  %v415 = vmul.f32 %v393, %v393
  %v416 = vmul.f32 %v394, %v394
  %v417 = vmul.f32 %v395, %v395
  %v418 = vmul.f32 %v396, %v396
  %v419 = vmul.f32 %v397, %v397
  %v420 = vmul.f32 %v398, %v398
  %v421 = vmul.f32 %v399, %v399
  %v422 = vmul.f32 %v400, %v400
  %v423 = vmul.f32 %v401, %v401
  %v424 = vmul.f32 %v402, %v402
  %v425 = vmul.f32 %v403, %v403
  %v426 = vmul.f32 %v404, %v404
  %v427 = vmul.f32 %v405, %v405
  %v428 = vmul.f32 %v406, %v406
  %v429 = vmul.f32 %v407, %v407
  %v430 = vsel %vm296, %v408, 0.0
  %431 = vadd.xlane.f32.xlu0 %v430
  %v432 = vpop.xlane.xlu0 %431
  %v433 = vsel %vm296, %v409, 0.0
  %434 = vadd.xlane.f32.xlu0 %v433
  %v435 = vpop.xlane.xlu0 %434
  %v436 = vsel %vm296, %v410, 0.0
  %437 = vadd.xlane.f32.xlu0 %v436
  %v438 = vpop.xlane.xlu0 %437
  %v439 = vsel %vm296, %v411, 0.0
  %440 = vadd.xlane.f32.xlu0 %v439
  %v441 = vpop.xlane.xlu0 %440
  %v442 = vsel %vm296, %v412, 0.0
  %443 = vadd.xlane.f32.xlu0 %v442
  %v444 = vpop.xlane.xlu0 %443
  %v445 = vsel %vm296, %v413, 0.0
  %446 = vadd.xlane.f32.xlu0 %v445
  %v447 = vpop.xlane.xlu0 %446
  %v448 = vsel %vm296, %v414, 0.0
  %449 = vadd.xlane.f32.xlu0 %v448
  %v450 = vpop.xlane.xlu0 %449
  %v451 = vsel %vm296, %v415, 0.0
  %452 = vadd.xlane.f32.xlu0 %v451
  %v453 = vpop.xlane.xlu0 %452
  %v454 = vsel %vm296, %v416, 0.0
  %455 = vadd.xlane.f32.xlu0 %v454
  %v456 = vpop.xlane.xlu0 %455
  %v457 = vsel %vm296, %v417, 0.0
  %458 = vadd.xlane.f32.xlu0 %v457
  %v459 = vpop.xlane.xlu0 %458
  %v460 = vsel %vm296, %v418, 0.0
  %461 = vadd.xlane.f32.xlu0 %v460
  %v462 = vpop.xlane.xlu0 %461
  %v463 = vsel %vm296, %v419, 0.0
  %464 = vadd.xlane.f32.xlu0 %v463
  %v465 = vpop.xlane.xlu0 %464
  %v466 = vsel %vm296, %v420, 0.0
  %467 = vadd.xlane.f32.xlu0 %v466
  %v468 = vpop.xlane.xlu0 %467
  %v469 = vsel %vm296, %v421, 0.0
  %470 = vadd.xlane.f32.xlu0 %v469
  %v471 = vpop.xlane.xlu0 %470
  %v472 = vsel %vm296, %v422, 0.0
  %473 = vadd.xlane.f32.xlu0 %v472
  %v474 = vpop.xlane.xlu0 %473
  %v475 = vsel %vm296, %v423, 0.0
  %476 = vadd.xlane.f32.xlu0 %v475
  %v477 = vpop.xlane.xlu0 %476
  %v478 = vsel %vm296, %v424, 0.0
  %479 = vadd.xlane.f32.xlu0 %v478
  %v480 = vpop.xlane.xlu0 %479
  %v481 = vsel %vm296, %v425, 0.0
  %482 = vadd.xlane.f32.xlu0 %v481
  %v483 = vpop.xlane.xlu0 %482
  %v484 = vsel %vm296, %v426, 0.0
  %485 = vadd.xlane.f32.xlu0 %v484
  %v486 = vpop.xlane.xlu0 %485
  %v487 = vsel %vm296, %v427, 0.0
  %488 = vadd.xlane.f32.xlu0 %v487
  %v489 = vpop.xlane.xlu0 %488
  %v490 = vsel %vm296, %v428, 0.0
  %491 = vadd.xlane.f32.xlu0 %v490
  %v492 = vpop.xlane.xlu0 %491
  %v493 = vsel %vm296, %v429, 0.0
  %494 = vadd.xlane.f32.xlu0 %v493
  %v495 = vpop.xlane.xlu0 %494
  %v496 = vmul.f32 %v432, %v363
  %v497 = vmul.f32 %v435, %v363
  %v498 = vmul.f32 %v438, %v363
  %v499 = vmul.f32 %v441, %v363
  %v500 = vmul.f32 %v444, %v363
  %v501 = vmul.f32 %v447, %v363
  %v502 = vmul.f32 %v450, %v363
  %v503 = vmul.f32 %v453, %v363
  %v504 = vmul.f32 %v456, %v363
  %v505 = vmul.f32 %v459, %v363
  %v506 = vmul.f32 %v462, %v363
  %v507 = vmul.f32 %v465, %v363
  %v508 = vmul.f32 %v468, %v363
  %v509 = vmul.f32 %v471, %v363
  %v510 = vmul.f32 %v474, %v363
  %v511 = vmul.f32 %v477, %v363
  %v512 = vmul.f32 %v480, %v363
  %v513 = vmul.f32 %v483, %v363
  %v514 = vmul.f32 %v486, %v363
  %v515 = vmul.f32 %v489, %v363
  %v516 = vmul.f32 %v492, %v363
  %v517 = vmul.f32 %v495, %v363
  %v518 = vadd.f32 %v496, 1e-05
  %v519 = vadd.f32 %v497, 1e-05
  %v520 = vadd.f32 %v498, 1e-05
  %v521 = vadd.f32 %v499, 1e-05
  %v522 = vadd.f32 %v500, 1e-05
  %v523 = vadd.f32 %v501, 1e-05
  %v524 = vadd.f32 %v502, 1e-05
  %v525 = vadd.f32 %v503, 1e-05
  %v526 = vadd.f32 %v504, 1e-05
  %v527 = vadd.f32 %v505, 1e-05
  %v528 = vadd.f32 %v506, 1e-05
  %v529 = vadd.f32 %v507, 1e-05
  %v530 = vadd.f32 %v508, 1e-05
  %v531 = vadd.f32 %v509, 1e-05
  %v532 = vadd.f32 %v510, 1e-05
  %v533 = vadd.f32 %v511, 1e-05
  %v534 = vadd.f32 %v512, 1e-05
  %v535 = vadd.f32 %v513, 1e-05
  %v536 = vadd.f32 %v514, 1e-05
  %v537 = vadd.f32 %v515, 1e-05
  %v538 = vadd.f32 %v516, 1e-05
  %v539 = vadd.f32 %v517, 1e-05
  %v540 = vrsqrt.pop %v518
  %v541 = vrsqrt.pop %v519
  %v542 = vrsqrt.pop %v520
  %v543 = vrsqrt.pop %v521
  %v544 = vrsqrt.pop %v522
  %v545 = vrsqrt.pop %v523
  %v546 = vrsqrt.pop %v524
  %v547 = vrsqrt.pop %v525
  %v548 = vrsqrt.pop %v526
  %v549 = vrsqrt.pop %v527
  %v550 = vrsqrt.pop %v528
  %v551 = vrsqrt.pop %v529
  %v552 = vrsqrt.pop %v530
  %v553 = vrsqrt.pop %v531
  %v554 = vrsqrt.pop %v532
  %v555 = vrsqrt.pop %v533
  %v556 = vrsqrt.pop %v534
  %v557 = vrsqrt.pop %v535
  %v558 = vrsqrt.pop %v536
  %v559 = vrsqrt.pop %v537
  %v560 = vrsqrt.pop %v538
  %v561 = vrsqrt.pop %v539
  %v562 = vmul.f32 %v386, %v540
  %v563 = vmul.f32 %v387, %v541
  %v564 = vmul.f32 %v388, %v542
  %v565 = vmul.f32 %v389, %v543
  %v566 = vmul.f32 %v390, %v544
  %v567 = vmul.f32 %v391, %v545
  %v568 = vmul.f32 %v392, %v546
  %v569 = vmul.f32 %v393, %v547
  %v570 = vmul.f32 %v394, %v548
  %v571 = vmul.f32 %v395, %v549
  %v572 = vmul.f32 %v396, %v550
  %v573 = vmul.f32 %v397, %v551
  %v574 = vmul.f32 %v398, %v552
  %v575 = vmul.f32 %v399, %v553
  %v576 = vmul.f32 %v400, %v554
  %v577 = vmul.f32 %v401, %v555
  %v578 = vmul.f32 %v402, %v556
  %v579 = vmul.f32 %v403, %v557
  %v580 = vmul.f32 %v404, %v558
  %v581 = vmul.f32 %v405, %v559
  %v582 = vmul.f32 %v406, %v560
  %v583 = vmul.f32 %v407, %v561
  %v584 = vld [vmem:[%s3] sm:$0x1]
  %v586 = vlaneseq
  %v587 = vshrl.u32 %v586, 7
  %v588 = vsub.s32 0, %v587
  %v589 = vrot.slane %v584, %v588
  %v591 = vmul.f32 %v562, %v589
  %v592 = vmul.f32 %v563, %v589
  %v593 = vmul.f32 %v564, %v589
  %v594 = vmul.f32 %v565, %v589
  %v595 = vmul.f32 %v566, %v589
  %v596 = vmul.f32 %v567, %v589
  %v597 = vmul.f32 %v568, %v589
  %v598 = vmul.f32 %v569, %v589
  %v599 = vmul.f32 %v570, %v589
  %v600 = vmul.f32 %v571, %v589
  %v601 = vmul.f32 %v572, %v589
  %v602 = vmul.f32 %v573, %v589
  %v603 = vmul.f32 %v574, %v589
  %v604 = vmul.f32 %v575, %v589
  %v605 = vmul.f32 %v576, %v589
  %v606 = vmul.f32 %v577, %v589
  %v607 = vmul.f32 %v578, %v589
  %v608 = vmul.f32 %v579, %v589
  %v609 = vmul.f32 %v580, %v589
  %v610 = vmul.f32 %v581, %v589
  %v611 = vmul.f32 %v582, %v589
  %v612 = vmul.f32 %v583, %v589
  %v613 = vld [vmem:[%s4] sm:$0x1]
  %v615 = vlaneseq
  %v616 = vshrl.u32 %v615, 7
  %v617 = vsub.s32 0, %v616
  %v618 = vrot.slane %v613, %v617
  %v620 = vadd.f32 %v591, %v618
  %v621 = vadd.f32 %v592, %v618
  %v622 = vadd.f32 %v593, %v618
  %v623 = vadd.f32 %v594, %v618
  %v624 = vadd.f32 %v595, %v618
  %v625 = vadd.f32 %v596, %v618
  %v626 = vadd.f32 %v597, %v618
  %v627 = vadd.f32 %v598, %v618
  %v628 = vadd.f32 %v599, %v618
  %v629 = vadd.f32 %v600, %v618
  %v630 = vadd.f32 %v601, %v618
  %v631 = vadd.f32 %v602, %v618
  %v632 = vadd.f32 %v603, %v618
  %v633 = vadd.f32 %v604, %v618
  %v634 = vadd.f32 %v605, %v618
  %v635 = vadd.f32 %v606, %v618
  %v636 = vadd.f32 %v607, %v618
  %v637 = vadd.f32 %v608, %v618
  %v638 = vadd.f32 %v609, %v618
  %v639 = vadd.f32 %v610, %v618
  %v640 = vadd.f32 %v611, %v618
  %v641 = vadd.f32 %v612, %v618
  %v642 = vmax.f32 %v620, 0.0
  %v643 = vmax.f32 %v621, 0.0
  %v644 = vmax.f32 %v622, 0.0
  %v645 = vmax.f32 %v623, 0.0
  %v646 = vmax.f32 %v624, 0.0
  %v647 = vmax.f32 %v625, 0.0
  %v648 = vmax.f32 %v626, 0.0
  %v649 = vmax.f32 %v627, 0.0
  %v650 = vmax.f32 %v628, 0.0
  %v651 = vmax.f32 %v629, 0.0
  %v652 = vmax.f32 %v630, 0.0
  %v653 = vmax.f32 %v631, 0.0
  %v654 = vmax.f32 %v632, 0.0
  %v655 = vmax.f32 %v633, 0.0
  %v656 = vmax.f32 %v634, 0.0
  %v657 = vmax.f32 %v635, 0.0
  %v658 = vmax.f32 %v636, 0.0
  %v659 = vmax.f32 %v637, 0.0
  %v660 = vmax.f32 %v638, 0.0
  %v661 = vmax.f32 %v639, 0.0
  %v662 = vmax.f32 %v640, 0.0
  %v663 = vmax.f32 %v641, 0.0
  %664 = vst.msk [vmem:[%s5] sm:$0xff] %vm296, %v642
  %665 = vst.msk [vmem:[%s5 + $0x8] sm:$0xff] %vm296, %v643
  %666 = vst.msk [vmem:[%s5 + $0x10] sm:$0xff] %vm296, %v644
  %667 = vst.msk [vmem:[%s5 + $0x18] sm:$0xff] %vm296, %v645
  %668 = vst.msk [vmem:[%s5 + $0x20] sm:$0xff] %vm296, %v646
  %669 = vst.msk [vmem:[%s5 + $0x28] sm:$0xff] %vm296, %v647
  %670 = vst.msk [vmem:[%s5 + $0x30] sm:$0xff] %vm296, %v648
  %671 = vst.msk [vmem:[%s5 + $0x38] sm:$0xff] %vm296, %v649
  %672 = vst.msk [vmem:[%s5 + $0x40] sm:$0xff] %vm296, %v650
  %673 = vst.msk [vmem:[%s5 + $0x48] sm:$0xff] %vm296, %v651
  %674 = vst.msk [vmem:[%s5 + $0x50] sm:$0xff] %vm296, %v652
  %675 = vst.msk [vmem:[%s5 + $0x58] sm:$0xff] %vm296, %v653
  %676 = vst.msk [vmem:[%s5 + $0x60] sm:$0xff] %vm296, %v654
  %677 = vst.msk [vmem:[%s5 + $0x68] sm:$0xff] %vm296, %v655
  %678 = vst.msk [vmem:[%s5 + $0x70] sm:$0xff] %vm296, %v656
  %679 = vst.msk [vmem:[%s5 + $0x78] sm:$0xff] %vm296, %v657
  %680 = vst.msk [vmem:[%s5 + $0x80] sm:$0xff] %vm296, %v658
  %681 = vst.msk [vmem:[%s5 + $0x88] sm:$0xff] %vm296, %v659
  %682 = vst.msk [vmem:[%s5 + $0x90] sm:$0xff] %vm296, %v660
  %683 = vst.msk [vmem:[%s5 + $0x98] sm:$0xff] %vm296, %v661
  %684 = vst.msk [vmem:[%s5 + $0xa0] sm:$0xff] %vm296, %v662
  %685 = vst.msk [vmem:[%s5 + $0xa8] sm:$0xff] %vm296, %v663
  // Predicated region
  $region22: #{forward.10} parent=0 // pred_check
    _
  $region23: #{forward.10} parent=0 // pred_check_branch
    %687 = sbr.rel (0) target = $region25
  $region24: #{forward.10} parent=0 // pred_region
    _
  $region25: #{forward.10} parent=0 // pred_fallthru
    _
  // Predicated region
  $region26: #{forward.10} parent=0 // pred_check
    _
  $region27: #{forward.10} parent=0 // pred_check_branch
    %689 = sbr.rel (0) target = $region29
  $region28: #{forward.10} parent=0 // pred_region
    _
  $region29: #{forward.10} parent=0 // pred_fallthru
    _

// kernel: forward.11
$region0: #{forward.11}
  #allocation0 [shape = 'u32[]', space=smem, size = 0x4, offset = 0x4, fixed_abs, tag = 'smem constant byte address 0x4 - core index']
  #allocation1 [shape = 'u32[144,128]{1,0:T(1,128)}', space=vmem, size = 0x12000, scoped, tag = 'internal scratch']
  %s0 = inlined_call_operand.vmem [shape: f32[192,7], index: 0, kind: input, shape index: {}]
  %s1 = inlined_call_operand.vmem [shape: f32[7,48], index: 1, kind: input, shape index: {}]
  %s2 = inlined_call_operand.vmem [shape: f32[1,48], index: 2, kind: input, shape index: {}]
  %s3 = inlined_call_operand.vmem [shape: f32[1,48], index: 3, kind: input, shape index: {}]
  %s4 = inlined_call_operand.vmem [shape: f32[1,48], index: 4, kind: input, shape index: {}]
  %s5 = inlined_call_operand.vmem [shape: f32[192,48], index: 5, kind: output, shape index: {}]
  %s6 = sld [smem:[#allocation0]]
  $region30: #{forward.11} parent=0
    _
  %s8 = ssub.s32 1, %s6
  %s9 = scalar_select 0, %s8, %s6
  // Predicated region
  $region2: #{forward.11} parent=0 // pred_check
    _
  $region3: #{forward.11} parent=0 // pred_check_branch
    %11 = sbr.rel (0) target = $region5
  $region4: #{forward.11} parent=0 // pred_region
    _
  $region5: #{forward.11} parent=0 // pred_fallthru
    _
  // Predicated region
  $region6: #{forward.11} parent=0 // pred_check
    _
  $region7: #{forward.11} parent=0 // pred_check_branch
    %13 = sbr.rel (0) target = $region9
  $region8: #{forward.11} parent=0 // pred_region
    _
  $region9: #{forward.11} parent=0 // pred_fallthru
    _
  // Predicated region
  $region10: #{forward.11} parent=0 // pred_check
    _
  $region11: #{forward.11} parent=0 // pred_check_branch
    %15 = sbr.rel (0) target = $region13
  $region12: #{forward.11} parent=0 // pred_region
    _
  $region13: #{forward.11} parent=0 // pred_fallthru
    _
  // Predicated region
  $region14: #{forward.11} parent=0 // pred_check
    _
  $region15: #{forward.11} parent=0 // pred_check_branch
    %17 = sbr.rel (0) target = $region17
  $region16: #{forward.11} parent=0 // pred_region
    _
  $region17: #{forward.11} parent=0 // pred_fallthru
    _
  // Predicated region
  $region18: #{forward.11} parent=0 // pred_check
    _
  $region19: #{forward.11} parent=0 // pred_check_branch
    %19 = sbr.rel (0) target = $region21
  $region20: #{forward.11} parent=0 // pred_region
    _
  $region21: #{forward.11} parent=0 // pred_fallthru
    _
  %v20 = vld [vmem:[%s0] sm:$0xff]
  %v21 = vld [vmem:[%s0 + $0x8] sm:$0xff]
  %v22 = vld [vmem:[%s0 + $0x10] sm:$0xff]
  %v23 = vld [vmem:[%s0 + $0x18] sm:$0xff]
  %v24 = vld [vmem:[%s0 + $0x20] sm:$0xff]
  %v25 = vld [vmem:[%s0 + $0x28] sm:$0xff]
  %v26 = vld [vmem:[%s0 + $0x30] sm:$0xff]
  %v27 = vld [vmem:[%s0 + $0x38] sm:$0xff]
  %v28 = vld [vmem:[%s0 + $0x40] sm:$0xff]
  %v29 = vld [vmem:[%s0 + $0x48] sm:$0xff]
  %v30 = vld [vmem:[%s0 + $0x50] sm:$0xff]
  %v31 = vld [vmem:[%s0 + $0x58] sm:$0xff]
  %v32 = vld [vmem:[%s0 + $0x60] sm:$0xff]
  %v33 = vld [vmem:[%s0 + $0x68] sm:$0xff]
  %v34 = vld [vmem:[%s0 + $0x70] sm:$0xff]
  %v35 = vld [vmem:[%s0 + $0x78] sm:$0xff]
  %v36 = vld [vmem:[%s0 + $0x80] sm:$0xff]
  %v37 = vld [vmem:[%s0 + $0x88] sm:$0xff]
  %v38 = vld [vmem:[%s0 + $0x90] sm:$0xff]
  %v39 = vld [vmem:[%s0 + $0x98] sm:$0xff]
  %v40 = vld [vmem:[%s0 + $0xa0] sm:$0xff]
  %v41 = vld [vmem:[%s0 + $0xa8] sm:$0xff]
  %v42 = vld [vmem:[%s0 + $0xb0] sm:$0xff]
  %v43 = vld [vmem:[%s0 + $0xb8] sm:$0xff]
  %v44 = vld [vmem:[%s1] sm:$0x7f]
  %v45 = vld [vmem:[%s2] sm:$0x1]
  %v47 = vlaneseq
  %v48 = vshrl.u32 %v47, 7
  %v49 = vsub.s32 0, %v48
  %v50 = vrot.slane %v45, %v49
  %vm52 = vcmask 56320
  %v54 = vsel %vm52, %v20, 0
  %v57 = vsel %vm52, %v21, 0
  %v60 = vsel %vm52, %v22, 0
  %v63 = vsel %vm52, %v23, 0
  %v66 = vsel %vm52, %v24, 0
  %v69 = vsel %vm52, %v25, 0
  %v72 = vsel %vm52, %v26, 0
  %v75 = vsel %vm52, %v27, 0
  %v78 = vsel %vm52, %v28, 0
  %v81 = vsel %vm52, %v29, 0
  %v84 = vsel %vm52, %v30, 0
  %v87 = vsel %vm52, %v31, 0
  %v90 = vsel %vm52, %v32, 0
  %v93 = vsel %vm52, %v33, 0
  %v96 = vsel %vm52, %v34, 0
  %v99 = vsel %vm52, %v35, 0
  %v102 = vsel %vm52, %v36, 0
  %v105 = vsel %vm52, %v37, 0
  %v108 = vsel %vm52, %v38, 0
  %v111 = vsel %vm52, %v39, 0
  %v114 = vsel %vm52, %v40, 0
  %v117 = vsel %vm52, %v41, 0
  %v120 = vsel %vm52, %v42, 0
  %v123 = vsel %vm52, %v43, 0
  %vm125 = vcmask 1046528
  %v127 = vsel %vm125, %v44, 0
  %129 = vmatprep.subr.mxu0 0.0
  %130 = vmatpush1.msra.mxu0 %v127
  %131 = vmatprep.subr.mxu0 0.0
  %132 = vmatpush1.msra.mxu0 0.0
  %133 = vmatprep.subr.mxu0 0.0
  %134 = vmatpush1.msra.mxu0 0.0
  %135 = vmatprep.subr.mxu0 0.0
  %136 = vmatpush1.msra.mxu0 0.0
  %137 = vmatprep.subr.mxu0 0.0
  %138 = vmatpush1.msra.mxu0 0.0
  %139 = vmatprep.subr.mxu0 0.0
  %140 = vmatpush1.msra.mxu0 0.0
  %141 = vmatprep.subr.mxu0 0.0
  %142 = vmatpush1.msra.mxu0 0.0
  %143 = vmatprep.subr.mxu0 0.0
  %144 = vmatpush1.msra.mxu0 0.0
  %145 = vmatprep.subr.mxu0 0.0
  %146 = vmatpush1.msra.mxu0 0.0
  %147 = vmatprep.subr.mxu0 0.0
  %148 = vmatpush1.msra.mxu0 0.0
  %149 = vmatprep.subr.mxu0 0.0
  %150 = vmatpush1.msra.mxu0 0.0
  %151 = vmatprep.subr.mxu0 0.0
  %152 = vmatpush1.msra.mxu0 0.0
  %153 = vmatprep.subr.mxu0 0.0
  %154 = vmatpush1.msra.mxu0 0.0
  %155 = vmatprep.subr.mxu0 0.0
  %156 = vmatpush1.msra.mxu0 0.0
  %157 = vmatprep.subr.mxu0 0.0
  %158 = vmatpush1.msra.mxu0 0.0
  %159 = vmatprep.subr.mxu0 0.0
  %160 = vmatpush1.msra.mxu0 0.0
  %161 = vmatprep.subr.mxu0 0.0
  %162 = vmatpush1.msra.mxu0 0.0
  %163 = vmatprep.subr.mxu0 0.0
  %164 = vmatpush1.msra.mxu0 0.0
  %165 = vmatprep.subr.mxu0 0.0
  %166 = vmatpush1.msra.mxu0 0.0
  %167 = vmatprep.subr.mxu0 0.0
  %168 = vmatpush1.msra.mxu0 0.0
  %169 = vmatprep.subr.mxu0 0.0
  %170 = vmatpush1.msra.mxu0 0.0
  %171 = vmatprep.subr.mxu0 0.0
  %172 = vmatpush1.msra.mxu0 0.0
  %173 = vmatprep.subr.mxu0 0.0
  %174 = vmatpush1.msra.mxu0 0.0
  %175 = vmatprep.subr.mxu0 0.0
  %176 = vmatpush1.msra.mxu0 0.0
  %177 = vmatprep.subr.mxu0 0.0
  %178 = vmatpush1.msra.mxu0 0.0
  %179 = vmatprep.subr.mxu0 0.0
  %180 = vmatpush1.msra.mxu0 0.0
  %181 = vmatprep.subr.mxu0 0.0
  %182 = vmatpush1.msra.mxu0 0.0
  %183 = vmatprep.subr.mxu0 0.0
  %184 = vmatpush1.msra.mxu0 0.0
  %185 = vmatprep.subr.mxu0 0.0
  %186 = vmatpush1.msra.mxu0 0.0
  %187 = vmatprep.subr.mxu0 0.0
  %188 = vmatpush1.msra.mxu0 0.0
  %189 = vmatprep.subr.mxu0 0.0
  %190 = vmatpush1.msra.mxu0 0.0
  %191 = vmatprep.subr.mxu0 0.0
  %192 = vmatpush1.msra.mxu0 0.0
  %193 = vmatprep.mubr.f32.mxu0 0.0
  %194 = vmatmul.mubr.f32.gmra.mrb[0].mxu0 %v54
  %v195 = vpop.f32.mrb[0].mxu0
  %v196 = vadd.f32 %v50, %v195
  %v197 = vpop.f32.mrb[0].mxu0
  %198 = vmatprep.mubr.f32.mxu0 0.0
  %199 = vmatmul.mubr.f32.gmra.mrb[0].mxu0 %v57
  %v200 = vpop.f32.mrb[0].mxu0
  %v201 = vadd.f32 %v50, %v200
  %v202 = vpop.f32.mrb[0].mxu0
  %203 = vmatprep.mubr.f32.mxu0 0.0
  %204 = vmatmul.mubr.f32.gmra.mrb[0].mxu0 %v60
  %v205 = vpop.f32.mrb[0].mxu0
  %v206 = vadd.f32 %v50, %v205
  %v207 = vpop.f32.mrb[0].mxu0
  %208 = vmatprep.mubr.f32.mxu0 0.0
  %209 = vmatmul.mubr.f32.gmra.mrb[0].mxu0 %v63
  %v210 = vpop.f32.mrb[0].mxu0
  %v211 = vadd.f32 %v50, %v210
  %v212 = vpop.f32.mrb[0].mxu0
  %213 = vmatprep.mubr.f32.mxu0 0.0
  %214 = vmatmul.mubr.f32.gmra.mrb[0].mxu0 %v66
  %v215 = vpop.f32.mrb[0].mxu0
  %v216 = vadd.f32 %v50, %v215
  %v217 = vpop.f32.mrb[0].mxu0
  %218 = vmatprep.mubr.f32.mxu0 0.0
  %219 = vmatmul.mubr.f32.gmra.mrb[0].mxu0 %v69
  %v220 = vpop.f32.mrb[0].mxu0
  %v221 = vadd.f32 %v50, %v220
  %v222 = vpop.f32.mrb[0].mxu0
  %223 = vmatprep.mubr.f32.mxu0 0.0
  %224 = vmatmul.mubr.f32.gmra.mrb[0].mxu0 %v72
  %v225 = vpop.f32.mrb[0].mxu0
  %v226 = vadd.f32 %v50, %v225
  %v227 = vpop.f32.mrb[0].mxu0
  %228 = vmatprep.mubr.f32.mxu0 0.0
  %229 = vmatmul.mubr.f32.gmra.mrb[0].mxu0 %v75
  %v230 = vpop.f32.mrb[0].mxu0
  %v231 = vadd.f32 %v50, %v230
  %v232 = vpop.f32.mrb[0].mxu0
  %233 = vmatprep.mubr.f32.mxu0 0.0
  %234 = vmatmul.mubr.f32.gmra.mrb[0].mxu0 %v78
  %v235 = vpop.f32.mrb[0].mxu0
  %v236 = vadd.f32 %v50, %v235
  %v237 = vpop.f32.mrb[0].mxu0
  %238 = vmatprep.mubr.f32.mxu0 0.0
  %239 = vmatmul.mubr.f32.gmra.mrb[0].mxu0 %v81
  %v240 = vpop.f32.mrb[0].mxu0
  %v241 = vadd.f32 %v50, %v240
  %v242 = vpop.f32.mrb[0].mxu0
  %243 = vmatprep.mubr.f32.mxu0 0.0
  %244 = vmatmul.mubr.f32.gmra.mrb[0].mxu0 %v84
  %v245 = vpop.f32.mrb[0].mxu0
  %v246 = vadd.f32 %v50, %v245
  %v247 = vpop.f32.mrb[0].mxu0
  %248 = vmatprep.mubr.f32.mxu0 0.0
  %249 = vmatmul.mubr.f32.gmra.mrb[0].mxu0 %v87
  %v250 = vpop.f32.mrb[0].mxu0
  %v251 = vadd.f32 %v50, %v250
  %v252 = vpop.f32.mrb[0].mxu0
  %253 = vmatprep.mubr.f32.mxu0 0.0
  %254 = vmatmul.mubr.f32.gmra.mrb[0].mxu0 %v90
  %v255 = vpop.f32.mrb[0].mxu0
  %v256 = vadd.f32 %v50, %v255
  %v257 = vpop.f32.mrb[0].mxu0
  %258 = vmatprep.mubr.f32.mxu0 0.0
  %259 = vmatmul.mubr.f32.gmra.mrb[0].mxu0 %v93
  %v260 = vpop.f32.mrb[0].mxu0
  %v261 = vadd.f32 %v50, %v260
  %v262 = vpop.f32.mrb[0].mxu0
  %263 = vmatprep.mubr.f32.mxu0 0.0
  %264 = vmatmul.mubr.f32.gmra.mrb[0].mxu0 %v96
  %v265 = vpop.f32.mrb[0].mxu0
  %v266 = vadd.f32 %v50, %v265
  %v267 = vpop.f32.mrb[0].mxu0
  %268 = vmatprep.mubr.f32.mxu0 0.0
  %269 = vmatmul.mubr.f32.gmra.mrb[0].mxu0 %v99
  %v270 = vpop.f32.mrb[0].mxu0
  %v271 = vadd.f32 %v50, %v270
  %v272 = vpop.f32.mrb[0].mxu0
  %273 = vmatprep.mubr.f32.mxu0 0.0
  %274 = vmatmul.mubr.f32.gmra.mrb[0].mxu0 %v102
  %v275 = vpop.f32.mrb[0].mxu0
  %v276 = vadd.f32 %v50, %v275
  %v277 = vpop.f32.mrb[0].mxu0
  %278 = vmatprep.mubr.f32.mxu0 0.0
  %279 = vmatmul.mubr.f32.gmra.mrb[0].mxu0 %v105
  %v280 = vpop.f32.mrb[0].mxu0
  %v281 = vadd.f32 %v50, %v280
  %v282 = vpop.f32.mrb[0].mxu0
  %283 = vmatprep.mubr.f32.mxu0 0.0
  %284 = vmatmul.mubr.f32.gmra.mrb[0].mxu0 %v108
  %v285 = vpop.f32.mrb[0].mxu0
  %v286 = vadd.f32 %v50, %v285
  %v287 = vpop.f32.mrb[0].mxu0
  %288 = vmatprep.mubr.f32.mxu0 0.0
  %289 = vmatmul.mubr.f32.gmra.mrb[0].mxu0 %v111
  %v290 = vpop.f32.mrb[0].mxu0
  %v291 = vadd.f32 %v50, %v290
  %v292 = vpop.f32.mrb[0].mxu0
  %293 = vmatprep.mubr.f32.mxu0 0.0
  %294 = vmatmul.mubr.f32.gmra.mrb[0].mxu0 %v114
  %v295 = vpop.f32.mrb[0].mxu0
  %v296 = vadd.f32 %v50, %v295
  %v297 = vpop.f32.mrb[0].mxu0
  %298 = vmatprep.mubr.f32.mxu0 0.0
  %299 = vmatmul.mubr.f32.gmra.mrb[0].mxu0 %v117
  %v300 = vpop.f32.mrb[0].mxu0
  %v301 = vadd.f32 %v50, %v300
  %v302 = vpop.f32.mrb[0].mxu0
  %303 = vmatprep.mubr.f32.mxu0 0.0
  %304 = vmatmul.mubr.f32.gmra.mrb[0].mxu0 %v120
  %v305 = vpop.f32.mrb[0].mxu0
  %v306 = vadd.f32 %v50, %v305
  %v307 = vpop.f32.mrb[0].mxu0
  %308 = vmatprep.mubr.f32.mxu0 0.0
  %309 = vmatmul.mubr.f32.gmra.mrb[0].mxu0 %v123
  %v310 = vpop.f32.mrb[0].mxu0
  %v311 = vadd.f32 %v50, %v310
  %v312 = vpop.f32.mrb[0].mxu0
  %313 = vdwg.mxu0
  %vm314 = vcmask 392192
  %v315 = vsel %vm314, %v196, 0.0
  %316 = vadd.xlane.f32.xlu0 %v315
  %v317 = vpop.xlane.xlu0 %316
  %v318 = vsel %vm314, %v201, 0.0
  %319 = vadd.xlane.f32.xlu0 %v318
  %v320 = vpop.xlane.xlu0 %319
  %v321 = vsel %vm314, %v206, 0.0
  %322 = vadd.xlane.f32.xlu0 %v321
  %v323 = vpop.xlane.xlu0 %322
  %v324 = vsel %vm314, %v211, 0.0
  %325 = vadd.xlane.f32.xlu0 %v324
  %v326 = vpop.xlane.xlu0 %325
  %v327 = vsel %vm314, %v216, 0.0
  %328 = vadd.xlane.f32.xlu0 %v327
  %v329 = vpop.xlane.xlu0 %328
  %v330 = vsel %vm314, %v221, 0.0
  %331 = vadd.xlane.f32.xlu0 %v330
  %v332 = vpop.xlane.xlu0 %331
  %v333 = vsel %vm314, %v226, 0.0
  %334 = vadd.xlane.f32.xlu0 %v333
  %v335 = vpop.xlane.xlu0 %334
  %v336 = vsel %vm314, %v231, 0.0
  %337 = vadd.xlane.f32.xlu0 %v336
  %v338 = vpop.xlane.xlu0 %337
  %v339 = vsel %vm314, %v236, 0.0
  %340 = vadd.xlane.f32.xlu0 %v339
  %v341 = vpop.xlane.xlu0 %340
  %v342 = vsel %vm314, %v241, 0.0
  %343 = vadd.xlane.f32.xlu0 %v342
  %v344 = vpop.xlane.xlu0 %343
  %v345 = vsel %vm314, %v246, 0.0
  %346 = vadd.xlane.f32.xlu0 %v345
  %v347 = vpop.xlane.xlu0 %346
  %v348 = vsel %vm314, %v251, 0.0
  %349 = vadd.xlane.f32.xlu0 %v348
  %v350 = vpop.xlane.xlu0 %349
  %v351 = vsel %vm314, %v256, 0.0
  %352 = vadd.xlane.f32.xlu0 %v351
  %v353 = vpop.xlane.xlu0 %352
  %v354 = vsel %vm314, %v261, 0.0
  %355 = vadd.xlane.f32.xlu0 %v354
  %v356 = vpop.xlane.xlu0 %355
  %v357 = vsel %vm314, %v266, 0.0
  %358 = vadd.xlane.f32.xlu0 %v357
  %v359 = vpop.xlane.xlu0 %358
  %v360 = vsel %vm314, %v271, 0.0
  %361 = vadd.xlane.f32.xlu0 %v360
  %v362 = vpop.xlane.xlu0 %361
  %v363 = vsel %vm314, %v276, 0.0
  %364 = vadd.xlane.f32.xlu0 %v363
  %v365 = vpop.xlane.xlu0 %364
  %v366 = vsel %vm314, %v281, 0.0
  %367 = vadd.xlane.f32.xlu0 %v366
  %v368 = vpop.xlane.xlu0 %367
  %v369 = vsel %vm314, %v286, 0.0
  %370 = vadd.xlane.f32.xlu0 %v369
  %v371 = vpop.xlane.xlu0 %370
  %v372 = vsel %vm314, %v291, 0.0
  %373 = vadd.xlane.f32.xlu0 %v372
  %v374 = vpop.xlane.xlu0 %373
  %v375 = vsel %vm314, %v296, 0.0
  %376 = vadd.xlane.f32.xlu0 %v375
  %v377 = vpop.xlane.xlu0 %376
  %v378 = vsel %vm314, %v301, 0.0
  %379 = vadd.xlane.f32.xlu0 %v378
  %v380 = vpop.xlane.xlu0 %379
  %v381 = vsel %vm314, %v306, 0.0
  %382 = vadd.xlane.f32.xlu0 %v381
  %v383 = vpop.xlane.xlu0 %382
  %v384 = vsel %vm314, %v311, 0.0
  %385 = vadd.xlane.f32.xlu0 %v384
  %v386 = vpop.xlane.xlu0 %385
  %v387 = vrcp.pop 48.0
  %v388 = vmul.f32 %v317, %v387
  %v389 = vmul.f32 %v320, %v387
  %v390 = vmul.f32 %v323, %v387
  %v391 = vmul.f32 %v326, %v387
  %v392 = vmul.f32 %v329, %v387
  %v393 = vmul.f32 %v332, %v387
  %v394 = vmul.f32 %v335, %v387
  %v395 = vmul.f32 %v338, %v387
  %v396 = vmul.f32 %v341, %v387
  %v397 = vmul.f32 %v344, %v387
  %v398 = vmul.f32 %v347, %v387
  %v399 = vmul.f32 %v350, %v387
  %v400 = vmul.f32 %v353, %v387
  %v401 = vmul.f32 %v356, %v387
  %v402 = vmul.f32 %v359, %v387
  %v403 = vmul.f32 %v362, %v387
  %v404 = vmul.f32 %v365, %v387
  %v405 = vmul.f32 %v368, %v387
  %v406 = vmul.f32 %v371, %v387
  %v407 = vmul.f32 %v374, %v387
  %v408 = vmul.f32 %v377, %v387
  %v409 = vmul.f32 %v380, %v387
  %v410 = vmul.f32 %v383, %v387
  %v411 = vmul.f32 %v386, %v387
  %v412 = vsub.f32 %v196, %v388
  %v413 = vsub.f32 %v201, %v389
  %v414 = vsub.f32 %v206, %v390
  %v415 = vsub.f32 %v211, %v391
  %v416 = vsub.f32 %v216, %v392
  %v417 = vsub.f32 %v221, %v393
  %v418 = vsub.f32 %v226, %v394
  %v419 = vsub.f32 %v231, %v395
  %v420 = vsub.f32 %v236, %v396
  %v421 = vsub.f32 %v241, %v397
  %v422 = vsub.f32 %v246, %v398
  %v423 = vsub.f32 %v251, %v399
  %v424 = vsub.f32 %v256, %v400
  %v425 = vsub.f32 %v261, %v401
  %v426 = vsub.f32 %v266, %v402
  %v427 = vsub.f32 %v271, %v403
  %v428 = vsub.f32 %v276, %v404
  %v429 = vsub.f32 %v281, %v405
  %v430 = vsub.f32 %v286, %v406
  %v431 = vsub.f32 %v291, %v407
  %v432 = vsub.f32 %v296, %v408
  %v433 = vsub.f32 %v301, %v409
  %v434 = vsub.f32 %v306, %v410
  %v435 = vsub.f32 %v311, %v411
  %v436 = vmul.f32 %v412, %v412
  %v437 = vmul.f32 %v413, %v413
  %v438 = vmul.f32 %v414, %v414
  %v439 = vmul.f32 %v415, %v415
  %v440 = vmul.f32 %v416, %v416
  %v441 = vmul.f32 %v417, %v417
  %v442 = vmul.f32 %v418, %v418
  %v443 = vmul.f32 %v419, %v419
  %v444 = vmul.f32 %v420, %v420
  %v445 = vmul.f32 %v421, %v421
  %v446 = vmul.f32 %v422, %v422
  %v447 = vmul.f32 %v423, %v423
  %v448 = vmul.f32 %v424, %v424
  %v449 = vmul.f32 %v425, %v425
  %v450 = vmul.f32 %v426, %v426
  %v451 = vmul.f32 %v427, %v427
  %v452 = vmul.f32 %v428, %v428
  %v453 = vmul.f32 %v429, %v429
  %v454 = vmul.f32 %v430, %v430
  %v455 = vmul.f32 %v431, %v431
  %v456 = vmul.f32 %v432, %v432
  %v457 = vmul.f32 %v433, %v433
  %v458 = vmul.f32 %v434, %v434
  %v459 = vmul.f32 %v435, %v435
  %v460 = vsel %vm314, %v436, 0.0
  %461 = vadd.xlane.f32.xlu0 %v460
  %v462 = vpop.xlane.xlu0 %461
  %v463 = vsel %vm314, %v437, 0.0
  %464 = vadd.xlane.f32.xlu0 %v463
  %v465 = vpop.xlane.xlu0 %464
  %v466 = vsel %vm314, %v438, 0.0
  %467 = vadd.xlane.f32.xlu0 %v466
  %v468 = vpop.xlane.xlu0 %467
  %v469 = vsel %vm314, %v439, 0.0
  %470 = vadd.xlane.f32.xlu0 %v469
  %v471 = vpop.xlane.xlu0 %470
  %v472 = vsel %vm314, %v440, 0.0
  %473 = vadd.xlane.f32.xlu0 %v472
  %v474 = vpop.xlane.xlu0 %473
  %v475 = vsel %vm314, %v441, 0.0
  %476 = vadd.xlane.f32.xlu0 %v475
  %v477 = vpop.xlane.xlu0 %476
  %v478 = vsel %vm314, %v442, 0.0
  %479 = vadd.xlane.f32.xlu0 %v478
  %v480 = vpop.xlane.xlu0 %479
  %v481 = vsel %vm314, %v443, 0.0
  %482 = vadd.xlane.f32.xlu0 %v481
  %v483 = vpop.xlane.xlu0 %482
  %v484 = vsel %vm314, %v444, 0.0
  %485 = vadd.xlane.f32.xlu0 %v484
  %v486 = vpop.xlane.xlu0 %485
  %v487 = vsel %vm314, %v445, 0.0
  %488 = vadd.xlane.f32.xlu0 %v487
  %v489 = vpop.xlane.xlu0 %488
  %v490 = vsel %vm314, %v446, 0.0
  %491 = vadd.xlane.f32.xlu0 %v490
  %v492 = vpop.xlane.xlu0 %491
  %v493 = vsel %vm314, %v447, 0.0
  %494 = vadd.xlane.f32.xlu0 %v493
  %v495 = vpop.xlane.xlu0 %494
  %v496 = vsel %vm314, %v448, 0.0
  %497 = vadd.xlane.f32.xlu0 %v496
  %v498 = vpop.xlane.xlu0 %497
  %v499 = vsel %vm314, %v449, 0.0
  %500 = vadd.xlane.f32.xlu0 %v499
  %v501 = vpop.xlane.xlu0 %500
  %v502 = vsel %vm314, %v450, 0.0
  %503 = vadd.xlane.f32.xlu0 %v502
  %v504 = vpop.xlane.xlu0 %503
  %v505 = vsel %vm314, %v451, 0.0
  %506 = vadd.xlane.f32.xlu0 %v505
  %v507 = vpop.xlane.xlu0 %506
  %v508 = vsel %vm314, %v452, 0.0
  %509 = vadd.xlane.f32.xlu0 %v508
  %v510 = vpop.xlane.xlu0 %509
  %v511 = vsel %vm314, %v453, 0.0
  %512 = vadd.xlane.f32.xlu0 %v511
  %v513 = vpop.xlane.xlu0 %512
  %v514 = vsel %vm314, %v454, 0.0
  %515 = vadd.xlane.f32.xlu0 %v514
  %v516 = vpop.xlane.xlu0 %515
  %v517 = vsel %vm314, %v455, 0.0
  %518 = vadd.xlane.f32.xlu0 %v517
  %v519 = vpop.xlane.xlu0 %518
  %v520 = vsel %vm314, %v456, 0.0
  %521 = vadd.xlane.f32.xlu0 %v520
  %v522 = vpop.xlane.xlu0 %521
  %v523 = vsel %vm314, %v457, 0.0
  %524 = vadd.xlane.f32.xlu0 %v523
  %v525 = vpop.xlane.xlu0 %524
  %v526 = vsel %vm314, %v458, 0.0
  %527 = vadd.xlane.f32.xlu0 %v526
  %v528 = vpop.xlane.xlu0 %527
  %v529 = vsel %vm314, %v459, 0.0
  %530 = vadd.xlane.f32.xlu0 %v529
  %v531 = vpop.xlane.xlu0 %530
  %v532 = vmul.f32 %v462, %v387
  %v533 = vmul.f32 %v465, %v387
  %v534 = vmul.f32 %v468, %v387
  %v535 = vmul.f32 %v471, %v387
  %v536 = vmul.f32 %v474, %v387
  %v537 = vmul.f32 %v477, %v387
  %v538 = vmul.f32 %v480, %v387
  %v539 = vmul.f32 %v483, %v387
  %v540 = vmul.f32 %v486, %v387
  %v541 = vmul.f32 %v489, %v387
  %v542 = vmul.f32 %v492, %v387
  %v543 = vmul.f32 %v495, %v387
  %v544 = vmul.f32 %v498, %v387
  %v545 = vmul.f32 %v501, %v387
  %v546 = vmul.f32 %v504, %v387
  %v547 = vmul.f32 %v507, %v387
  %v548 = vmul.f32 %v510, %v387
  %v549 = vmul.f32 %v513, %v387
  %v550 = vmul.f32 %v516, %v387
  %v551 = vmul.f32 %v519, %v387
  %v552 = vmul.f32 %v522, %v387
  %v553 = vmul.f32 %v525, %v387
  %v554 = vmul.f32 %v528, %v387
  %v555 = vmul.f32 %v531, %v387
  %v556 = vadd.f32 %v532, 1e-05
  %v557 = vadd.f32 %v533, 1e-05
  %v558 = vadd.f32 %v534, 1e-05
  %v559 = vadd.f32 %v535, 1e-05
  %v560 = vadd.f32 %v536, 1e-05
  %v561 = vadd.f32 %v537, 1e-05
  %v562 = vadd.f32 %v538, 1e-05
  %v563 = vadd.f32 %v539, 1e-05
  %v564 = vadd.f32 %v540, 1e-05
  %v565 = vadd.f32 %v541, 1e-05
  %v566 = vadd.f32 %v542, 1e-05
  %v567 = vadd.f32 %v543, 1e-05
  %v568 = vadd.f32 %v544, 1e-05
  %v569 = vadd.f32 %v545, 1e-05
  %v570 = vadd.f32 %v546, 1e-05
  %v571 = vadd.f32 %v547, 1e-05
  %v572 = vadd.f32 %v548, 1e-05
  %v573 = vadd.f32 %v549, 1e-05
  %v574 = vadd.f32 %v550, 1e-05
  %v575 = vadd.f32 %v551, 1e-05
  %v576 = vadd.f32 %v552, 1e-05
  %v577 = vadd.f32 %v553, 1e-05
  %v578 = vadd.f32 %v554, 1e-05
  %v579 = vadd.f32 %v555, 1e-05
  %v580 = vrsqrt.pop %v556
  %v581 = vrsqrt.pop %v557
  %v582 = vrsqrt.pop %v558
  %v583 = vrsqrt.pop %v559
  %v584 = vrsqrt.pop %v560
  %v585 = vrsqrt.pop %v561
  %v586 = vrsqrt.pop %v562
  %v587 = vrsqrt.pop %v563
  %v588 = vrsqrt.pop %v564
  %v589 = vrsqrt.pop %v565
  %v590 = vrsqrt.pop %v566
  %v591 = vrsqrt.pop %v567
  %v592 = vrsqrt.pop %v568
  %v593 = vrsqrt.pop %v569
  %v594 = vrsqrt.pop %v570
  %v595 = vrsqrt.pop %v571
  %v596 = vrsqrt.pop %v572
  %v597 = vrsqrt.pop %v573
  %v598 = vrsqrt.pop %v574
  %v599 = vrsqrt.pop %v575
  %v600 = vrsqrt.pop %v576
  %v601 = vrsqrt.pop %v577
  %v602 = vrsqrt.pop %v578
  %v603 = vrsqrt.pop %v579
  %v604 = vmul.f32 %v412, %v580
  %v605 = vmul.f32 %v413, %v581
  %v606 = vmul.f32 %v414, %v582
  %v607 = vmul.f32 %v415, %v583
  %v608 = vmul.f32 %v416, %v584
  %v609 = vmul.f32 %v417, %v585
  %v610 = vmul.f32 %v418, %v586
  %v611 = vmul.f32 %v419, %v587
  %v612 = vmul.f32 %v420, %v588
  %v613 = vmul.f32 %v421, %v589
  %v614 = vmul.f32 %v422, %v590
  %v615 = vmul.f32 %v423, %v591
  %v616 = vmul.f32 %v424, %v592
  %v617 = vmul.f32 %v425, %v593
  %v618 = vmul.f32 %v426, %v594
  %v619 = vmul.f32 %v427, %v595
  %v620 = vmul.f32 %v428, %v596
  %v621 = vmul.f32 %v429, %v597
  %v622 = vmul.f32 %v430, %v598
  %v623 = vmul.f32 %v431, %v599
  %v624 = vmul.f32 %v432, %v600
  %v625 = vmul.f32 %v433, %v601
  %v626 = vmul.f32 %v434, %v602
  %v627 = vmul.f32 %v435, %v603
  %v628 = vld [vmem:[%s3] sm:$0x1]
  %v630 = vlaneseq
  %v631 = vshrl.u32 %v630, 7
  %v632 = vsub.s32 0, %v631
  %v633 = vrot.slane %v628, %v632
  %v635 = vmul.f32 %v604, %v633
  %v636 = vmul.f32 %v605, %v633
  %v637 = vmul.f32 %v606, %v633
  %v638 = vmul.f32 %v607, %v633
  %v639 = vmul.f32 %v608, %v633
  %v640 = vmul.f32 %v609, %v633
  %v641 = vmul.f32 %v610, %v633
  %v642 = vmul.f32 %v611, %v633
  %v643 = vmul.f32 %v612, %v633
  %v644 = vmul.f32 %v613, %v633
  %v645 = vmul.f32 %v614, %v633
  %v646 = vmul.f32 %v615, %v633
  %v647 = vmul.f32 %v616, %v633
  %v648 = vmul.f32 %v617, %v633
  %v649 = vmul.f32 %v618, %v633
  %v650 = vmul.f32 %v619, %v633
  %v651 = vmul.f32 %v620, %v633
  %v652 = vmul.f32 %v621, %v633
  %v653 = vmul.f32 %v622, %v633
  %v654 = vmul.f32 %v623, %v633
  %v655 = vmul.f32 %v624, %v633
  %v656 = vmul.f32 %v625, %v633
  %v657 = vmul.f32 %v626, %v633
  %v658 = vmul.f32 %v627, %v633
  %v659 = vld [vmem:[%s4] sm:$0x1]
  %v661 = vlaneseq
  %v662 = vshrl.u32 %v661, 7
  %v663 = vsub.s32 0, %v662
  %v664 = vrot.slane %v659, %v663
  %v666 = vadd.f32 %v635, %v664
  %v667 = vadd.f32 %v636, %v664
  %v668 = vadd.f32 %v637, %v664
  %v669 = vadd.f32 %v638, %v664
  %v670 = vadd.f32 %v639, %v664
  %v671 = vadd.f32 %v640, %v664
  %v672 = vadd.f32 %v641, %v664
  %v673 = vadd.f32 %v642, %v664
  %v674 = vadd.f32 %v643, %v664
  %v675 = vadd.f32 %v644, %v664
  %v676 = vadd.f32 %v645, %v664
  %v677 = vadd.f32 %v646, %v664
  %v678 = vadd.f32 %v647, %v664
  %v679 = vadd.f32 %v648, %v664
  %v680 = vadd.f32 %v649, %v664
  %v681 = vadd.f32 %v650, %v664
  %v682 = vadd.f32 %v651, %v664
  %v683 = vadd.f32 %v652, %v664
  %v684 = vadd.f32 %v653, %v664
  %v685 = vadd.f32 %v654, %v664
  %v686 = vadd.f32 %v655, %v664
  %v687 = vadd.f32 %v656, %v664
  %v688 = vadd.f32 %v657, %v664
  %v689 = vadd.f32 %v658, %v664
  %v690 = vmax.f32 %v666, 0.0
  %v691 = vmax.f32 %v667, 0.0
  %v692 = vmax.f32 %v668, 0.0
  %v693 = vmax.f32 %v669, 0.0
  %v694 = vmax.f32 %v670, 0.0
  %v695 = vmax.f32 %v671, 0.0
  %v696 = vmax.f32 %v672, 0.0
  %v697 = vmax.f32 %v673, 0.0
  %v698 = vmax.f32 %v674, 0.0
  %v699 = vmax.f32 %v675, 0.0
  %v700 = vmax.f32 %v676, 0.0
  %v701 = vmax.f32 %v677, 0.0
  %v702 = vmax.f32 %v678, 0.0
  %v703 = vmax.f32 %v679, 0.0
  %v704 = vmax.f32 %v680, 0.0
  %v705 = vmax.f32 %v681, 0.0
  %v706 = vmax.f32 %v682, 0.0
  %v707 = vmax.f32 %v683, 0.0
  %v708 = vmax.f32 %v684, 0.0
  %v709 = vmax.f32 %v685, 0.0
  %v710 = vmax.f32 %v686, 0.0
  %v711 = vmax.f32 %v687, 0.0
  %v712 = vmax.f32 %v688, 0.0
  %v713 = vmax.f32 %v689, 0.0
  %714 = vst.msk [vmem:[%s5] sm:$0xff] %vm314, %v690
  %715 = vst.msk [vmem:[%s5 + $0x8] sm:$0xff] %vm314, %v691
  %716 = vst.msk [vmem:[%s5 + $0x10] sm:$0xff] %vm314, %v692
  %717 = vst.msk [vmem:[%s5 + $0x18] sm:$0xff] %vm314, %v693
  %718 = vst.msk [vmem:[%s5 + $0x20] sm:$0xff] %vm314, %v694
  %719 = vst.msk [vmem:[%s5 + $0x28] sm:$0xff] %vm314, %v695
  %720 = vst.msk [vmem:[%s5 + $0x30] sm:$0xff] %vm314, %v696
  %721 = vst.msk [vmem:[%s5 + $0x38] sm:$0xff] %vm314, %v697
  %722 = vst.msk [vmem:[%s5 + $0x40] sm:$0xff] %vm314, %v698
  %723 = vst.msk [vmem:[%s5 + $0x48] sm:$0xff] %vm314, %v699
  %724 = vst.msk [vmem:[%s5 + $0x50] sm:$0xff] %vm314, %v700
  %725 = vst.msk [vmem:[%s5 + $0x58] sm:$0xff] %vm314, %v701
  %726 = vst.msk [vmem:[%s5 + $0x60] sm:$0xff] %vm314, %v702
  %727 = vst.msk [vmem:[%s5 + $0x68] sm:$0xff] %vm314, %v703
  %728 = vst.msk [vmem:[%s5 + $0x70] sm:$0xff] %vm314, %v704
  %729 = vst.msk [vmem:[%s5 + $0x78] sm:$0xff] %vm314, %v705
  %730 = vst.msk [vmem:[%s5 + $0x80] sm:$0xff] %vm314, %v706
  %731 = vst.msk [vmem:[%s5 + $0x88] sm:$0xff] %vm314, %v707
  %732 = vst.msk [vmem:[%s5 + $0x90] sm:$0xff] %vm314, %v708
  %733 = vst.msk [vmem:[%s5 + $0x98] sm:$0xff] %vm314, %v709
  %734 = vst.msk [vmem:[%s5 + $0xa0] sm:$0xff] %vm314, %v710
  %735 = vst.msk [vmem:[%s5 + $0xa8] sm:$0xff] %vm314, %v711
  %736 = vst.msk [vmem:[%s5 + $0xb0] sm:$0xff] %vm314, %v712
  %737 = vst.msk [vmem:[%s5 + $0xb8] sm:$0xff] %vm314, %v713
  // Predicated region
  $region22: #{forward.11} parent=0 // pred_check
    _
  $region23: #{forward.11} parent=0 // pred_check_branch
    %739 = sbr.rel (0) target = $region25
  $region24: #{forward.11} parent=0 // pred_region
    _
  $region25: #{forward.11} parent=0 // pred_fallthru
    _
  // Predicated region
  $region26: #{forward.11} parent=0 // pred_check
    _
  $region27: #{forward.11} parent=0 // pred_check_branch
    %741 = sbr.rel (0) target = $region29
  $region28: #{forward.11} parent=0 // pred_region
    _
  $region29: #{forward.11} parent=0 // pred_fallthru
    _

// kernel: forward.14
$region0: #{forward.14}
  #allocation0 [shape = 'u32[]', space=smem, size = 0x4, offset = 0x4, fixed_abs, tag = 'smem constant byte address 0x4 - core index']
  #allocation1 [shape = 'u32[144,128]{1,0:T(1,128)}', space=vmem, size = 0x12000, scoped, tag = 'internal scratch']
  %s0 = inlined_call_operand.vmem [shape: f32[352,48], index: 0, kind: input, shape index: {}]
  %s1 = inlined_call_operand.vmem [shape: f32[48,50], index: 1, kind: input, shape index: {}]
  %s2 = inlined_call_operand.vmem [shape: f32[1,50], index: 2, kind: input, shape index: {}]
  %s3 = inlined_call_operand.vmem [shape: f32[352,50], index: 3, kind: output, shape index: {}]
  %s4 = sld [smem:[#allocation0]]
  $region22: #{forward.14} parent=0
    _
  %s6 = ssub.s32 1, %s4
  %s7 = scalar_select 0, %s6, %s4
  // Predicated region
  $region2: #{forward.14} parent=0 // pred_check
    _
  $region3: #{forward.14} parent=0 // pred_check_branch
    %9 = sbr.rel (0) target = $region5
  $region4: #{forward.14} parent=0 // pred_region
    _
  $region5: #{forward.14} parent=0 // pred_fallthru
    _
  // Predicated region
  $region6: #{forward.14} parent=0 // pred_check
    _
  $region7: #{forward.14} parent=0 // pred_check_branch
    %11 = sbr.rel (0) target = $region9
  $region8: #{forward.14} parent=0 // pred_region
    _
  $region9: #{forward.14} parent=0 // pred_fallthru
    _
  // Predicated region
  $region10: #{forward.14} parent=0 // pred_check
    _
  $region11: #{forward.14} parent=0 // pred_check_branch
    %13 = sbr.rel (0) target = $region13
  $region12: #{forward.14} parent=0 // pred_region
    _
  $region13: #{forward.14} parent=0 // pred_fallthru
    _
  %v14 = vld [vmem:[%s0] sm:$0xff]
  %v15 = vld [vmem:[%s0 + $0x8] sm:$0xff]
  %v16 = vld [vmem:[%s0 + $0x10] sm:$0xff]
  %v17 = vld [vmem:[%s0 + $0x18] sm:$0xff]
  %v18 = vld [vmem:[%s0 + $0x20] sm:$0xff]
  %v19 = vld [vmem:[%s0 + $0x28] sm:$0xff]
  %v20 = vld [vmem:[%s0 + $0x30] sm:$0xff]
  %v21 = vld [vmem:[%s0 + $0x38] sm:$0xff]
  %v22 = vld [vmem:[%s0 + $0x40] sm:$0xff]
  %v23 = vld [vmem:[%s0 + $0x48] sm:$0xff]
  %v24 = vld [vmem:[%s0 + $0x50] sm:$0xff]
  %v25 = vld [vmem:[%s0 + $0x58] sm:$0xff]
  %v26 = vld [vmem:[%s0 + $0x60] sm:$0xff]
  %v27 = vld [vmem:[%s0 + $0x68] sm:$0xff]
  %v28 = vld [vmem:[%s0 + $0x70] sm:$0xff]
  %v29 = vld [vmem:[%s0 + $0x78] sm:$0xff]
  %v30 = vld [vmem:[%s0 + $0x80] sm:$0xff]
  %v31 = vld [vmem:[%s0 + $0x88] sm:$0xff]
  %v32 = vld [vmem:[%s0 + $0x90] sm:$0xff]
  %v33 = vld [vmem:[%s0 + $0x98] sm:$0xff]
  %v34 = vld [vmem:[%s0 + $0xa0] sm:$0xff]
  %v35 = vld [vmem:[%s0 + $0xa8] sm:$0xff]
  %v36 = vld [vmem:[%s0 + $0xb0] sm:$0xff]
  %v37 = vld [vmem:[%s0 + $0xb8] sm:$0xff]
  %v38 = vld [vmem:[%s0 + $0xc0] sm:$0xff]
  %v39 = vld [vmem:[%s0 + $0xc8] sm:$0xff]
  %v40 = vld [vmem:[%s0 + $0xd0] sm:$0xff]
  %v41 = vld [vmem:[%s0 + $0xd8] sm:$0xff]
  %v42 = vld [vmem:[%s0 + $0xe0] sm:$0xff]
  %v43 = vld [vmem:[%s0 + $0xe8] sm:$0xff]
  %v44 = vld [vmem:[%s0 + $0xf0] sm:$0xff]
  %v45 = vld [vmem:[%s0 + $0xf8] sm:$0xff]
  %v46 = vld [vmem:[%s0 + $0x100] sm:$0xff]
  %v47 = vld [vmem:[%s0 + $0x108] sm:$0xff]
  %v48 = vld [vmem:[%s0 + $0x110] sm:$0xff]
  %v49 = vld [vmem:[%s0 + $0x118] sm:$0xff]
  %v50 = vld [vmem:[%s0 + $0x120] sm:$0xff]
  %v51 = vld [vmem:[%s0 + $0x128] sm:$0xff]
  %v52 = vld [vmem:[%s0 + $0x130] sm:$0xff]
  %v53 = vld [vmem:[%s0 + $0x138] sm:$0xff]
  %v54 = vld [vmem:[%s0 + $0x140] sm:$0xff]
  %v55 = vld [vmem:[%s0 + $0x148] sm:$0xff]
  %v56 = vld [vmem:[%s0 + $0x150] sm:$0xff]
  %v57 = vld [vmem:[%s0 + $0x158] sm:$0xff]
  %v58 = vld [vmem:[%s1] sm:$0xff]
  %v59 = vld [vmem:[%s1 + $0x8] sm:$0xff]
  %v60 = vld [vmem:[%s1 + $0x10] sm:$0xff]
  %v61 = vld [vmem:[%s1 + $0x18] sm:$0xff]
  %v62 = vld [vmem:[%s1 + $0x20] sm:$0xff]
  %v63 = vld [vmem:[%s1 + $0x28] sm:$0xff]
  %v64 = vld [vmem:[%s2] sm:$0x1]
  %v66 = vlaneseq
  %v67 = vshrl.u32 %v66, 7
  %v68 = vsub.s32 0, %v67
  %v69 = vrot.slane %v64, %v68
  %vm71 = vcmask 392192
  %v73 = vsel %vm71, %v14, 0
  %v76 = vsel %vm71, %v15, 0
  %v79 = vsel %vm71, %v16, 0
  %v82 = vsel %vm71, %v17, 0
  %v85 = vsel %vm71, %v18, 0
  %v88 = vsel %vm71, %v19, 0
  %v91 = vsel %vm71, %v20, 0
  %v94 = vsel %vm71, %v21, 0
  %v97 = vsel %vm71, %v22, 0
  %v100 = vsel %vm71, %v23, 0
  %v103 = vsel %vm71, %v24, 0
  %v106 = vsel %vm71, %v25, 0
  %v109 = vsel %vm71, %v26, 0
  %v112 = vsel %vm71, %v27, 0
  %v115 = vsel %vm71, %v28, 0
  %v118 = vsel %vm71, %v29, 0
  %v121 = vsel %vm71, %v30, 0
  %v124 = vsel %vm71, %v31, 0
  %v127 = vsel %vm71, %v32, 0
  %v130 = vsel %vm71, %v33, 0
  %v133 = vsel %vm71, %v34, 0
  %v136 = vsel %vm71, %v35, 0
  %v139 = vsel %vm71, %v36, 0
  %v142 = vsel %vm71, %v37, 0
  %v145 = vsel %vm71, %v38, 0
  %v148 = vsel %vm71, %v39, 0
  %v151 = vsel %vm71, %v40, 0
  %v154 = vsel %vm71, %v41, 0
  %v157 = vsel %vm71, %v42, 0
  %v160 = vsel %vm71, %v43, 0
  %v163 = vsel %vm71, %v44, 0
  %v166 = vsel %vm71, %v45, 0
  %v169 = vsel %vm71, %v46, 0
  %v172 = vsel %vm71, %v47, 0
  %v175 = vsel %vm71, %v48, 0
  %v178 = vsel %vm71, %v49, 0
  %v181 = vsel %vm71, %v50, 0
  %v184 = vsel %vm71, %v51, 0
  %v187 = vsel %vm71, %v52, 0
  %v190 = vsel %vm71, %v53, 0
  %v193 = vsel %vm71, %v54, 0
  %v196 = vsel %vm71, %v55, 0
  %v199 = vsel %vm71, %v56, 0
  %v202 = vsel %vm71, %v57, 0
  %204 = vmatprep.subr.mxu0 0.0
  %205 = vmatpush1.msra.mxu0 %v58
  %206 = vmatprep.subr.mxu0 0.0
  %207 = vmatpush1.msra.mxu0 %v59
  %208 = vmatprep.subr.mxu0 0.0
  %209 = vmatpush1.msra.mxu0 %v60
  %210 = vmatprep.subr.mxu0 0.0
  %211 = vmatpush1.msra.mxu0 %v61
  %212 = vmatprep.subr.mxu0 0.0
  %213 = vmatpush1.msra.mxu0 %v62
  %214 = vmatprep.subr.mxu0 0.0
  %215 = vmatpush1.msra.mxu0 %v63
  %216 = vmatprep.subr.mxu0 0.0
  %217 = vmatpush1.msra.mxu0 0.0
  %218 = vmatprep.subr.mxu0 0.0
  %219 = vmatpush1.msra.mxu0 0.0
  %220 = vmatprep.subr.mxu0 0.0
  %221 = vmatpush1.msra.mxu0 0.0
  %222 = vmatprep.subr.mxu0 0.0
  %223 = vmatpush1.msra.mxu0 0.0
  %224 = vmatprep.subr.mxu0 0.0
  %225 = vmatpush1.msra.mxu0 0.0
  %226 = vmatprep.subr.mxu0 0.0
  %227 = vmatpush1.msra.mxu0 0.0
  %228 = vmatprep.subr.mxu0 0.0
  %229 = vmatpush1.msra.mxu0 0.0
  %230 = vmatprep.subr.mxu0 0.0
  %231 = vmatpush1.msra.mxu0 0.0
  %232 = vmatprep.subr.mxu0 0.0
  %233 = vmatpush1.msra.mxu0 0.0
  %234 = vmatprep.subr.mxu0 0.0
  %235 = vmatpush1.msra.mxu0 0.0
  %236 = vmatprep.subr.mxu0 0.0
  %237 = vmatpush1.msra.mxu0 0.0
  %238 = vmatprep.subr.mxu0 0.0
  %239 = vmatpush1.msra.mxu0 0.0
  %240 = vmatprep.subr.mxu0 0.0
  %241 = vmatpush1.msra.mxu0 0.0
  %242 = vmatprep.subr.mxu0 0.0
  %243 = vmatpush1.msra.mxu0 0.0
  %244 = vmatprep.subr.mxu0 0.0
  %245 = vmatpush1.msra.mxu0 0.0
  %246 = vmatprep.subr.mxu0 0.0
  %247 = vmatpush1.msra.mxu0 0.0
  %248 = vmatprep.subr.mxu0 0.0
  %249 = vmatpush1.msra.mxu0 0.0
  %250 = vmatprep.subr.mxu0 0.0
  %251 = vmatpush1.msra.mxu0 0.0
  %252 = vmatprep.subr.mxu0 0.0
  %253 = vmatpush1.msra.mxu0 0.0
  %254 = vmatprep.subr.mxu0 0.0
  %255 = vmatpush1.msra.mxu0 0.0
  %256 = vmatprep.subr.mxu0 0.0
  %257 = vmatpush1.msra.mxu0 0.0
  %258 = vmatprep.subr.mxu0 0.0
  %259 = vmatpush1.msra.mxu0 0.0
  %260 = vmatprep.subr.mxu0 0.0
  %261 = vmatpush1.msra.mxu0 0.0
  %262 = vmatprep.subr.mxu0 0.0
  %263 = vmatpush1.msra.mxu0 0.0
  %264 = vmatprep.subr.mxu0 0.0
  %265 = vmatpush1.msra.mxu0 0.0
  %266 = vmatprep.subr.mxu0 0.0
  %267 = vmatpush1.msra.mxu0 0.0
  %268 = vmatprep.mubr.f32.mxu0 0.0
  %269 = vmatmul.mubr.f32.gmra.mrb[0].mxu0 %v73
  %v270 = vpop.f32.mrb[0].mxu0
  %v271 = vadd.f32 %v69, %v270
  %v272 = vpop.f32.mrb[0].mxu0
  %273 = vmatprep.mubr.f32.mxu0 0.0
  %274 = vmatmul.mubr.f32.gmra.mrb[0].mxu0 %v76
  %v275 = vpop.f32.mrb[0].mxu0
  %v276 = vadd.f32 %v69, %v275
  %v277 = vpop.f32.mrb[0].mxu0
  %278 = vmatprep.mubr.f32.mxu0 0.0
  %279 = vmatmul.mubr.f32.gmra.mrb[0].mxu0 %v79
  %v280 = vpop.f32.mrb[0].mxu0
  %v281 = vadd.f32 %v69, %v280
  %v282 = vpop.f32.mrb[0].mxu0
  %283 = vmatprep.mubr.f32.mxu0 0.0
  %284 = vmatmul.mubr.f32.gmra.mrb[0].mxu0 %v82
  %v285 = vpop.f32.mrb[0].mxu0
  %v286 = vadd.f32 %v69, %v285
  %v287 = vpop.f32.mrb[0].mxu0
  %288 = vmatprep.mubr.f32.mxu0 0.0
  %289 = vmatmul.mubr.f32.gmra.mrb[0].mxu0 %v85
  %v290 = vpop.f32.mrb[0].mxu0
  %v291 = vadd.f32 %v69, %v290
  %v292 = vpop.f32.mrb[0].mxu0
  %293 = vmatprep.mubr.f32.mxu0 0.0
  %294 = vmatmul.mubr.f32.gmra.mrb[0].mxu0 %v88
  %v295 = vpop.f32.mrb[0].mxu0
  %v296 = vadd.f32 %v69, %v295
  %v297 = vpop.f32.mrb[0].mxu0
  %298 = vmatprep.mubr.f32.mxu0 0.0
  %299 = vmatmul.mubr.f32.gmra.mrb[0].mxu0 %v91
  %v300 = vpop.f32.mrb[0].mxu0
  %v301 = vadd.f32 %v69, %v300
  %v302 = vpop.f32.mrb[0].mxu0
  %303 = vmatprep.mubr.f32.mxu0 0.0
  %304 = vmatmul.mubr.f32.gmra.mrb[0].mxu0 %v94
  %v305 = vpop.f32.mrb[0].mxu0
  %v306 = vadd.f32 %v69, %v305
  %v307 = vpop.f32.mrb[0].mxu0
  %308 = vmatprep.mubr.f32.mxu0 0.0
  %309 = vmatmul.mubr.f32.gmra.mrb[0].mxu0 %v97
  %v310 = vpop.f32.mrb[0].mxu0
  %v311 = vadd.f32 %v69, %v310
  %v312 = vpop.f32.mrb[0].mxu0
  %313 = vmatprep.mubr.f32.mxu0 0.0
  %314 = vmatmul.mubr.f32.gmra.mrb[0].mxu0 %v100
  %v315 = vpop.f32.mrb[0].mxu0
  %v316 = vadd.f32 %v69, %v315
  %v317 = vpop.f32.mrb[0].mxu0
  %318 = vmatprep.mubr.f32.mxu0 0.0
  %319 = vmatmul.mubr.f32.gmra.mrb[0].mxu0 %v103
  %v320 = vpop.f32.mrb[0].mxu0
  %v321 = vadd.f32 %v69, %v320
  %v322 = vpop.f32.mrb[0].mxu0
  %323 = vmatprep.mubr.f32.mxu0 0.0
  %324 = vmatmul.mubr.f32.gmra.mrb[0].mxu0 %v106
  %v325 = vpop.f32.mrb[0].mxu0
  %v326 = vadd.f32 %v69, %v325
  %v327 = vpop.f32.mrb[0].mxu0
  %328 = vmatprep.mubr.f32.mxu0 0.0
  %329 = vmatmul.mubr.f32.gmra.mrb[0].mxu0 %v109
  %v330 = vpop.f32.mrb[0].mxu0
  %v331 = vadd.f32 %v69, %v330
  %v332 = vpop.f32.mrb[0].mxu0
  %333 = vmatprep.mubr.f32.mxu0 0.0
  %334 = vmatmul.mubr.f32.gmra.mrb[0].mxu0 %v112
  %v335 = vpop.f32.mrb[0].mxu0
  %v336 = vadd.f32 %v69, %v335
  %v337 = vpop.f32.mrb[0].mxu0
  %338 = vmatprep.mubr.f32.mxu0 0.0
  %339 = vmatmul.mubr.f32.gmra.mrb[0].mxu0 %v115
  %v340 = vpop.f32.mrb[0].mxu0
  %v341 = vadd.f32 %v69, %v340
  %v342 = vpop.f32.mrb[0].mxu0
  %343 = vmatprep.mubr.f32.mxu0 0.0
  %344 = vmatmul.mubr.f32.gmra.mrb[0].mxu0 %v118
  %v345 = vpop.f32.mrb[0].mxu0
  %v346 = vadd.f32 %v69, %v345
  %v347 = vpop.f32.mrb[0].mxu0
  %348 = vmatprep.mubr.f32.mxu0 0.0
  %349 = vmatmul.mubr.f32.gmra.mrb[0].mxu0 %v121
  %v350 = vpop.f32.mrb[0].mxu0
  %v351 = vadd.f32 %v69, %v350
  %v352 = vpop.f32.mrb[0].mxu0
  %353 = vmatprep.mubr.f32.mxu0 0.0
  %354 = vmatmul.mubr.f32.gmra.mrb[0].mxu0 %v124
  %v355 = vpop.f32.mrb[0].mxu0
  %v356 = vadd.f32 %v69, %v355
  %v357 = vpop.f32.mrb[0].mxu0
  %358 = vmatprep.mubr.f32.mxu0 0.0
  %359 = vmatmul.mubr.f32.gmra.mrb[0].mxu0 %v127
  %v360 = vpop.f32.mrb[0].mxu0
  %v361 = vadd.f32 %v69, %v360
  %v362 = vpop.f32.mrb[0].mxu0
  %363 = vmatprep.mubr.f32.mxu0 0.0
  %364 = vmatmul.mubr.f32.gmra.mrb[0].mxu0 %v130
  %v365 = vpop.f32.mrb[0].mxu0
  %v366 = vadd.f32 %v69, %v365
  %v367 = vpop.f32.mrb[0].mxu0
  %368 = vmatprep.mubr.f32.mxu0 0.0
  %369 = vmatmul.mubr.f32.gmra.mrb[0].mxu0 %v133
  %v370 = vpop.f32.mrb[0].mxu0
  %v371 = vadd.f32 %v69, %v370
  %v372 = vpop.f32.mrb[0].mxu0
  %373 = vmatprep.mubr.f32.mxu0 0.0
  %374 = vmatmul.mubr.f32.gmra.mrb[0].mxu0 %v136
  %v375 = vpop.f32.mrb[0].mxu0
  %v376 = vadd.f32 %v69, %v375
  %v377 = vpop.f32.mrb[0].mxu0
  %378 = vmatprep.mubr.f32.mxu0 0.0
  %379 = vmatmul.mubr.f32.gmra.mrb[0].mxu0 %v139
  %v380 = vpop.f32.mrb[0].mxu0
  %v381 = vadd.f32 %v69, %v380
  %v382 = vpop.f32.mrb[0].mxu0
  %383 = vmatprep.mubr.f32.mxu0 0.0
  %384 = vmatmul.mubr.f32.gmra.mrb[0].mxu0 %v142
  %v385 = vpop.f32.mrb[0].mxu0
  %v386 = vadd.f32 %v69, %v385
  %v387 = vpop.f32.mrb[0].mxu0
  %388 = vmatprep.mubr.f32.mxu0 0.0
  %389 = vmatmul.mubr.f32.gmra.mrb[0].mxu0 %v145
  %v390 = vpop.f32.mrb[0].mxu0
  %v391 = vadd.f32 %v69, %v390
  %v392 = vpop.f32.mrb[0].mxu0
  %393 = vmatprep.mubr.f32.mxu0 0.0
  %394 = vmatmul.mubr.f32.gmra.mrb[0].mxu0 %v148
  %v395 = vpop.f32.mrb[0].mxu0
  %v396 = vadd.f32 %v69, %v395
  %v397 = vpop.f32.mrb[0].mxu0
  %398 = vmatprep.mubr.f32.mxu0 0.0
  %399 = vmatmul.mubr.f32.gmra.mrb[0].mxu0 %v151
  %v400 = vpop.f32.mrb[0].mxu0
  %v401 = vadd.f32 %v69, %v400
  %v402 = vpop.f32.mrb[0].mxu0
  %403 = vmatprep.mubr.f32.mxu0 0.0
  %404 = vmatmul.mubr.f32.gmra.mrb[0].mxu0 %v154
  %v405 = vpop.f32.mrb[0].mxu0
  %v406 = vadd.f32 %v69, %v405
  %v407 = vpop.f32.mrb[0].mxu0
  %408 = vmatprep.mubr.f32.mxu0 0.0
  %409 = vmatmul.mubr.f32.gmra.mrb[0].mxu0 %v157
  %v410 = vpop.f32.mrb[0].mxu0
  %v411 = vadd.f32 %v69, %v410
  %v412 = vpop.f32.mrb[0].mxu0
  %413 = vmatprep.mubr.f32.mxu0 0.0
  %414 = vmatmul.mubr.f32.gmra.mrb[0].mxu0 %v160
  %v415 = vpop.f32.mrb[0].mxu0
  %v416 = vadd.f32 %v69, %v415
  %v417 = vpop.f32.mrb[0].mxu0
  %418 = vmatprep.mubr.f32.mxu0 0.0
  %419 = vmatmul.mubr.f32.gmra.mrb[0].mxu0 %v163
  %v420 = vpop.f32.mrb[0].mxu0
  %v421 = vadd.f32 %v69, %v420
  %v422 = vpop.f32.mrb[0].mxu0
  %423 = vmatprep.mubr.f32.mxu0 0.0
  %424 = vmatmul.mubr.f32.gmra.mrb[0].mxu0 %v166
  %v425 = vpop.f32.mrb[0].mxu0
  %v426 = vadd.f32 %v69, %v425
  %v427 = vpop.f32.mrb[0].mxu0
  %428 = vmatprep.mubr.f32.mxu0 0.0
  %429 = vmatmul.mubr.f32.gmra.mrb[0].mxu0 %v169
  %v430 = vpop.f32.mrb[0].mxu0
  %v431 = vadd.f32 %v69, %v430
  %v432 = vpop.f32.mrb[0].mxu0
  %433 = vmatprep.mubr.f32.mxu0 0.0
  %434 = vmatmul.mubr.f32.gmra.mrb[0].mxu0 %v172
  %v435 = vpop.f32.mrb[0].mxu0
  %v436 = vadd.f32 %v69, %v435
  %v437 = vpop.f32.mrb[0].mxu0
  %438 = vmatprep.mubr.f32.mxu0 0.0
  %439 = vmatmul.mubr.f32.gmra.mrb[0].mxu0 %v175
  %v440 = vpop.f32.mrb[0].mxu0
  %v441 = vadd.f32 %v69, %v440
  %v442 = vpop.f32.mrb[0].mxu0
  %443 = vmatprep.mubr.f32.mxu0 0.0
  %444 = vmatmul.mubr.f32.gmra.mrb[0].mxu0 %v178
  %v445 = vpop.f32.mrb[0].mxu0
  %v446 = vadd.f32 %v69, %v445
  %v447 = vpop.f32.mrb[0].mxu0
  %448 = vmatprep.mubr.f32.mxu0 0.0
  %449 = vmatmul.mubr.f32.gmra.mrb[0].mxu0 %v181
  %v450 = vpop.f32.mrb[0].mxu0
  %v451 = vadd.f32 %v69, %v450
  %v452 = vpop.f32.mrb[0].mxu0
  %453 = vmatprep.mubr.f32.mxu0 0.0
  %454 = vmatmul.mubr.f32.gmra.mrb[0].mxu0 %v184
  %v455 = vpop.f32.mrb[0].mxu0
  %v456 = vadd.f32 %v69, %v455
  %v457 = vpop.f32.mrb[0].mxu0
  %458 = vmatprep.mubr.f32.mxu0 0.0
  %459 = vmatmul.mubr.f32.gmra.mrb[0].mxu0 %v187
  %v460 = vpop.f32.mrb[0].mxu0
  %v461 = vadd.f32 %v69, %v460
  %v462 = vpop.f32.mrb[0].mxu0
  %463 = vmatprep.mubr.f32.mxu0 0.0
  %464 = vmatmul.mubr.f32.gmra.mrb[0].mxu0 %v190
  %v465 = vpop.f32.mrb[0].mxu0
  %v466 = vadd.f32 %v69, %v465
  %v467 = vpop.f32.mrb[0].mxu0
  %468 = vmatprep.mubr.f32.mxu0 0.0
  %469 = vmatmul.mubr.f32.gmra.mrb[0].mxu0 %v193
  %v470 = vpop.f32.mrb[0].mxu0
  %v471 = vadd.f32 %v69, %v470
  %v472 = vpop.f32.mrb[0].mxu0
  %473 = vmatprep.mubr.f32.mxu0 0.0
  %474 = vmatmul.mubr.f32.gmra.mrb[0].mxu0 %v196
  %v475 = vpop.f32.mrb[0].mxu0
  %v476 = vadd.f32 %v69, %v475
  %v477 = vpop.f32.mrb[0].mxu0
  %478 = vmatprep.mubr.f32.mxu0 0.0
  %479 = vmatmul.mubr.f32.gmra.mrb[0].mxu0 %v199
  %v480 = vpop.f32.mrb[0].mxu0
  %v481 = vadd.f32 %v69, %v480
  %v482 = vpop.f32.mrb[0].mxu0
  %483 = vmatprep.mubr.f32.mxu0 0.0
  %484 = vmatmul.mubr.f32.gmra.mrb[0].mxu0 %v202
  %v485 = vpop.f32.mrb[0].mxu0
  %v486 = vadd.f32 %v69, %v485
  %v487 = vpop.f32.mrb[0].mxu0
  %488 = vdwg.mxu0
  %vm489 = vcmask 408576
  %490 = vst.msk [vmem:[%s3] sm:$0xff] %vm489, %v271
  %491 = vst.msk [vmem:[%s3 + $0x8] sm:$0xff] %vm489, %v276
  %492 = vst.msk [vmem:[%s3 + $0x10] sm:$0xff] %vm489, %v281
  %493 = vst.msk [vmem:[%s3 + $0x18] sm:$0xff] %vm489, %v286
  %494 = vst.msk [vmem:[%s3 + $0x20] sm:$0xff] %vm489, %v291
  %495 = vst.msk [vmem:[%s3 + $0x28] sm:$0xff] %vm489, %v296
  %496 = vst.msk [vmem:[%s3 + $0x30] sm:$0xff] %vm489, %v301
  %497 = vst.msk [vmem:[%s3 + $0x38] sm:$0xff] %vm489, %v306
  %498 = vst.msk [vmem:[%s3 + $0x40] sm:$0xff] %vm489, %v311
  %499 = vst.msk [vmem:[%s3 + $0x48] sm:$0xff] %vm489, %v316
  %500 = vst.msk [vmem:[%s3 + $0x50] sm:$0xff] %vm489, %v321
  %501 = vst.msk [vmem:[%s3 + $0x58] sm:$0xff] %vm489, %v326
  %502 = vst.msk [vmem:[%s3 + $0x60] sm:$0xff] %vm489, %v331
  %503 = vst.msk [vmem:[%s3 + $0x68] sm:$0xff] %vm489, %v336
  %504 = vst.msk [vmem:[%s3 + $0x70] sm:$0xff] %vm489, %v341
  %505 = vst.msk [vmem:[%s3 + $0x78] sm:$0xff] %vm489, %v346
  %506 = vst.msk [vmem:[%s3 + $0x80] sm:$0xff] %vm489, %v351
  %507 = vst.msk [vmem:[%s3 + $0x88] sm:$0xff] %vm489, %v356
  %508 = vst.msk [vmem:[%s3 + $0x90] sm:$0xff] %vm489, %v361
  %509 = vst.msk [vmem:[%s3 + $0x98] sm:$0xff] %vm489, %v366
  %510 = vst.msk [vmem:[%s3 + $0xa0] sm:$0xff] %vm489, %v371
  %511 = vst.msk [vmem:[%s3 + $0xa8] sm:$0xff] %vm489, %v376
  %512 = vst.msk [vmem:[%s3 + $0xb0] sm:$0xff] %vm489, %v381
  %513 = vst.msk [vmem:[%s3 + $0xb8] sm:$0xff] %vm489, %v386
  %514 = vst.msk [vmem:[%s3 + $0xc0] sm:$0xff] %vm489, %v391
  %515 = vst.msk [vmem:[%s3 + $0xc8] sm:$0xff] %vm489, %v396
  %516 = vst.msk [vmem:[%s3 + $0xd0] sm:$0xff] %vm489, %v401
  %517 = vst.msk [vmem:[%s3 + $0xd8] sm:$0xff] %vm489, %v406
  %518 = vst.msk [vmem:[%s3 + $0xe0] sm:$0xff] %vm489, %v411
  %519 = vst.msk [vmem:[%s3 + $0xe8] sm:$0xff] %vm489, %v416
  %520 = vst.msk [vmem:[%s3 + $0xf0] sm:$0xff] %vm489, %v421
  %521 = vst.msk [vmem:[%s3 + $0xf8] sm:$0xff] %vm489, %v426
  %522 = vst.msk [vmem:[%s3 + $0x100] sm:$0xff] %vm489, %v431
  %523 = vst.msk [vmem:[%s3 + $0x108] sm:$0xff] %vm489, %v436
  %524 = vst.msk [vmem:[%s3 + $0x110] sm:$0xff] %vm489, %v441
  %525 = vst.msk [vmem:[%s3 + $0x118] sm:$0xff] %vm489, %v446
  %526 = vst.msk [vmem:[%s3 + $0x120] sm:$0xff] %vm489, %v451
  %527 = vst.msk [vmem:[%s3 + $0x128] sm:$0xff] %vm489, %v456
  %528 = vst.msk [vmem:[%s3 + $0x130] sm:$0xff] %vm489, %v461
  %529 = vst.msk [vmem:[%s3 + $0x138] sm:$0xff] %vm489, %v466
  %530 = vst.msk [vmem:[%s3 + $0x140] sm:$0xff] %vm489, %v471
  %531 = vst.msk [vmem:[%s3 + $0x148] sm:$0xff] %vm489, %v476
  %532 = vst.msk [vmem:[%s3 + $0x150] sm:$0xff] %vm489, %v481
  %533 = vst.msk [vmem:[%s3 + $0x158] sm:$0xff] %vm489, %v486
  // Predicated region
  $region14: #{forward.14} parent=0 // pred_check
    _
  $region15: #{forward.14} parent=0 // pred_check_branch
    %535 = sbr.rel (0) target = $region17
  $region16: #{forward.14} parent=0 // pred_region
    _
  $region17: #{forward.14} parent=0 // pred_fallthru
    _
  // Predicated region
  $region18: #{forward.14} parent=0 // pred_check
    _
  $region19: #{forward.14} parent=0 // pred_check_branch
    %537 = sbr.rel (0) target = $region21
  $region20: #{forward.14} parent=0 // pred_region
    _
  $region21: #{forward.14} parent=0 // pred_fallthru
    _

// kernel: forward.15
$region0: #{forward.15}
  #allocation0 [shape = 'u32[]', space=smem, size = 0x4, offset = 0x4, fixed_abs, tag = 'smem constant byte address 0x4 - core index']
  #allocation1 [shape = 'u32[144,128]{1,0:T(1,128)}', space=vmem, size = 0x12000, scoped, tag = 'internal scratch']
  %s0 = inlined_call_operand.vmem [shape: f32[176,96], index: 0, kind: input, shape index: {}]
  %s1 = inlined_call_operand.vmem [shape: f32[96,98], index: 1, kind: input, shape index: {}]
  %s2 = inlined_call_operand.vmem [shape: f32[1,98], index: 2, kind: input, shape index: {}]
  %s3 = inlined_call_operand.vmem [shape: f32[176,98], index: 3, kind: output, shape index: {}]
  %s4 = sld [smem:[#allocation0]]
  $region22: #{forward.15} parent=0
    _
  %s6 = ssub.s32 1, %s4
  %s7 = scalar_select 0, %s6, %s4
  // Predicated region
  $region2: #{forward.15} parent=0 // pred_check
    _
  $region3: #{forward.15} parent=0 // pred_check_branch
    %9 = sbr.rel (0) target = $region5
  $region4: #{forward.15} parent=0 // pred_region
    _
  $region5: #{forward.15} parent=0 // pred_fallthru
    _
  // Predicated region
  $region6: #{forward.15} parent=0 // pred_check
    _
  $region7: #{forward.15} parent=0 // pred_check_branch
    %11 = sbr.rel (0) target = $region9
  $region8: #{forward.15} parent=0 // pred_region
    _
  $region9: #{forward.15} parent=0 // pred_fallthru
    _
  // Predicated region
  $region10: #{forward.15} parent=0 // pred_check
    _
  $region11: #{forward.15} parent=0 // pred_check_branch
    %13 = sbr.rel (0) target = $region13
  $region12: #{forward.15} parent=0 // pred_region
    _
  $region13: #{forward.15} parent=0 // pred_fallthru
    _
  %v14 = vld [vmem:[%s0] sm:$0xff]
  %v15 = vld [vmem:[%s0 + $0x8] sm:$0xff]
  %v16 = vld [vmem:[%s0 + $0x10] sm:$0xff]
  %v17 = vld [vmem:[%s0 + $0x18] sm:$0xff]
  %v18 = vld [vmem:[%s0 + $0x20] sm:$0xff]
  %v19 = vld [vmem:[%s0 + $0x28] sm:$0xff]
  %v20 = vld [vmem:[%s0 + $0x30] sm:$0xff]
  %v21 = vld [vmem:[%s0 + $0x38] sm:$0xff]
  %v22 = vld [vmem:[%s0 + $0x40] sm:$0xff]
  %v23 = vld [vmem:[%s0 + $0x48] sm:$0xff]
  %v24 = vld [vmem:[%s0 + $0x50] sm:$0xff]
  %v25 = vld [vmem:[%s0 + $0x58] sm:$0xff]
  %v26 = vld [vmem:[%s0 + $0x60] sm:$0xff]
  %v27 = vld [vmem:[%s0 + $0x68] sm:$0xff]
  %v28 = vld [vmem:[%s0 + $0x70] sm:$0xff]
  %v29 = vld [vmem:[%s0 + $0x78] sm:$0xff]
  %v30 = vld [vmem:[%s0 + $0x80] sm:$0xff]
  %v31 = vld [vmem:[%s0 + $0x88] sm:$0xff]
  %v32 = vld [vmem:[%s0 + $0x90] sm:$0xff]
  %v33 = vld [vmem:[%s0 + $0x98] sm:$0xff]
  %v34 = vld [vmem:[%s0 + $0xa0] sm:$0xff]
  %v35 = vld [vmem:[%s0 + $0xa8] sm:$0xff]
  %v36 = vld [vmem:[%s1] sm:$0xff]
  %v37 = vld [vmem:[%s1 + $0x8] sm:$0xff]
  %v38 = vld [vmem:[%s1 + $0x10] sm:$0xff]
  %v39 = vld [vmem:[%s1 + $0x18] sm:$0xff]
  %v40 = vld [vmem:[%s1 + $0x20] sm:$0xff]
  %v41 = vld [vmem:[%s1 + $0x28] sm:$0xff]
  %v42 = vld [vmem:[%s1 + $0x30] sm:$0xff]
  %v43 = vld [vmem:[%s1 + $0x38] sm:$0xff]
  %v44 = vld [vmem:[%s1 + $0x40] sm:$0xff]
  %v45 = vld [vmem:[%s1 + $0x48] sm:$0xff]
  %v46 = vld [vmem:[%s1 + $0x50] sm:$0xff]
  %v47 = vld [vmem:[%s1 + $0x58] sm:$0xff]
  %v48 = vld [vmem:[%s2] sm:$0x1]
  %v50 = vlaneseq
  %v51 = vshrl.u32 %v50, 7
  %v52 = vsub.s32 0, %v51
  %v53 = vrot.slane %v48, %v52
  %vm55 = vcmask 785408
  %v57 = vsel %vm55, %v14, 0
  %v60 = vsel %vm55, %v15, 0
  %v63 = vsel %vm55, %v16, 0
  %v66 = vsel %vm55, %v17, 0
  %v69 = vsel %vm55, %v18, 0
  %v72 = vsel %vm55, %v19, 0
  %v75 = vsel %vm55, %v20, 0
  %v78 = vsel %vm55, %v21, 0
  %v81 = vsel %vm55, %v22, 0
  %v84 = vsel %vm55, %v23, 0
  %v87 = vsel %vm55, %v24, 0
  %v90 = vsel %vm55, %v25, 0
  %v93 = vsel %vm55, %v26, 0
  %v96 = vsel %vm55, %v27, 0
  %v99 = vsel %vm55, %v28, 0
  %v102 = vsel %vm55, %v29, 0
  %v105 = vsel %vm55, %v30, 0
  %v108 = vsel %vm55, %v31, 0
  %v111 = vsel %vm55, %v32, 0
  %v114 = vsel %vm55, %v33, 0
  %v117 = vsel %vm55, %v34, 0
  %v120 = vsel %vm55, %v35, 0
  %122 = vmatprep.subr.mxu0 0.0
  %123 = vmatpush1.msra.mxu0 %v36
  %124 = vmatprep.subr.mxu0 0.0
  %125 = vmatpush1.msra.mxu0 %v37
  %126 = vmatprep.subr.mxu0 0.0
  %127 = vmatpush1.msra.mxu0 %v38
  %128 = vmatprep.subr.mxu0 0.0
  %129 = vmatpush1.msra.mxu0 %v39
  %130 = vmatprep.subr.mxu0 0.0
  %131 = vmatpush1.msra.mxu0 %v40
  %132 = vmatprep.subr.mxu0 0.0
  %133 = vmatpush1.msra.mxu0 %v41
  %134 = vmatprep.subr.mxu0 0.0
  %135 = vmatpush1.msra.mxu0 %v42
  %136 = vmatprep.subr.mxu0 0.0
  %137 = vmatpush1.msra.mxu0 %v43
  %138 = vmatprep.subr.mxu0 0.0
  %139 = vmatpush1.msra.mxu0 %v44
  %140 = vmatprep.subr.mxu0 0.0
  %141 = vmatpush1.msra.mxu0 %v45
  %142 = vmatprep.subr.mxu0 0.0
  %143 = vmatpush1.msra.mxu0 %v46
  %144 = vmatprep.subr.mxu0 0.0
  %145 = vmatpush1.msra.mxu0 %v47
  %146 = vmatprep.subr.mxu0 0.0
  %147 = vmatpush1.msra.mxu0 0.0
  %148 = vmatprep.subr.mxu0 0.0
  %149 = vmatpush1.msra.mxu0 0.0
  %150 = vmatprep.subr.mxu0 0.0
  %151 = vmatpush1.msra.mxu0 0.0
  %152 = vmatprep.subr.mxu0 0.0
  %153 = vmatpush1.msra.mxu0 0.0
  %154 = vmatprep.subr.mxu0 0.0
  %155 = vmatpush1.msra.mxu0 0.0
  %156 = vmatprep.subr.mxu0 0.0
  %157 = vmatpush1.msra.mxu0 0.0
  %158 = vmatprep.subr.mxu0 0.0
  %159 = vmatpush1.msra.mxu0 0.0
  %160 = vmatprep.subr.mxu0 0.0
  %161 = vmatpush1.msra.mxu0 0.0
  %162 = vmatprep.subr.mxu0 0.0
  %163 = vmatpush1.msra.mxu0 0.0
  %164 = vmatprep.subr.mxu0 0.0
  %165 = vmatpush1.msra.mxu0 0.0
  %166 = vmatprep.subr.mxu0 0.0
  %167 = vmatpush1.msra.mxu0 0.0
  %168 = vmatprep.subr.mxu0 0.0
  %169 = vmatpush1.msra.mxu0 0.0
  %170 = vmatprep.subr.mxu0 0.0
  %171 = vmatpush1.msra.mxu0 0.0
  %172 = vmatprep.subr.mxu0 0.0
  %173 = vmatpush1.msra.mxu0 0.0
  %174 = vmatprep.subr.mxu0 0.0
  %175 = vmatpush1.msra.mxu0 0.0
  %176 = vmatprep.subr.mxu0 0.0
  %177 = vmatpush1.msra.mxu0 0.0
  %178 = vmatprep.subr.mxu0 0.0
  %179 = vmatpush1.msra.mxu0 0.0
  %180 = vmatprep.subr.mxu0 0.0
  %181 = vmatpush1.msra.mxu0 0.0
  %182 = vmatprep.subr.mxu0 0.0
  %183 = vmatpush1.msra.mxu0 0.0
  %184 = vmatprep.subr.mxu0 0.0
  %185 = vmatpush1.msra.mxu0 0.0
  %186 = vmatprep.mubr.f32.mxu0 0.0
  %187 = vmatmul.mubr.f32.gmra.mrb[0].mxu0 %v57
  %v188 = vpop.f32.mrb[0].mxu0
  %v189 = vadd.f32 %v53, %v188
  %v190 = vpop.f32.mrb[0].mxu0
  %191 = vmatprep.mubr.f32.mxu0 0.0
  %192 = vmatmul.mubr.f32.gmra.mrb[0].mxu0 %v60
  %v193 = vpop.f32.mrb[0].mxu0
  %v194 = vadd.f32 %v53, %v193
  %v195 = vpop.f32.mrb[0].mxu0
  %196 = vmatprep.mubr.f32.mxu0 0.0
  %197 = vmatmul.mubr.f32.gmra.mrb[0].mxu0 %v63
  %v198 = vpop.f32.mrb[0].mxu0
  %v199 = vadd.f32 %v53, %v198
  %v200 = vpop.f32.mrb[0].mxu0
  %201 = vmatprep.mubr.f32.mxu0 0.0
  %202 = vmatmul.mubr.f32.gmra.mrb[0].mxu0 %v66
  %v203 = vpop.f32.mrb[0].mxu0
  %v204 = vadd.f32 %v53, %v203
  %v205 = vpop.f32.mrb[0].mxu0
  %206 = vmatprep.mubr.f32.mxu0 0.0
  %207 = vmatmul.mubr.f32.gmra.mrb[0].mxu0 %v69
  %v208 = vpop.f32.mrb[0].mxu0
  %v209 = vadd.f32 %v53, %v208
  %v210 = vpop.f32.mrb[0].mxu0
  %211 = vmatprep.mubr.f32.mxu0 0.0
  %212 = vmatmul.mubr.f32.gmra.mrb[0].mxu0 %v72
  %v213 = vpop.f32.mrb[0].mxu0
  %v214 = vadd.f32 %v53, %v213
  %v215 = vpop.f32.mrb[0].mxu0
  %216 = vmatprep.mubr.f32.mxu0 0.0
  %217 = vmatmul.mubr.f32.gmra.mrb[0].mxu0 %v75
  %v218 = vpop.f32.mrb[0].mxu0
  %v219 = vadd.f32 %v53, %v218
  %v220 = vpop.f32.mrb[0].mxu0
  %221 = vmatprep.mubr.f32.mxu0 0.0
  %222 = vmatmul.mubr.f32.gmra.mrb[0].mxu0 %v78
  %v223 = vpop.f32.mrb[0].mxu0
  %v224 = vadd.f32 %v53, %v223
  %v225 = vpop.f32.mrb[0].mxu0
  %226 = vmatprep.mubr.f32.mxu0 0.0
  %227 = vmatmul.mubr.f32.gmra.mrb[0].mxu0 %v81
  %v228 = vpop.f32.mrb[0].mxu0
  %v229 = vadd.f32 %v53, %v228
  %v230 = vpop.f32.mrb[0].mxu0
  %231 = vmatprep.mubr.f32.mxu0 0.0
  %232 = vmatmul.mubr.f32.gmra.mrb[0].mxu0 %v84
  %v233 = vpop.f32.mrb[0].mxu0
  %v234 = vadd.f32 %v53, %v233
  %v235 = vpop.f32.mrb[0].mxu0
  %236 = vmatprep.mubr.f32.mxu0 0.0
  %237 = vmatmul.mubr.f32.gmra.mrb[0].mxu0 %v87
  %v238 = vpop.f32.mrb[0].mxu0
  %v239 = vadd.f32 %v53, %v238
  %v240 = vpop.f32.mrb[0].mxu0
  %241 = vmatprep.mubr.f32.mxu0 0.0
  %242 = vmatmul.mubr.f32.gmra.mrb[0].mxu0 %v90
  %v243 = vpop.f32.mrb[0].mxu0
  %v244 = vadd.f32 %v53, %v243
  %v245 = vpop.f32.mrb[0].mxu0
  %246 = vmatprep.mubr.f32.mxu0 0.0
  %247 = vmatmul.mubr.f32.gmra.mrb[0].mxu0 %v93
  %v248 = vpop.f32.mrb[0].mxu0
  %v249 = vadd.f32 %v53, %v248
  %v250 = vpop.f32.mrb[0].mxu0
  %251 = vmatprep.mubr.f32.mxu0 0.0
  %252 = vmatmul.mubr.f32.gmra.mrb[0].mxu0 %v96
  %v253 = vpop.f32.mrb[0].mxu0
  %v254 = vadd.f32 %v53, %v253
  %v255 = vpop.f32.mrb[0].mxu0
  %256 = vmatprep.mubr.f32.mxu0 0.0
  %257 = vmatmul.mubr.f32.gmra.mrb[0].mxu0 %v99
  %v258 = vpop.f32.mrb[0].mxu0
  %v259 = vadd.f32 %v53, %v258
  %v260 = vpop.f32.mrb[0].mxu0
  %261 = vmatprep.mubr.f32.mxu0 0.0
  %262 = vmatmul.mubr.f32.gmra.mrb[0].mxu0 %v102
  %v263 = vpop.f32.mrb[0].mxu0
  %v264 = vadd.f32 %v53, %v263
  %v265 = vpop.f32.mrb[0].mxu0
  %266 = vmatprep.mubr.f32.mxu0 0.0
  %267 = vmatmul.mubr.f32.gmra.mrb[0].mxu0 %v105
  %v268 = vpop.f32.mrb[0].mxu0
  %v269 = vadd.f32 %v53, %v268
  %v270 = vpop.f32.mrb[0].mxu0
  %271 = vmatprep.mubr.f32.mxu0 0.0
  %272 = vmatmul.mubr.f32.gmra.mrb[0].mxu0 %v108
  %v273 = vpop.f32.mrb[0].mxu0
  %v274 = vadd.f32 %v53, %v273
  %v275 = vpop.f32.mrb[0].mxu0
  %276 = vmatprep.mubr.f32.mxu0 0.0
  %277 = vmatmul.mubr.f32.gmra.mrb[0].mxu0 %v111
  %v278 = vpop.f32.mrb[0].mxu0
  %v279 = vadd.f32 %v53, %v278
  %v280 = vpop.f32.mrb[0].mxu0
  %281 = vmatprep.mubr.f32.mxu0 0.0
  %282 = vmatmul.mubr.f32.gmra.mrb[0].mxu0 %v114
  %v283 = vpop.f32.mrb[0].mxu0
  %v284 = vadd.f32 %v53, %v283
  %v285 = vpop.f32.mrb[0].mxu0
  %286 = vmatprep.mubr.f32.mxu0 0.0
  %287 = vmatmul.mubr.f32.gmra.mrb[0].mxu0 %v117
  %v288 = vpop.f32.mrb[0].mxu0
  %v289 = vadd.f32 %v53, %v288
  %v290 = vpop.f32.mrb[0].mxu0
  %291 = vmatprep.mubr.f32.mxu0 0.0
  %292 = vmatmul.mubr.f32.gmra.mrb[0].mxu0 %v120
  %v293 = vpop.f32.mrb[0].mxu0
  %v294 = vadd.f32 %v53, %v293
  %v295 = vpop.f32.mrb[0].mxu0
  %296 = vdwg.mxu0
  %vm297 = vcmask 801792
  %298 = vst.msk [vmem:[%s3] sm:$0xff] %vm297, %v189
  %299 = vst.msk [vmem:[%s3 + $0x8] sm:$0xff] %vm297, %v194
  %300 = vst.msk [vmem:[%s3 + $0x10] sm:$0xff] %vm297, %v199
  %301 = vst.msk [vmem:[%s3 + $0x18] sm:$0xff] %vm297, %v204
  %302 = vst.msk [vmem:[%s3 + $0x20] sm:$0xff] %vm297, %v209
  %303 = vst.msk [vmem:[%s3 + $0x28] sm:$0xff] %vm297, %v214
  %304 = vst.msk [vmem:[%s3 + $0x30] sm:$0xff] %vm297, %v219
  %305 = vst.msk [vmem:[%s3 + $0x38] sm:$0xff] %vm297, %v224
  %306 = vst.msk [vmem:[%s3 + $0x40] sm:$0xff] %vm297, %v229
  %307 = vst.msk [vmem:[%s3 + $0x48] sm:$0xff] %vm297, %v234
  %308 = vst.msk [vmem:[%s3 + $0x50] sm:$0xff] %vm297, %v239
  %309 = vst.msk [vmem:[%s3 + $0x58] sm:$0xff] %vm297, %v244
  %310 = vst.msk [vmem:[%s3 + $0x60] sm:$0xff] %vm297, %v249
  %311 = vst.msk [vmem:[%s3 + $0x68] sm:$0xff] %vm297, %v254
  %312 = vst.msk [vmem:[%s3 + $0x70] sm:$0xff] %vm297, %v259
  %313 = vst.msk [vmem:[%s3 + $0x78] sm:$0xff] %vm297, %v264
  %314 = vst.msk [vmem:[%s3 + $0x80] sm:$0xff] %vm297, %v269
  %315 = vst.msk [vmem:[%s3 + $0x88] sm:$0xff] %vm297, %v274
  %316 = vst.msk [vmem:[%s3 + $0x90] sm:$0xff] %vm297, %v279
  %317 = vst.msk [vmem:[%s3 + $0x98] sm:$0xff] %vm297, %v284
  %318 = vst.msk [vmem:[%s3 + $0xa0] sm:$0xff] %vm297, %v289
  %319 = vst.msk [vmem:[%s3 + $0xa8] sm:$0xff] %vm297, %v294
  // Predicated region
  $region14: #{forward.15} parent=0 // pred_check
    _
  $region15: #{forward.15} parent=0 // pred_check_branch
    %321 = sbr.rel (0) target = $region17
  $region16: #{forward.15} parent=0 // pred_region
    _
  $region17: #{forward.15} parent=0 // pred_fallthru
    _
  // Predicated region
  $region18: #{forward.15} parent=0 // pred_check
    _
  $region19: #{forward.15} parent=0 // pred_check_branch
    %323 = sbr.rel (0) target = $region21
  $region20: #{forward.15} parent=0 // pred_region
    _
  $region21: #{forward.15} parent=0 // pred_fallthru
    _

// kernel: forward.16
$region0: #{forward.16}
  #allocation0 [shape = 'u32[]', space=smem, size = 0x4, offset = 0x4, fixed_abs, tag = 'smem constant byte address 0x4 - core index']
  #allocation1 [shape = 'u32[144,128]{1,0:T(1,128)}', space=vmem, size = 0x12000, scoped, tag = 'internal scratch']
  %s0 = inlined_call_operand.vmem [shape: f32[192,48], index: 0, kind: input, shape index: {}]
  %s1 = inlined_call_operand.vmem [shape: f32[48,50], index: 1, kind: input, shape index: {}]
  %s2 = inlined_call_operand.vmem [shape: f32[1,50], index: 2, kind: input, shape index: {}]
  %s3 = inlined_call_operand.vmem [shape: f32[192,50], index: 3, kind: output, shape index: {}]
  %s4 = sld [smem:[#allocation0]]
  $region22: #{forward.16} parent=0
    _
  %s6 = ssub.s32 1, %s4
  %s7 = scalar_select 0, %s6, %s4
  // Predicated region
  $region2: #{forward.16} parent=0 // pred_check
    _
  $region3: #{forward.16} parent=0 // pred_check_branch
    %9 = sbr.rel (0) target = $region5
  $region4: #{forward.16} parent=0 // pred_region
    _
  $region5: #{forward.16} parent=0 // pred_fallthru
    _
  // Predicated region
  $region6: #{forward.16} parent=0 // pred_check
    _
  $region7: #{forward.16} parent=0 // pred_check_branch
    %11 = sbr.rel (0) target = $region9
  $region8: #{forward.16} parent=0 // pred_region
    _
  $region9: #{forward.16} parent=0 // pred_fallthru
    _
  // Predicated region
  $region10: #{forward.16} parent=0 // pred_check
    _
  $region11: #{forward.16} parent=0 // pred_check_branch
    %13 = sbr.rel (0) target = $region13
  $region12: #{forward.16} parent=0 // pred_region
    _
  $region13: #{forward.16} parent=0 // pred_fallthru
    _
  %v14 = vld [vmem:[%s0] sm:$0xff]
  %v15 = vld [vmem:[%s0 + $0x8] sm:$0xff]
  %v16 = vld [vmem:[%s0 + $0x10] sm:$0xff]
  %v17 = vld [vmem:[%s0 + $0x18] sm:$0xff]
  %v18 = vld [vmem:[%s0 + $0x20] sm:$0xff]
  %v19 = vld [vmem:[%s0 + $0x28] sm:$0xff]
  %v20 = vld [vmem:[%s0 + $0x30] sm:$0xff]
  %v21 = vld [vmem:[%s0 + $0x38] sm:$0xff]
  %v22 = vld [vmem:[%s0 + $0x40] sm:$0xff]
  %v23 = vld [vmem:[%s0 + $0x48] sm:$0xff]
  %v24 = vld [vmem:[%s0 + $0x50] sm:$0xff]
  %v25 = vld [vmem:[%s0 + $0x58] sm:$0xff]
  %v26 = vld [vmem:[%s0 + $0x60] sm:$0xff]
  %v27 = vld [vmem:[%s0 + $0x68] sm:$0xff]
  %v28 = vld [vmem:[%s0 + $0x70] sm:$0xff]
  %v29 = vld [vmem:[%s0 + $0x78] sm:$0xff]
  %v30 = vld [vmem:[%s0 + $0x80] sm:$0xff]
  %v31 = vld [vmem:[%s0 + $0x88] sm:$0xff]
  %v32 = vld [vmem:[%s0 + $0x90] sm:$0xff]
  %v33 = vld [vmem:[%s0 + $0x98] sm:$0xff]
  %v34 = vld [vmem:[%s0 + $0xa0] sm:$0xff]
  %v35 = vld [vmem:[%s0 + $0xa8] sm:$0xff]
  %v36 = vld [vmem:[%s0 + $0xb0] sm:$0xff]
  %v37 = vld [vmem:[%s0 + $0xb8] sm:$0xff]
  %v38 = vld [vmem:[%s1] sm:$0xff]
  %v39 = vld [vmem:[%s1 + $0x8] sm:$0xff]
  %v40 = vld [vmem:[%s1 + $0x10] sm:$0xff]
  %v41 = vld [vmem:[%s1 + $0x18] sm:$0xff]
  %v42 = vld [vmem:[%s1 + $0x20] sm:$0xff]
  %v43 = vld [vmem:[%s1 + $0x28] sm:$0xff]
  %v44 = vld [vmem:[%s2] sm:$0x1]
  %v46 = vlaneseq
  %v47 = vshrl.u32 %v46, 7
  %v48 = vsub.s32 0, %v47
  %v49 = vrot.slane %v44, %v48
  %vm51 = vcmask 392192
  %v53 = vsel %vm51, %v14, 0
  %v56 = vsel %vm51, %v15, 0
  %v59 = vsel %vm51, %v16, 0
  %v62 = vsel %vm51, %v17, 0
  %v65 = vsel %vm51, %v18, 0
  %v68 = vsel %vm51, %v19, 0
  %v71 = vsel %vm51, %v20, 0
  %v74 = vsel %vm51, %v21, 0
  %v77 = vsel %vm51, %v22, 0
  %v80 = vsel %vm51, %v23, 0
  %v83 = vsel %vm51, %v24, 0
  %v86 = vsel %vm51, %v25, 0
  %v89 = vsel %vm51, %v26, 0
  %v92 = vsel %vm51, %v27, 0
  %v95 = vsel %vm51, %v28, 0
  %v98 = vsel %vm51, %v29, 0
  %v101 = vsel %vm51, %v30, 0
  %v104 = vsel %vm51, %v31, 0
  %v107 = vsel %vm51, %v32, 0
  %v110 = vsel %vm51, %v33, 0
  %v113 = vsel %vm51, %v34, 0
  %v116 = vsel %vm51, %v35, 0
  %v119 = vsel %vm51, %v36, 0
  %v122 = vsel %vm51, %v37, 0
  %124 = vmatprep.subr.mxu0 0.0
  %125 = vmatpush1.msra.mxu0 %v38
  %126 = vmatprep.subr.mxu0 0.0
  %127 = vmatpush1.msra.mxu0 %v39
  %128 = vmatprep.subr.mxu0 0.0
  %129 = vmatpush1.msra.mxu0 %v40
  %130 = vmatprep.subr.mxu0 0.0
  %131 = vmatpush1.msra.mxu0 %v41
  %132 = vmatprep.subr.mxu0 0.0
  %133 = vmatpush1.msra.mxu0 %v42
  %134 = vmatprep.subr.mxu0 0.0
  %135 = vmatpush1.msra.mxu0 %v43
  %136 = vmatprep.subr.mxu0 0.0
  %137 = vmatpush1.msra.mxu0 0.0
  %138 = vmatprep.subr.mxu0 0.0
  %139 = vmatpush1.msra.mxu0 0.0
  %140 = vmatprep.subr.mxu0 0.0
  %141 = vmatpush1.msra.mxu0 0.0
  %142 = vmatprep.subr.mxu0 0.0
  %143 = vmatpush1.msra.mxu0 0.0
  %144 = vmatprep.subr.mxu0 0.0
  %145 = vmatpush1.msra.mxu0 0.0
  %146 = vmatprep.subr.mxu0 0.0
  %147 = vmatpush1.msra.mxu0 0.0
  %148 = vmatprep.subr.mxu0 0.0
  %149 = vmatpush1.msra.mxu0 0.0
  %150 = vmatprep.subr.mxu0 0.0
  %151 = vmatpush1.msra.mxu0 0.0
  %152 = vmatprep.subr.mxu0 0.0
  %153 = vmatpush1.msra.mxu0 0.0
  %154 = vmatprep.subr.mxu0 0.0
  %155 = vmatpush1.msra.mxu0 0.0
  %156 = vmatprep.subr.mxu0 0.0
  %157 = vmatpush1.msra.mxu0 0.0
  %158 = vmatprep.subr.mxu0 0.0
  %159 = vmatpush1.msra.mxu0 0.0
  %160 = vmatprep.subr.mxu0 0.0
  %161 = vmatpush1.msra.mxu0 0.0
  %162 = vmatprep.subr.mxu0 0.0
  %163 = vmatpush1.msra.mxu0 0.0
  %164 = vmatprep.subr.mxu0 0.0
  %165 = vmatpush1.msra.mxu0 0.0
  %166 = vmatprep.subr.mxu0 0.0
  %167 = vmatpush1.msra.mxu0 0.0
  %168 = vmatprep.subr.mxu0 0.0
  %169 = vmatpush1.msra.mxu0 0.0
  %170 = vmatprep.subr.mxu0 0.0
  %171 = vmatpush1.msra.mxu0 0.0
  %172 = vmatprep.subr.mxu0 0.0
  %173 = vmatpush1.msra.mxu0 0.0
  %174 = vmatprep.subr.mxu0 0.0
  %175 = vmatpush1.msra.mxu0 0.0
  %176 = vmatprep.subr.mxu0 0.0
  %177 = vmatpush1.msra.mxu0 0.0
  %178 = vmatprep.subr.mxu0 0.0
  %179 = vmatpush1.msra.mxu0 0.0
  %180 = vmatprep.subr.mxu0 0.0
  %181 = vmatpush1.msra.mxu0 0.0
  %182 = vmatprep.subr.mxu0 0.0
  %183 = vmatpush1.msra.mxu0 0.0
  %184 = vmatprep.subr.mxu0 0.0
  %185 = vmatpush1.msra.mxu0 0.0
  %186 = vmatprep.subr.mxu0 0.0
  %187 = vmatpush1.msra.mxu0 0.0
  %188 = vmatprep.mubr.f32.mxu0 0.0
  %189 = vmatmul.mubr.f32.gmra.mrb[0].mxu0 %v53
  %v190 = vpop.f32.mrb[0].mxu0
  %v191 = vadd.f32 %v49, %v190
  %v192 = vpop.f32.mrb[0].mxu0
  %193 = vmatprep.mubr.f32.mxu0 0.0
  %194 = vmatmul.mubr.f32.gmra.mrb[0].mxu0 %v56
  %v195 = vpop.f32.mrb[0].mxu0
  %v196 = vadd.f32 %v49, %v195
  %v197 = vpop.f32.mrb[0].mxu0
  %198 = vmatprep.mubr.f32.mxu0 0.0
  %199 = vmatmul.mubr.f32.gmra.mrb[0].mxu0 %v59
  %v200 = vpop.f32.mrb[0].mxu0
  %v201 = vadd.f32 %v49, %v200
  %v202 = vpop.f32.mrb[0].mxu0
  %203 = vmatprep.mubr.f32.mxu0 0.0
  %204 = vmatmul.mubr.f32.gmra.mrb[0].mxu0 %v62
  %v205 = vpop.f32.mrb[0].mxu0
  %v206 = vadd.f32 %v49, %v205
  %v207 = vpop.f32.mrb[0].mxu0
  %208 = vmatprep.mubr.f32.mxu0 0.0
  %209 = vmatmul.mubr.f32.gmra.mrb[0].mxu0 %v65
  %v210 = vpop.f32.mrb[0].mxu0
  %v211 = vadd.f32 %v49, %v210
  %v212 = vpop.f32.mrb[0].mxu0
  %213 = vmatprep.mubr.f32.mxu0 0.0
  %214 = vmatmul.mubr.f32.gmra.mrb[0].mxu0 %v68
  %v215 = vpop.f32.mrb[0].mxu0
  %v216 = vadd.f32 %v49, %v215
  %v217 = vpop.f32.mrb[0].mxu0
  %218 = vmatprep.mubr.f32.mxu0 0.0
  %219 = vmatmul.mubr.f32.gmra.mrb[0].mxu0 %v71
  %v220 = vpop.f32.mrb[0].mxu0
  %v221 = vadd.f32 %v49, %v220
  %v222 = vpop.f32.mrb[0].mxu0
  %223 = vmatprep.mubr.f32.mxu0 0.0
  %224 = vmatmul.mubr.f32.gmra.mrb[0].mxu0 %v74
  %v225 = vpop.f32.mrb[0].mxu0
  %v226 = vadd.f32 %v49, %v225
  %v227 = vpop.f32.mrb[0].mxu0
  %228 = vmatprep.mubr.f32.mxu0 0.0
  %229 = vmatmul.mubr.f32.gmra.mrb[0].mxu0 %v77
  %v230 = vpop.f32.mrb[0].mxu0
  %v231 = vadd.f32 %v49, %v230
  %v232 = vpop.f32.mrb[0].mxu0
  %233 = vmatprep.mubr.f32.mxu0 0.0
  %234 = vmatmul.mubr.f32.gmra.mrb[0].mxu0 %v80
  %v235 = vpop.f32.mrb[0].mxu0
  %v236 = vadd.f32 %v49, %v235
  %v237 = vpop.f32.mrb[0].mxu0
  %238 = vmatprep.mubr.f32.mxu0 0.0
  %239 = vmatmul.mubr.f32.gmra.mrb[0].mxu0 %v83
  %v240 = vpop.f32.mrb[0].mxu0
  %v241 = vadd.f32 %v49, %v240
  %v242 = vpop.f32.mrb[0].mxu0
  %243 = vmatprep.mubr.f32.mxu0 0.0
  %244 = vmatmul.mubr.f32.gmra.mrb[0].mxu0 %v86
  %v245 = vpop.f32.mrb[0].mxu0
  %v246 = vadd.f32 %v49, %v245
  %v247 = vpop.f32.mrb[0].mxu0
  %248 = vmatprep.mubr.f32.mxu0 0.0
  %249 = vmatmul.mubr.f32.gmra.mrb[0].mxu0 %v89
  %v250 = vpop.f32.mrb[0].mxu0
  %v251 = vadd.f32 %v49, %v250
  %v252 = vpop.f32.mrb[0].mxu0
  %253 = vmatprep.mubr.f32.mxu0 0.0
  %254 = vmatmul.mubr.f32.gmra.mrb[0].mxu0 %v92
  %v255 = vpop.f32.mrb[0].mxu0
  %v256 = vadd.f32 %v49, %v255
  %v257 = vpop.f32.mrb[0].mxu0
  %258 = vmatprep.mubr.f32.mxu0 0.0
  %259 = vmatmul.mubr.f32.gmra.mrb[0].mxu0 %v95
  %v260 = vpop.f32.mrb[0].mxu0
  %v261 = vadd.f32 %v49, %v260
  %v262 = vpop.f32.mrb[0].mxu0
  %263 = vmatprep.mubr.f32.mxu0 0.0
  %264 = vmatmul.mubr.f32.gmra.mrb[0].mxu0 %v98
  %v265 = vpop.f32.mrb[0].mxu0
  %v266 = vadd.f32 %v49, %v265
  %v267 = vpop.f32.mrb[0].mxu0
  %268 = vmatprep.mubr.f32.mxu0 0.0
  %269 = vmatmul.mubr.f32.gmra.mrb[0].mxu0 %v101
  %v270 = vpop.f32.mrb[0].mxu0
  %v271 = vadd.f32 %v49, %v270
  %v272 = vpop.f32.mrb[0].mxu0
  %273 = vmatprep.mubr.f32.mxu0 0.0
  %274 = vmatmul.mubr.f32.gmra.mrb[0].mxu0 %v104
  %v275 = vpop.f32.mrb[0].mxu0
  %v276 = vadd.f32 %v49, %v275
  %v277 = vpop.f32.mrb[0].mxu0
  %278 = vmatprep.mubr.f32.mxu0 0.0
  %279 = vmatmul.mubr.f32.gmra.mrb[0].mxu0 %v107
  %v280 = vpop.f32.mrb[0].mxu0
  %v281 = vadd.f32 %v49, %v280
  %v282 = vpop.f32.mrb[0].mxu0
  %283 = vmatprep.mubr.f32.mxu0 0.0
  %284 = vmatmul.mubr.f32.gmra.mrb[0].mxu0 %v110
  %v285 = vpop.f32.mrb[0].mxu0
  %v286 = vadd.f32 %v49, %v285
  %v287 = vpop.f32.mrb[0].mxu0
  %288 = vmatprep.mubr.f32.mxu0 0.0
  %289 = vmatmul.mubr.f32.gmra.mrb[0].mxu0 %v113
  %v290 = vpop.f32.mrb[0].mxu0
  %v291 = vadd.f32 %v49, %v290
  %v292 = vpop.f32.mrb[0].mxu0
  %293 = vmatprep.mubr.f32.mxu0 0.0
  %294 = vmatmul.mubr.f32.gmra.mrb[0].mxu0 %v116
  %v295 = vpop.f32.mrb[0].mxu0
  %v296 = vadd.f32 %v49, %v295
  %v297 = vpop.f32.mrb[0].mxu0
  %298 = vmatprep.mubr.f32.mxu0 0.0
  %299 = vmatmul.mubr.f32.gmra.mrb[0].mxu0 %v119
  %v300 = vpop.f32.mrb[0].mxu0
  %v301 = vadd.f32 %v49, %v300
  %v302 = vpop.f32.mrb[0].mxu0
  %303 = vmatprep.mubr.f32.mxu0 0.0
  %304 = vmatmul.mubr.f32.gmra.mrb[0].mxu0 %v122
  %v305 = vpop.f32.mrb[0].mxu0
  %v306 = vadd.f32 %v49, %v305
  %v307 = vpop.f32.mrb[0].mxu0
  %308 = vdwg.mxu0
  %vm309 = vcmask 408576
  %310 = vst.msk [vmem:[%s3] sm:$0xff] %vm309, %v191
  %311 = vst.msk [vmem:[%s3 + $0x8] sm:$0xff] %vm309, %v196
  %312 = vst.msk [vmem:[%s3 + $0x10] sm:$0xff] %vm309, %v201
  %313 = vst.msk [vmem:[%s3 + $0x18] sm:$0xff] %vm309, %v206
  %314 = vst.msk [vmem:[%s3 + $0x20] sm:$0xff] %vm309, %v211
  %315 = vst.msk [vmem:[%s3 + $0x28] sm:$0xff] %vm309, %v216
  %316 = vst.msk [vmem:[%s3 + $0x30] sm:$0xff] %vm309, %v221
  %317 = vst.msk [vmem:[%s3 + $0x38] sm:$0xff] %vm309, %v226
  %318 = vst.msk [vmem:[%s3 + $0x40] sm:$0xff] %vm309, %v231
  %319 = vst.msk [vmem:[%s3 + $0x48] sm:$0xff] %vm309, %v236
  %320 = vst.msk [vmem:[%s3 + $0x50] sm:$0xff] %vm309, %v241
  %321 = vst.msk [vmem:[%s3 + $0x58] sm:$0xff] %vm309, %v246
  %322 = vst.msk [vmem:[%s3 + $0x60] sm:$0xff] %vm309, %v251
  %323 = vst.msk [vmem:[%s3 + $0x68] sm:$0xff] %vm309, %v256
  %324 = vst.msk [vmem:[%s3 + $0x70] sm:$0xff] %vm309, %v261
  %325 = vst.msk [vmem:[%s3 + $0x78] sm:$0xff] %vm309, %v266
  %326 = vst.msk [vmem:[%s3 + $0x80] sm:$0xff] %vm309, %v271
  %327 = vst.msk [vmem:[%s3 + $0x88] sm:$0xff] %vm309, %v276
  %328 = vst.msk [vmem:[%s3 + $0x90] sm:$0xff] %vm309, %v281
  %329 = vst.msk [vmem:[%s3 + $0x98] sm:$0xff] %vm309, %v286
  %330 = vst.msk [vmem:[%s3 + $0xa0] sm:$0xff] %vm309, %v291
  %331 = vst.msk [vmem:[%s3 + $0xa8] sm:$0xff] %vm309, %v296
  %332 = vst.msk [vmem:[%s3 + $0xb0] sm:$0xff] %vm309, %v301
  %333 = vst.msk [vmem:[%s3 + $0xb8] sm:$0xff] %vm309, %v306
  // Predicated region
  $region14: #{forward.16} parent=0 // pred_check
    _
  $region15: #{forward.16} parent=0 // pred_check_branch
    %335 = sbr.rel (0) target = $region17
  $region16: #{forward.16} parent=0 // pred_region
    _
  $region17: #{forward.16} parent=0 // pred_fallthru
    _
  // Predicated region
  $region18: #{forward.16} parent=0 // pred_check
    _
  $region19: #{forward.16} parent=0 // pred_check_branch
    %337 = sbr.rel (0) target = $region21
  $region20: #{forward.16} parent=0 // pred_region
    _
  $region21: #{forward.16} parent=0 // pred_fallthru
    _

// kernel: forward.17
$region0: #{forward.17}
  #allocation0 [shape = 'u32[]', space=smem, size = 0x4, offset = 0x4, fixed_abs, tag = 'smem constant byte address 0x4 - core index']
  #allocation1 [shape = 'u32[144,128]{1,0:T(1,128)}', space=vmem, size = 0x12000, scoped, tag = 'internal scratch']
  %s0 = inlined_call_operand.vmem [shape: f32[16,432], index: 0, kind: input, shape index: {}]
  %s1 = inlined_call_operand.vmem [shape: f32[432,128], index: 1, kind: input, shape index: {}]
  %s2 = inlined_call_operand.vmem [shape: f32[1,128], index: 2, kind: input, shape index: {}]
  %s3 = inlined_call_operand.vmem [shape: f32[1,128], index: 3, kind: input, shape index: {}]
  %s4 = inlined_call_operand.vmem [shape: f32[1,128], index: 4, kind: input, shape index: {}]
  %s5 = inlined_call_operand.vmem [shape: f32[128,512], index: 5, kind: input, shape index: {}]
  %s6 = inlined_call_operand.vmem [shape: f32[1,512], index: 6, kind: input, shape index: {}]
  %s7 = inlined_call_operand.vmem [shape: f32[16,512], index: 7, kind: output, shape index: {}]
  %s8 = sld [smem:[#allocation0]]
  $region38: #{forward.17} parent=0
    _
  %s10 = ssub.s32 1, %s8
  %s11 = scalar_select 0, %s10, %s8
  // Predicated region
  $region2: #{forward.17} parent=0 // pred_check
    _
  $region3: #{forward.17} parent=0 // pred_check_branch
    %13 = sbr.rel (0) target = $region5
  $region4: #{forward.17} parent=0 // pred_region
    _
  $region5: #{forward.17} parent=0 // pred_fallthru
    _
  // Predicated region
  $region6: #{forward.17} parent=0 // pred_check
    _
  $region7: #{forward.17} parent=0 // pred_check_branch
    %15 = sbr.rel (0) target = $region9
  $region8: #{forward.17} parent=0 // pred_region
    _
  $region9: #{forward.17} parent=0 // pred_fallthru
    _
  // Predicated region
  $region10: #{forward.17} parent=0 // pred_check
    _
  $region11: #{forward.17} parent=0 // pred_check_branch
    %17 = sbr.rel (0) target = $region13
  $region12: #{forward.17} parent=0 // pred_region
    _
  $region13: #{forward.17} parent=0 // pred_fallthru
    _
  // Predicated region
  $region14: #{forward.17} parent=0 // pred_check
    _
  $region15: #{forward.17} parent=0 // pred_check_branch
    %19 = sbr.rel (0) target = $region17
  $region16: #{forward.17} parent=0 // pred_region
    _
  $region17: #{forward.17} parent=0 // pred_fallthru
    _
  // Predicated region
  $region18: #{forward.17} parent=0 // pred_check
    _
  $region19: #{forward.17} parent=0 // pred_check_branch
    %21 = sbr.rel (0) target = $region21
  $region20: #{forward.17} parent=0 // pred_region
    _
  $region21: #{forward.17} parent=0 // pred_fallthru
    _
  // Predicated region
  $region22: #{forward.17} parent=0 // pred_check
    _
  $region23: #{forward.17} parent=0 // pred_check_branch
    %23 = sbr.rel (0) target = $region25
  $region24: #{forward.17} parent=0 // pred_region
    _
  $region25: #{forward.17} parent=0 // pred_fallthru
    _
  // Predicated region
  $region26: #{forward.17} parent=0 // pred_check
    _
  $region27: #{forward.17} parent=0 // pred_check_branch
    %25 = sbr.rel (0) target = $region29
  $region28: #{forward.17} parent=0 // pred_region
    _
  $region29: #{forward.17} parent=0 // pred_fallthru
    _
  %v26 = vld [vmem:[%s0] sm:$0xff]
  %v27 = vld [vmem:[%s0 + $0x8] sm:$0xff]
  %v28 = vld [vmem:[%s0 + $0x10] sm:$0xff]
  %v29 = vld [vmem:[%s0 + $0x18] sm:$0xff]
  %v30 = vld [vmem:[%s0 + $0x20] sm:$0xff]
  %v31 = vld [vmem:[%s0 + $0x28] sm:$0xff]
  %v32 = vld [vmem:[%s0 + $0x30] sm:$0xff]
  %v33 = vld [vmem:[%s0 + $0x38] sm:$0xff]
  %v34 = vld [vmem:[%s1] sm:$0xff]
  %v35 = vld [vmem:[%s1 + $0x8] sm:$0xff]
  %v36 = vld [vmem:[%s1 + $0x10] sm:$0xff]
  %v37 = vld [vmem:[%s1 + $0x18] sm:$0xff]
  %v38 = vld [vmem:[%s1 + $0x20] sm:$0xff]
  %v39 = vld [vmem:[%s1 + $0x28] sm:$0xff]
  %v40 = vld [vmem:[%s1 + $0x30] sm:$0xff]
  %v41 = vld [vmem:[%s1 + $0x38] sm:$0xff]
  %v42 = vld [vmem:[%s1 + $0x40] sm:$0xff]
  %v43 = vld [vmem:[%s1 + $0x48] sm:$0xff]
  %v44 = vld [vmem:[%s1 + $0x50] sm:$0xff]
  %v45 = vld [vmem:[%s1 + $0x58] sm:$0xff]
  %v46 = vld [vmem:[%s1 + $0x60] sm:$0xff]
  %v47 = vld [vmem:[%s1 + $0x68] sm:$0xff]
  %v48 = vld [vmem:[%s1 + $0x70] sm:$0xff]
  %v49 = vld [vmem:[%s1 + $0x78] sm:$0xff]
  %v50 = vld [vmem:[%s1 + $0x80] sm:$0xff]
  %v51 = vld [vmem:[%s1 + $0x88] sm:$0xff]
  %v52 = vld [vmem:[%s1 + $0x90] sm:$0xff]
  %v53 = vld [vmem:[%s1 + $0x98] sm:$0xff]
  %v54 = vld [vmem:[%s1 + $0xa0] sm:$0xff]
  %v55 = vld [vmem:[%s1 + $0xa8] sm:$0xff]
  %v56 = vld [vmem:[%s1 + $0xb0] sm:$0xff]
  %v57 = vld [vmem:[%s1 + $0xb8] sm:$0xff]
  %v58 = vld [vmem:[%s1 + $0xc0] sm:$0xff]
  %v59 = vld [vmem:[%s1 + $0xc8] sm:$0xff]
  %v60 = vld [vmem:[%s1 + $0xd0] sm:$0xff]
  %v61 = vld [vmem:[%s1 + $0xd8] sm:$0xff]
  %v62 = vld [vmem:[%s1 + $0xe0] sm:$0xff]
  %v63 = vld [vmem:[%s1 + $0xe8] sm:$0xff]
  %v64 = vld [vmem:[%s1 + $0xf0] sm:$0xff]
  %v65 = vld [vmem:[%s1 + $0xf8] sm:$0xff]
  %v66 = vld [vmem:[%s1 + $0x100] sm:$0xff]
  %v67 = vld [vmem:[%s1 + $0x108] sm:$0xff]
  %v68 = vld [vmem:[%s1 + $0x110] sm:$0xff]
  %v69 = vld [vmem:[%s1 + $0x118] sm:$0xff]
  %v70 = vld [vmem:[%s1 + $0x120] sm:$0xff]
  %v71 = vld [vmem:[%s1 + $0x128] sm:$0xff]
  %v72 = vld [vmem:[%s1 + $0x130] sm:$0xff]
  %v73 = vld [vmem:[%s1 + $0x138] sm:$0xff]
  %v74 = vld [vmem:[%s1 + $0x140] sm:$0xff]
  %v75 = vld [vmem:[%s1 + $0x148] sm:$0xff]
  %v76 = vld [vmem:[%s1 + $0x150] sm:$0xff]
  %v77 = vld [vmem:[%s1 + $0x158] sm:$0xff]
  %v78 = vld [vmem:[%s1 + $0x160] sm:$0xff]
  %v79 = vld [vmem:[%s1 + $0x168] sm:$0xff]
  %v80 = vld [vmem:[%s1 + $0x170] sm:$0xff]
  %v81 = vld [vmem:[%s1 + $0x178] sm:$0xff]
  %v82 = vld [vmem:[%s1 + $0x180] sm:$0xff]
  %v83 = vld [vmem:[%s1 + $0x188] sm:$0xff]
  %v84 = vld [vmem:[%s1 + $0x190] sm:$0xff]
  %v85 = vld [vmem:[%s1 + $0x198] sm:$0xff]
  %v86 = vld [vmem:[%s1 + $0x1a0] sm:$0xff]
  %v87 = vld [vmem:[%s1 + $0x1a8] sm:$0xff]
  %v88 = vld [vmem:[%s2] sm:$0x1]
  %v90 = vlaneseq
  %v91 = vshrl.u32 %v90, 7
  %v92 = vsub.s32 0, %v91
  %v93 = vrot.slane %v88, %v92
  %vm95 = vcmask 392192
  %v97 = vsel %vm95, %v29, 0
  %v100 = vsel %vm95, %v33, 0
  %102 = vmatprep.subr.mxu0 0.0
  %103 = vmatpush1.msra.mxu0 %v34
  %104 = vmatprep.subr.mxu0 0.0
  %105 = vmatpush1.msra.mxu0 %v35
  %106 = vmatprep.subr.mxu0 0.0
  %107 = vmatpush1.msra.mxu0 %v36
  %108 = vmatprep.subr.mxu0 0.0
  %109 = vmatpush1.msra.mxu0 %v37
  %110 = vmatprep.subr.mxu0 0.0
  %111 = vmatpush1.msra.mxu0 %v38
  %112 = vmatprep.subr.mxu0 0.0
  %113 = vmatpush1.msra.mxu0 %v39
  %114 = vmatprep.subr.mxu0 0.0
  %115 = vmatpush1.msra.mxu0 %v40
  %116 = vmatprep.subr.mxu0 0.0
  %117 = vmatpush1.msra.mxu0 %v41
  %118 = vmatprep.subr.mxu0 0.0
  %119 = vmatpush1.msra.mxu0 %v42
  %120 = vmatprep.subr.mxu0 0.0
  %121 = vmatpush1.msra.mxu0 %v43
  %122 = vmatprep.subr.mxu0 0.0
  %123 = vmatpush1.msra.mxu0 %v44
  %124 = vmatprep.subr.mxu0 0.0
  %125 = vmatpush1.msra.mxu0 %v45
  %126 = vmatprep.subr.mxu0 0.0
  %127 = vmatpush1.msra.mxu0 %v46
  %128 = vmatprep.subr.mxu0 0.0
  %129 = vmatpush1.msra.mxu0 %v47
  %130 = vmatprep.subr.mxu0 0.0
  %131 = vmatpush1.msra.mxu0 %v48
  %132 = vmatprep.subr.mxu0 0.0
  %133 = vmatpush1.msra.mxu0 %v49
  %134 = vmatprep.subr.mxu0 0.0
  %135 = vmatpush1.msra.mxu0 %v50
  %136 = vmatprep.subr.mxu0 0.0
  %137 = vmatpush1.msra.mxu0 %v51
  %138 = vmatprep.subr.mxu0 0.0
  %139 = vmatpush1.msra.mxu0 %v52
  %140 = vmatprep.subr.mxu0 0.0
  %141 = vmatpush1.msra.mxu0 %v53
  %142 = vmatprep.subr.mxu0 0.0
  %143 = vmatpush1.msra.mxu0 %v54
  %144 = vmatprep.subr.mxu0 0.0
  %145 = vmatpush1.msra.mxu0 %v55
  %146 = vmatprep.subr.mxu0 0.0
  %147 = vmatpush1.msra.mxu0 %v56
  %148 = vmatprep.subr.mxu0 0.0
  %149 = vmatpush1.msra.mxu0 %v57
  %150 = vmatprep.subr.mxu0 0.0
  %151 = vmatpush1.msra.mxu0 %v58
  %152 = vmatprep.subr.mxu0 0.0
  %153 = vmatpush1.msra.mxu0 %v59
  %154 = vmatprep.subr.mxu0 0.0
  %155 = vmatpush1.msra.mxu0 %v60
  %156 = vmatprep.subr.mxu0 0.0
  %157 = vmatpush1.msra.mxu0 %v61
  %158 = vmatprep.subr.mxu0 0.0
  %159 = vmatpush1.msra.mxu0 %v62
  %160 = vmatprep.subr.mxu0 0.0
  %161 = vmatpush1.msra.mxu0 %v63
  %162 = vmatprep.subr.mxu0 0.0
  %163 = vmatpush1.msra.mxu0 %v64
  %164 = vmatprep.subr.mxu0 0.0
  %165 = vmatpush1.msra.mxu0 %v65
  %166 = vmatprep.mubr.f32.mxu0 %v27
  %167 = vmatmul.mubr.f32.gmra.mrb[0].mxu0 %v26
  %v168 = vpop.f32.mrb[0].mxu0
  %v169 = vadd.f32 %v93, %v168
  %v170 = vpop.f32.mrb[0].mxu0
  %171 = vmatprep.mubr.f32.mxu0 %v31
  %172 = vmatmul.mubr.f32.gmra.mrb[0].mxu0 %v30
  %v173 = vpop.f32.mrb[0].mxu0
  %v174 = vadd.f32 %v93, %v173
  %v175 = vpop.f32.mrb[0].mxu0
  %176 = vdwg.mxu0
  %177 = vmatprep.subr.mxu0 0.0
  %178 = vmatpush1.msra.mxu0 %v66
  %179 = vmatprep.subr.mxu0 0.0
  %180 = vmatpush1.msra.mxu0 %v67
  %181 = vmatprep.subr.mxu0 0.0
  %182 = vmatpush1.msra.mxu0 %v68
  %183 = vmatprep.subr.mxu0 0.0
  %184 = vmatpush1.msra.mxu0 %v69
  %185 = vmatprep.subr.mxu0 0.0
  %186 = vmatpush1.msra.mxu0 %v70
  %187 = vmatprep.subr.mxu0 0.0
  %188 = vmatpush1.msra.mxu0 %v71
  %189 = vmatprep.subr.mxu0 0.0
  %190 = vmatpush1.msra.mxu0 %v72
  %191 = vmatprep.subr.mxu0 0.0
  %192 = vmatpush1.msra.mxu0 %v73
  %193 = vmatprep.subr.mxu0 0.0
  %194 = vmatpush1.msra.mxu0 %v74
  %195 = vmatprep.subr.mxu0 0.0
  %196 = vmatpush1.msra.mxu0 %v75
  %197 = vmatprep.subr.mxu0 0.0
  %198 = vmatpush1.msra.mxu0 %v76
  %199 = vmatprep.subr.mxu0 0.0
  %200 = vmatpush1.msra.mxu0 %v77
  %201 = vmatprep.subr.mxu0 0.0
  %202 = vmatpush1.msra.mxu0 %v78
  %203 = vmatprep.subr.mxu0 0.0
  %204 = vmatpush1.msra.mxu0 %v79
  %205 = vmatprep.subr.mxu0 0.0
  %206 = vmatpush1.msra.mxu0 %v80
  %207 = vmatprep.subr.mxu0 0.0
  %208 = vmatpush1.msra.mxu0 %v81
  %209 = vmatprep.subr.mxu0 0.0
  %210 = vmatpush1.msra.mxu0 %v82
  %211 = vmatprep.subr.mxu0 0.0
  %212 = vmatpush1.msra.mxu0 %v83
  %213 = vmatprep.subr.mxu0 0.0
  %214 = vmatpush1.msra.mxu0 %v84
  %215 = vmatprep.subr.mxu0 0.0
  %216 = vmatpush1.msra.mxu0 %v85
  %217 = vmatprep.subr.mxu0 0.0
  %218 = vmatpush1.msra.mxu0 %v86
  %219 = vmatprep.subr.mxu0 0.0
  %220 = vmatpush1.msra.mxu0 %v87
  %221 = vmatprep.subr.mxu0 0.0
  %222 = vmatpush1.msra.mxu0 0.0
  %223 = vmatprep.subr.mxu0 0.0
  %224 = vmatpush1.msra.mxu0 0.0
  %225 = vmatprep.subr.mxu0 0.0
  %226 = vmatpush1.msra.mxu0 0.0
  %227 = vmatprep.subr.mxu0 0.0
  %228 = vmatpush1.msra.mxu0 0.0
  %229 = vmatprep.subr.mxu0 0.0
  %230 = vmatpush1.msra.mxu0 0.0
  %231 = vmatprep.subr.mxu0 0.0
  %232 = vmatpush1.msra.mxu0 0.0
  %233 = vmatprep.subr.mxu0 0.0
  %234 = vmatpush1.msra.mxu0 0.0
  %235 = vmatprep.subr.mxu0 0.0
  %236 = vmatpush1.msra.mxu0 0.0
  %237 = vmatprep.subr.mxu0 0.0
  %238 = vmatpush1.msra.mxu0 0.0
  %239 = vmatprep.subr.mxu0 0.0
  %240 = vmatpush1.msra.mxu0 0.0
  %241 = vmatprep.mubr.f32.mxu0 %v97
  %242 = vmatmul.mubr.f32.gmra.mrb[0].mxu0 %v28
  %v243 = vpop.f32.mrb[0].mxu0
  %v244 = vadd.f32 %v169, %v243
  %v245 = vpop.f32.mrb[0].mxu0
  %246 = vmatprep.mubr.f32.mxu0 %v100
  %247 = vmatmul.mubr.f32.gmra.mrb[0].mxu0 %v32
  %v248 = vpop.f32.mrb[0].mxu0
  %v249 = vadd.f32 %v174, %v248
  %v250 = vpop.f32.mrb[0].mxu0
  %251 = vdwg.mxu0
  %252 = vadd.xlane.f32.xlu0 %v244
  %v253 = vpop.xlane.xlu0 %252
  %254 = vadd.xlane.f32.xlu0 %v249
  %v255 = vpop.xlane.xlu0 %254
  %v256 = vrcp.pop 128.0
  %v257 = vmul.f32 %v253, %v256
  %v258 = vmul.f32 %v255, %v256
  %v259 = vsub.f32 %v244, %v257
  %v260 = vsub.f32 %v249, %v258
  %v261 = vmul.f32 %v259, %v259
  %v262 = vmul.f32 %v260, %v260
  %263 = vadd.xlane.f32.xlu0 %v261
  %v264 = vpop.xlane.xlu0 %263
  %265 = vadd.xlane.f32.xlu0 %v262
  %v266 = vpop.xlane.xlu0 %265
  %v267 = vmul.f32 %v264, %v256
  %v268 = vmul.f32 %v266, %v256
  %v269 = vadd.f32 %v267, 1e-05
  %v270 = vadd.f32 %v268, 1e-05
  %v271 = vrsqrt.pop %v269
  %v272 = vrsqrt.pop %v270
  %v273 = vmul.f32 %v259, %v271
  %v274 = vmul.f32 %v260, %v272
  %v275 = vld [vmem:[%s3] sm:$0x1]
  %v277 = vlaneseq
  %v278 = vshrl.u32 %v277, 7
  %v279 = vsub.s32 0, %v278
  %v280 = vrot.slane %v275, %v279
  %v282 = vmul.f32 %v273, %v280
  %v283 = vmul.f32 %v274, %v280
  %v284 = vld [vmem:[%s4] sm:$0x1]
  %v286 = vlaneseq
  %v287 = vshrl.u32 %v286, 7
  %v288 = vsub.s32 0, %v287
  %v289 = vrot.slane %v284, %v288
  %v291 = vadd.f32 %v282, %v289
  %v292 = vadd.f32 %v283, %v289
  %v293 = vmax.f32 %v291, 0.0
  %v294 = vmax.f32 %v292, 0.0
  %v295 = vld [vmem:[%s5] sm:$0xff]
  %v296 = vld [vmem:[%s5 + $0x8] sm:$0xff]
  %v297 = vld [vmem:[%s5 + $0x10] sm:$0xff]
  %v298 = vld [vmem:[%s5 + $0x18] sm:$0xff]
  %v299 = vld [vmem:[%s5 + $0x20] sm:$0xff]
  %v300 = vld [vmem:[%s5 + $0x28] sm:$0xff]
  %v301 = vld [vmem:[%s5 + $0x30] sm:$0xff]
  %v302 = vld [vmem:[%s5 + $0x38] sm:$0xff]
  %v303 = vld [vmem:[%s5 + $0x40] sm:$0xff]
  %v304 = vld [vmem:[%s5 + $0x48] sm:$0xff]
  %v305 = vld [vmem:[%s5 + $0x50] sm:$0xff]
  %v306 = vld [vmem:[%s5 + $0x58] sm:$0xff]
  %v307 = vld [vmem:[%s5 + $0x60] sm:$0xff]
  %v308 = vld [vmem:[%s5 + $0x68] sm:$0xff]
  %v309 = vld [vmem:[%s5 + $0x70] sm:$0xff]
  %v310 = vld [vmem:[%s5 + $0x78] sm:$0xff]
  %v311 = vld [vmem:[%s5 + $0x80] sm:$0xff]
  %v312 = vld [vmem:[%s5 + $0x88] sm:$0xff]
  %v313 = vld [vmem:[%s5 + $0x90] sm:$0xff]
  %v314 = vld [vmem:[%s5 + $0x98] sm:$0xff]
  %v315 = vld [vmem:[%s5 + $0xa0] sm:$0xff]
  %v316 = vld [vmem:[%s5 + $0xa8] sm:$0xff]
  %v317 = vld [vmem:[%s5 + $0xb0] sm:$0xff]
  %v318 = vld [vmem:[%s5 + $0xb8] sm:$0xff]
  %v319 = vld [vmem:[%s5 + $0xc0] sm:$0xff]
  %v320 = vld [vmem:[%s5 + $0xc8] sm:$0xff]
  %v321 = vld [vmem:[%s5 + $0xd0] sm:$0xff]
  %v322 = vld [vmem:[%s5 + $0xd8] sm:$0xff]
  %v323 = vld [vmem:[%s5 + $0xe0] sm:$0xff]
  %v324 = vld [vmem:[%s5 + $0xe8] sm:$0xff]
  %v325 = vld [vmem:[%s5 + $0xf0] sm:$0xff]
  %v326 = vld [vmem:[%s5 + $0xf8] sm:$0xff]
  %v327 = vld [vmem:[%s5 + $0x100] sm:$0xff]
  %v328 = vld [vmem:[%s5 + $0x108] sm:$0xff]
  %v329 = vld [vmem:[%s5 + $0x110] sm:$0xff]
  %v330 = vld [vmem:[%s5 + $0x118] sm:$0xff]
  %v331 = vld [vmem:[%s5 + $0x120] sm:$0xff]
  %v332 = vld [vmem:[%s5 + $0x128] sm:$0xff]
  %v333 = vld [vmem:[%s5 + $0x130] sm:$0xff]
  %v334 = vld [vmem:[%s5 + $0x138] sm:$0xff]
  %v335 = vld [vmem:[%s5 + $0x140] sm:$0xff]
  %v336 = vld [vmem:[%s5 + $0x148] sm:$0xff]
  %v337 = vld [vmem:[%s5 + $0x150] sm:$0xff]
  %v338 = vld [vmem:[%s5 + $0x158] sm:$0xff]
  %v339 = vld [vmem:[%s5 + $0x160] sm:$0xff]
  %v340 = vld [vmem:[%s5 + $0x168] sm:$0xff]
  %v341 = vld [vmem:[%s5 + $0x170] sm:$0xff]
  %v342 = vld [vmem:[%s5 + $0x178] sm:$0xff]
  %v343 = vld [vmem:[%s5 + $0x180] sm:$0xff]
  %v344 = vld [vmem:[%s5 + $0x188] sm:$0xff]
  %v345 = vld [vmem:[%s5 + $0x190] sm:$0xff]
  %v346 = vld [vmem:[%s5 + $0x198] sm:$0xff]
  %v347 = vld [vmem:[%s5 + $0x1a0] sm:$0xff]
  %v348 = vld [vmem:[%s5 + $0x1a8] sm:$0xff]
  %v349 = vld [vmem:[%s5 + $0x1b0] sm:$0xff]
  %v350 = vld [vmem:[%s5 + $0x1b8] sm:$0xff]
  %v351 = vld [vmem:[%s5 + $0x1c0] sm:$0xff]
  %v352 = vld [vmem:[%s5 + $0x1c8] sm:$0xff]
  %v353 = vld [vmem:[%s5 + $0x1d0] sm:$0xff]
  %v354 = vld [vmem:[%s5 + $0x1d8] sm:$0xff]
  %v355 = vld [vmem:[%s5 + $0x1e0] sm:$0xff]
  %v356 = vld [vmem:[%s5 + $0x1e8] sm:$0xff]
  %v357 = vld [vmem:[%s5 + $0x1f0] sm:$0xff]
  %v358 = vld [vmem:[%s5 + $0x1f8] sm:$0xff]
  %v359 = vld [vmem:[%s6] sm:$0xf]
  %v361 = vlaneseq
  %v362 = vshrl.u32 %v361, 7
  %v363 = vsub.s32 0, %v362
  %v364 = vrot.slane %v359, %v363
  %v365 = vlaneseq
  %v366 = vshrl.u32 %v365, 7
  %v367 = vsub.s32 1, %v366
  %v368 = vrot.slane %v359, %v367
  %v369 = vlaneseq
  %v370 = vshrl.u32 %v369, 7
  %v371 = vsub.s32 2, %v370
  %v372 = vrot.slane %v359, %v371
  %v373 = vlaneseq
  %v374 = vshrl.u32 %v373, 7
  %v375 = vsub.s32 3, %v374
  %v376 = vrot.slane %v359, %v375
  %381 = vmatprep.subr.mxu0 %v296
  %382 = vmatpush1.msra.mxu0 %v295
  %383 = vmatprep.subr.mxu0 %v300
  %384 = vmatpush1.msra.mxu0 %v299
  %385 = vmatprep.subr.mxu0 %v304
  %386 = vmatpush1.msra.mxu0 %v303
  %387 = vmatprep.subr.mxu0 %v308
  %388 = vmatpush1.msra.mxu0 %v307
  %389 = vmatprep.subr.mxu0 %v312
  %390 = vmatpush1.msra.mxu0 %v311
  %391 = vmatprep.subr.mxu0 %v316
  %392 = vmatpush1.msra.mxu0 %v315
  %393 = vmatprep.subr.mxu0 %v320
  %394 = vmatpush1.msra.mxu0 %v319
  %395 = vmatprep.subr.mxu0 %v324
  %396 = vmatpush1.msra.mxu0 %v323
  %397 = vmatprep.subr.mxu0 %v328
  %398 = vmatpush1.msra.mxu0 %v327
  %399 = vmatprep.subr.mxu0 %v332
  %400 = vmatpush1.msra.mxu0 %v331
  %401 = vmatprep.subr.mxu0 %v336
  %402 = vmatpush1.msra.mxu0 %v335
  %403 = vmatprep.subr.mxu0 %v340
  %404 = vmatpush1.msra.mxu0 %v339
  %405 = vmatprep.subr.mxu0 %v344
  %406 = vmatpush1.msra.mxu0 %v343
  %407 = vmatprep.subr.mxu0 %v348
  %408 = vmatpush1.msra.mxu0 %v347
  %409 = vmatprep.subr.mxu0 %v352
  %410 = vmatpush1.msra.mxu0 %v351
  %411 = vmatprep.subr.mxu0 %v356
  %412 = vmatpush1.msra.mxu0 %v355
  %413 = vmatprep.subr.mxu0 0.0
  %414 = vmatpush1.msra.mxu0 0.0
  %415 = vmatprep.subr.mxu0 0.0
  %416 = vmatpush1.msra.mxu0 0.0
  %417 = vmatprep.subr.mxu0 0.0
  %418 = vmatpush1.msra.mxu0 0.0
  %419 = vmatprep.subr.mxu0 0.0
  %420 = vmatpush1.msra.mxu0 0.0
  %421 = vmatprep.subr.mxu0 0.0
  %422 = vmatpush1.msra.mxu0 0.0
  %423 = vmatprep.subr.mxu0 0.0
  %424 = vmatpush1.msra.mxu0 0.0
  %425 = vmatprep.subr.mxu0 0.0
  %426 = vmatpush1.msra.mxu0 0.0
  %427 = vmatprep.subr.mxu0 0.0
  %428 = vmatpush1.msra.mxu0 0.0
  %429 = vmatprep.subr.mxu0 0.0
  %430 = vmatpush1.msra.mxu0 0.0
  %431 = vmatprep.subr.mxu0 0.0
  %432 = vmatpush1.msra.mxu0 0.0
  %433 = vmatprep.subr.mxu0 0.0
  %434 = vmatpush1.msra.mxu0 0.0
  %435 = vmatprep.subr.mxu0 0.0
  %436 = vmatpush1.msra.mxu0 0.0
  %437 = vmatprep.subr.mxu0 0.0
  %438 = vmatpush1.msra.mxu0 0.0
  %439 = vmatprep.subr.mxu0 0.0
  %440 = vmatpush1.msra.mxu0 0.0
  %441 = vmatprep.subr.mxu0 0.0
  %442 = vmatpush1.msra.mxu0 0.0
  %443 = vmatprep.subr.mxu0 0.0
  %444 = vmatpush1.msra.mxu0 0.0
  %445 = vmatprep.mubr.f32.mxu0 0.0
  %446 = vmatmul.mubr.f32.gmra.mrb[0].mxu0 %v293
  %v447 = vpop.f32.mrb[0].mxu0
  %v448 = vadd.f32 %v364, %v447
  %v449 = vpop.f32.mrb[0].mxu0
  %v450 = vadd.f32 %v368, %v449
  %451 = vmatprep.mubr.f32.mxu0 0.0
  %452 = vmatmul.mubr.f32.gmra.mrb[0].mxu0 %v294
  %v453 = vpop.f32.mrb[0].mxu0
  %v454 = vadd.f32 %v364, %v453
  %v455 = vpop.f32.mrb[0].mxu0
  %v456 = vadd.f32 %v368, %v455
  %457 = vdwg.mxu0
  %458 = vmatprep.subr.mxu0 %v298
  %459 = vmatpush1.msra.mxu0 %v297
  %460 = vmatprep.subr.mxu0 %v302
  %461 = vmatpush1.msra.mxu0 %v301
  %462 = vmatprep.subr.mxu0 %v306
  %463 = vmatpush1.msra.mxu0 %v305
  %464 = vmatprep.subr.mxu0 %v310
  %465 = vmatpush1.msra.mxu0 %v309
  %466 = vmatprep.subr.mxu0 %v314
  %467 = vmatpush1.msra.mxu0 %v313
  %468 = vmatprep.subr.mxu0 %v318
  %469 = vmatpush1.msra.mxu0 %v317
  %470 = vmatprep.subr.mxu0 %v322
  %471 = vmatpush1.msra.mxu0 %v321
  %472 = vmatprep.subr.mxu0 %v326
  %473 = vmatpush1.msra.mxu0 %v325
  %474 = vmatprep.subr.mxu0 %v330
  %475 = vmatpush1.msra.mxu0 %v329
  %476 = vmatprep.subr.mxu0 %v334
  %477 = vmatpush1.msra.mxu0 %v333
  %478 = vmatprep.subr.mxu0 %v338
  %479 = vmatpush1.msra.mxu0 %v337
  %480 = vmatprep.subr.mxu0 %v342
  %481 = vmatpush1.msra.mxu0 %v341
  %482 = vmatprep.subr.mxu0 %v346
  %483 = vmatpush1.msra.mxu0 %v345
  %484 = vmatprep.subr.mxu0 %v350
  %485 = vmatpush1.msra.mxu0 %v349
  %486 = vmatprep.subr.mxu0 %v354
  %487 = vmatpush1.msra.mxu0 %v353
  %488 = vmatprep.subr.mxu0 %v358
  %489 = vmatpush1.msra.mxu0 %v357
  %490 = vmatprep.subr.mxu0 0.0
  %491 = vmatpush1.msra.mxu0 0.0
  %492 = vmatprep.subr.mxu0 0.0
  %493 = vmatpush1.msra.mxu0 0.0
  %494 = vmatprep.subr.mxu0 0.0
  %495 = vmatpush1.msra.mxu0 0.0
  %496 = vmatprep.subr.mxu0 0.0
  %497 = vmatpush1.msra.mxu0 0.0
  %498 = vmatprep.subr.mxu0 0.0
  %499 = vmatpush1.msra.mxu0 0.0
  %500 = vmatprep.subr.mxu0 0.0
  %501 = vmatpush1.msra.mxu0 0.0
  %502 = vmatprep.subr.mxu0 0.0
  %503 = vmatpush1.msra.mxu0 0.0
  %504 = vmatprep.subr.mxu0 0.0
  %505 = vmatpush1.msra.mxu0 0.0
  %506 = vmatprep.subr.mxu0 0.0
  %507 = vmatpush1.msra.mxu0 0.0
  %508 = vmatprep.subr.mxu0 0.0
  %509 = vmatpush1.msra.mxu0 0.0
  %510 = vmatprep.subr.mxu0 0.0
  %511 = vmatpush1.msra.mxu0 0.0
  %512 = vmatprep.subr.mxu0 0.0
  %513 = vmatpush1.msra.mxu0 0.0
  %514 = vmatprep.subr.mxu0 0.0
  %515 = vmatpush1.msra.mxu0 0.0
  %516 = vmatprep.subr.mxu0 0.0
  %517 = vmatpush1.msra.mxu0 0.0
  %518 = vmatprep.subr.mxu0 0.0
  %519 = vmatpush1.msra.mxu0 0.0
  %520 = vmatprep.subr.mxu0 0.0
  %521 = vmatpush1.msra.mxu0 0.0
  %522 = vmatprep.mubr.f32.mxu0 0.0
  %523 = vmatmul.mubr.f32.gmra.mrb[0].mxu0 %v293
  %v524 = vpop.f32.mrb[0].mxu0
  %v525 = vadd.f32 %v372, %v524
  %v526 = vpop.f32.mrb[0].mxu0
  %v527 = vadd.f32 %v376, %v526
  %528 = vmatprep.mubr.f32.mxu0 0.0
  %529 = vmatmul.mubr.f32.gmra.mrb[0].mxu0 %v294
  %v530 = vpop.f32.mrb[0].mxu0
  %v531 = vadd.f32 %v372, %v530
  %v532 = vpop.f32.mrb[0].mxu0
  %v533 = vadd.f32 %v376, %v532
  %534 = vdwg.mxu0
  %535 = vst [vmem:[%s7] sm:$0xff] %v448
  %536 = vst [vmem:[%s7 + $0x8] sm:$0xff] %v450
  %537 = vst [vmem:[%s7 + $0x10] sm:$0xff] %v525
  %538 = vst [vmem:[%s7 + $0x18] sm:$0xff] %v527
  %539 = vst [vmem:[%s7 + $0x20] sm:$0xff] %v454
  %540 = vst [vmem:[%s7 + $0x28] sm:$0xff] %v456
  %541 = vst [vmem:[%s7 + $0x30] sm:$0xff] %v531
  %542 = vst [vmem:[%s7 + $0x38] sm:$0xff] %v533
  // Predicated region
  $region30: #{forward.17} parent=0 // pred_check
    _
  $region31: #{forward.17} parent=0 // pred_check_branch
    %544 = sbr.rel (0) target = $region33
  $region32: #{forward.17} parent=0 // pred_region
    _
  $region33: #{forward.17} parent=0 // pred_fallthru
    _
  // Predicated region
  $region34: #{forward.17} parent=0 // pred_check
    _
  $region35: #{forward.17} parent=0 // pred_check_branch
    %546 = sbr.rel (0) target = $region37
  $region36: #{forward.17} parent=0 // pred_region
    _
  $region37: #{forward.17} parent=0 // pred_fallthru
    _

// kernel: forward.18
$region0: #{forward.18}
  #allocation0 [shape = 'u32[]', space=smem, size = 0x4, offset = 0x4, fixed_abs, tag = 'smem constant byte address 0x4 - core index']
  #allocation1 [shape = 'u32[144,128]{1,0:T(1,128)}', space=vmem, size = 0x12000, scoped, tag = 'internal scratch']
  %s0 = inlined_call_operand.vmem [shape: f32[8,2,512], index: 0, kind: input, shape index: {}]
  %s1 = inlined_call_operand.vmem [shape: f32[2,128], index: 1, kind: input, shape index: {}]
  %s2 = inlined_call_operand.vmem [shape: f32[2,128], index: 2, kind: input, shape index: {}]
  %s3 = inlined_call_operand.vmem [shape: f32[128,512], index: 3, kind: input, shape index: {}]
  %s4 = inlined_call_operand.vmem [shape: f32[8,2,128], index: 4, kind: output, shape index: {0}]
  %s5 = inlined_call_operand.hbm [shape: f32[2,128], index: 5, kind: output, shape index: {1}]
  %s6 = inlined_call_operand.hbm [shape: f32[2,128], index: 6, kind: output, shape index: {2}]
  %7 = xla_tuple %s4, %s5, %s6
  %s8 = sld [smem:[#allocation0]]
  $region42: #{forward.18} parent=0
    _
  %s10 = ssub.s32 1, %s8
  %s11 = scalar_select 0, %s10, %s8
  $region1: #{forward.18} parent=0
    #allocation2 [shape = 'u8[1024]{0}', space=vmem, size = 0x400, scoped, tag = 'output window, operand 1, single buffered']
    #allocation3 [shape = 's32[1]{0}', space=sflag, size = 0x4, scoped, tag = 'scoped memory for forward.18']
    #allocation4 [shape = 'u8[1024]{0}', space=vmem, size = 0x400, scoped, tag = 'output window, operand 2, single buffered']
    #allocation5 [shape = 's32[1]{0}', space=sflag, size = 0x4, scoped, tag = 'scoped memory for forward.18']
    %12 = vsyncpa [#allocation3], 0
    %13 = vsyncpa [#allocation5], 0
    // Predicated region
    $region2: #{forward.18} parent=1 // pred_check
      _
    $region3: #{forward.18} parent=1 // pred_check_branch
      %15 = sbr.rel (0) target = $region5
    $region4: #{forward.18} parent=1 // pred_region
      _
    $region5: #{forward.18} parent=1 // pred_fallthru
      _
    // Predicated region
    $region6: #{forward.18} parent=1 // pred_check
      _
    $region7: #{forward.18} parent=1 // pred_check_branch
      %17 = sbr.rel (0) target = $region9
    $region8: #{forward.18} parent=1 // pred_region
      _
    $region9: #{forward.18} parent=1 // pred_fallthru
      _
    // Predicated region
    $region10: #{forward.18} parent=1 // pred_check
      _
    $region11: #{forward.18} parent=1 // pred_check_branch
      %19 = sbr.rel (0) target = $region13
    $region12: #{forward.18} parent=1 // pred_region
      _
    $region13: #{forward.18} parent=1 // pred_fallthru
      _
    // Predicated region
    $region14: #{forward.18} parent=1 // pred_check
      _
    $region15: #{forward.18} parent=1 // pred_check_branch
      %21 = sbr.rel (0) target = $region17
    $region16: #{forward.18} parent=1 // pred_region
      _
    $region17: #{forward.18} parent=1 // pred_fallthru
      _
    %v22 = vld [vmem:[%s1] sm:$0x3]
    %v23 = vld [vmem:[%s2] sm:$0x3]
    %v24 = vld [vmem:[%s3] sm:$0xff]
    %v25 = vld [vmem:[%s3 + $0x8] sm:$0xff]
    %v26 = vld [vmem:[%s3 + $0x10] sm:$0xff]
    %v27 = vld [vmem:[%s3 + $0x18] sm:$0xff]
    %v28 = vld [vmem:[%s3 + $0x20] sm:$0xff]
    %v29 = vld [vmem:[%s3 + $0x28] sm:$0xff]
    %v30 = vld [vmem:[%s3 + $0x30] sm:$0xff]
    %v31 = vld [vmem:[%s3 + $0x38] sm:$0xff]
    %v32 = vld [vmem:[%s3 + $0x40] sm:$0xff]
    %v33 = vld [vmem:[%s3 + $0x48] sm:$0xff]
    %v34 = vld [vmem:[%s3 + $0x50] sm:$0xff]
    %v35 = vld [vmem:[%s3 + $0x58] sm:$0xff]
    %v36 = vld [vmem:[%s3 + $0x60] sm:$0xff]
    %v37 = vld [vmem:[%s3 + $0x68] sm:$0xff]
    %v38 = vld [vmem:[%s3 + $0x70] sm:$0xff]
    %v39 = vld [vmem:[%s3 + $0x78] sm:$0xff]
    %v40 = vld [vmem:[%s3 + $0x80] sm:$0xff]
    %v41 = vld [vmem:[%s3 + $0x88] sm:$0xff]
    %v42 = vld [vmem:[%s3 + $0x90] sm:$0xff]
    %v43 = vld [vmem:[%s3 + $0x98] sm:$0xff]
    %v44 = vld [vmem:[%s3 + $0xa0] sm:$0xff]
    %v45 = vld [vmem:[%s3 + $0xa8] sm:$0xff]
    %v46 = vld [vmem:[%s3 + $0xb0] sm:$0xff]
    %v47 = vld [vmem:[%s3 + $0xb8] sm:$0xff]
    %v48 = vld [vmem:[%s3 + $0xc0] sm:$0xff]
    %v49 = vld [vmem:[%s3 + $0xc8] sm:$0xff]
    %v50 = vld [vmem:[%s3 + $0xd0] sm:$0xff]
    %v51 = vld [vmem:[%s3 + $0xd8] sm:$0xff]
    %v52 = vld [vmem:[%s3 + $0xe0] sm:$0xff]
    %v53 = vld [vmem:[%s3 + $0xe8] sm:$0xff]
    %v54 = vld [vmem:[%s3 + $0xf0] sm:$0xff]
    %v55 = vld [vmem:[%s3 + $0xf8] sm:$0xff]
    %v56 = vld [vmem:[%s3 + $0x100] sm:$0xff]
    %v57 = vld [vmem:[%s3 + $0x108] sm:$0xff]
    %v58 = vld [vmem:[%s3 + $0x110] sm:$0xff]
    %v59 = vld [vmem:[%s3 + $0x118] sm:$0xff]
    %v60 = vld [vmem:[%s3 + $0x120] sm:$0xff]
    %v61 = vld [vmem:[%s3 + $0x128] sm:$0xff]
    %v62 = vld [vmem:[%s3 + $0x130] sm:$0xff]
    %v63 = vld [vmem:[%s3 + $0x138] sm:$0xff]
    %v64 = vld [vmem:[%s3 + $0x140] sm:$0xff]
    %v65 = vld [vmem:[%s3 + $0x148] sm:$0xff]
    %v66 = vld [vmem:[%s3 + $0x150] sm:$0xff]
    %v67 = vld [vmem:[%s3 + $0x158] sm:$0xff]
    %v68 = vld [vmem:[%s3 + $0x160] sm:$0xff]
    %v69 = vld [vmem:[%s3 + $0x168] sm:$0xff]
    %v70 = vld [vmem:[%s3 + $0x170] sm:$0xff]
    %v71 = vld [vmem:[%s3 + $0x178] sm:$0xff]
    %v72 = vld [vmem:[%s3 + $0x180] sm:$0xff]
    %v73 = vld [vmem:[%s3 + $0x188] sm:$0xff]
    %v74 = vld [vmem:[%s3 + $0x190] sm:$0xff]
    %v75 = vld [vmem:[%s3 + $0x198] sm:$0xff]
    %v76 = vld [vmem:[%s3 + $0x1a0] sm:$0xff]
    %v77 = vld [vmem:[%s3 + $0x1a8] sm:$0xff]
    %v78 = vld [vmem:[%s3 + $0x1b0] sm:$0xff]
    %v79 = vld [vmem:[%s3 + $0x1b8] sm:$0xff]
    %v80 = vld [vmem:[%s3 + $0x1c0] sm:$0xff]
    %v81 = vld [vmem:[%s3 + $0x1c8] sm:$0xff]
    %v82 = vld [vmem:[%s3 + $0x1d0] sm:$0xff]
    %v83 = vld [vmem:[%s3 + $0x1d8] sm:$0xff]
    %v84 = vld [vmem:[%s3 + $0x1e0] sm:$0xff]
    %v85 = vld [vmem:[%s3 + $0x1e8] sm:$0xff]
    %v86 = vld [vmem:[%s3 + $0x1f0] sm:$0xff]
    %v87 = vld [vmem:[%s3 + $0x1f8] sm:$0xff]
    %v88 = vld [vmem:[%s0] sm:$0xff]
    %89 = vmatprep.subr.mxu0 %v25
    %90 = vmatpush1.msra.mxu0 %v24
    %91 = vmatprep.subr.mxu0 %v29
    %92 = vmatpush1.msra.mxu0 %v28
    %93 = vmatprep.subr.mxu0 %v33
    %94 = vmatpush1.msra.mxu0 %v32
    %95 = vmatprep.subr.mxu0 %v37
    %96 = vmatpush1.msra.mxu0 %v36
    %97 = vmatprep.subr.mxu0 %v41
    %98 = vmatpush1.msra.mxu0 %v40
    %99 = vmatprep.subr.mxu0 %v45
    %100 = vmatpush1.msra.mxu0 %v44
    %101 = vmatprep.subr.mxu0 %v49
    %102 = vmatpush1.msra.mxu0 %v48
    %103 = vmatprep.subr.mxu0 %v53
    %104 = vmatpush1.msra.mxu0 %v52
    %105 = vmatprep.subr.mxu0 %v57
    %106 = vmatpush1.msra.mxu0 %v56
    %107 = vmatprep.subr.mxu0 %v61
    %108 = vmatpush1.msra.mxu0 %v60
    %109 = vmatprep.subr.mxu0 %v65
    %110 = vmatpush1.msra.mxu0 %v64
    %111 = vmatprep.subr.mxu0 %v69
    %112 = vmatpush1.msra.mxu0 %v68
    %113 = vmatprep.subr.mxu0 %v73
    %114 = vmatpush1.msra.mxu0 %v72
    %115 = vmatprep.subr.mxu0 %v77
    %116 = vmatpush1.msra.mxu0 %v76
    %117 = vmatprep.subr.mxu0 %v81
    %118 = vmatpush1.msra.mxu0 %v80
    %119 = vmatprep.subr.mxu0 %v85
    %120 = vmatpush1.msra.mxu0 %v84
    %121 = vmatprep.subr.mxu0 0.0
    %122 = vmatpush1.msra.mxu0 0.0
    %123 = vmatprep.subr.mxu0 0.0
    %124 = vmatpush1.msra.mxu0 0.0
    %125 = vmatprep.subr.mxu0 0.0
    %126 = vmatpush1.msra.mxu0 0.0
    %127 = vmatprep.subr.mxu0 0.0
    %128 = vmatpush1.msra.mxu0 0.0
    %129 = vmatprep.subr.mxu0 0.0
    %130 = vmatpush1.msra.mxu0 0.0
    %131 = vmatprep.subr.mxu0 0.0
    %132 = vmatpush1.msra.mxu0 0.0
    %133 = vmatprep.subr.mxu0 0.0
    %134 = vmatpush1.msra.mxu0 0.0
    %135 = vmatprep.subr.mxu0 0.0
    %136 = vmatpush1.msra.mxu0 0.0
    %137 = vmatprep.subr.mxu0 0.0
    %138 = vmatpush1.msra.mxu0 0.0
    %139 = vmatprep.subr.mxu0 0.0
    %140 = vmatpush1.msra.mxu0 0.0
    %141 = vmatprep.subr.mxu0 0.0
    %142 = vmatpush1.msra.mxu0 0.0
    %143 = vmatprep.subr.mxu0 0.0
    %144 = vmatpush1.msra.mxu0 0.0
    %145 = vmatprep.subr.mxu0 0.0
    %146 = vmatpush1.msra.mxu0 0.0
    %147 = vmatprep.subr.mxu0 0.0
    %148 = vmatpush1.msra.mxu0 0.0
    %149 = vmatprep.subr.mxu0 0.0
    %150 = vmatpush1.msra.mxu0 0.0
    %151 = vmatprep.subr.mxu0 0.0
    %152 = vmatpush1.msra.mxu0 0.0
    %153 = vmatprep.mubr.f32.mxu0 0.0
    %154 = vmatmul.mubr.f32.gmra.mrb[0].mxu0 %v22
    %v155 = vpop.f32.mrb[0].mxu0
    %v156 = vadd.f32 0.0, %v155
    %v157 = vpop.f32.mrb[0].mxu0
    %v158 = vadd.f32 0.0, %v157
    %159 = vdwg.mxu0
    %160 = vmatprep.subr.mxu0 %v27
    %161 = vmatpush1.msra.mxu0 %v26
    %162 = vmatprep.subr.mxu0 %v31
    %163 = vmatpush1.msra.mxu0 %v30
    %164 = vmatprep.subr.mxu0 %v35
    %165 = vmatpush1.msra.mxu0 %v34
    %166 = vmatprep.subr.mxu0 %v39
    %167 = vmatpush1.msra.mxu0 %v38
    %168 = vmatprep.subr.mxu0 %v43
    %169 = vmatpush1.msra.mxu0 %v42
    %170 = vmatprep.subr.mxu0 %v47
    %171 = vmatpush1.msra.mxu0 %v46
    %172 = vmatprep.subr.mxu0 %v51
    %173 = vmatpush1.msra.mxu0 %v50
    %174 = vmatprep.subr.mxu0 %v55
    %175 = vmatpush1.msra.mxu0 %v54
    %176 = vmatprep.subr.mxu0 %v59
    %177 = vmatpush1.msra.mxu0 %v58
    %178 = vmatprep.subr.mxu0 %v63
    %179 = vmatpush1.msra.mxu0 %v62
    %180 = vmatprep.subr.mxu0 %v67
    %181 = vmatpush1.msra.mxu0 %v66
    %182 = vmatprep.subr.mxu0 %v71
    %183 = vmatpush1.msra.mxu0 %v70
    %184 = vmatprep.subr.mxu0 %v75
    %185 = vmatpush1.msra.mxu0 %v74
    %186 = vmatprep.subr.mxu0 %v79
    %187 = vmatpush1.msra.mxu0 %v78
    %188 = vmatprep.subr.mxu0 %v83
    %189 = vmatpush1.msra.mxu0 %v82
    %190 = vmatprep.subr.mxu0 %v87
    %191 = vmatpush1.msra.mxu0 %v86
    %192 = vmatprep.subr.mxu0 0.0
    %193 = vmatpush1.msra.mxu0 0.0
    %194 = vmatprep.subr.mxu0 0.0
    %195 = vmatpush1.msra.mxu0 0.0
    %196 = vmatprep.subr.mxu0 0.0
    %197 = vmatpush1.msra.mxu0 0.0
    %198 = vmatprep.subr.mxu0 0.0
    %199 = vmatpush1.msra.mxu0 0.0
    %200 = vmatprep.subr.mxu0 0.0
    %201 = vmatpush1.msra.mxu0 0.0
    %202 = vmatprep.subr.mxu0 0.0
    %203 = vmatpush1.msra.mxu0 0.0
    %204 = vmatprep.subr.mxu0 0.0
    %205 = vmatpush1.msra.mxu0 0.0
    %206 = vmatprep.subr.mxu0 0.0
    %207 = vmatpush1.msra.mxu0 0.0
    %208 = vmatprep.subr.mxu0 0.0
    %209 = vmatpush1.msra.mxu0 0.0
    %210 = vmatprep.subr.mxu0 0.0
    %211 = vmatpush1.msra.mxu0 0.0
    %212 = vmatprep.subr.mxu0 0.0
    %213 = vmatpush1.msra.mxu0 0.0
    %214 = vmatprep.subr.mxu0 0.0
    %215 = vmatpush1.msra.mxu0 0.0
    %216 = vmatprep.subr.mxu0 0.0
    %217 = vmatpush1.msra.mxu0 0.0
    %218 = vmatprep.subr.mxu0 0.0
    %219 = vmatpush1.msra.mxu0 0.0
    %220 = vmatprep.subr.mxu0 0.0
    %221 = vmatpush1.msra.mxu0 0.0
    %222 = vmatprep.subr.mxu0 0.0
    %223 = vmatpush1.msra.mxu0 0.0
    %224 = vmatprep.mubr.f32.mxu0 0.0
    %225 = vmatmul.mubr.f32.gmra.mrb[0].mxu0 %v22
    %v226 = vpop.f32.mrb[0].mxu0
    %v227 = vadd.f32 0.0, %v226
    %v228 = vpop.f32.mrb[0].mxu0
    %v229 = vadd.f32 0.0, %v228
    %230 = vdwg.mxu0
    %v235 = vcombine.low %v156, %v158
    %v236 = vcombine.low %v227, %v229
    %v238 = vunpack.c.l.s4 1983009808
    %v239 = vunpack.c.0.s8 %v238
    %v240 = vlaneseq
    %v241 = vshrl.u32 %v240, 7
    %v242 = vsub.s32 %v239, %v241
    %v243 = vrot.slane %v235, %v242
    %v245 = vunpack.c.l.s4 1983009808
    %v246 = vunpack.c.0.s8 %v245
    %v247 = vlaneseq
    %v248 = vshrl.u32 %v247, 7
    %v249 = vsub.s32 %v246, %v248
    %v250 = vrot.slane %v236, %v249
    %v251 = vcombine.low %v243, %v250
    %v253 = vadd.f32 %v88, %v251
    %v254 = vxor.u32 %v253, 2147483648
    %v255 = vmul.f32 %v254, 1.442695
    %v256 = vpow.pop %v255
    %v257 = vadd.f32 %v256, 1.0
    %v258 = vrcp.pop %v257
    %v259 = vmul.f32 1.0, %v258
    %v261 = vrot.slane %v253, 2
    %v263 = vxor.u32 %v261, 2147483648
    %v264 = vmul.f32 %v263, 1.442695
    %v265 = vpow.pop %v264
    %v266 = vadd.f32 %v265, 1.0
    %v267 = vrcp.pop %v266
    %v268 = vmul.f32 1.0, %v267
    %v269 = vrot.slane %v253, 4
    %v271 = vtanh.pop %v269
    %v272 = vrot.slane %v253, 6
    %v274 = vxor.u32 %v272, 2147483648
    %v275 = vmul.f32 %v274, 1.442695
    %v276 = vpow.pop %v275
    %v277 = vadd.f32 %v276, 1.0
    %v278 = vrcp.pop %v277
    %v279 = vmul.f32 1.0, %v278
    %v280 = vmul.f32 %v268, %v23
    %v281 = vmul.f32 %v259, %v271
    %v282 = vadd.f32 %v280, %v281
    %v283 = vtanh.pop %v282
    %v284 = vmul.f32 %v279, %v283
    %285 = vst [vmem:[%s4] sm:$0x3] %v284
    %s286 = scalar_lea.vmem %s0, 8
    %v287 = vld [vmem:[%s286] sm:$0xff]
    %288 = vmatprep.subr.mxu0 %v25
    %289 = vmatpush1.msra.mxu0 %v24
    %290 = vmatprep.subr.mxu0 %v29
    %291 = vmatpush1.msra.mxu0 %v28
    %292 = vmatprep.subr.mxu0 %v33
    %293 = vmatpush1.msra.mxu0 %v32
    %294 = vmatprep.subr.mxu0 %v37
    %295 = vmatpush1.msra.mxu0 %v36
    %296 = vmatprep.subr.mxu0 %v41
    %297 = vmatpush1.msra.mxu0 %v40
    %298 = vmatprep.subr.mxu0 %v45
    %299 = vmatpush1.msra.mxu0 %v44
    %300 = vmatprep.subr.mxu0 %v49
    %301 = vmatpush1.msra.mxu0 %v48
    %302 = vmatprep.subr.mxu0 %v53
    %303 = vmatpush1.msra.mxu0 %v52
    %304 = vmatprep.subr.mxu0 %v57
    %305 = vmatpush1.msra.mxu0 %v56
    %306 = vmatprep.subr.mxu0 %v61
    %307 = vmatpush1.msra.mxu0 %v60
    %308 = vmatprep.subr.mxu0 %v65
    %309 = vmatpush1.msra.mxu0 %v64
    %310 = vmatprep.subr.mxu0 %v69
    %311 = vmatpush1.msra.mxu0 %v68
    %312 = vmatprep.subr.mxu0 %v73
    %313 = vmatpush1.msra.mxu0 %v72
    %314 = vmatprep.subr.mxu0 %v77
    %315 = vmatpush1.msra.mxu0 %v76
    %316 = vmatprep.subr.mxu0 %v81
    %317 = vmatpush1.msra.mxu0 %v80
    %318 = vmatprep.subr.mxu0 %v85
    %319 = vmatpush1.msra.mxu0 %v84
    %320 = vmatprep.subr.mxu0 0.0
    %321 = vmatpush1.msra.mxu0 0.0
    %322 = vmatprep.subr.mxu0 0.0
    %323 = vmatpush1.msra.mxu0 0.0
    %324 = vmatprep.subr.mxu0 0.0
    %325 = vmatpush1.msra.mxu0 0.0
    %326 = vmatprep.subr.mxu0 0.0
    %327 = vmatpush1.msra.mxu0 0.0
    %328 = vmatprep.subr.mxu0 0.0
    %329 = vmatpush1.msra.mxu0 0.0
    %330 = vmatprep.subr.mxu0 0.0
    %331 = vmatpush1.msra.mxu0 0.0
    %332 = vmatprep.subr.mxu0 0.0
    %333 = vmatpush1.msra.mxu0 0.0
    %334 = vmatprep.subr.mxu0 0.0
    %335 = vmatpush1.msra.mxu0 0.0
    %336 = vmatprep.subr.mxu0 0.0
    %337 = vmatpush1.msra.mxu0 0.0
    %338 = vmatprep.subr.mxu0 0.0
    %339 = vmatpush1.msra.mxu0 0.0
    %340 = vmatprep.subr.mxu0 0.0
    %341 = vmatpush1.msra.mxu0 0.0
    %342 = vmatprep.subr.mxu0 0.0
    %343 = vmatpush1.msra.mxu0 0.0
    %344 = vmatprep.subr.mxu0 0.0
    %345 = vmatpush1.msra.mxu0 0.0
    %346 = vmatprep.subr.mxu0 0.0
    %347 = vmatpush1.msra.mxu0 0.0
    %348 = vmatprep.subr.mxu0 0.0
    %349 = vmatpush1.msra.mxu0 0.0
    %350 = vmatprep.subr.mxu0 0.0
    %351 = vmatpush1.msra.mxu0 0.0
    %352 = vmatprep.mubr.f32.mxu0 0.0
    %353 = vmatmul.mubr.f32.gmra.mrb[0].mxu0 %v284
    %v354 = vpop.f32.mrb[0].mxu0
    %v355 = vadd.f32 0.0, %v354
    %v356 = vpop.f32.mrb[0].mxu0
    %v357 = vadd.f32 0.0, %v356
    %358 = vdwg.mxu0
    %359 = vmatprep.subr.mxu0 %v27
    %360 = vmatpush1.msra.mxu0 %v26
    %361 = vmatprep.subr.mxu0 %v31
    %362 = vmatpush1.msra.mxu0 %v30
    %363 = vmatprep.subr.mxu0 %v35
    %364 = vmatpush1.msra.mxu0 %v34
    %365 = vmatprep.subr.mxu0 %v39
    %366 = vmatpush1.msra.mxu0 %v38
    %367 = vmatprep.subr.mxu0 %v43
    %368 = vmatpush1.msra.mxu0 %v42
    %369 = vmatprep.subr.mxu0 %v47
    %370 = vmatpush1.msra.mxu0 %v46
    %371 = vmatprep.subr.mxu0 %v51
    %372 = vmatpush1.msra.mxu0 %v50
    %373 = vmatprep.subr.mxu0 %v55
    %374 = vmatpush1.msra.mxu0 %v54
    %375 = vmatprep.subr.mxu0 %v59
    %376 = vmatpush1.msra.mxu0 %v58
    %377 = vmatprep.subr.mxu0 %v63
    %378 = vmatpush1.msra.mxu0 %v62
    %379 = vmatprep.subr.mxu0 %v67
    %380 = vmatpush1.msra.mxu0 %v66
    %381 = vmatprep.subr.mxu0 %v71
    %382 = vmatpush1.msra.mxu0 %v70
    %383 = vmatprep.subr.mxu0 %v75
    %384 = vmatpush1.msra.mxu0 %v74
    %385 = vmatprep.subr.mxu0 %v79
    %386 = vmatpush1.msra.mxu0 %v78
    %387 = vmatprep.subr.mxu0 %v83
    %388 = vmatpush1.msra.mxu0 %v82
    %389 = vmatprep.subr.mxu0 %v87
    %390 = vmatpush1.msra.mxu0 %v86
    %391 = vmatprep.subr.mxu0 0.0
    %392 = vmatpush1.msra.mxu0 0.0
    %393 = vmatprep.subr.mxu0 0.0
    %394 = vmatpush1.msra.mxu0 0.0
    %395 = vmatprep.subr.mxu0 0.0
    %396 = vmatpush1.msra.mxu0 0.0
    %397 = vmatprep.subr.mxu0 0.0
    %398 = vmatpush1.msra.mxu0 0.0
    %399 = vmatprep.subr.mxu0 0.0
    %400 = vmatpush1.msra.mxu0 0.0
    %401 = vmatprep.subr.mxu0 0.0
    %402 = vmatpush1.msra.mxu0 0.0
    %403 = vmatprep.subr.mxu0 0.0
    %404 = vmatpush1.msra.mxu0 0.0
    %405 = vmatprep.subr.mxu0 0.0
    %406 = vmatpush1.msra.mxu0 0.0
    %407 = vmatprep.subr.mxu0 0.0
    %408 = vmatpush1.msra.mxu0 0.0
    %409 = vmatprep.subr.mxu0 0.0
    %410 = vmatpush1.msra.mxu0 0.0
    %411 = vmatprep.subr.mxu0 0.0
    %412 = vmatpush1.msra.mxu0 0.0
    %413 = vmatprep.subr.mxu0 0.0
    %414 = vmatpush1.msra.mxu0 0.0
    %415 = vmatprep.subr.mxu0 0.0
    %416 = vmatpush1.msra.mxu0 0.0
    %417 = vmatprep.subr.mxu0 0.0
    %418 = vmatpush1.msra.mxu0 0.0
    %419 = vmatprep.subr.mxu0 0.0
    %420 = vmatpush1.msra.mxu0 0.0
    %421 = vmatprep.subr.mxu0 0.0
    %422 = vmatpush1.msra.mxu0 0.0
    %423 = vmatprep.mubr.f32.mxu0 0.0
    %424 = vmatmul.mubr.f32.gmra.mrb[0].mxu0 %v284
    %v425 = vpop.f32.mrb[0].mxu0
    %v426 = vadd.f32 0.0, %v425
    %v427 = vpop.f32.mrb[0].mxu0
    %v428 = vadd.f32 0.0, %v427
    %429 = vdwg.mxu0
    %v434 = vcombine.low %v355, %v357
    %v435 = vcombine.low %v426, %v428
    %v437 = vunpack.c.l.s4 1983009808
    %v438 = vunpack.c.0.s8 %v437
    %v439 = vlaneseq
    %v440 = vshrl.u32 %v439, 7
    %v441 = vsub.s32 %v438, %v440
    %v442 = vrot.slane %v434, %v441
    %v444 = vunpack.c.l.s4 1983009808
    %v445 = vunpack.c.0.s8 %v444
    %v446 = vlaneseq
    %v447 = vshrl.u32 %v446, 7
    %v448 = vsub.s32 %v445, %v447
    %v449 = vrot.slane %v435, %v448
    %v450 = vcombine.low %v442, %v449
    %v452 = vadd.f32 %v287, %v450
    %v453 = vxor.u32 %v452, 2147483648
    %v454 = vmul.f32 %v453, 1.442695
    %v455 = vpow.pop %v454
    %v456 = vadd.f32 %v455, 1.0
    %v457 = vrcp.pop %v456
    %v458 = vmul.f32 1.0, %v457
    %v460 = vrot.slane %v452, 2
    %v462 = vxor.u32 %v460, 2147483648
    %v463 = vmul.f32 %v462, 1.442695
    %v464 = vpow.pop %v463
    %v465 = vadd.f32 %v464, 1.0
    %v466 = vrcp.pop %v465
    %v467 = vmul.f32 1.0, %v466
    %v468 = vrot.slane %v452, 4
    %v470 = vtanh.pop %v468
    %v471 = vrot.slane %v452, 6
    %v473 = vxor.u32 %v471, 2147483648
    %v474 = vmul.f32 %v473, 1.442695
    %v475 = vpow.pop %v474
    %v476 = vadd.f32 %v475, 1.0
    %v477 = vrcp.pop %v476
    %v478 = vmul.f32 1.0, %v477
    %v479 = vmul.f32 %v467, %v282
    %v480 = vmul.f32 %v458, %v470
    %v481 = vadd.f32 %v479, %v480
    %v482 = vtanh.pop %v481
    %v483 = vmul.f32 %v478, %v482
    %s484 = scalar_lea.vmem %s4, 2
    %485 = vst [vmem:[%s484] sm:$0x3] %v483
    %s486 = scalar_lea.vmem %s0, 16
    %v487 = vld [vmem:[%s486] sm:$0xff]
    %488 = vmatprep.subr.mxu0 %v25
    %489 = vmatpush1.msra.mxu0 %v24
    %490 = vmatprep.subr.mxu0 %v29
    %491 = vmatpush1.msra.mxu0 %v28
    %492 = vmatprep.subr.mxu0 %v33
    %493 = vmatpush1.msra.mxu0 %v32
    %494 = vmatprep.subr.mxu0 %v37
    %495 = vmatpush1.msra.mxu0 %v36
    %496 = vmatprep.subr.mxu0 %v41
    %497 = vmatpush1.msra.mxu0 %v40
    %498 = vmatprep.subr.mxu0 %v45
    %499 = vmatpush1.msra.mxu0 %v44
    %500 = vmatprep.subr.mxu0 %v49
    %501 = vmatpush1.msra.mxu0 %v48
    %502 = vmatprep.subr.mxu0 %v53
    %503 = vmatpush1.msra.mxu0 %v52
    %504 = vmatprep.subr.mxu0 %v57
    %505 = vmatpush1.msra.mxu0 %v56
    %506 = vmatprep.subr.mxu0 %v61
    %507 = vmatpush1.msra.mxu0 %v60
    %508 = vmatprep.subr.mxu0 %v65
    %509 = vmatpush1.msra.mxu0 %v64
    %510 = vmatprep.subr.mxu0 %v69
    %511 = vmatpush1.msra.mxu0 %v68
    %512 = vmatprep.subr.mxu0 %v73
    %513 = vmatpush1.msra.mxu0 %v72
    %514 = vmatprep.subr.mxu0 %v77
    %515 = vmatpush1.msra.mxu0 %v76
    %516 = vmatprep.subr.mxu0 %v81
    %517 = vmatpush1.msra.mxu0 %v80
    %518 = vmatprep.subr.mxu0 %v85
    %519 = vmatpush1.msra.mxu0 %v84
    %520 = vmatprep.subr.mxu0 0.0
    %521 = vmatpush1.msra.mxu0 0.0
    %522 = vmatprep.subr.mxu0 0.0
    %523 = vmatpush1.msra.mxu0 0.0
    %524 = vmatprep.subr.mxu0 0.0
    %525 = vmatpush1.msra.mxu0 0.0
    %526 = vmatprep.subr.mxu0 0.0
    %527 = vmatpush1.msra.mxu0 0.0
    %528 = vmatprep.subr.mxu0 0.0
    %529 = vmatpush1.msra.mxu0 0.0
    %530 = vmatprep.subr.mxu0 0.0
    %531 = vmatpush1.msra.mxu0 0.0
    %532 = vmatprep.subr.mxu0 0.0
    %533 = vmatpush1.msra.mxu0 0.0
    %534 = vmatprep.subr.mxu0 0.0
    %535 = vmatpush1.msra.mxu0 0.0
    %536 = vmatprep.subr.mxu0 0.0
    %537 = vmatpush1.msra.mxu0 0.0
    %538 = vmatprep.subr.mxu0 0.0
    %539 = vmatpush1.msra.mxu0 0.0
    %540 = vmatprep.subr.mxu0 0.0
    %541 = vmatpush1.msra.mxu0 0.0
    %542 = vmatprep.subr.mxu0 0.0
    %543 = vmatpush1.msra.mxu0 0.0
    %544 = vmatprep.subr.mxu0 0.0
    %545 = vmatpush1.msra.mxu0 0.0
    %546 = vmatprep.subr.mxu0 0.0
    %547 = vmatpush1.msra.mxu0 0.0
    %548 = vmatprep.subr.mxu0 0.0
    %549 = vmatpush1.msra.mxu0 0.0
    %550 = vmatprep.subr.mxu0 0.0
    %551 = vmatpush1.msra.mxu0 0.0
    %552 = vmatprep.mubr.f32.mxu0 0.0
    %553 = vmatmul.mubr.f32.gmra.mrb[0].mxu0 %v483
    %v554 = vpop.f32.mrb[0].mxu0
    %v555 = vadd.f32 0.0, %v554
    %v556 = vpop.f32.mrb[0].mxu0
    %v557 = vadd.f32 0.0, %v556
    %558 = vdwg.mxu0
    %559 = vmatprep.subr.mxu0 %v27
    %560 = vmatpush1.msra.mxu0 %v26
    %561 = vmatprep.subr.mxu0 %v31
    %562 = vmatpush1.msra.mxu0 %v30
    %563 = vmatprep.subr.mxu0 %v35
    %564 = vmatpush1.msra.mxu0 %v34
    %565 = vmatprep.subr.mxu0 %v39
    %566 = vmatpush1.msra.mxu0 %v38
    %567 = vmatprep.subr.mxu0 %v43
    %568 = vmatpush1.msra.mxu0 %v42
    %569 = vmatprep.subr.mxu0 %v47
    %570 = vmatpush1.msra.mxu0 %v46
    %571 = vmatprep.subr.mxu0 %v51
    %572 = vmatpush1.msra.mxu0 %v50
    %573 = vmatprep.subr.mxu0 %v55
    %574 = vmatpush1.msra.mxu0 %v54
    %575 = vmatprep.subr.mxu0 %v59
    %576 = vmatpush1.msra.mxu0 %v58
    %577 = vmatprep.subr.mxu0 %v63
    %578 = vmatpush1.msra.mxu0 %v62
    %579 = vmatprep.subr.mxu0 %v67
    %580 = vmatpush1.msra.mxu0 %v66
    %581 = vmatprep.subr.mxu0 %v71
    %582 = vmatpush1.msra.mxu0 %v70
    %583 = vmatprep.subr.mxu0 %v75
    %584 = vmatpush1.msra.mxu0 %v74
    %585 = vmatprep.subr.mxu0 %v79
    %586 = vmatpush1.msra.mxu0 %v78
    %587 = vmatprep.subr.mxu0 %v83
    %588 = vmatpush1.msra.mxu0 %v82
    %589 = vmatprep.subr.mxu0 %v87
    %590 = vmatpush1.msra.mxu0 %v86
    %591 = vmatprep.subr.mxu0 0.0
    %592 = vmatpush1.msra.mxu0 0.0
    %593 = vmatprep.subr.mxu0 0.0
    %594 = vmatpush1.msra.mxu0 0.0
    %595 = vmatprep.subr.mxu0 0.0
    %596 = vmatpush1.msra.mxu0 0.0
    %597 = vmatprep.subr.mxu0 0.0
    %598 = vmatpush1.msra.mxu0 0.0
    %599 = vmatprep.subr.mxu0 0.0
    %600 = vmatpush1.msra.mxu0 0.0
    %601 = vmatprep.subr.mxu0 0.0
    %602 = vmatpush1.msra.mxu0 0.0
    %603 = vmatprep.subr.mxu0 0.0
    %604 = vmatpush1.msra.mxu0 0.0
    %605 = vmatprep.subr.mxu0 0.0
    %606 = vmatpush1.msra.mxu0 0.0
    %607 = vmatprep.subr.mxu0 0.0
    %608 = vmatpush1.msra.mxu0 0.0
    %609 = vmatprep.subr.mxu0 0.0
    %610 = vmatpush1.msra.mxu0 0.0
    %611 = vmatprep.subr.mxu0 0.0
    %612 = vmatpush1.msra.mxu0 0.0
    %613 = vmatprep.subr.mxu0 0.0
    %614 = vmatpush1.msra.mxu0 0.0
    %615 = vmatprep.subr.mxu0 0.0
    %616 = vmatpush1.msra.mxu0 0.0
    %617 = vmatprep.subr.mxu0 0.0
    %618 = vmatpush1.msra.mxu0 0.0
    %619 = vmatprep.subr.mxu0 0.0
    %620 = vmatpush1.msra.mxu0 0.0
    %621 = vmatprep.subr.mxu0 0.0
    %622 = vmatpush1.msra.mxu0 0.0
    %623 = vmatprep.mubr.f32.mxu0 0.0
    %624 = vmatmul.mubr.f32.gmra.mrb[0].mxu0 %v483
    %v625 = vpop.f32.mrb[0].mxu0
    %v626 = vadd.f32 0.0, %v625
    %v627 = vpop.f32.mrb[0].mxu0
    %v628 = vadd.f32 0.0, %v627
    %629 = vdwg.mxu0
    %v634 = vcombine.low %v555, %v557
    %v635 = vcombine.low %v626, %v628
    %v637 = vunpack.c.l.s4 1983009808
    %v638 = vunpack.c.0.s8 %v637
    %v639 = vlaneseq
    %v640 = vshrl.u32 %v639, 7
    %v641 = vsub.s32 %v638, %v640
    %v642 = vrot.slane %v634, %v641
    %v644 = vunpack.c.l.s4 1983009808
    %v645 = vunpack.c.0.s8 %v644
    %v646 = vlaneseq
    %v647 = vshrl.u32 %v646, 7
    %v648 = vsub.s32 %v645, %v647
    %v649 = vrot.slane %v635, %v648
    %v650 = vcombine.low %v642, %v649
    %v652 = vadd.f32 %v487, %v650
    %v653 = vxor.u32 %v652, 2147483648
    %v654 = vmul.f32 %v653, 1.442695
    %v655 = vpow.pop %v654
    %v656 = vadd.f32 %v655, 1.0
    %v657 = vrcp.pop %v656
    %v658 = vmul.f32 1.0, %v657
    %v660 = vrot.slane %v652, 2
    %v662 = vxor.u32 %v660, 2147483648
    %v663 = vmul.f32 %v662, 1.442695
    %v664 = vpow.pop %v663
    %v665 = vadd.f32 %v664, 1.0
    %v666 = vrcp.pop %v665
    %v667 = vmul.f32 1.0, %v666
    %v668 = vrot.slane %v652, 4
    %v670 = vtanh.pop %v668
    %v671 = vrot.slane %v652, 6
    %v673 = vxor.u32 %v671, 2147483648
    %v674 = vmul.f32 %v673, 1.442695
    %v675 = vpow.pop %v674
    %v676 = vadd.f32 %v675, 1.0
    %v677 = vrcp.pop %v676
    %v678 = vmul.f32 1.0, %v677
    %v679 = vmul.f32 %v667, %v481
    %v680 = vmul.f32 %v658, %v670
    %v681 = vadd.f32 %v679, %v680
    %v682 = vtanh.pop %v681
    %v683 = vmul.f32 %v678, %v682
    %s684 = scalar_lea.vmem %s4, 4
    %685 = vst [vmem:[%s684] sm:$0x3] %v683
    %s686 = scalar_lea.vmem %s0, 24
    %v687 = vld [vmem:[%s686] sm:$0xff]
    %688 = vmatprep.subr.mxu0 %v25
    %689 = vmatpush1.msra.mxu0 %v24
    %690 = vmatprep.subr.mxu0 %v29
    %691 = vmatpush1.msra.mxu0 %v28
    %692 = vmatprep.subr.mxu0 %v33
    %693 = vmatpush1.msra.mxu0 %v32
    %694 = vmatprep.subr.mxu0 %v37
    %695 = vmatpush1.msra.mxu0 %v36
    %696 = vmatprep.subr.mxu0 %v41
    %697 = vmatpush1.msra.mxu0 %v40
    %698 = vmatprep.subr.mxu0 %v45
    %699 = vmatpush1.msra.mxu0 %v44
    %700 = vmatprep.subr.mxu0 %v49
    %701 = vmatpush1.msra.mxu0 %v48
    %702 = vmatprep.subr.mxu0 %v53
    %703 = vmatpush1.msra.mxu0 %v52
    %704 = vmatprep.subr.mxu0 %v57
    %705 = vmatpush1.msra.mxu0 %v56
    %706 = vmatprep.subr.mxu0 %v61
    %707 = vmatpush1.msra.mxu0 %v60
    %708 = vmatprep.subr.mxu0 %v65
    %709 = vmatpush1.msra.mxu0 %v64
    %710 = vmatprep.subr.mxu0 %v69
    %711 = vmatpush1.msra.mxu0 %v68
    %712 = vmatprep.subr.mxu0 %v73
    %713 = vmatpush1.msra.mxu0 %v72
    %714 = vmatprep.subr.mxu0 %v77
    %715 = vmatpush1.msra.mxu0 %v76
    %716 = vmatprep.subr.mxu0 %v81
    %717 = vmatpush1.msra.mxu0 %v80
    %718 = vmatprep.subr.mxu0 %v85
    %719 = vmatpush1.msra.mxu0 %v84
    %720 = vmatprep.subr.mxu0 0.0
    %721 = vmatpush1.msra.mxu0 0.0
    %722 = vmatprep.subr.mxu0 0.0
    %723 = vmatpush1.msra.mxu0 0.0
    %724 = vmatprep.subr.mxu0 0.0
    %725 = vmatpush1.msra.mxu0 0.0
    %726 = vmatprep.subr.mxu0 0.0
    %727 = vmatpush1.msra.mxu0 0.0
    %728 = vmatprep.subr.mxu0 0.0
    %729 = vmatpush1.msra.mxu0 0.0
    %730 = vmatprep.subr.mxu0 0.0
    %731 = vmatpush1.msra.mxu0 0.0
    %732 = vmatprep.subr.mxu0 0.0
    %733 = vmatpush1.msra.mxu0 0.0
    %734 = vmatprep.subr.mxu0 0.0
    %735 = vmatpush1.msra.mxu0 0.0
    %736 = vmatprep.subr.mxu0 0.0
    %737 = vmatpush1.msra.mxu0 0.0
    %738 = vmatprep.subr.mxu0 0.0
    %739 = vmatpush1.msra.mxu0 0.0
    %740 = vmatprep.subr.mxu0 0.0
    %741 = vmatpush1.msra.mxu0 0.0
    %742 = vmatprep.subr.mxu0 0.0
    %743 = vmatpush1.msra.mxu0 0.0
    %744 = vmatprep.subr.mxu0 0.0
    %745 = vmatpush1.msra.mxu0 0.0
    %746 = vmatprep.subr.mxu0 0.0
    %747 = vmatpush1.msra.mxu0 0.0
    %748 = vmatprep.subr.mxu0 0.0
    %749 = vmatpush1.msra.mxu0 0.0
    %750 = vmatprep.subr.mxu0 0.0
    %751 = vmatpush1.msra.mxu0 0.0
    %752 = vmatprep.mubr.f32.mxu0 0.0
    %753 = vmatmul.mubr.f32.gmra.mrb[0].mxu0 %v683
    %v754 = vpop.f32.mrb[0].mxu0
    %v755 = vadd.f32 0.0, %v754
    %v756 = vpop.f32.mrb[0].mxu0
    %v757 = vadd.f32 0.0, %v756
    %758 = vdwg.mxu0
    %759 = vmatprep.subr.mxu0 %v27
    %760 = vmatpush1.msra.mxu0 %v26
    %761 = vmatprep.subr.mxu0 %v31
    %762 = vmatpush1.msra.mxu0 %v30
    %763 = vmatprep.subr.mxu0 %v35
    %764 = vmatpush1.msra.mxu0 %v34
    %765 = vmatprep.subr.mxu0 %v39
    %766 = vmatpush1.msra.mxu0 %v38
    %767 = vmatprep.subr.mxu0 %v43
    %768 = vmatpush1.msra.mxu0 %v42
    %769 = vmatprep.subr.mxu0 %v47
    %770 = vmatpush1.msra.mxu0 %v46
    %771 = vmatprep.subr.mxu0 %v51
    %772 = vmatpush1.msra.mxu0 %v50
    %773 = vmatprep.subr.mxu0 %v55
    %774 = vmatpush1.msra.mxu0 %v54
    %775 = vmatprep.subr.mxu0 %v59
    %776 = vmatpush1.msra.mxu0 %v58
    %777 = vmatprep.subr.mxu0 %v63
    %778 = vmatpush1.msra.mxu0 %v62
    %779 = vmatprep.subr.mxu0 %v67
    %780 = vmatpush1.msra.mxu0 %v66
    %781 = vmatprep.subr.mxu0 %v71
    %782 = vmatpush1.msra.mxu0 %v70
    %783 = vmatprep.subr.mxu0 %v75
    %784 = vmatpush1.msra.mxu0 %v74
    %785 = vmatprep.subr.mxu0 %v79
    %786 = vmatpush1.msra.mxu0 %v78
    %787 = vmatprep.subr.mxu0 %v83
    %788 = vmatpush1.msra.mxu0 %v82
    %789 = vmatprep.subr.mxu0 %v87
    %790 = vmatpush1.msra.mxu0 %v86
    %791 = vmatprep.subr.mxu0 0.0
    %792 = vmatpush1.msra.mxu0 0.0
    %793 = vmatprep.subr.mxu0 0.0
    %794 = vmatpush1.msra.mxu0 0.0
    %795 = vmatprep.subr.mxu0 0.0
    %796 = vmatpush1.msra.mxu0 0.0
    %797 = vmatprep.subr.mxu0 0.0
    %798 = vmatpush1.msra.mxu0 0.0
    %799 = vmatprep.subr.mxu0 0.0
    %800 = vmatpush1.msra.mxu0 0.0
    %801 = vmatprep.subr.mxu0 0.0
    %802 = vmatpush1.msra.mxu0 0.0
    %803 = vmatprep.subr.mxu0 0.0
    %804 = vmatpush1.msra.mxu0 0.0
    %805 = vmatprep.subr.mxu0 0.0
    %806 = vmatpush1.msra.mxu0 0.0
    %807 = vmatprep.subr.mxu0 0.0
    %808 = vmatpush1.msra.mxu0 0.0
    %809 = vmatprep.subr.mxu0 0.0
    %810 = vmatpush1.msra.mxu0 0.0
    %811 = vmatprep.subr.mxu0 0.0
    %812 = vmatpush1.msra.mxu0 0.0
    %813 = vmatprep.subr.mxu0 0.0
    %814 = vmatpush1.msra.mxu0 0.0
    %815 = vmatprep.subr.mxu0 0.0
    %816 = vmatpush1.msra.mxu0 0.0
    %817 = vmatprep.subr.mxu0 0.0
    %818 = vmatpush1.msra.mxu0 0.0
    %819 = vmatprep.subr.mxu0 0.0
    %820 = vmatpush1.msra.mxu0 0.0
    %821 = vmatprep.subr.mxu0 0.0
    %822 = vmatpush1.msra.mxu0 0.0
    %823 = vmatprep.mubr.f32.mxu0 0.0
    %824 = vmatmul.mubr.f32.gmra.mrb[0].mxu0 %v683
    %v825 = vpop.f32.mrb[0].mxu0
    %v826 = vadd.f32 0.0, %v825
    %v827 = vpop.f32.mrb[0].mxu0
    %v828 = vadd.f32 0.0, %v827
    %829 = vdwg.mxu0
    %v834 = vcombine.low %v755, %v757
    %v835 = vcombine.low %v826, %v828
    %v837 = vunpack.c.l.s4 1983009808
    %v838 = vunpack.c.0.s8 %v837
    %v839 = vlaneseq
    %v840 = vshrl.u32 %v839, 7
    %v841 = vsub.s32 %v838, %v840
    %v842 = vrot.slane %v834, %v841
    %v844 = vunpack.c.l.s4 1983009808
    %v845 = vunpack.c.0.s8 %v844
    %v846 = vlaneseq
    %v847 = vshrl.u32 %v846, 7
    %v848 = vsub.s32 %v845, %v847
    %v849 = vrot.slane %v835, %v848
    %v850 = vcombine.low %v842, %v849
    %v852 = vadd.f32 %v687, %v850
    %v853 = vxor.u32 %v852, 2147483648
    %v854 = vmul.f32 %v853, 1.442695
    %v855 = vpow.pop %v854
    %v856 = vadd.f32 %v855, 1.0
    %v857 = vrcp.pop %v856
    %v858 = vmul.f32 1.0, %v857
    %v860 = vrot.slane %v852, 2
    %v862 = vxor.u32 %v860, 2147483648
    %v863 = vmul.f32 %v862, 1.442695
    %v864 = vpow.pop %v863
    %v865 = vadd.f32 %v864, 1.0
    %v866 = vrcp.pop %v865
    %v867 = vmul.f32 1.0, %v866
    %v868 = vrot.slane %v852, 4
    %v870 = vtanh.pop %v868
    %v871 = vrot.slane %v852, 6
    %v873 = vxor.u32 %v871, 2147483648
    %v874 = vmul.f32 %v873, 1.442695
    %v875 = vpow.pop %v874
    %v876 = vadd.f32 %v875, 1.0
    %v877 = vrcp.pop %v876
    %v878 = vmul.f32 1.0, %v877
    %v879 = vmul.f32 %v867, %v681
    %v880 = vmul.f32 %v858, %v870
    %v881 = vadd.f32 %v879, %v880
    %v882 = vtanh.pop %v881
    %v883 = vmul.f32 %v878, %v882
    %s884 = scalar_lea.vmem %s4, 6
    %885 = vst [vmem:[%s884] sm:$0x3] %v883
    %s886 = scalar_lea.vmem %s0, 32
    %v887 = vld [vmem:[%s886] sm:$0xff]
    %888 = vmatprep.subr.mxu0 %v25
    %889 = vmatpush1.msra.mxu0 %v24
    %890 = vmatprep.subr.mxu0 %v29
    %891 = vmatpush1.msra.mxu0 %v28
    %892 = vmatprep.subr.mxu0 %v33
    %893 = vmatpush1.msra.mxu0 %v32
    %894 = vmatprep.subr.mxu0 %v37
    %895 = vmatpush1.msra.mxu0 %v36
    %896 = vmatprep.subr.mxu0 %v41
    %897 = vmatpush1.msra.mxu0 %v40
    %898 = vmatprep.subr.mxu0 %v45
    %899 = vmatpush1.msra.mxu0 %v44
    %900 = vmatprep.subr.mxu0 %v49
    %901 = vmatpush1.msra.mxu0 %v48
    %902 = vmatprep.subr.mxu0 %v53
    %903 = vmatpush1.msra.mxu0 %v52
    %904 = vmatprep.subr.mxu0 %v57
    %905 = vmatpush1.msra.mxu0 %v56
    %906 = vmatprep.subr.mxu0 %v61
    %907 = vmatpush1.msra.mxu0 %v60
    %908 = vmatprep.subr.mxu0 %v65
    %909 = vmatpush1.msra.mxu0 %v64
    %910 = vmatprep.subr.mxu0 %v69
    %911 = vmatpush1.msra.mxu0 %v68
    %912 = vmatprep.subr.mxu0 %v73
    %913 = vmatpush1.msra.mxu0 %v72
    %914 = vmatprep.subr.mxu0 %v77
    %915 = vmatpush1.msra.mxu0 %v76
    %916 = vmatprep.subr.mxu0 %v81
    %917 = vmatpush1.msra.mxu0 %v80
    %918 = vmatprep.subr.mxu0 %v85
    %919 = vmatpush1.msra.mxu0 %v84
    %920 = vmatprep.subr.mxu0 0.0
    %921 = vmatpush1.msra.mxu0 0.0
    %922 = vmatprep.subr.mxu0 0.0
    %923 = vmatpush1.msra.mxu0 0.0
    %924 = vmatprep.subr.mxu0 0.0
    %925 = vmatpush1.msra.mxu0 0.0
    %926 = vmatprep.subr.mxu0 0.0
    %927 = vmatpush1.msra.mxu0 0.0
    %928 = vmatprep.subr.mxu0 0.0
    %929 = vmatpush1.msra.mxu0 0.0
    %930 = vmatprep.subr.mxu0 0.0
    %931 = vmatpush1.msra.mxu0 0.0
    %932 = vmatprep.subr.mxu0 0.0
    %933 = vmatpush1.msra.mxu0 0.0
    %934 = vmatprep.subr.mxu0 0.0
    %935 = vmatpush1.msra.mxu0 0.0
    %936 = vmatprep.subr.mxu0 0.0
    %937 = vmatpush1.msra.mxu0 0.0
    %938 = vmatprep.subr.mxu0 0.0
    %939 = vmatpush1.msra.mxu0 0.0
    %940 = vmatprep.subr.mxu0 0.0
    %941 = vmatpush1.msra.mxu0 0.0
    %942 = vmatprep.subr.mxu0 0.0
    %943 = vmatpush1.msra.mxu0 0.0
    %944 = vmatprep.subr.mxu0 0.0
    %945 = vmatpush1.msra.mxu0 0.0
    %946 = vmatprep.subr.mxu0 0.0
    %947 = vmatpush1.msra.mxu0 0.0
    %948 = vmatprep.subr.mxu0 0.0
    %949 = vmatpush1.msra.mxu0 0.0
    %950 = vmatprep.subr.mxu0 0.0
    %951 = vmatpush1.msra.mxu0 0.0
    %952 = vmatprep.mubr.f32.mxu0 0.0
    %953 = vmatmul.mubr.f32.gmra.mrb[0].mxu0 %v883
    %v954 = vpop.f32.mrb[0].mxu0
    %v955 = vadd.f32 0.0, %v954
    %v956 = vpop.f32.mrb[0].mxu0
    %v957 = vadd.f32 0.0, %v956
    %958 = vdwg.mxu0
    %959 = vmatprep.subr.mxu0 %v27
    %960 = vmatpush1.msra.mxu0 %v26
    %961 = vmatprep.subr.mxu0 %v31
    %962 = vmatpush1.msra.mxu0 %v30
    %963 = vmatprep.subr.mxu0 %v35
    %964 = vmatpush1.msra.mxu0 %v34
    %965 = vmatprep.subr.mxu0 %v39
    %966 = vmatpush1.msra.mxu0 %v38
    %967 = vmatprep.subr.mxu0 %v43
    %968 = vmatpush1.msra.mxu0 %v42
    %969 = vmatprep.subr.mxu0 %v47
    %970 = vmatpush1.msra.mxu0 %v46
    %971 = vmatprep.subr.mxu0 %v51
    %972 = vmatpush1.msra.mxu0 %v50
    %973 = vmatprep.subr.mxu0 %v55
    %974 = vmatpush1.msra.mxu0 %v54
    %975 = vmatprep.subr.mxu0 %v59
    %976 = vmatpush1.msra.mxu0 %v58
    %977 = vmatprep.subr.mxu0 %v63
    %978 = vmatpush1.msra.mxu0 %v62
    %979 = vmatprep.subr.mxu0 %v67
    %980 = vmatpush1.msra.mxu0 %v66
    %981 = vmatprep.subr.mxu0 %v71
    %982 = vmatpush1.msra.mxu0 %v70
    %983 = vmatprep.subr.mxu0 %v75
    %984 = vmatpush1.msra.mxu0 %v74
    %985 = vmatprep.subr.mxu0 %v79
    %986 = vmatpush1.msra.mxu0 %v78
    %987 = vmatprep.subr.mxu0 %v83
    %988 = vmatpush1.msra.mxu0 %v82
    %989 = vmatprep.subr.mxu0 %v87
    %990 = vmatpush1.msra.mxu0 %v86
    %991 = vmatprep.subr.mxu0 0.0
    %992 = vmatpush1.msra.mxu0 0.0
    %993 = vmatprep.subr.mxu0 0.0
    %994 = vmatpush1.msra.mxu0 0.0
    %995 = vmatprep.subr.mxu0 0.0
    %996 = vmatpush1.msra.mxu0 0.0
    %997 = vmatprep.subr.mxu0 0.0
    %998 = vmatpush1.msra.mxu0 0.0
    %999 = vmatprep.subr.mxu0 0.0
    %1000 = vmatpush1.msra.mxu0 0.0
    %1001 = vmatprep.subr.mxu0 0.0
    %1002 = vmatpush1.msra.mxu0 0.0
    %1003 = vmatprep.subr.mxu0 0.0
    %1004 = vmatpush1.msra.mxu0 0.0
    %1005 = vmatprep.subr.mxu0 0.0
    %1006 = vmatpush1.msra.mxu0 0.0
    %1007 = vmatprep.subr.mxu0 0.0
    %1008 = vmatpush1.msra.mxu0 0.0
    %1009 = vmatprep.subr.mxu0 0.0
    %1010 = vmatpush1.msra.mxu0 0.0
    %1011 = vmatprep.subr.mxu0 0.0
    %1012 = vmatpush1.msra.mxu0 0.0
    %1013 = vmatprep.subr.mxu0 0.0
    %1014 = vmatpush1.msra.mxu0 0.0
    %1015 = vmatprep.subr.mxu0 0.0
    %1016 = vmatpush1.msra.mxu0 0.0
    %1017 = vmatprep.subr.mxu0 0.0
    %1018 = vmatpush1.msra.mxu0 0.0
    %1019 = vmatprep.subr.mxu0 0.0
    %1020 = vmatpush1.msra.mxu0 0.0
    %1021 = vmatprep.subr.mxu0 0.0
    %1022 = vmatpush1.msra.mxu0 0.0
    %1023 = vmatprep.mubr.f32.mxu0 0.0
    %1024 = vmatmul.mubr.f32.gmra.mrb[0].mxu0 %v883
    %v1025 = vpop.f32.mrb[0].mxu0
    %v1026 = vadd.f32 0.0, %v1025
    %v1027 = vpop.f32.mrb[0].mxu0
    %v1028 = vadd.f32 0.0, %v1027
    %1029 = vdwg.mxu0
    %v1034 = vcombine.low %v955, %v957
    %v1035 = vcombine.low %v1026, %v1028
    %v1037 = vunpack.c.l.s4 1983009808
    %v1038 = vunpack.c.0.s8 %v1037
    %v1039 = vlaneseq
    %v1040 = vshrl.u32 %v1039, 7
    %v1041 = vsub.s32 %v1038, %v1040
    %v1042 = vrot.slane %v1034, %v1041
    %v1044 = vunpack.c.l.s4 1983009808
    %v1045 = vunpack.c.0.s8 %v1044
    %v1046 = vlaneseq
    %v1047 = vshrl.u32 %v1046, 7
    %v1048 = vsub.s32 %v1045, %v1047
    %v1049 = vrot.slane %v1035, %v1048
    %v1050 = vcombine.low %v1042, %v1049
    %v1052 = vadd.f32 %v887, %v1050
    %v1053 = vxor.u32 %v1052, 2147483648
    %v1054 = vmul.f32 %v1053, 1.442695
    %v1055 = vpow.pop %v1054
    %v1056 = vadd.f32 %v1055, 1.0
    %v1057 = vrcp.pop %v1056
    %v1058 = vmul.f32 1.0, %v1057
    %v1060 = vrot.slane %v1052, 2
    %v1062 = vxor.u32 %v1060, 2147483648
    %v1063 = vmul.f32 %v1062, 1.442695
    %v1064 = vpow.pop %v1063
    %v1065 = vadd.f32 %v1064, 1.0
    %v1066 = vrcp.pop %v1065
    %v1067 = vmul.f32 1.0, %v1066
    %v1068 = vrot.slane %v1052, 4
    %v1070 = vtanh.pop %v1068
    %v1071 = vrot.slane %v1052, 6
    %v1073 = vxor.u32 %v1071, 2147483648
    %v1074 = vmul.f32 %v1073, 1.442695
    %v1075 = vpow.pop %v1074
    %v1076 = vadd.f32 %v1075, 1.0
    %v1077 = vrcp.pop %v1076
    %v1078 = vmul.f32 1.0, %v1077
    %v1079 = vmul.f32 %v1067, %v881
    %v1080 = vmul.f32 %v1058, %v1070
    %v1081 = vadd.f32 %v1079, %v1080
    %v1082 = vtanh.pop %v1081
    %v1083 = vmul.f32 %v1078, %v1082
    %s1084 = scalar_lea.vmem %s4, 8
    %1085 = vst [vmem:[%s1084] sm:$0x3] %v1083
    %s1086 = scalar_lea.vmem %s0, 40
    %v1087 = vld [vmem:[%s1086] sm:$0xff]
    %1088 = vmatprep.subr.mxu0 %v25
    %1089 = vmatpush1.msra.mxu0 %v24
    %1090 = vmatprep.subr.mxu0 %v29
    %1091 = vmatpush1.msra.mxu0 %v28
    %1092 = vmatprep.subr.mxu0 %v33
    %1093 = vmatpush1.msra.mxu0 %v32
    %1094 = vmatprep.subr.mxu0 %v37
    %1095 = vmatpush1.msra.mxu0 %v36
    %1096 = vmatprep.subr.mxu0 %v41
    %1097 = vmatpush1.msra.mxu0 %v40
    %1098 = vmatprep.subr.mxu0 %v45
    %1099 = vmatpush1.msra.mxu0 %v44
    %1100 = vmatprep.subr.mxu0 %v49
    %1101 = vmatpush1.msra.mxu0 %v48
    %1102 = vmatprep.subr.mxu0 %v53
    %1103 = vmatpush1.msra.mxu0 %v52
    %1104 = vmatprep.subr.mxu0 %v57
    %1105 = vmatpush1.msra.mxu0 %v56
    %1106 = vmatprep.subr.mxu0 %v61
    %1107 = vmatpush1.msra.mxu0 %v60
    %1108 = vmatprep.subr.mxu0 %v65
    %1109 = vmatpush1.msra.mxu0 %v64
    %1110 = vmatprep.subr.mxu0 %v69
    %1111 = vmatpush1.msra.mxu0 %v68
    %1112 = vmatprep.subr.mxu0 %v73
    %1113 = vmatpush1.msra.mxu0 %v72
    %1114 = vmatprep.subr.mxu0 %v77
    %1115 = vmatpush1.msra.mxu0 %v76
    %1116 = vmatprep.subr.mxu0 %v81
    %1117 = vmatpush1.msra.mxu0 %v80
    %1118 = vmatprep.subr.mxu0 %v85
    %1119 = vmatpush1.msra.mxu0 %v84
    %1120 = vmatprep.subr.mxu0 0.0
    %1121 = vmatpush1.msra.mxu0 0.0
    %1122 = vmatprep.subr.mxu0 0.0
    %1123 = vmatpush1.msra.mxu0 0.0
    %1124 = vmatprep.subr.mxu0 0.0
    %1125 = vmatpush1.msra.mxu0 0.0
    %1126 = vmatprep.subr.mxu0 0.0
    %1127 = vmatpush1.msra.mxu0 0.0
    %1128 = vmatprep.subr.mxu0 0.0
    %1129 = vmatpush1.msra.mxu0 0.0
    %1130 = vmatprep.subr.mxu0 0.0
    %1131 = vmatpush1.msra.mxu0 0.0
    %1132 = vmatprep.subr.mxu0 0.0
    %1133 = vmatpush1.msra.mxu0 0.0
    %1134 = vmatprep.subr.mxu0 0.0
    %1135 = vmatpush1.msra.mxu0 0.0
    %1136 = vmatprep.subr.mxu0 0.0
    %1137 = vmatpush1.msra.mxu0 0.0
    %1138 = vmatprep.subr.mxu0 0.0
    %1139 = vmatpush1.msra.mxu0 0.0
    %1140 = vmatprep.subr.mxu0 0.0
    %1141 = vmatpush1.msra.mxu0 0.0
    %1142 = vmatprep.subr.mxu0 0.0
    %1143 = vmatpush1.msra.mxu0 0.0
    %1144 = vmatprep.subr.mxu0 0.0
    %1145 = vmatpush1.msra.mxu0 0.0
    %1146 = vmatprep.subr.mxu0 0.0
    %1147 = vmatpush1.msra.mxu0 0.0
    %1148 = vmatprep.subr.mxu0 0.0
    %1149 = vmatpush1.msra.mxu0 0.0
    %1150 = vmatprep.subr.mxu0 0.0
    %1151 = vmatpush1.msra.mxu0 0.0
    %1152 = vmatprep.mubr.f32.mxu0 0.0
    %1153 = vmatmul.mubr.f32.gmra.mrb[0].mxu0 %v1083
    %v1154 = vpop.f32.mrb[0].mxu0
    %v1155 = vadd.f32 0.0, %v1154
    %v1156 = vpop.f32.mrb[0].mxu0
    %v1157 = vadd.f32 0.0, %v1156
    %1158 = vdwg.mxu0
    %1159 = vmatprep.subr.mxu0 %v27
    %1160 = vmatpush1.msra.mxu0 %v26
    %1161 = vmatprep.subr.mxu0 %v31
    %1162 = vmatpush1.msra.mxu0 %v30
    %1163 = vmatprep.subr.mxu0 %v35
    %1164 = vmatpush1.msra.mxu0 %v34
    %1165 = vmatprep.subr.mxu0 %v39
    %1166 = vmatpush1.msra.mxu0 %v38
    %1167 = vmatprep.subr.mxu0 %v43
    %1168 = vmatpush1.msra.mxu0 %v42
    %1169 = vmatprep.subr.mxu0 %v47
    %1170 = vmatpush1.msra.mxu0 %v46
    %1171 = vmatprep.subr.mxu0 %v51
    %1172 = vmatpush1.msra.mxu0 %v50
    %1173 = vmatprep.subr.mxu0 %v55
    %1174 = vmatpush1.msra.mxu0 %v54
    %1175 = vmatprep.subr.mxu0 %v59
    %1176 = vmatpush1.msra.mxu0 %v58
    %1177 = vmatprep.subr.mxu0 %v63
    %1178 = vmatpush1.msra.mxu0 %v62
    %1179 = vmatprep.subr.mxu0 %v67
    %1180 = vmatpush1.msra.mxu0 %v66
    %1181 = vmatprep.subr.mxu0 %v71
    %1182 = vmatpush1.msra.mxu0 %v70
    %1183 = vmatprep.subr.mxu0 %v75
    %1184 = vmatpush1.msra.mxu0 %v74
    %1185 = vmatprep.subr.mxu0 %v79
    %1186 = vmatpush1.msra.mxu0 %v78
    %1187 = vmatprep.subr.mxu0 %v83
    %1188 = vmatpush1.msra.mxu0 %v82
    %1189 = vmatprep.subr.mxu0 %v87
    %1190 = vmatpush1.msra.mxu0 %v86
    %1191 = vmatprep.subr.mxu0 0.0
    %1192 = vmatpush1.msra.mxu0 0.0
    %1193 = vmatprep.subr.mxu0 0.0
    %1194 = vmatpush1.msra.mxu0 0.0
    %1195 = vmatprep.subr.mxu0 0.0
    %1196 = vmatpush1.msra.mxu0 0.0
    %1197 = vmatprep.subr.mxu0 0.0
    %1198 = vmatpush1.msra.mxu0 0.0
    %1199 = vmatprep.subr.mxu0 0.0
    %1200 = vmatpush1.msra.mxu0 0.0
    %1201 = vmatprep.subr.mxu0 0.0
    %1202 = vmatpush1.msra.mxu0 0.0
    %1203 = vmatprep.subr.mxu0 0.0
    %1204 = vmatpush1.msra.mxu0 0.0
    %1205 = vmatprep.subr.mxu0 0.0
    %1206 = vmatpush1.msra.mxu0 0.0
    %1207 = vmatprep.subr.mxu0 0.0
    %1208 = vmatpush1.msra.mxu0 0.0
    %1209 = vmatprep.subr.mxu0 0.0
    %1210 = vmatpush1.msra.mxu0 0.0
    %1211 = vmatprep.subr.mxu0 0.0
    %1212 = vmatpush1.msra.mxu0 0.0
    %1213 = vmatprep.subr.mxu0 0.0
    %1214 = vmatpush1.msra.mxu0 0.0
    %1215 = vmatprep.subr.mxu0 0.0
    %1216 = vmatpush1.msra.mxu0 0.0
    %1217 = vmatprep.subr.mxu0 0.0
    %1218 = vmatpush1.msra.mxu0 0.0
    %1219 = vmatprep.subr.mxu0 0.0
    %1220 = vmatpush1.msra.mxu0 0.0
    %1221 = vmatprep.subr.mxu0 0.0
    %1222 = vmatpush1.msra.mxu0 0.0
    %1223 = vmatprep.mubr.f32.mxu0 0.0
    %1224 = vmatmul.mubr.f32.gmra.mrb[0].mxu0 %v1083
    %v1225 = vpop.f32.mrb[0].mxu0
    %v1226 = vadd.f32 0.0, %v1225
    %v1227 = vpop.f32.mrb[0].mxu0
    %v1228 = vadd.f32 0.0, %v1227
    %1229 = vdwg.mxu0
    %v1234 = vcombine.low %v1155, %v1157
    %v1235 = vcombine.low %v1226, %v1228
    %v1237 = vunpack.c.l.s4 1983009808
    %v1238 = vunpack.c.0.s8 %v1237
    %v1239 = vlaneseq
    %v1240 = vshrl.u32 %v1239, 7
    %v1241 = vsub.s32 %v1238, %v1240
    %v1242 = vrot.slane %v1234, %v1241
    %v1244 = vunpack.c.l.s4 1983009808
    %v1245 = vunpack.c.0.s8 %v1244
    %v1246 = vlaneseq
    %v1247 = vshrl.u32 %v1246, 7
    %v1248 = vsub.s32 %v1245, %v1247
    %v1249 = vrot.slane %v1235, %v1248
    %v1250 = vcombine.low %v1242, %v1249
    %v1252 = vadd.f32 %v1087, %v1250
    %v1253 = vxor.u32 %v1252, 2147483648
    %v1254 = vmul.f32 %v1253, 1.442695
    %v1255 = vpow.pop %v1254
    %v1256 = vadd.f32 %v1255, 1.0
    %v1257 = vrcp.pop %v1256
    %v1258 = vmul.f32 1.0, %v1257
    %v1260 = vrot.slane %v1252, 2
    %v1262 = vxor.u32 %v1260, 2147483648
    %v1263 = vmul.f32 %v1262, 1.442695
    %v1264 = vpow.pop %v1263
    %v1265 = vadd.f32 %v1264, 1.0
    %v1266 = vrcp.pop %v1265
    %v1267 = vmul.f32 1.0, %v1266
    %v1268 = vrot.slane %v1252, 4
    %v1270 = vtanh.pop %v1268
    %v1271 = vrot.slane %v1252, 6
    %v1273 = vxor.u32 %v1271, 2147483648
    %v1274 = vmul.f32 %v1273, 1.442695
    %v1275 = vpow.pop %v1274
    %v1276 = vadd.f32 %v1275, 1.0
    %v1277 = vrcp.pop %v1276
    %v1278 = vmul.f32 1.0, %v1277
    %v1279 = vmul.f32 %v1267, %v1081
    %v1280 = vmul.f32 %v1258, %v1270
    %v1281 = vadd.f32 %v1279, %v1280
    %v1282 = vtanh.pop %v1281
    %v1283 = vmul.f32 %v1278, %v1282
    %s1284 = scalar_lea.vmem %s4, 10
    %1285 = vst [vmem:[%s1284] sm:$0x3] %v1283
    %s1286 = scalar_lea.vmem %s0, 48
    %v1287 = vld [vmem:[%s1286] sm:$0xff]
    %1288 = vmatprep.subr.mxu0 %v25
    %1289 = vmatpush1.msra.mxu0 %v24
    %1290 = vmatprep.subr.mxu0 %v29
    %1291 = vmatpush1.msra.mxu0 %v28
    %1292 = vmatprep.subr.mxu0 %v33
    %1293 = vmatpush1.msra.mxu0 %v32
    %1294 = vmatprep.subr.mxu0 %v37
    %1295 = vmatpush1.msra.mxu0 %v36
    %1296 = vmatprep.subr.mxu0 %v41
    %1297 = vmatpush1.msra.mxu0 %v40
    %1298 = vmatprep.subr.mxu0 %v45
    %1299 = vmatpush1.msra.mxu0 %v44
    %1300 = vmatprep.subr.mxu0 %v49
    %1301 = vmatpush1.msra.mxu0 %v48
    %1302 = vmatprep.subr.mxu0 %v53
    %1303 = vmatpush1.msra.mxu0 %v52
    %1304 = vmatprep.subr.mxu0 %v57
    %1305 = vmatpush1.msra.mxu0 %v56
    %1306 = vmatprep.subr.mxu0 %v61
    %1307 = vmatpush1.msra.mxu0 %v60
    %1308 = vmatprep.subr.mxu0 %v65
    %1309 = vmatpush1.msra.mxu0 %v64
    %1310 = vmatprep.subr.mxu0 %v69
    %1311 = vmatpush1.msra.mxu0 %v68
    %1312 = vmatprep.subr.mxu0 %v73
    %1313 = vmatpush1.msra.mxu0 %v72
    %1314 = vmatprep.subr.mxu0 %v77
    %1315 = vmatpush1.msra.mxu0 %v76
    %1316 = vmatprep.subr.mxu0 %v81
    %1317 = vmatpush1.msra.mxu0 %v80
    %1318 = vmatprep.subr.mxu0 %v85
    %1319 = vmatpush1.msra.mxu0 %v84
    %1320 = vmatprep.subr.mxu0 0.0
    %1321 = vmatpush1.msra.mxu0 0.0
    %1322 = vmatprep.subr.mxu0 0.0
    %1323 = vmatpush1.msra.mxu0 0.0
    %1324 = vmatprep.subr.mxu0 0.0
    %1325 = vmatpush1.msra.mxu0 0.0
    %1326 = vmatprep.subr.mxu0 0.0
    %1327 = vmatpush1.msra.mxu0 0.0
    %1328 = vmatprep.subr.mxu0 0.0
    %1329 = vmatpush1.msra.mxu0 0.0
    %1330 = vmatprep.subr.mxu0 0.0
    %1331 = vmatpush1.msra.mxu0 0.0
    %1332 = vmatprep.subr.mxu0 0.0
    %1333 = vmatpush1.msra.mxu0 0.0
    %1334 = vmatprep.subr.mxu0 0.0
    %1335 = vmatpush1.msra.mxu0 0.0
    %1336 = vmatprep.subr.mxu0 0.0
    %1337 = vmatpush1.msra.mxu0 0.0
    %1338 = vmatprep.subr.mxu0 0.0
    %1339 = vmatpush1.msra.mxu0 0.0
    %1340 = vmatprep.subr.mxu0 0.0
    %1341 = vmatpush1.msra.mxu0 0.0
    %1342 = vmatprep.subr.mxu0 0.0
    %1343 = vmatpush1.msra.mxu0 0.0
    %1344 = vmatprep.subr.mxu0 0.0
    %1345 = vmatpush1.msra.mxu0 0.0
    %1346 = vmatprep.subr.mxu0 0.0
    %1347 = vmatpush1.msra.mxu0 0.0
    %1348 = vmatprep.subr.mxu0 0.0
    %1349 = vmatpush1.msra.mxu0 0.0
    %1350 = vmatprep.subr.mxu0 0.0
    %1351 = vmatpush1.msra.mxu0 0.0
    %1352 = vmatprep.mubr.f32.mxu0 0.0
    %1353 = vmatmul.mubr.f32.gmra.mrb[0].mxu0 %v1283
    %v1354 = vpop.f32.mrb[0].mxu0
    %v1355 = vadd.f32 0.0, %v1354
    %v1356 = vpop.f32.mrb[0].mxu0
    %v1357 = vadd.f32 0.0, %v1356
    %1358 = vdwg.mxu0
    %1359 = vmatprep.subr.mxu0 %v27
    %1360 = vmatpush1.msra.mxu0 %v26
    %1361 = vmatprep.subr.mxu0 %v31
    %1362 = vmatpush1.msra.mxu0 %v30
    %1363 = vmatprep.subr.mxu0 %v35
    %1364 = vmatpush1.msra.mxu0 %v34
    %1365 = vmatprep.subr.mxu0 %v39
    %1366 = vmatpush1.msra.mxu0 %v38
    %1367 = vmatprep.subr.mxu0 %v43
    %1368 = vmatpush1.msra.mxu0 %v42
    %1369 = vmatprep.subr.mxu0 %v47
    %1370 = vmatpush1.msra.mxu0 %v46
    %1371 = vmatprep.subr.mxu0 %v51
    %1372 = vmatpush1.msra.mxu0 %v50
    %1373 = vmatprep.subr.mxu0 %v55
    %1374 = vmatpush1.msra.mxu0 %v54
    %1375 = vmatprep.subr.mxu0 %v59
    %1376 = vmatpush1.msra.mxu0 %v58
    %1377 = vmatprep.subr.mxu0 %v63
    %1378 = vmatpush1.msra.mxu0 %v62
    %1379 = vmatprep.subr.mxu0 %v67
    %1380 = vmatpush1.msra.mxu0 %v66
    %1381 = vmatprep.subr.mxu0 %v71
    %1382 = vmatpush1.msra.mxu0 %v70
    %1383 = vmatprep.subr.mxu0 %v75
    %1384 = vmatpush1.msra.mxu0 %v74
    %1385 = vmatprep.subr.mxu0 %v79
    %1386 = vmatpush1.msra.mxu0 %v78
    %1387 = vmatprep.subr.mxu0 %v83
    %1388 = vmatpush1.msra.mxu0 %v82
    %1389 = vmatprep.subr.mxu0 %v87
    %1390 = vmatpush1.msra.mxu0 %v86
    %1391 = vmatprep.subr.mxu0 0.0
    %1392 = vmatpush1.msra.mxu0 0.0
    %1393 = vmatprep.subr.mxu0 0.0
    %1394 = vmatpush1.msra.mxu0 0.0
    %1395 = vmatprep.subr.mxu0 0.0
    %1396 = vmatpush1.msra.mxu0 0.0
    %1397 = vmatprep.subr.mxu0 0.0
    %1398 = vmatpush1.msra.mxu0 0.0
    %1399 = vmatprep.subr.mxu0 0.0
    %1400 = vmatpush1.msra.mxu0 0.0
    %1401 = vmatprep.subr.mxu0 0.0
    %1402 = vmatpush1.msra.mxu0 0.0
    %1403 = vmatprep.subr.mxu0 0.0
    %1404 = vmatpush1.msra.mxu0 0.0
    %1405 = vmatprep.subr.mxu0 0.0
    %1406 = vmatpush1.msra.mxu0 0.0
    %1407 = vmatprep.subr.mxu0 0.0
    %1408 = vmatpush1.msra.mxu0 0.0
    %1409 = vmatprep.subr.mxu0 0.0
    %1410 = vmatpush1.msra.mxu0 0.0
    %1411 = vmatprep.subr.mxu0 0.0
    %1412 = vmatpush1.msra.mxu0 0.0
    %1413 = vmatprep.subr.mxu0 0.0
    %1414 = vmatpush1.msra.mxu0 0.0
    %1415 = vmatprep.subr.mxu0 0.0
    %1416 = vmatpush1.msra.mxu0 0.0
    %1417 = vmatprep.subr.mxu0 0.0
    %1418 = vmatpush1.msra.mxu0 0.0
    %1419 = vmatprep.subr.mxu0 0.0
    %1420 = vmatpush1.msra.mxu0 0.0
    %1421 = vmatprep.subr.mxu0 0.0
    %1422 = vmatpush1.msra.mxu0 0.0
    %1423 = vmatprep.mubr.f32.mxu0 0.0
    %1424 = vmatmul.mubr.f32.gmra.mrb[0].mxu0 %v1283
    %v1425 = vpop.f32.mrb[0].mxu0
    %v1426 = vadd.f32 0.0, %v1425
    %v1427 = vpop.f32.mrb[0].mxu0
    %v1428 = vadd.f32 0.0, %v1427
    %1429 = vdwg.mxu0
    %v1434 = vcombine.low %v1355, %v1357
    %v1435 = vcombine.low %v1426, %v1428
    %v1437 = vunpack.c.l.s4 1983009808
    %v1438 = vunpack.c.0.s8 %v1437
    %v1439 = vlaneseq
    %v1440 = vshrl.u32 %v1439, 7
    %v1441 = vsub.s32 %v1438, %v1440
    %v1442 = vrot.slane %v1434, %v1441
    %v1444 = vunpack.c.l.s4 1983009808
    %v1445 = vunpack.c.0.s8 %v1444
    %v1446 = vlaneseq
    %v1447 = vshrl.u32 %v1446, 7
    %v1448 = vsub.s32 %v1445, %v1447
    %v1449 = vrot.slane %v1435, %v1448
    %v1450 = vcombine.low %v1442, %v1449
    %v1452 = vadd.f32 %v1287, %v1450
    %v1453 = vxor.u32 %v1452, 2147483648
    %v1454 = vmul.f32 %v1453, 1.442695
    %v1455 = vpow.pop %v1454
    %v1456 = vadd.f32 %v1455, 1.0
    %v1457 = vrcp.pop %v1456
    %v1458 = vmul.f32 1.0, %v1457
    %v1460 = vrot.slane %v1452, 2
    %v1462 = vxor.u32 %v1460, 2147483648
    %v1463 = vmul.f32 %v1462, 1.442695
    %v1464 = vpow.pop %v1463
    %v1465 = vadd.f32 %v1464, 1.0
    %v1466 = vrcp.pop %v1465
    %v1467 = vmul.f32 1.0, %v1466
    %v1468 = vrot.slane %v1452, 4
    %v1470 = vtanh.pop %v1468
    %v1471 = vrot.slane %v1452, 6
    %v1473 = vxor.u32 %v1471, 2147483648
    %v1474 = vmul.f32 %v1473, 1.442695
    %v1475 = vpow.pop %v1474
    %v1476 = vadd.f32 %v1475, 1.0
    %v1477 = vrcp.pop %v1476
    %v1478 = vmul.f32 1.0, %v1477
    %v1479 = vmul.f32 %v1467, %v1281
    %v1480 = vmul.f32 %v1458, %v1470
    %v1481 = vadd.f32 %v1479, %v1480
    %v1482 = vtanh.pop %v1481
    %v1483 = vmul.f32 %v1478, %v1482
    %s1484 = scalar_lea.vmem %s4, 12
    %1485 = vst [vmem:[%s1484] sm:$0x3] %v1483
    %s1486 = scalar_lea.vmem %s0, 56
    %v1487 = vld [vmem:[%s1486] sm:$0xff]
    %1488 = vmatprep.subr.mxu0 %v25
    %1489 = vmatpush1.msra.mxu0 %v24
    %1490 = vmatprep.subr.mxu0 %v29
    %1491 = vmatpush1.msra.mxu0 %v28
    %1492 = vmatprep.subr.mxu0 %v33
    %1493 = vmatpush1.msra.mxu0 %v32
    %1494 = vmatprep.subr.mxu0 %v37
    %1495 = vmatpush1.msra.mxu0 %v36
    %1496 = vmatprep.subr.mxu0 %v41
    %1497 = vmatpush1.msra.mxu0 %v40
    %1498 = vmatprep.subr.mxu0 %v45
    %1499 = vmatpush1.msra.mxu0 %v44
    %1500 = vmatprep.subr.mxu0 %v49
    %1501 = vmatpush1.msra.mxu0 %v48
    %1502 = vmatprep.subr.mxu0 %v53
    %1503 = vmatpush1.msra.mxu0 %v52
    %1504 = vmatprep.subr.mxu0 %v57
    %1505 = vmatpush1.msra.mxu0 %v56
    %1506 = vmatprep.subr.mxu0 %v61
    %1507 = vmatpush1.msra.mxu0 %v60
    %1508 = vmatprep.subr.mxu0 %v65
    %1509 = vmatpush1.msra.mxu0 %v64
    %1510 = vmatprep.subr.mxu0 %v69
    %1511 = vmatpush1.msra.mxu0 %v68
    %1512 = vmatprep.subr.mxu0 %v73
    %1513 = vmatpush1.msra.mxu0 %v72
    %1514 = vmatprep.subr.mxu0 %v77
    %1515 = vmatpush1.msra.mxu0 %v76
    %1516 = vmatprep.subr.mxu0 %v81
    %1517 = vmatpush1.msra.mxu0 %v80
    %1518 = vmatprep.subr.mxu0 %v85
    %1519 = vmatpush1.msra.mxu0 %v84
    %1520 = vmatprep.subr.mxu0 0.0
    %1521 = vmatpush1.msra.mxu0 0.0
    %1522 = vmatprep.subr.mxu0 0.0
    %1523 = vmatpush1.msra.mxu0 0.0
    %1524 = vmatprep.subr.mxu0 0.0
    %1525 = vmatpush1.msra.mxu0 0.0
    %1526 = vmatprep.subr.mxu0 0.0
    %1527 = vmatpush1.msra.mxu0 0.0
    %1528 = vmatprep.subr.mxu0 0.0
    %1529 = vmatpush1.msra.mxu0 0.0
    %1530 = vmatprep.subr.mxu0 0.0
    %1531 = vmatpush1.msra.mxu0 0.0
    %1532 = vmatprep.subr.mxu0 0.0
    %1533 = vmatpush1.msra.mxu0 0.0
    %1534 = vmatprep.subr.mxu0 0.0
    %1535 = vmatpush1.msra.mxu0 0.0
    %1536 = vmatprep.subr.mxu0 0.0
    %1537 = vmatpush1.msra.mxu0 0.0
    %1538 = vmatprep.subr.mxu0 0.0
    %1539 = vmatpush1.msra.mxu0 0.0
    %1540 = vmatprep.subr.mxu0 0.0
    %1541 = vmatpush1.msra.mxu0 0.0
    %1542 = vmatprep.subr.mxu0 0.0
    %1543 = vmatpush1.msra.mxu0 0.0
    %1544 = vmatprep.subr.mxu0 0.0
    %1545 = vmatpush1.msra.mxu0 0.0
    %1546 = vmatprep.subr.mxu0 0.0
    %1547 = vmatpush1.msra.mxu0 0.0
    %1548 = vmatprep.subr.mxu0 0.0
    %1549 = vmatpush1.msra.mxu0 0.0
    %1550 = vmatprep.subr.mxu0 0.0
    %1551 = vmatpush1.msra.mxu0 0.0
    %1552 = vmatprep.mubr.f32.mxu0 0.0
    %1553 = vmatmul.mubr.f32.gmra.mrb[0].mxu0 %v1483
    %v1554 = vpop.f32.mrb[0].mxu0
    %v1555 = vadd.f32 0.0, %v1554
    %v1556 = vpop.f32.mrb[0].mxu0
    %v1557 = vadd.f32 0.0, %v1556
    %1558 = vdwg.mxu0
    %1559 = vmatprep.subr.mxu0 %v27
    %1560 = vmatpush1.msra.mxu0 %v26
    %1561 = vmatprep.subr.mxu0 %v31
    %1562 = vmatpush1.msra.mxu0 %v30
    %1563 = vmatprep.subr.mxu0 %v35
    %1564 = vmatpush1.msra.mxu0 %v34
    %1565 = vmatprep.subr.mxu0 %v39
    %1566 = vmatpush1.msra.mxu0 %v38
    %1567 = vmatprep.subr.mxu0 %v43
    %1568 = vmatpush1.msra.mxu0 %v42
    %1569 = vmatprep.subr.mxu0 %v47
    %1570 = vmatpush1.msra.mxu0 %v46
    %1571 = vmatprep.subr.mxu0 %v51
    %1572 = vmatpush1.msra.mxu0 %v50
    %1573 = vmatprep.subr.mxu0 %v55
    %1574 = vmatpush1.msra.mxu0 %v54
    %1575 = vmatprep.subr.mxu0 %v59
    %1576 = vmatpush1.msra.mxu0 %v58
    %1577 = vmatprep.subr.mxu0 %v63
    %1578 = vmatpush1.msra.mxu0 %v62
    %1579 = vmatprep.subr.mxu0 %v67
    %1580 = vmatpush1.msra.mxu0 %v66
    %1581 = vmatprep.subr.mxu0 %v71
    %1582 = vmatpush1.msra.mxu0 %v70
    %1583 = vmatprep.subr.mxu0 %v75
    %1584 = vmatpush1.msra.mxu0 %v74
    %1585 = vmatprep.subr.mxu0 %v79
    %1586 = vmatpush1.msra.mxu0 %v78
    %1587 = vmatprep.subr.mxu0 %v83
    %1588 = vmatpush1.msra.mxu0 %v82
    %1589 = vmatprep.subr.mxu0 %v87
    %1590 = vmatpush1.msra.mxu0 %v86
    %1591 = vmatprep.subr.mxu0 0.0
    %1592 = vmatpush1.msra.mxu0 0.0
    %1593 = vmatprep.subr.mxu0 0.0
    %1594 = vmatpush1.msra.mxu0 0.0
    %1595 = vmatprep.subr.mxu0 0.0
    %1596 = vmatpush1.msra.mxu0 0.0
    %1597 = vmatprep.subr.mxu0 0.0
    %1598 = vmatpush1.msra.mxu0 0.0
    %1599 = vmatprep.subr.mxu0 0.0
    %1600 = vmatpush1.msra.mxu0 0.0
    %1601 = vmatprep.subr.mxu0 0.0
    %1602 = vmatpush1.msra.mxu0 0.0
    %1603 = vmatprep.subr.mxu0 0.0
    %1604 = vmatpush1.msra.mxu0 0.0
    %1605 = vmatprep.subr.mxu0 0.0
    %1606 = vmatpush1.msra.mxu0 0.0
    %1607 = vmatprep.subr.mxu0 0.0
    %1608 = vmatpush1.msra.mxu0 0.0
    %1609 = vmatprep.subr.mxu0 0.0
    %1610 = vmatpush1.msra.mxu0 0.0
    %1611 = vmatprep.subr.mxu0 0.0
    %1612 = vmatpush1.msra.mxu0 0.0
    %1613 = vmatprep.subr.mxu0 0.0
    %1614 = vmatpush1.msra.mxu0 0.0
    %1615 = vmatprep.subr.mxu0 0.0
    %1616 = vmatpush1.msra.mxu0 0.0
    %1617 = vmatprep.subr.mxu0 0.0
    %1618 = vmatpush1.msra.mxu0 0.0
    %1619 = vmatprep.subr.mxu0 0.0
    %1620 = vmatpush1.msra.mxu0 0.0
    %1621 = vmatprep.subr.mxu0 0.0
    %1622 = vmatpush1.msra.mxu0 0.0
    %1623 = vmatprep.mubr.f32.mxu0 0.0
    %1624 = vmatmul.mubr.f32.gmra.mrb[0].mxu0 %v1483
    %v1625 = vpop.f32.mrb[0].mxu0
    %v1626 = vadd.f32 0.0, %v1625
    %v1627 = vpop.f32.mrb[0].mxu0
    %v1628 = vadd.f32 0.0, %v1627
    %1629 = vdwg.mxu0
    %v1634 = vcombine.low %v1555, %v1557
    %v1635 = vcombine.low %v1626, %v1628
    %v1637 = vunpack.c.l.s4 1983009808
    %v1638 = vunpack.c.0.s8 %v1637
    %v1639 = vlaneseq
    %v1640 = vshrl.u32 %v1639, 7
    %v1641 = vsub.s32 %v1638, %v1640
    %v1642 = vrot.slane %v1634, %v1641
    %v1644 = vunpack.c.l.s4 1983009808
    %v1645 = vunpack.c.0.s8 %v1644
    %v1646 = vlaneseq
    %v1647 = vshrl.u32 %v1646, 7
    %v1648 = vsub.s32 %v1645, %v1647
    %v1649 = vrot.slane %v1635, %v1648
    %v1650 = vcombine.low %v1642, %v1649
    %v1652 = vadd.f32 %v1487, %v1650
    %v1653 = vxor.u32 %v1652, 2147483648
    %v1654 = vmul.f32 %v1653, 1.442695
    %v1655 = vpow.pop %v1654
    %v1656 = vadd.f32 %v1655, 1.0
    %v1657 = vrcp.pop %v1656
    %v1658 = vmul.f32 1.0, %v1657
    %v1660 = vrot.slane %v1652, 2
    %v1662 = vxor.u32 %v1660, 2147483648
    %v1663 = vmul.f32 %v1662, 1.442695
    %v1664 = vpow.pop %v1663
    %v1665 = vadd.f32 %v1664, 1.0
    %v1666 = vrcp.pop %v1665
    %v1667 = vmul.f32 1.0, %v1666
    %v1668 = vrot.slane %v1652, 4
    %v1670 = vtanh.pop %v1668
    %v1671 = vrot.slane %v1652, 6
    %v1673 = vxor.u32 %v1671, 2147483648
    %v1674 = vmul.f32 %v1673, 1.442695
    %v1675 = vpow.pop %v1674
    %v1676 = vadd.f32 %v1675, 1.0
    %v1677 = vrcp.pop %v1676
    %v1678 = vmul.f32 1.0, %v1677
    %v1679 = vmul.f32 %v1667, %v1481
    %v1680 = vmul.f32 %v1658, %v1670
    %v1681 = vadd.f32 %v1679, %v1680
    %v1682 = vtanh.pop %v1681
    %v1683 = vmul.f32 %v1678, %v1682
    %s1684 = scalar_lea.vmem %s4, 14
    %1685 = vst [vmem:[%s1684] sm:$0x3] %v1683
    %1686 = vst [vmem:[#allocation2] sm:$0x3] %v1683
    %1687 = vst [vmem:[#allocation4] sm:$0x3] %v1681
    // Predicated region
    $region18: #{forward.18} parent=1 // pred_check
      _
    $region19: #{forward.18} parent=1 // pred_check_branch
      %1689 = sbr.rel (0) target = $region21
    $region20: #{forward.18} parent=1 // pred_region
      _
    $region21: #{forward.18} parent=1 // pred_fallthru
      _
    // Predicated region
    $region22: #{forward.18} parent=1 // pred_check
      _
    $region23: #{forward.18} parent=1 // pred_check_branch
      %1691 = sbr.rel (0) target = $region25
    $region24: #{forward.18} parent=1 // pred_region
      %s1693 = ssub.s32 32, 32
      %1694 = vsyncadd [#allocation3], %s1693
      %s1696 = sshll.u32 [#allocation2], 4
      %s1697 = int_to_ptr.vmem [resolvable:$true] %s1696
      %1699 = dma.vmem_to_hbm [thread:$0]  %s1697, 32, %s5, [#allocation3]
    $region25: #{forward.18} parent=1 // pred_fallthru
      _
    // Predicated region
    $region26: #{forward.18} parent=1 // pred_check
      _
    $region27: #{forward.18} parent=1 // pred_check_branch
      %1701 = sbr.rel (0) target = $region29
    $region28: #{forward.18} parent=1 // pred_region
      %s1703 = ssub.s32 32, 32
      %1704 = vsyncadd [#allocation5], %s1703
      %s1706 = sshll.u32 [#allocation4], 4
      %s1707 = int_to_ptr.vmem [resolvable:$true] %s1706
      %1709 = dma.vmem_to_hbm [thread:$0]  %s1707, 32, %s6, [#allocation5]
    $region29: #{forward.18} parent=1 // pred_fallthru
      _
    // Predicated region
    $region30: #{forward.18} parent=1 // pred_check
      _
    $region31: #{forward.18} parent=1 // pred_check_branch
      %1711 = sbr.rel (0) target = $region33
    $region32: #{forward.18} parent=1 // pred_region
      _
    $region33: #{forward.18} parent=1 // pred_fallthru
      _
    // Predicated region
    $region34: #{forward.18} parent=1 // pred_check
      _
    $region35: #{forward.18} parent=1 // pred_check_branch
      %1713 = sbr.rel (0) target = $region37
    $region36: #{forward.18} parent=1 // pred_region
      %1714 = dma.done [#allocation3], 32
    $region37: #{forward.18} parent=1 // pred_fallthru
      _
    // Predicated region
    $region38: #{forward.18} parent=1 // pred_check
      _
    $region39: #{forward.18} parent=1 // pred_check_branch
      %1716 = sbr.rel (0) target = $region41
    $region40: #{forward.18} parent=1 // pred_region
      %1717 = dma.done [#allocation5], 32
    $region41: #{forward.18} parent=1 // pred_fallthru
      _
    %1718 = vsyncpa [#allocation3], 1
    %1719 = vsyncpa [#allocation5], 1

// kernel: forward.19
$region0: #{forward.19}
  #allocation0 [shape = 'u32[]', space=smem, size = 0x4, offset = 0x4, fixed_abs, tag = 'smem constant byte address 0x4 - core index']
  #allocation1 [shape = 'u32[144,128]{1,0:T(1,128)}', space=vmem, size = 0x12000, scoped, tag = 'internal scratch']
  %s0 = inlined_call_operand.vmem [shape: f32[16,128], index: 0, kind: input, shape index: {}]
  %s1 = inlined_call_operand.vmem [shape: f32[128,768], index: 1, kind: input, shape index: {}]
  %s2 = inlined_call_operand.vmem [shape: f32[1,768], index: 2, kind: input, shape index: {}]
  %s3 = inlined_call_operand.vmem [shape: f32[1,768], index: 3, kind: input, shape index: {}]
  %s4 = inlined_call_operand.vmem [shape: f32[1,768], index: 4, kind: input, shape index: {}]
  %s5 = inlined_call_operand.vmem [shape: f32[164,12], index: 5, kind: input, shape index: {}]
  %s6 = inlined_call_operand.vmem [shape: f32[1,12], index: 6, kind: input, shape index: {}]
  %s7 = inlined_call_operand.vmem [shape: f32[164,8], index: 7, kind: input, shape index: {}]
  %s8 = inlined_call_operand.vmem [shape: f32[1,8], index: 8, kind: input, shape index: {}]
  %s9 = inlined_call_operand.vmem [shape: f32[164,1], index: 9, kind: input, shape index: {}]
  %s10 = inlined_call_operand.vmem [shape: f32[16,12], index: 10, kind: input, shape index: {}]
  %s11 = inlined_call_operand.hbm [shape: f32[16,12], index: 11, kind: output, shape index: {0}]
  %s12 = inlined_call_operand.hbm [shape: f32[16,8], index: 12, kind: output, shape index: {1}]
  %s13 = inlined_call_operand.vmem [shape: f32[16,1], index: 13, kind: output, shape index: {2}]
  %14 = xla_tuple %s11, %s12, %s13
  %s15 = sld [smem:[#allocation0]]
  $region70: #{forward.19} parent=0
    _
  %s17 = ssub.s32 1, %s15
  %s18 = scalar_select 0, %s17, %s15
  $region1: #{forward.19} parent=0
    #allocation2 [shape = 'u8[8192]{0}', space=vmem, size = 0x2000, scoped, tag = 'output window, operand 0, single buffered']
    #allocation3 [shape = 's32[1]{0}', space=sflag, size = 0x4, scoped, tag = 'scoped memory for forward.19']
    #allocation4 [shape = 'u8[8192]{0}', space=vmem, size = 0x2000, scoped, tag = 'output window, operand 1, single buffered']
    #allocation5 [shape = 's32[1]{0}', space=sflag, size = 0x4, scoped, tag = 'scoped memory for forward.19']
    %19 = vsyncpa [#allocation3], 0
    %20 = vsyncpa [#allocation5], 0
    // Predicated region
    $region2: #{forward.19} parent=1 // pred_check
      _
    $region3: #{forward.19} parent=1 // pred_check_branch
      %22 = sbr.rel (0) target = $region5
    $region4: #{forward.19} parent=1 // pred_region
      _
    $region5: #{forward.19} parent=1 // pred_fallthru
      _
    // Predicated region
    $region6: #{forward.19} parent=1 // pred_check
      _
    $region7: #{forward.19} parent=1 // pred_check_branch
      %24 = sbr.rel (0) target = $region9
    $region8: #{forward.19} parent=1 // pred_region
      _
    $region9: #{forward.19} parent=1 // pred_fallthru
      _
    // Predicated region
    $region10: #{forward.19} parent=1 // pred_check
      _
    $region11: #{forward.19} parent=1 // pred_check_branch
      %26 = sbr.rel (0) target = $region13
    $region12: #{forward.19} parent=1 // pred_region
      _
    $region13: #{forward.19} parent=1 // pred_fallthru
      _
    // Predicated region
    $region14: #{forward.19} parent=1 // pred_check
      _
    $region15: #{forward.19} parent=1 // pred_check_branch
      %28 = sbr.rel (0) target = $region17
    $region16: #{forward.19} parent=1 // pred_region
      _
    $region17: #{forward.19} parent=1 // pred_fallthru
      _
    // Predicated region
    $region18: #{forward.19} parent=1 // pred_check
      _
    $region19: #{forward.19} parent=1 // pred_check_branch
      %30 = sbr.rel (0) target = $region21
    $region20: #{forward.19} parent=1 // pred_region
      _
    $region21: #{forward.19} parent=1 // pred_fallthru
      _
    // Predicated region
    $region22: #{forward.19} parent=1 // pred_check
      _
    $region23: #{forward.19} parent=1 // pred_check_branch
      %32 = sbr.rel (0) target = $region25
    $region24: #{forward.19} parent=1 // pred_region
      _
    $region25: #{forward.19} parent=1 // pred_fallthru
      _
    // Predicated region
    $region26: #{forward.19} parent=1 // pred_check
      _
    $region27: #{forward.19} parent=1 // pred_check_branch
      %34 = sbr.rel (0) target = $region29
    $region28: #{forward.19} parent=1 // pred_region
      _
    $region29: #{forward.19} parent=1 // pred_fallthru
      _
    // Predicated region
    $region30: #{forward.19} parent=1 // pred_check
      _
    $region31: #{forward.19} parent=1 // pred_check_branch
      %36 = sbr.rel (0) target = $region33
    $region32: #{forward.19} parent=1 // pred_region
      _
    $region33: #{forward.19} parent=1 // pred_fallthru
      _
    // Predicated region
    $region34: #{forward.19} parent=1 // pred_check
      _
    $region35: #{forward.19} parent=1 // pred_check_branch
      %38 = sbr.rel (0) target = $region37
    $region36: #{forward.19} parent=1 // pred_region
      _
    $region37: #{forward.19} parent=1 // pred_fallthru
      _
    // Predicated region
    $region38: #{forward.19} parent=1 // pred_check
      _
    $region39: #{forward.19} parent=1 // pred_check_branch
      %40 = sbr.rel (0) target = $region41
    $region40: #{forward.19} parent=1 // pred_region
      _
    $region41: #{forward.19} parent=1 // pred_fallthru
      _
    // Predicated region
    $region42: #{forward.19} parent=1 // pred_check
      _
    $region43: #{forward.19} parent=1 // pred_check_branch
      %42 = sbr.rel (0) target = $region45
    $region44: #{forward.19} parent=1 // pred_region
      _
    $region45: #{forward.19} parent=1 // pred_fallthru
      _
    %v43 = vld [vmem:[%s0] sm:$0xff]
    %v44 = vld [vmem:[%s0 + $0x8] sm:$0xff]
    %v45 = vld [vmem:[%s1] sm:$0xff]
    %v46 = vld [vmem:[%s1 + $0x8] sm:$0xff]
    %v47 = vld [vmem:[%s1 + $0x10] sm:$0xff]
    %v48 = vld [vmem:[%s1 + $0x18] sm:$0xff]
    %v49 = vld [vmem:[%s1 + $0x20] sm:$0xff]
    %v50 = vld [vmem:[%s1 + $0x28] sm:$0xff]
    %v51 = vld [vmem:[%s1 + $0x30] sm:$0xff]
    %v52 = vld [vmem:[%s1 + $0x38] sm:$0xff]
    %v53 = vld [vmem:[%s1 + $0x40] sm:$0xff]
    %v54 = vld [vmem:[%s1 + $0x48] sm:$0xff]
    %v55 = vld [vmem:[%s1 + $0x50] sm:$0xff]
    %v56 = vld [vmem:[%s1 + $0x58] sm:$0xff]
    %v57 = vld [vmem:[%s1 + $0x60] sm:$0xff]
    %v58 = vld [vmem:[%s1 + $0x68] sm:$0xff]
    %v59 = vld [vmem:[%s1 + $0x70] sm:$0xff]
    %v60 = vld [vmem:[%s1 + $0x78] sm:$0xff]
    %v61 = vld [vmem:[%s1 + $0x80] sm:$0xff]
    %v62 = vld [vmem:[%s1 + $0x88] sm:$0xff]
    %v63 = vld [vmem:[%s1 + $0x90] sm:$0xff]
    %v64 = vld [vmem:[%s1 + $0x98] sm:$0xff]
    %v65 = vld [vmem:[%s1 + $0xa0] sm:$0xff]
    %v66 = vld [vmem:[%s1 + $0xa8] sm:$0xff]
    %v67 = vld [vmem:[%s1 + $0xb0] sm:$0xff]
    %v68 = vld [vmem:[%s1 + $0xb8] sm:$0xff]
    %v69 = vld [vmem:[%s1 + $0xc0] sm:$0xff]
    %v70 = vld [vmem:[%s1 + $0xc8] sm:$0xff]
    %v71 = vld [vmem:[%s1 + $0xd0] sm:$0xff]
    %v72 = vld [vmem:[%s1 + $0xd8] sm:$0xff]
    %v73 = vld [vmem:[%s1 + $0xe0] sm:$0xff]
    %v74 = vld [vmem:[%s1 + $0xe8] sm:$0xff]
    %v75 = vld [vmem:[%s1 + $0xf0] sm:$0xff]
    %v76 = vld [vmem:[%s1 + $0xf8] sm:$0xff]
    %v77 = vld [vmem:[%s1 + $0x100] sm:$0xff]
    %v78 = vld [vmem:[%s1 + $0x108] sm:$0xff]
    %v79 = vld [vmem:[%s1 + $0x110] sm:$0xff]
    %v80 = vld [vmem:[%s1 + $0x118] sm:$0xff]
    %v81 = vld [vmem:[%s1 + $0x120] sm:$0xff]
    %v82 = vld [vmem:[%s1 + $0x128] sm:$0xff]
    %v83 = vld [vmem:[%s1 + $0x130] sm:$0xff]
    %v84 = vld [vmem:[%s1 + $0x138] sm:$0xff]
    %v85 = vld [vmem:[%s1 + $0x140] sm:$0xff]
    %v86 = vld [vmem:[%s1 + $0x148] sm:$0xff]
    %v87 = vld [vmem:[%s1 + $0x150] sm:$0xff]
    %v88 = vld [vmem:[%s1 + $0x158] sm:$0xff]
    %v89 = vld [vmem:[%s1 + $0x160] sm:$0xff]
    %v90 = vld [vmem:[%s1 + $0x168] sm:$0xff]
    %v91 = vld [vmem:[%s1 + $0x170] sm:$0xff]
    %v92 = vld [vmem:[%s1 + $0x178] sm:$0xff]
    %v93 = vld [vmem:[%s1 + $0x180] sm:$0xff]
    %v94 = vld [vmem:[%s1 + $0x188] sm:$0xff]
    %v95 = vld [vmem:[%s1 + $0x190] sm:$0xff]
    %v96 = vld [vmem:[%s1 + $0x198] sm:$0xff]
    %v97 = vld [vmem:[%s1 + $0x1a0] sm:$0xff]
    %v98 = vld [vmem:[%s1 + $0x1a8] sm:$0xff]
    %v99 = vld [vmem:[%s1 + $0x1b0] sm:$0xff]
    %v100 = vld [vmem:[%s1 + $0x1b8] sm:$0xff]
    %v101 = vld [vmem:[%s1 + $0x1c0] sm:$0xff]
    %v102 = vld [vmem:[%s1 + $0x1c8] sm:$0xff]
    %v103 = vld [vmem:[%s1 + $0x1d0] sm:$0xff]
    %v104 = vld [vmem:[%s1 + $0x1d8] sm:$0xff]
    %v105 = vld [vmem:[%s1 + $0x1e0] sm:$0xff]
    %v106 = vld [vmem:[%s1 + $0x1e8] sm:$0xff]
    %v107 = vld [vmem:[%s1 + $0x1f0] sm:$0xff]
    %v108 = vld [vmem:[%s1 + $0x1f8] sm:$0xff]
    %v109 = vld [vmem:[%s1 + $0x200] sm:$0xff]
    %v110 = vld [vmem:[%s1 + $0x208] sm:$0xff]
    %v111 = vld [vmem:[%s1 + $0x210] sm:$0xff]
    %v112 = vld [vmem:[%s1 + $0x218] sm:$0xff]
    %v113 = vld [vmem:[%s1 + $0x220] sm:$0xff]
    %v114 = vld [vmem:[%s1 + $0x228] sm:$0xff]
    %v115 = vld [vmem:[%s1 + $0x230] sm:$0xff]
    %v116 = vld [vmem:[%s1 + $0x238] sm:$0xff]
    %v117 = vld [vmem:[%s1 + $0x240] sm:$0xff]
    %v118 = vld [vmem:[%s1 + $0x248] sm:$0xff]
    %v119 = vld [vmem:[%s1 + $0x250] sm:$0xff]
    %v120 = vld [vmem:[%s1 + $0x258] sm:$0xff]
    %v121 = vld [vmem:[%s1 + $0x260] sm:$0xff]
    %v122 = vld [vmem:[%s1 + $0x268] sm:$0xff]
    %v123 = vld [vmem:[%s1 + $0x270] sm:$0xff]
    %v124 = vld [vmem:[%s1 + $0x278] sm:$0xff]
    %v125 = vld [vmem:[%s1 + $0x280] sm:$0xff]
    %v126 = vld [vmem:[%s1 + $0x288] sm:$0xff]
    %v127 = vld [vmem:[%s1 + $0x290] sm:$0xff]
    %v128 = vld [vmem:[%s1 + $0x298] sm:$0xff]
    %v129 = vld [vmem:[%s1 + $0x2a0] sm:$0xff]
    %v130 = vld [vmem:[%s1 + $0x2a8] sm:$0xff]
    %v131 = vld [vmem:[%s1 + $0x2b0] sm:$0xff]
    %v132 = vld [vmem:[%s1 + $0x2b8] sm:$0xff]
    %v133 = vld [vmem:[%s1 + $0x2c0] sm:$0xff]
    %v134 = vld [vmem:[%s1 + $0x2c8] sm:$0xff]
    %v135 = vld [vmem:[%s1 + $0x2d0] sm:$0xff]
    %v136 = vld [vmem:[%s1 + $0x2d8] sm:$0xff]
    %v137 = vld [vmem:[%s1 + $0x2e0] sm:$0xff]
    %v138 = vld [vmem:[%s1 + $0x2e8] sm:$0xff]
    %v139 = vld [vmem:[%s1 + $0x2f0] sm:$0xff]
    %v140 = vld [vmem:[%s1 + $0x2f8] sm:$0xff]
    %v141 = vld [vmem:[%s2] sm:$0x3f]
    %v143 = vlaneseq
    %v144 = vshrl.u32 %v143, 7
    %v145 = vsub.s32 0, %v144
    %v146 = vrot.slane %v141, %v145
    %v147 = vlaneseq
    %v148 = vshrl.u32 %v147, 7
    %v149 = vsub.s32 1, %v148
    %v150 = vrot.slane %v141, %v149
    %v151 = vlaneseq
    %v152 = vshrl.u32 %v151, 7
    %v153 = vsub.s32 2, %v152
    %v154 = vrot.slane %v141, %v153
    %v155 = vlaneseq
    %v156 = vshrl.u32 %v155, 7
    %v157 = vsub.s32 3, %v156
    %v158 = vrot.slane %v141, %v157
    %v159 = vlaneseq
    %v160 = vshrl.u32 %v159, 7
    %v161 = vsub.s32 4, %v160
    %v162 = vrot.slane %v141, %v161
    %v163 = vlaneseq
    %v164 = vshrl.u32 %v163, 7
    %v165 = vsub.s32 5, %v164
    %v166 = vrot.slane %v141, %v165
    %173 = vmatprep.subr.mxu0 %v46
    %174 = vmatpush1.msra.mxu0 %v45
    %175 = vmatprep.subr.mxu0 %v52
    %176 = vmatpush1.msra.mxu0 %v51
    %177 = vmatprep.subr.mxu0 %v58
    %178 = vmatpush1.msra.mxu0 %v57
    %179 = vmatprep.subr.mxu0 %v64
    %180 = vmatpush1.msra.mxu0 %v63
    %181 = vmatprep.subr.mxu0 %v70
    %182 = vmatpush1.msra.mxu0 %v69
    %183 = vmatprep.subr.mxu0 %v76
    %184 = vmatpush1.msra.mxu0 %v75
    %185 = vmatprep.subr.mxu0 %v82
    %186 = vmatpush1.msra.mxu0 %v81
    %187 = vmatprep.subr.mxu0 %v88
    %188 = vmatpush1.msra.mxu0 %v87
    %189 = vmatprep.subr.mxu0 %v94
    %190 = vmatpush1.msra.mxu0 %v93
    %191 = vmatprep.subr.mxu0 %v100
    %192 = vmatpush1.msra.mxu0 %v99
    %193 = vmatprep.subr.mxu0 %v106
    %194 = vmatpush1.msra.mxu0 %v105
    %195 = vmatprep.subr.mxu0 %v112
    %196 = vmatpush1.msra.mxu0 %v111
    %197 = vmatprep.subr.mxu0 %v118
    %198 = vmatpush1.msra.mxu0 %v117
    %199 = vmatprep.subr.mxu0 %v124
    %200 = vmatpush1.msra.mxu0 %v123
    %201 = vmatprep.subr.mxu0 %v130
    %202 = vmatpush1.msra.mxu0 %v129
    %203 = vmatprep.subr.mxu0 %v136
    %204 = vmatpush1.msra.mxu0 %v135
    %205 = vmatprep.subr.mxu0 0.0
    %206 = vmatpush1.msra.mxu0 0.0
    %207 = vmatprep.subr.mxu0 0.0
    %208 = vmatpush1.msra.mxu0 0.0
    %209 = vmatprep.subr.mxu0 0.0
    %210 = vmatpush1.msra.mxu0 0.0
    %211 = vmatprep.subr.mxu0 0.0
    %212 = vmatpush1.msra.mxu0 0.0
    %213 = vmatprep.subr.mxu0 0.0
    %214 = vmatpush1.msra.mxu0 0.0
    %215 = vmatprep.subr.mxu0 0.0
    %216 = vmatpush1.msra.mxu0 0.0
    %217 = vmatprep.subr.mxu0 0.0
    %218 = vmatpush1.msra.mxu0 0.0
    %219 = vmatprep.subr.mxu0 0.0
    %220 = vmatpush1.msra.mxu0 0.0
    %221 = vmatprep.subr.mxu0 0.0
    %222 = vmatpush1.msra.mxu0 0.0
    %223 = vmatprep.subr.mxu0 0.0
    %224 = vmatpush1.msra.mxu0 0.0
    %225 = vmatprep.subr.mxu0 0.0
    %226 = vmatpush1.msra.mxu0 0.0
    %227 = vmatprep.subr.mxu0 0.0
    %228 = vmatpush1.msra.mxu0 0.0
    %229 = vmatprep.subr.mxu0 0.0
    %230 = vmatpush1.msra.mxu0 0.0
    %231 = vmatprep.subr.mxu0 0.0
    %232 = vmatpush1.msra.mxu0 0.0
    %233 = vmatprep.subr.mxu0 0.0
    %234 = vmatpush1.msra.mxu0 0.0
    %235 = vmatprep.subr.mxu0 0.0
    %236 = vmatpush1.msra.mxu0 0.0
    %237 = vmatprep.mubr.f32.mxu0 0.0
    %238 = vmatmul.mubr.f32.gmra.mrb[0].mxu0 %v43
    %v239 = vpop.f32.mrb[0].mxu0
    %v240 = vadd.f32 %v146, %v239
    %v241 = vpop.f32.mrb[0].mxu0
    %v242 = vadd.f32 %v150, %v241
    %243 = vmatprep.mubr.f32.mxu0 0.0
    %244 = vmatmul.mubr.f32.gmra.mrb[0].mxu0 %v44
    %v245 = vpop.f32.mrb[0].mxu0
    %v246 = vadd.f32 %v146, %v245
    %v247 = vpop.f32.mrb[0].mxu0
    %v248 = vadd.f32 %v150, %v247
    %249 = vdwg.mxu0
    %250 = vmatprep.subr.mxu0 %v48
    %251 = vmatpush1.msra.mxu0 %v47
    %252 = vmatprep.subr.mxu0 %v54
    %253 = vmatpush1.msra.mxu0 %v53
    %254 = vmatprep.subr.mxu0 %v60
    %255 = vmatpush1.msra.mxu0 %v59
    %256 = vmatprep.subr.mxu0 %v66
    %257 = vmatpush1.msra.mxu0 %v65
    %258 = vmatprep.subr.mxu0 %v72
    %259 = vmatpush1.msra.mxu0 %v71
    %260 = vmatprep.subr.mxu0 %v78
    %261 = vmatpush1.msra.mxu0 %v77
    %262 = vmatprep.subr.mxu0 %v84
    %263 = vmatpush1.msra.mxu0 %v83
    %264 = vmatprep.subr.mxu0 %v90
    %265 = vmatpush1.msra.mxu0 %v89
    %266 = vmatprep.subr.mxu0 %v96
    %267 = vmatpush1.msra.mxu0 %v95
    %268 = vmatprep.subr.mxu0 %v102
    %269 = vmatpush1.msra.mxu0 %v101
    %270 = vmatprep.subr.mxu0 %v108
    %271 = vmatpush1.msra.mxu0 %v107
    %272 = vmatprep.subr.mxu0 %v114
    %273 = vmatpush1.msra.mxu0 %v113
    %274 = vmatprep.subr.mxu0 %v120
    %275 = vmatpush1.msra.mxu0 %v119
    %276 = vmatprep.subr.mxu0 %v126
    %277 = vmatpush1.msra.mxu0 %v125
    %278 = vmatprep.subr.mxu0 %v132
    %279 = vmatpush1.msra.mxu0 %v131
    %280 = vmatprep.subr.mxu0 %v138
    %281 = vmatpush1.msra.mxu0 %v137
    %282 = vmatprep.subr.mxu0 0.0
    %283 = vmatpush1.msra.mxu0 0.0
    %284 = vmatprep.subr.mxu0 0.0
    %285 = vmatpush1.msra.mxu0 0.0
    %286 = vmatprep.subr.mxu0 0.0
    %287 = vmatpush1.msra.mxu0 0.0
    %288 = vmatprep.subr.mxu0 0.0
    %289 = vmatpush1.msra.mxu0 0.0
    %290 = vmatprep.subr.mxu0 0.0
    %291 = vmatpush1.msra.mxu0 0.0
    %292 = vmatprep.subr.mxu0 0.0
    %293 = vmatpush1.msra.mxu0 0.0
    %294 = vmatprep.subr.mxu0 0.0
    %295 = vmatpush1.msra.mxu0 0.0
    %296 = vmatprep.subr.mxu0 0.0
    %297 = vmatpush1.msra.mxu0 0.0
    %298 = vmatprep.subr.mxu0 0.0
    %299 = vmatpush1.msra.mxu0 0.0
    %300 = vmatprep.subr.mxu0 0.0
    %301 = vmatpush1.msra.mxu0 0.0
    %302 = vmatprep.subr.mxu0 0.0
    %303 = vmatpush1.msra.mxu0 0.0
    %304 = vmatprep.subr.mxu0 0.0
    %305 = vmatpush1.msra.mxu0 0.0
    %306 = vmatprep.subr.mxu0 0.0
    %307 = vmatpush1.msra.mxu0 0.0
    %308 = vmatprep.subr.mxu0 0.0
    %309 = vmatpush1.msra.mxu0 0.0
    %310 = vmatprep.subr.mxu0 0.0
    %311 = vmatpush1.msra.mxu0 0.0
    %312 = vmatprep.subr.mxu0 0.0
    %313 = vmatpush1.msra.mxu0 0.0
    %314 = vmatprep.mubr.f32.mxu0 0.0
    %315 = vmatmul.mubr.f32.gmra.mrb[0].mxu0 %v43
    %v316 = vpop.f32.mrb[0].mxu0
    %v317 = vadd.f32 %v154, %v316
    %v318 = vpop.f32.mrb[0].mxu0
    %v319 = vadd.f32 %v158, %v318
    %320 = vmatprep.mubr.f32.mxu0 0.0
    %321 = vmatmul.mubr.f32.gmra.mrb[0].mxu0 %v44
    %v322 = vpop.f32.mrb[0].mxu0
    %v323 = vadd.f32 %v154, %v322
    %v324 = vpop.f32.mrb[0].mxu0
    %v325 = vadd.f32 %v158, %v324
    %326 = vdwg.mxu0
    %327 = vmatprep.subr.mxu0 %v50
    %328 = vmatpush1.msra.mxu0 %v49
    %329 = vmatprep.subr.mxu0 %v56
    %330 = vmatpush1.msra.mxu0 %v55
    %331 = vmatprep.subr.mxu0 %v62
    %332 = vmatpush1.msra.mxu0 %v61
    %333 = vmatprep.subr.mxu0 %v68
    %334 = vmatpush1.msra.mxu0 %v67
    %335 = vmatprep.subr.mxu0 %v74
    %336 = vmatpush1.msra.mxu0 %v73
    %337 = vmatprep.subr.mxu0 %v80
    %338 = vmatpush1.msra.mxu0 %v79
    %339 = vmatprep.subr.mxu0 %v86
    %340 = vmatpush1.msra.mxu0 %v85
    %341 = vmatprep.subr.mxu0 %v92
    %342 = vmatpush1.msra.mxu0 %v91
    %343 = vmatprep.subr.mxu0 %v98
    %344 = vmatpush1.msra.mxu0 %v97
    %345 = vmatprep.subr.mxu0 %v104
    %346 = vmatpush1.msra.mxu0 %v103
    %347 = vmatprep.subr.mxu0 %v110
    %348 = vmatpush1.msra.mxu0 %v109
    %349 = vmatprep.subr.mxu0 %v116
    %350 = vmatpush1.msra.mxu0 %v115
    %351 = vmatprep.subr.mxu0 %v122
    %352 = vmatpush1.msra.mxu0 %v121
    %353 = vmatprep.subr.mxu0 %v128
    %354 = vmatpush1.msra.mxu0 %v127
    %355 = vmatprep.subr.mxu0 %v134
    %356 = vmatpush1.msra.mxu0 %v133
    %357 = vmatprep.subr.mxu0 %v140
    %358 = vmatpush1.msra.mxu0 %v139
    %359 = vmatprep.subr.mxu0 0.0
    %360 = vmatpush1.msra.mxu0 0.0
    %361 = vmatprep.subr.mxu0 0.0
    %362 = vmatpush1.msra.mxu0 0.0
    %363 = vmatprep.subr.mxu0 0.0
    %364 = vmatpush1.msra.mxu0 0.0
    %365 = vmatprep.subr.mxu0 0.0
    %366 = vmatpush1.msra.mxu0 0.0
    %367 = vmatprep.subr.mxu0 0.0
    %368 = vmatpush1.msra.mxu0 0.0
    %369 = vmatprep.subr.mxu0 0.0
    %370 = vmatpush1.msra.mxu0 0.0
    %371 = vmatprep.subr.mxu0 0.0
    %372 = vmatpush1.msra.mxu0 0.0
    %373 = vmatprep.subr.mxu0 0.0
    %374 = vmatpush1.msra.mxu0 0.0
    %375 = vmatprep.subr.mxu0 0.0
    %376 = vmatpush1.msra.mxu0 0.0
    %377 = vmatprep.subr.mxu0 0.0
    %378 = vmatpush1.msra.mxu0 0.0
    %379 = vmatprep.subr.mxu0 0.0
    %380 = vmatpush1.msra.mxu0 0.0
    %381 = vmatprep.subr.mxu0 0.0
    %382 = vmatpush1.msra.mxu0 0.0
    %383 = vmatprep.subr.mxu0 0.0
    %384 = vmatpush1.msra.mxu0 0.0
    %385 = vmatprep.subr.mxu0 0.0
    %386 = vmatpush1.msra.mxu0 0.0
    %387 = vmatprep.subr.mxu0 0.0
    %388 = vmatpush1.msra.mxu0 0.0
    %389 = vmatprep.subr.mxu0 0.0
    %390 = vmatpush1.msra.mxu0 0.0
    %391 = vmatprep.mubr.f32.mxu0 0.0
    %392 = vmatmul.mubr.f32.gmra.mrb[0].mxu0 %v43
    %v393 = vpop.f32.mrb[0].mxu0
    %v394 = vadd.f32 %v162, %v393
    %v395 = vpop.f32.mrb[0].mxu0
    %v396 = vadd.f32 %v166, %v395
    %397 = vmatprep.mubr.f32.mxu0 0.0
    %398 = vmatmul.mubr.f32.gmra.mrb[0].mxu0 %v44
    %v399 = vpop.f32.mrb[0].mxu0
    %v400 = vadd.f32 %v162, %v399
    %v401 = vpop.f32.mrb[0].mxu0
    %v402 = vadd.f32 %v166, %v401
    %403 = vdwg.mxu0
    %v404 = vld [vmem:[%s3] sm:$0x3]
    %v405 = vld [vmem:[%s4] sm:$0x3]
    %vm406 = vcmask 293888
    %v407 = vsel %vm406, %v242, 0.0
    %v408 = vadd.f32 %v240, %v407
    %409 = vadd.xlane.f32.xlu0 %v408
    %v410 = vpop.xlane.xlu0 %409
    %v411 = vsel %vm406, %v248, 0.0
    %v412 = vadd.f32 %v246, %v411
    %413 = vadd.xlane.f32.xlu0 %v412
    %v414 = vpop.xlane.xlu0 %413
    %v415 = vrcp.pop 164.0
    %v416 = vmul.f32 %v410, %v415
    %v417 = vmul.f32 %v414, %v415
    %v418 = vsub.f32 %v240, %v416
    %v419 = vsub.f32 %v242, %v416
    %v420 = vsub.f32 %v246, %v417
    %v421 = vsub.f32 %v248, %v417
    %v422 = vmul.f32 %v418, %v418
    %v423 = vmul.f32 %v419, %v419
    %v424 = vmul.f32 %v420, %v420
    %v425 = vmul.f32 %v421, %v421
    %v426 = vsel %vm406, %v423, 0.0
    %v427 = vadd.f32 %v422, %v426
    %428 = vadd.xlane.f32.xlu0 %v427
    %v429 = vpop.xlane.xlu0 %428
    %v430 = vsel %vm406, %v425, 0.0
    %v431 = vadd.f32 %v424, %v430
    %432 = vadd.xlane.f32.xlu0 %v431
    %v433 = vpop.xlane.xlu0 %432
    %v434 = vmul.f32 %v429, %v415
    %v435 = vmul.f32 %v433, %v415
    %v436 = vadd.f32 %v434, 1e-05
    %v437 = vadd.f32 %v435, 1e-05
    %v438 = vrsqrt.pop %v436
    %v439 = vrsqrt.pop %v437
    %v440 = vmul.f32 %v418, %v438
    %v441 = vmul.f32 %v419, %v438
    %v442 = vmul.f32 %v420, %v439
    %v443 = vmul.f32 %v421, %v439
    %v445 = vlaneseq
    %v446 = vshrl.u32 %v445, 7
    %v447 = vsub.s32 0, %v446
    %v448 = vrot.slane %v404, %v447
    %v449 = vlaneseq
    %v450 = vshrl.u32 %v449, 7
    %v451 = vsub.s32 1, %v450
    %v452 = vrot.slane %v404, %v451
    %v455 = vmul.f32 %v440, %v448
    %v456 = vmul.f32 %v441, %v452
    %v457 = vmul.f32 %v442, %v448
    %v458 = vmul.f32 %v443, %v452
    %v460 = vlaneseq
    %v461 = vshrl.u32 %v460, 7
    %v462 = vsub.s32 0, %v461
    %v463 = vrot.slane %v405, %v462
    %v464 = vlaneseq
    %v465 = vshrl.u32 %v464, 7
    %v466 = vsub.s32 1, %v465
    %v467 = vrot.slane %v405, %v466
    %v470 = vadd.f32 %v455, %v463
    %v471 = vadd.f32 %v456, %v467
    %v472 = vadd.f32 %v457, %v463
    %v473 = vadd.f32 %v458, %v467
    %v474 = vmax.f32 %v470, 0.0
    %v475 = vmax.f32 %v471, 0.0
    %v476 = vmax.f32 %v472, 0.0
    %v477 = vmax.f32 %v473, 0.0
    %v478 = vld [vmem:[%s3 + $0x2] sm:$0x3]
    %v479 = vld [vmem:[%s4 + $0x2] sm:$0x3]
    %v480 = vsel %vm406, %v319, 0.0
    %v481 = vadd.f32 %v317, %v480
    %482 = vadd.xlane.f32.xlu0 %v481
    %v483 = vpop.xlane.xlu0 %482
    %v484 = vsel %vm406, %v325, 0.0
    %v485 = vadd.f32 %v323, %v484
    %486 = vadd.xlane.f32.xlu0 %v485
    %v487 = vpop.xlane.xlu0 %486
    %v488 = vmul.f32 %v483, %v415
    %v489 = vmul.f32 %v487, %v415
    %v490 = vsub.f32 %v317, %v488
    %v491 = vsub.f32 %v319, %v488
    %v492 = vsub.f32 %v323, %v489
    %v493 = vsub.f32 %v325, %v489
    %v494 = vmul.f32 %v490, %v490
    %v495 = vmul.f32 %v491, %v491
    %v496 = vmul.f32 %v492, %v492
    %v497 = vmul.f32 %v493, %v493
    %v498 = vsel %vm406, %v495, 0.0
    %v499 = vadd.f32 %v494, %v498
    %500 = vadd.xlane.f32.xlu0 %v499
    %v501 = vpop.xlane.xlu0 %500
    %v502 = vsel %vm406, %v497, 0.0
    %v503 = vadd.f32 %v496, %v502
    %504 = vadd.xlane.f32.xlu0 %v503
    %v505 = vpop.xlane.xlu0 %504
    %v506 = vmul.f32 %v501, %v415
    %v507 = vmul.f32 %v505, %v415
    %v508 = vadd.f32 %v506, 1e-05
    %v509 = vadd.f32 %v507, 1e-05
    %v510 = vrsqrt.pop %v508
    %v511 = vrsqrt.pop %v509
    %v512 = vmul.f32 %v490, %v510
    %v513 = vmul.f32 %v491, %v510
    %v514 = vmul.f32 %v492, %v511
    %v515 = vmul.f32 %v493, %v511
    %v517 = vlaneseq
    %v518 = vshrl.u32 %v517, 7
    %v519 = vsub.s32 0, %v518
    %v520 = vrot.slane %v478, %v519
    %v521 = vlaneseq
    %v522 = vshrl.u32 %v521, 7
    %v523 = vsub.s32 1, %v522
    %v524 = vrot.slane %v478, %v523
    %v527 = vmul.f32 %v512, %v520
    %v528 = vmul.f32 %v513, %v524
    %v529 = vmul.f32 %v514, %v520
    %v530 = vmul.f32 %v515, %v524
    %v532 = vlaneseq
    %v533 = vshrl.u32 %v532, 7
    %v534 = vsub.s32 0, %v533
    %v535 = vrot.slane %v479, %v534
    %v536 = vlaneseq
    %v537 = vshrl.u32 %v536, 7
    %v538 = vsub.s32 1, %v537
    %v539 = vrot.slane %v479, %v538
    %v542 = vadd.f32 %v527, %v535
    %v543 = vadd.f32 %v528, %v539
    %v544 = vadd.f32 %v529, %v535
    %v545 = vadd.f32 %v530, %v539
    %v546 = vmax.f32 %v542, 0.0
    %v547 = vmax.f32 %v543, 0.0
    %v548 = vmax.f32 %v544, 0.0
    %v549 = vmax.f32 %v545, 0.0
    %v550 = vld [vmem:[%s3 + $0x4] sm:$0x3]
    %v551 = vld [vmem:[%s4 + $0x4] sm:$0x3]
    %v552 = vsel %vm406, %v396, 0.0
    %v553 = vadd.f32 %v394, %v552
    %554 = vadd.xlane.f32.xlu0 %v553
    %v555 = vpop.xlane.xlu0 %554
    %v556 = vsel %vm406, %v402, 0.0
    %v557 = vadd.f32 %v400, %v556
    %558 = vadd.xlane.f32.xlu0 %v557
    %v559 = vpop.xlane.xlu0 %558
    %v560 = vmul.f32 %v555, %v415
    %v561 = vmul.f32 %v559, %v415
    %v562 = vsub.f32 %v394, %v560
    %v563 = vsub.f32 %v396, %v560
    %v564 = vsub.f32 %v400, %v561
    %v565 = vsub.f32 %v402, %v561
    %v566 = vmul.f32 %v562, %v562
    %v567 = vmul.f32 %v563, %v563
    %v568 = vmul.f32 %v564, %v564
    %v569 = vmul.f32 %v565, %v565
    %v570 = vsel %vm406, %v567, 0.0
    %v571 = vadd.f32 %v566, %v570
    %572 = vadd.xlane.f32.xlu0 %v571
    %v573 = vpop.xlane.xlu0 %572
    %v574 = vsel %vm406, %v569, 0.0
    %v575 = vadd.f32 %v568, %v574
    %576 = vadd.xlane.f32.xlu0 %v575
    %v577 = vpop.xlane.xlu0 %576
    %v578 = vmul.f32 %v573, %v415
    %v579 = vmul.f32 %v577, %v415
    %v580 = vadd.f32 %v578, 1e-05
    %v581 = vadd.f32 %v579, 1e-05
    %v582 = vrsqrt.pop %v580
    %v583 = vrsqrt.pop %v581
    %v584 = vmul.f32 %v562, %v582
    %v585 = vmul.f32 %v563, %v582
    %v586 = vmul.f32 %v564, %v583
    %v587 = vmul.f32 %v565, %v583
    %v589 = vlaneseq
    %v590 = vshrl.u32 %v589, 7
    %v591 = vsub.s32 0, %v590
    %v592 = vrot.slane %v550, %v591
    %v593 = vlaneseq
    %v594 = vshrl.u32 %v593, 7
    %v595 = vsub.s32 1, %v594
    %v596 = vrot.slane %v550, %v595
    %v599 = vmul.f32 %v584, %v592
    %v600 = vmul.f32 %v585, %v596
    %v601 = vmul.f32 %v586, %v592
    %v602 = vmul.f32 %v587, %v596
    %v604 = vlaneseq
    %v605 = vshrl.u32 %v604, 7
    %v606 = vsub.s32 0, %v605
    %v607 = vrot.slane %v551, %v606
    %v608 = vlaneseq
    %v609 = vshrl.u32 %v608, 7
    %v610 = vsub.s32 1, %v609
    %v611 = vrot.slane %v551, %v610
    %v614 = vadd.f32 %v599, %v607
    %v615 = vadd.f32 %v600, %v611
    %v616 = vadd.f32 %v601, %v607
    %v617 = vadd.f32 %v602, %v611
    %v618 = vmax.f32 %v614, 0.0
    %v619 = vmax.f32 %v615, 0.0
    %v620 = vmax.f32 %v616, 0.0
    %v621 = vmax.f32 %v617, 0.0
    %v622 = vld [vmem:[%s5] sm:$0xff]
    %v623 = vld [vmem:[%s5 + $0x8] sm:$0xff]
    %v624 = vld [vmem:[%s5 + $0x10] sm:$0xff]
    %v625 = vld [vmem:[%s5 + $0x18] sm:$0xff]
    %v626 = vld [vmem:[%s5 + $0x20] sm:$0xff]
    %v627 = vld [vmem:[%s5 + $0x28] sm:$0xff]
    %v628 = vld [vmem:[%s5 + $0x30] sm:$0xff]
    %v629 = vld [vmem:[%s5 + $0x38] sm:$0xff]
    %v630 = vld [vmem:[%s5 + $0x40] sm:$0xff]
    %v631 = vld [vmem:[%s5 + $0x48] sm:$0xff]
    %v632 = vld [vmem:[%s5 + $0x50] sm:$0xff]
    %v633 = vld [vmem:[%s5 + $0x58] sm:$0xff]
    %v634 = vld [vmem:[%s5 + $0x60] sm:$0xff]
    %v635 = vld [vmem:[%s5 + $0x68] sm:$0xff]
    %v636 = vld [vmem:[%s5 + $0x70] sm:$0xff]
    %v637 = vld [vmem:[%s5 + $0x78] sm:$0xff]
    %v638 = vld [vmem:[%s5 + $0x80] sm:$0xff]
    %v639 = vld [vmem:[%s5 + $0x88] sm:$0xff]
    %v640 = vld [vmem:[%s5 + $0x90] sm:$0xff]
    %v641 = vld [vmem:[%s5 + $0x98] sm:$0xff]
    %v642 = vld [vmem:[%s5 + $0xa0] sm:$0xf]
    %v643 = vld [vmem:[%s6] sm:$0x1]
    %v645 = vlaneseq
    %v646 = vshrl.u32 %v645, 7
    %v647 = vsub.s32 0, %v646
    %v648 = vrot.slane %v643, %v647
    %v651 = vsel %vm406, %v475, 0
    %v654 = vsel %vm406, %v477, 0
    %vm656 = vcmask 1043456
    %v658 = vsel %vm656, %v642, 0
    %660 = vmatprep.subr.mxu0 0.0
    %661 = vmatpush1.msra.mxu0 %v622
    %662 = vmatprep.subr.mxu0 0.0
    %663 = vmatpush1.msra.mxu0 %v623
    %664 = vmatprep.subr.mxu0 0.0
    %665 = vmatpush1.msra.mxu0 %v624
    %666 = vmatprep.subr.mxu0 0.0
    %667 = vmatpush1.msra.mxu0 %v625
    %668 = vmatprep.subr.mxu0 0.0
    %669 = vmatpush1.msra.mxu0 %v626
    %670 = vmatprep.subr.mxu0 0.0
    %671 = vmatpush1.msra.mxu0 %v627
    %672 = vmatprep.subr.mxu0 0.0
    %673 = vmatpush1.msra.mxu0 %v628
    %674 = vmatprep.subr.mxu0 0.0
    %675 = vmatpush1.msra.mxu0 %v629
    %676 = vmatprep.subr.mxu0 0.0
    %677 = vmatpush1.msra.mxu0 %v630
    %678 = vmatprep.subr.mxu0 0.0
    %679 = vmatpush1.msra.mxu0 %v631
    %680 = vmatprep.subr.mxu0 0.0
    %681 = vmatpush1.msra.mxu0 %v632
    %682 = vmatprep.subr.mxu0 0.0
    %683 = vmatpush1.msra.mxu0 %v633
    %684 = vmatprep.subr.mxu0 0.0
    %685 = vmatpush1.msra.mxu0 %v634
    %686 = vmatprep.subr.mxu0 0.0
    %687 = vmatpush1.msra.mxu0 %v635
    %688 = vmatprep.subr.mxu0 0.0
    %689 = vmatpush1.msra.mxu0 %v636
    %690 = vmatprep.subr.mxu0 0.0
    %691 = vmatpush1.msra.mxu0 %v637
    %692 = vmatprep.subr.mxu0 0.0
    %693 = vmatpush1.msra.mxu0 %v638
    %694 = vmatprep.subr.mxu0 0.0
    %695 = vmatpush1.msra.mxu0 %v639
    %696 = vmatprep.subr.mxu0 0.0
    %697 = vmatpush1.msra.mxu0 %v640
    %698 = vmatprep.subr.mxu0 0.0
    %699 = vmatpush1.msra.mxu0 %v641
    %700 = vmatprep.subr.mxu0 0.0
    %701 = vmatpush1.msra.mxu0 %v658
    %702 = vmatprep.subr.mxu0 0.0
    %703 = vmatpush1.msra.mxu0 0.0
    %704 = vmatprep.subr.mxu0 0.0
    %705 = vmatpush1.msra.mxu0 0.0
    %706 = vmatprep.subr.mxu0 0.0
    %707 = vmatpush1.msra.mxu0 0.0
    %708 = vmatprep.subr.mxu0 0.0
    %709 = vmatpush1.msra.mxu0 0.0
    %710 = vmatprep.subr.mxu0 0.0
    %711 = vmatpush1.msra.mxu0 0.0
    %712 = vmatprep.subr.mxu0 0.0
    %713 = vmatpush1.msra.mxu0 0.0
    %714 = vmatprep.subr.mxu0 0.0
    %715 = vmatpush1.msra.mxu0 0.0
    %716 = vmatprep.subr.mxu0 0.0
    %717 = vmatpush1.msra.mxu0 0.0
    %718 = vmatprep.subr.mxu0 0.0
    %719 = vmatpush1.msra.mxu0 0.0
    %720 = vmatprep.subr.mxu0 0.0
    %721 = vmatpush1.msra.mxu0 0.0
    %722 = vmatprep.subr.mxu0 0.0
    %723 = vmatpush1.msra.mxu0 0.0
    %724 = vmatprep.mubr.f32.mxu0 %v651
    %725 = vmatmul.mubr.f32.gmra.mrb[0].mxu0 %v474
    %v726 = vpop.f32.mrb[0].mxu0
    %v727 = vadd.f32 %v648, %v726
    %v728 = vpop.f32.mrb[0].mxu0
    %729 = vmatprep.mubr.f32.mxu0 %v654
    %730 = vmatmul.mubr.f32.gmra.mrb[0].mxu0 %v476
    %v731 = vpop.f32.mrb[0].mxu0
    %v732 = vadd.f32 %v648, %v731
    %v733 = vpop.f32.mrb[0].mxu0
    %734 = vdwg.mxu0
    %v735 = vld [vmem:[%s7] sm:$0xff]
    %v736 = vld [vmem:[%s7 + $0x8] sm:$0xff]
    %v737 = vld [vmem:[%s7 + $0x10] sm:$0xff]
    %v738 = vld [vmem:[%s7 + $0x18] sm:$0xff]
    %v739 = vld [vmem:[%s7 + $0x20] sm:$0xff]
    %v740 = vld [vmem:[%s7 + $0x28] sm:$0xff]
    %v741 = vld [vmem:[%s7 + $0x30] sm:$0xff]
    %v742 = vld [vmem:[%s7 + $0x38] sm:$0xff]
    %v743 = vld [vmem:[%s7 + $0x40] sm:$0xff]
    %v744 = vld [vmem:[%s7 + $0x48] sm:$0xff]
    %v745 = vld [vmem:[%s7 + $0x50] sm:$0xff]
    %v746 = vld [vmem:[%s7 + $0x58] sm:$0xff]
    %v747 = vld [vmem:[%s7 + $0x60] sm:$0xff]
    %v748 = vld [vmem:[%s7 + $0x68] sm:$0xff]
    %v749 = vld [vmem:[%s7 + $0x70] sm:$0xff]
    %v750 = vld [vmem:[%s7 + $0x78] sm:$0xff]
    %v751 = vld [vmem:[%s7 + $0x80] sm:$0xff]
    %v752 = vld [vmem:[%s7 + $0x88] sm:$0xff]
    %v753 = vld [vmem:[%s7 + $0x90] sm:$0xff]
    %v754 = vld [vmem:[%s7 + $0x98] sm:$0xff]
    %v755 = vld [vmem:[%s7 + $0xa0] sm:$0xf]
    %v756 = vld [vmem:[%s8] sm:$0x1]
    %v758 = vlaneseq
    %v759 = vshrl.u32 %v758, 7
    %v760 = vsub.s32 0, %v759
    %v761 = vrot.slane %v756, %v760
    %v764 = vsel %vm406, %v547, 0
    %v767 = vsel %vm406, %v549, 0
    %v770 = vsel %vm656, %v755, 0
    %772 = vmatprep.subr.mxu0 0.0
    %773 = vmatpush1.msra.mxu0 %v735
    %774 = vmatprep.subr.mxu0 0.0
    %775 = vmatpush1.msra.mxu0 %v736
    %776 = vmatprep.subr.mxu0 0.0
    %777 = vmatpush1.msra.mxu0 %v737
    %778 = vmatprep.subr.mxu0 0.0
    %779 = vmatpush1.msra.mxu0 %v738
    %780 = vmatprep.subr.mxu0 0.0
    %781 = vmatpush1.msra.mxu0 %v739
    %782 = vmatprep.subr.mxu0 0.0
    %783 = vmatpush1.msra.mxu0 %v740
    %784 = vmatprep.subr.mxu0 0.0
    %785 = vmatpush1.msra.mxu0 %v741
    %786 = vmatprep.subr.mxu0 0.0
    %787 = vmatpush1.msra.mxu0 %v742
    %788 = vmatprep.subr.mxu0 0.0
    %789 = vmatpush1.msra.mxu0 %v743
    %790 = vmatprep.subr.mxu0 0.0
    %791 = vmatpush1.msra.mxu0 %v744
    %792 = vmatprep.subr.mxu0 0.0
    %793 = vmatpush1.msra.mxu0 %v745
    %794 = vmatprep.subr.mxu0 0.0
    %795 = vmatpush1.msra.mxu0 %v746
    %796 = vmatprep.subr.mxu0 0.0
    %797 = vmatpush1.msra.mxu0 %v747
    %798 = vmatprep.subr.mxu0 0.0
    %799 = vmatpush1.msra.mxu0 %v748
    %800 = vmatprep.subr.mxu0 0.0
    %801 = vmatpush1.msra.mxu0 %v749
    %802 = vmatprep.subr.mxu0 0.0
    %803 = vmatpush1.msra.mxu0 %v750
    %804 = vmatprep.subr.mxu0 0.0
    %805 = vmatpush1.msra.mxu0 %v751
    %806 = vmatprep.subr.mxu0 0.0
    %807 = vmatpush1.msra.mxu0 %v752
    %808 = vmatprep.subr.mxu0 0.0
    %809 = vmatpush1.msra.mxu0 %v753
    %810 = vmatprep.subr.mxu0 0.0
    %811 = vmatpush1.msra.mxu0 %v754
    %812 = vmatprep.subr.mxu0 0.0
    %813 = vmatpush1.msra.mxu0 %v770
    %814 = vmatprep.subr.mxu0 0.0
    %815 = vmatpush1.msra.mxu0 0.0
    %816 = vmatprep.subr.mxu0 0.0
    %817 = vmatpush1.msra.mxu0 0.0
    %818 = vmatprep.subr.mxu0 0.0
    %819 = vmatpush1.msra.mxu0 0.0
    %820 = vmatprep.subr.mxu0 0.0
    %821 = vmatpush1.msra.mxu0 0.0
    %822 = vmatprep.subr.mxu0 0.0
    %823 = vmatpush1.msra.mxu0 0.0
    %824 = vmatprep.subr.mxu0 0.0
    %825 = vmatpush1.msra.mxu0 0.0
    %826 = vmatprep.subr.mxu0 0.0
    %827 = vmatpush1.msra.mxu0 0.0
    %828 = vmatprep.subr.mxu0 0.0
    %829 = vmatpush1.msra.mxu0 0.0
    %830 = vmatprep.subr.mxu0 0.0
    %831 = vmatpush1.msra.mxu0 0.0
    %832 = vmatprep.subr.mxu0 0.0
    %833 = vmatpush1.msra.mxu0 0.0
    %834 = vmatprep.subr.mxu0 0.0
    %835 = vmatpush1.msra.mxu0 0.0
    %836 = vmatprep.mubr.f32.mxu0 %v764
    %837 = vmatmul.mubr.f32.gmra.mrb[0].mxu0 %v546
    %v838 = vpop.f32.mrb[0].mxu0
    %v839 = vadd.f32 %v761, %v838
    %v840 = vpop.f32.mrb[0].mxu0
    %841 = vmatprep.mubr.f32.mxu0 %v767
    %842 = vmatmul.mubr.f32.gmra.mrb[0].mxu0 %v548
    %v843 = vpop.f32.mrb[0].mxu0
    %v844 = vadd.f32 %v761, %v843
    %v845 = vpop.f32.mrb[0].mxu0
    %846 = vdwg.mxu0
    %v847 = vld [vmem:[%s9] sm:$0xff]
    %v848 = vld [vmem:[%s9 + $0x8] sm:$0xff]
    %v849 = vld [vmem:[%s9 + $0x10] sm:$0xff]
    %v850 = vld [vmem:[%s9 + $0x18] sm:$0xff]
    %v851 = vld [vmem:[%s9 + $0x20] sm:$0xff]
    %v852 = vld [vmem:[%s9 + $0x28] sm:$0xff]
    %v853 = vld [vmem:[%s9 + $0x30] sm:$0xff]
    %v854 = vld [vmem:[%s9 + $0x38] sm:$0xff]
    %v855 = vld [vmem:[%s9 + $0x40] sm:$0xff]
    %v856 = vld [vmem:[%s9 + $0x48] sm:$0xff]
    %v857 = vld [vmem:[%s9 + $0x50] sm:$0xff]
    %v858 = vld [vmem:[%s9 + $0x58] sm:$0xff]
    %v859 = vld [vmem:[%s9 + $0x60] sm:$0xff]
    %v860 = vld [vmem:[%s9 + $0x68] sm:$0xff]
    %v861 = vld [vmem:[%s9 + $0x70] sm:$0xff]
    %v862 = vld [vmem:[%s9 + $0x78] sm:$0xff]
    %v863 = vld [vmem:[%s9 + $0x80] sm:$0xff]
    %v864 = vld [vmem:[%s9 + $0x88] sm:$0xff]
    %v865 = vld [vmem:[%s9 + $0x90] sm:$0xff]
    %v866 = vld [vmem:[%s9 + $0x98] sm:$0xff]
    %v867 = vld [vmem:[%s9 + $0xa0] sm:$0xf]
    %v869 = vsel %vm406, %v619, 0
    %v872 = vsel %vm406, %v621, 0
    %v875 = vsel %vm656, %v867, 0
    %877 = vmatprep.subr.mxu0 0.0
    %878 = vmatpush1.msra.mxu0 %v847
    %879 = vmatprep.subr.mxu0 0.0
    %880 = vmatpush1.msra.mxu0 %v848
    %881 = vmatprep.subr.mxu0 0.0
    %882 = vmatpush1.msra.mxu0 %v849
    %883 = vmatprep.subr.mxu0 0.0
    %884 = vmatpush1.msra.mxu0 %v850
    %885 = vmatprep.subr.mxu0 0.0
    %886 = vmatpush1.msra.mxu0 %v851
    %887 = vmatprep.subr.mxu0 0.0
    %888 = vmatpush1.msra.mxu0 %v852
    %889 = vmatprep.subr.mxu0 0.0
    %890 = vmatpush1.msra.mxu0 %v853
    %891 = vmatprep.subr.mxu0 0.0
    %892 = vmatpush1.msra.mxu0 %v854
    %893 = vmatprep.subr.mxu0 0.0
    %894 = vmatpush1.msra.mxu0 %v855
    %895 = vmatprep.subr.mxu0 0.0
    %896 = vmatpush1.msra.mxu0 %v856
    %897 = vmatprep.subr.mxu0 0.0
    %898 = vmatpush1.msra.mxu0 %v857
    %899 = vmatprep.subr.mxu0 0.0
    %900 = vmatpush1.msra.mxu0 %v858
    %901 = vmatprep.subr.mxu0 0.0
    %902 = vmatpush1.msra.mxu0 %v859
    %903 = vmatprep.subr.mxu0 0.0
    %904 = vmatpush1.msra.mxu0 %v860
    %905 = vmatprep.subr.mxu0 0.0
    %906 = vmatpush1.msra.mxu0 %v861
    %907 = vmatprep.subr.mxu0 0.0
    %908 = vmatpush1.msra.mxu0 %v862
    %909 = vmatprep.subr.mxu0 0.0
    %910 = vmatpush1.msra.mxu0 %v863
    %911 = vmatprep.subr.mxu0 0.0
    %912 = vmatpush1.msra.mxu0 %v864
    %913 = vmatprep.subr.mxu0 0.0
    %914 = vmatpush1.msra.mxu0 %v865
    %915 = vmatprep.subr.mxu0 0.0
    %916 = vmatpush1.msra.mxu0 %v866
    %917 = vmatprep.subr.mxu0 0.0
    %918 = vmatpush1.msra.mxu0 %v875
    %919 = vmatprep.subr.mxu0 0.0
    %920 = vmatpush1.msra.mxu0 0.0
    %921 = vmatprep.subr.mxu0 0.0
    %922 = vmatpush1.msra.mxu0 0.0
    %923 = vmatprep.subr.mxu0 0.0
    %924 = vmatpush1.msra.mxu0 0.0
    %925 = vmatprep.subr.mxu0 0.0
    %926 = vmatpush1.msra.mxu0 0.0
    %927 = vmatprep.subr.mxu0 0.0
    %928 = vmatpush1.msra.mxu0 0.0
    %929 = vmatprep.subr.mxu0 0.0
    %930 = vmatpush1.msra.mxu0 0.0
    %931 = vmatprep.subr.mxu0 0.0
    %932 = vmatpush1.msra.mxu0 0.0
    %933 = vmatprep.subr.mxu0 0.0
    %934 = vmatpush1.msra.mxu0 0.0
    %935 = vmatprep.subr.mxu0 0.0
    %936 = vmatpush1.msra.mxu0 0.0
    %937 = vmatprep.subr.mxu0 0.0
    %938 = vmatpush1.msra.mxu0 0.0
    %939 = vmatprep.subr.mxu0 0.0
    %940 = vmatpush1.msra.mxu0 0.0
    %941 = vmatprep.mubr.f32.mxu0 %v869
    %942 = vmatmul.mubr.f32.gmra.mrb[0].mxu0 %v618
    %v943 = vpop.f32.mrb[0].mxu0
    %v944 = vadd.f32 0.0, %v943
    %v945 = vpop.f32.mrb[0].mxu0
    %946 = vmatprep.mubr.f32.mxu0 %v872
    %947 = vmatmul.mubr.f32.gmra.mrb[0].mxu0 %v620
    %v948 = vpop.f32.mrb[0].mxu0
    %v949 = vadd.f32 0.0, %v948
    %v950 = vpop.f32.mrb[0].mxu0
    %951 = vdwg.mxu0
    %v952 = vld [vmem:[%s10] sm:$0xff]
    %v953 = vld [vmem:[%s10 + $0x8] sm:$0xff]
    %v954 = vsub.f32 %v952, 1.0
    %v955 = vsub.f32 %v953, 1.0
    %v956 = vmul.f32 %v954, 10000000.0
    %v957 = vmul.f32 %v955, 10000000.0
    %v958 = vadd.f32 %v727, %v956
    %v959 = vadd.f32 %v732, %v957
    %vm960 = vcmask 97280
    %v961 = vsel %vm960, %v958, -inf
    %962 = vmax.xlane.f32.xlu0 %v961
    %v963 = vpop.xlane.xlu0 %962
    %v964 = vsel %vm960, %v959, -inf
    %965 = vmax.xlane.f32.xlu0 %v964
    %v966 = vpop.xlane.xlu0 %965
    %v967 = vsub.f32 %v958, %v963
    %v968 = vsub.f32 %v959, %v966
    %v969 = vmul.f32 %v967, 1.442695
    %v970 = vpow.pop %v969
    %v971 = vmul.f32 %v968, 1.442695
    %v972 = vpow.pop %v971
    %v973 = vsel %vm960, %v970, 0.0
    %974 = vadd.xlane.f32.xlu0 %v973
    %v975 = vpop.xlane.xlu0 %974
    %v976 = vsel %vm960, %v972, 0.0
    %977 = vadd.xlane.f32.xlu0 %v976
    %v978 = vpop.xlane.xlu0 %977
    %v979 = vrcp.pop %v975
    %v980 = vmul.f32 %v970, %v979
    %v981 = vrcp.pop %v978
    %v982 = vmul.f32 %v972, %v981
    %983 = vst.msk [vmem:[#allocation2] sm:$0xff] %vm960, %v980
    %984 = vst.msk [vmem:[#allocation2 + $0x8] sm:$0xff] %vm960, %v982
    %vm985 = vcmask 64512
    %v986 = vsel %vm985, %v839, -inf
    %987 = vmax.xlane.f32.xlu0 %v986
    %v988 = vpop.xlane.xlu0 %987
    %v989 = vsel %vm985, %v844, -inf
    %990 = vmax.xlane.f32.xlu0 %v989
    %v991 = vpop.xlane.xlu0 %990
    %v992 = vsub.f32 %v839, %v988
    %v993 = vsub.f32 %v844, %v991
    %v994 = vmul.f32 %v992, 1.442695
    %v995 = vpow.pop %v994
    %v996 = vmul.f32 %v993, 1.442695
    %v997 = vpow.pop %v996
    %v998 = vsel %vm985, %v995, 0.0
    %999 = vadd.xlane.f32.xlu0 %v998
    %v1000 = vpop.xlane.xlu0 %999
    %v1001 = vsel %vm985, %v997, 0.0
    %1002 = vadd.xlane.f32.xlu0 %v1001
    %v1003 = vpop.xlane.xlu0 %1002
    %v1004 = vrcp.pop %v1000
    %v1005 = vmul.f32 %v995, %v1004
    %v1006 = vrcp.pop %v1003
    %v1007 = vmul.f32 %v997, %v1006
    %1008 = vst.msk [vmem:[#allocation4] sm:$0xff] %vm985, %v1005
    %1009 = vst.msk [vmem:[#allocation4 + $0x8] sm:$0xff] %vm985, %v1007
    %vm1010 = vcmask 7168
    %1011 = vst.msk [vmem:[%s13] sm:$0xff] %vm1010, %v944
    %1012 = vst.msk [vmem:[%s13 + $0x8] sm:$0xff] %vm1010, %v949
    // Predicated region
    $region46: #{forward.19} parent=1 // pred_check
      _
    $region47: #{forward.19} parent=1 // pred_check_branch
      %1014 = sbr.rel (0) target = $region49
    $region48: #{forward.19} parent=1 // pred_region
      %s1016 = ssub.s32 256, 256
      %1017 = vsyncadd [#allocation3], %s1016
      %s1018 = sshll.u32 [#allocation2], 4
      %s1019 = int_to_ptr.vmem [resolvable:$true] %s1018
      %1024 = dma.vmem_to_hbm [thread:$0]  %s1019, 256, %s11, [#allocation3], 128, 128, 8
    $region49: #{forward.19} parent=1 // pred_fallthru
      _
    // Predicated region
    $region50: #{forward.19} parent=1 // pred_check
      _
    $region51: #{forward.19} parent=1 // pred_check_branch
      %1026 = sbr.rel (0) target = $region53
    $region52: #{forward.19} parent=1 // pred_region
      %s1028 = ssub.s32 256, 256
      %1029 = vsyncadd [#allocation5], %s1028
      %s1030 = sshll.u32 [#allocation4], 4
      %s1031 = int_to_ptr.vmem [resolvable:$true] %s1030
      %1036 = dma.vmem_to_hbm [thread:$0]  %s1031, 256, %s12, [#allocation5], 128, 128, 8
    $region53: #{forward.19} parent=1 // pred_fallthru
      _
    // Predicated region
    $region54: #{forward.19} parent=1 // pred_check
      _
    $region55: #{forward.19} parent=1 // pred_check_branch
      %1038 = sbr.rel (0) target = $region57
    $region56: #{forward.19} parent=1 // pred_region
      _
    $region57: #{forward.19} parent=1 // pred_fallthru
      _
    // Predicated region
    $region58: #{forward.19} parent=1 // pred_check
      _
    $region59: #{forward.19} parent=1 // pred_check_branch
      %1040 = sbr.rel (0) target = $region61
    $region60: #{forward.19} parent=1 // pred_region
      %1041 = dma.done [#allocation3], 256
    $region61: #{forward.19} parent=1 // pred_fallthru
      _
    // Predicated region
    $region62: #{forward.19} parent=1 // pred_check
      _
    $region63: #{forward.19} parent=1 // pred_check_branch
      %1043 = sbr.rel (0) target = $region65
    $region64: #{forward.19} parent=1 // pred_region
      %1044 = dma.done [#allocation5], 256
    $region65: #{forward.19} parent=1 // pred_fallthru
      _
    // Predicated region
    $region66: #{forward.19} parent=1 // pred_check
      _
    $region67: #{forward.19} parent=1 // pred_check_branch
      %1046 = sbr.rel (0) target = $region69
    $region68: #{forward.19} parent=1 // pred_region
      _
    $region69: #{forward.19} parent=1 // pred_fallthru
      _
    %1047 = vsyncpa [#allocation3], 1
    %1048 = vsyncpa [#allocation5], 1

</llo_original>
